<compile_context>
chip_gen: v7x
topology: tpu7x:2x2x1
jax: 0.10.0
libtpu: 0.0.40
codegen_flags: <defaults>
</compile_context>

<pallas_src>
import functools

import jax
import jax.numpy as jnp
from jax import lax
from jax.experimental import pallas as pl
from jax.experimental.pallas import tpu as pltpu


# ----------------------------------------------------------------------------
# Helpers
# ----------------------------------------------------------------------------
def _largest_divisor_leq(n, cap):
    for d in range(min(n, cap), 0, -1):
        if n % d == 0:
            return d
    return 1


# ----------------------------------------------------------------------------
# Pallas kernel: direct 4x4 / stride-2 / pad-1 convolution
# ----------------------------------------------------------------------------
def _conv_tap_kernel(xr_ref, wr_ref, o_ref, *stat_refs, th, compute_stats,
                     apply_sigmoid):
    """One image, one block of `th` output rows.

    xr_ref : (1, Ho+1, Wo, 8*C_in) width-window + height-phase folded input
    wr_ref : (2, 8*C_in, C_out)    weight matrix per height tap (dh in {0,1})
    o_ref  : (1, th, Wo, C_out)    conv output block (pre-BN for enc1-4)
    stats  : two (1, 1, 1, C_out)  per-block partial sum / sum-of-squares
    """
    m = pl.program_id(1)
    row0 = m * th
    c_out = o_ref.shape[3]

    def compute_row(oh):
        # Two height taps, each a (Wo, 8C) x (8C, C_out) MXU matmul with a
        # float32 accumulator.  First dot initializes acc (no zero-fill+add).
        acc = jnp.dot(xr_ref[0, oh, :, :], wr_ref[0, :, :],
                      preferred_element_type=jnp.float32)
        acc = acc + jnp.dot(xr_ref[0, oh + 1, :, :], wr_ref[1, :, :],
                            preferred_element_type=jnp.float32)
        return acc                                      # (Wo, C_out) f32

    if compute_stats:
        ssum_ref, ssq_ref = stat_refs

        def body(r, carry):
            s, ss = carry
            acc = compute_row(row0 + r)
            o_ref[0, r, :, :] = acc.astype(o_ref.dtype)
            s = s + jnp.sum(acc, axis=0, keepdims=True)
            ss = ss + jnp.sum(acc * acc, axis=0, keepdims=True)
            return s, ss

        zero = jnp.zeros((1, c_out), jnp.float32)
        s, ss = lax.fori_loop(0, th, body, (zero, zero), unroll=th <= 8)
        ssum_ref[0, 0, :, :] = s
        ssq_ref[0, 0, :, :] = ss
    else:

        def body(r, carry):
            acc = compute_row(row0 + r)
            if apply_sigmoid:
                # exact sigmoid (keeps outputs strictly inside [0, 1])
                acc = 1.0 / (1.0 + jnp.exp(-acc))
            o_ref[0, r, :, :] = acc.astype(o_ref.dtype)
            return carry

        lax.fori_loop(0, th, body, 0, unroll=th <= 8)


def pallas_conv4x4s2(xr, wr, *, compute_stats, apply_sigmoid=False,
                     out_dtype=jnp.bfloat16, max_rows_per_step=16):
    """Direct conv over the folded input.

    Returns y (N, Ho, Wo, C_out) and, if compute_stats, per-block partial
    per-channel sum / sum-of-squares of the f32 accumulator.
    """
    N, Hq, Wo, K8 = xr.shape
    _, _, C_out = wr.shape
    Ho = Hq - 1
    th = _largest_divisor_leq(Ho, max_rows_per_step)
    mb = Ho // th
    grid = (N, mb)

    in_specs = [
        # full folded image per step; index depends only on n -> DMA'd once
        # per image (Pallas elides the copy while the block index is constant)
        pl.BlockSpec((1, Hq, Wo, K8), lambda n, m: (n, 0, 0, 0)),
        pl.BlockSpec((2, K8, C_out), lambda n, m: (0, 0, 0)),
    ]
    y_spec = pl.BlockSpec((1, th, Wo, C_out), lambda n, m: (n, m, 0, 0))

    kernel = functools.partial(_conv_tap_kernel, th=th,
                               compute_stats=compute_stats,
                               apply_sigmoid=apply_sigmoid)
    cparams = pltpu.CompilerParams(
        # no revisited outputs -> both grid axes independent (v7x megacore
        # gets the M axis even when C_out / batch are small)
        dimension_semantics=("parallel", "parallel"),
        vmem_limit_bytes=64 * 1024 * 1024)

    if compute_stats:
        out_shape = (
            jax.ShapeDtypeStruct((N, Ho, Wo, C_out), out_dtype),
            jax.ShapeDtypeStruct((N, mb, 1, C_out), jnp.float32),
            jax.ShapeDtypeStruct((N, mb, 1, C_out), jnp.float32),
        )
        out_specs = (
            y_spec,
            pl.BlockSpec((1, 1, 1, C_out), lambda n, m: (n, m, 0, 0)),
            pl.BlockSpec((1, 1, 1, C_out), lambda n, m: (n, m, 0, 0)),
        )
        return pl.pallas_call(kernel, out_shape=out_shape, grid=grid,
                              in_specs=in_specs, out_specs=out_specs,
                              compiler_params=cparams)(xr, wr)

    out_shape = jax.ShapeDtypeStruct((N, Ho, Wo, C_out), out_dtype)
    return pl.pallas_call(kernel, out_shape=out_shape, grid=grid,
                          in_specs=in_specs, out_specs=y_spec,
                          compiler_params=cparams)(xr, wr)


# ----------------------------------------------------------------------------
# JAX glue: input folding (with fused BN apply + LeakyReLU), weight packing
# ----------------------------------------------------------------------------
def fold_input(act_nhwc, scale=None, shift=None, neg_slope=0.2):
    """Apply previous layer's BN affine + LeakyReLU (if any), zero-pad (pad=1),
    and fold the 4-wide stride-2 width window and the height phase into the
    channel dim:
        xr[n, hh, ow, hp*4C + ws*C + c] = x_pad[n, 2*hh + hp, 2*ow + ws, c]
    Result: (N, Ho+1, Wo, 8*C), bf16.  XLA fuses the affine/LReLU with the
    repack, so the activation makes exactly one read + one write here.
    """
    x = act_nhwc.astype(jnp.float32)
    if scale is not None:
        x = x * scale + shift
        x = jnp.where(x >= 0.0, x, neg_slope * x)
    N, H, W, C = x.shape
    assert H % 2 == 0 and W % 2 == 0
    Hq, Wq = H // 2 + 1, W // 2 + 1
    Wo = Wq - 1
    xp = jnp.pad(x, ((0, 0), (1, 1), (1, 1), (0, 0)))       # (N, 2Hq, 2Wq, C)
    xpw = xp.reshape(N, 2 * Hq, Wq, 2, C)                   # w = 2*ww + wp
    # window slot ws = 0..3: [pair ow (wp 0,1), pair ow+1 (wp 0,1)]
    win = jnp.concatenate([xpw[:, :, 0:Wo], xpw[:, :, 1:Wo + 1]], axis=3)
    xr = win.reshape(N, Hq, 2, Wo, 4, C)                    # split h = 2*hh+hp
    xr = jnp.transpose(xr, (0, 1, 3, 2, 4, 5))              # (N,Hq,Wo,hp,ws,C)
    return xr.reshape(N, Hq, Wo, 8 * C).astype(jnp.bfloat16)


def pack_weight(w_oihw):
    """(C_out, C_in, 4, 4) -> (2, 8*C_in, C_out): one matrix per height tap dh,
    contraction index ordered (hp, ws, c) to match fold_input."""
    C_out, C_in, KH, KW = w_oihw.shape
    w = w_oihw.reshape(C_out, C_in, 2, 2, KW)               # (co, c, dh, hp, ws)
    w = jnp.transpose(w, (2, 3, 4, 1, 0))                   # (dh, hp, ws, c, co)
    return w.reshape(2, 8 * C_in, C_out).astype(jnp.bfloat16)


# ----------------------------------------------------------------------------
# Full model
# ----------------------------------------------------------------------------
def init_params(key, in_channels, nker):
    chans = [in_channels, nker, nker * 2, nker * 4, nker * 8, nker * 16]
    params = []
    for l in range(5):
        key, wk = jax.random.split(key)
        c_in, c_out = chans[l], chans[l + 1]
        w = 0.05 * jax.random.normal(wk, (c_out, c_in, 4, 4), dtype=jnp.float32)
        if l < 4:  # BatchNorm layers (torch default init: gamma=1, beta=0)
            gamma = jnp.ones((c_out,), jnp.float32)
            beta = jnp.zeros((c_out,), jnp.float32)
        else:
            gamma, beta = None, None
        params.append({"w": w, "gamma": gamma, "beta": beta})
    return params


def dcgan_discriminator(x_nchw, params, eps=1e-5, neg_slope=0.2):
    # PyTorch NCHW -> internal NHWC
    act = jnp.transpose(x_nchw, (0, 2, 3, 1)).astype(jnp.float32)
    scale = shift = None
    for l in range(4):
        p = params[l]
        xr = fold_input(act, scale, shift, neg_slope)
        wr = pack_weight(p["w"])
        y, ssum, ssq = pallas_conv4x4s2(xr, wr, compute_stats=True,
                                        out_dtype=jnp.bfloat16)
        n, ho, wo, _ = y.shape
        m_total = n * ho * wo
        mean = jnp.sum(ssum, axis=(0, 1, 2)) / m_total
        var = jnp.maximum(jnp.sum(ssq, axis=(0, 1, 2)) / m_total - mean * mean,
                          0.0)                               # biased (torch BN)
        scale = p["gamma"] / jnp.sqrt(var + eps)
        shift = p["beta"] - mean * scale
        act = y
    # enc5: conv + sigmoid (enc4's BN + LeakyReLU is applied inside the fold)
    xr = fold_input(act, scale, shift, neg_slope)
    wr = pack_weight(params[4]["w"])
    y = pallas_conv4x4s2(xr, wr, compute_stats=False, apply_sigmoid=True,
                         out_dtype=jnp.float32)
    # back to NCHW to match the torch output convention
    return jnp.transpose(y, (0, 3, 1, 2)).astype(jnp.float32)


if __name__ == "__main__":
    key = jax.random.PRNGKey(0)
    key, xk = jax.random.split(key)

    batch, in_channels, spatial = 2, 3, 32
    nker = 8  # small nker for the test (module default is 64)

    x = jax.random.normal(xk, (batch, in_channels, spatial, spatial),
                          dtype=jnp.float32)
    params = init_params(key, in_channels, nker)

    forward = jax.jit(dcgan_discriminator)
    out = forward(x, params)
    out = jax.block_until_ready(out)

    # Sanity checks: 5 stride-2 convs: 32 -> 16 -> 8 -> 4 -> 2 -> 1
    assert out.shape == (batch, nker * 16, 1, 1), out.shape
    assert bool(jnp.all(jnp.isfinite(out)))
    assert bool(jnp.all((out >= 0.0) & (out <= 1.0)))  # sigmoid range

    print("KERNEL_OK")
</pallas_src>

<mosaic_0001>
module attributes {stable_mosaic.version = 11 : i64} {
  func.func @_conv_tap_kernel(%arg0: i32, %arg1: i32, %arg2: memref<1x17x16x24xbf16, #tpu.memory_space<vmem>>, %arg3: memref<2x24x8xbf16, #tpu.memory_space<vmem>>, %arg4: memref<1x16x16x8xbf16, #tpu.memory_space<vmem>>, %arg5: memref<1x1x1x8xf32, #tpu.memory_space<vmem>>, %arg6: memref<1x1x1x8xf32, #tpu.memory_space<vmem>>) attributes {dimension_semantics = [#tpu.dimension_semantics<parallel>, #tpu.dimension_semantics<parallel>], iteration_bounds = array<i64: 2, 1>, scalar_prefetch = 0 : i64, scratch_operands = 0 : i64, tpu.core_type = #tpu.core_type<tc>, window_params = [{transform_indices = @transform_0, window_bounds = array<i64: 1, 17, 16, 24>}, {pipeline_mode = #tpu.pipeline_mode<synchronous>, transform_indices = @transform_1, window_bounds = array<i64: 2, 24, 8>}, {transform_indices = @transform_2, window_bounds = array<i64: 1, 16, 16, 8>}, {transform_indices = @transform_3, window_bounds = array<i64: 1, 1, 1, 8>}, {transform_indices = @transform_4, window_bounds = array<i64: 1, 1, 1, 8>}]} {
    %c16_i32 = arith.constant 16 : i32
    %0 = arith.muli %arg1, %c16_i32 : i32
    %cst = arith.constant 0.000000e+00 : f32
    %1 = vector.broadcast %cst : f32 to vector<1x8xf32>
    %c0_i32 = arith.constant 0 : i32
    %c16_i32_0 = arith.constant 16 : i32
    %2 = arith.addi %c0_i32, %c16_i32_0 : i32
    %c1_i32 = arith.constant 1 : i32
    %3:2 = scf.for %arg7 = %c0_i32 to %2 step %c1_i32 iter_args(%arg8 = %1, %arg9 = %1) -> (vector<1x8xf32>, vector<1x8xf32>)  : i32 {
      %10 = arith.addi %0, %arg7 : i32
      %c0_9 = arith.constant 0 : index
      %11 = arith.index_cast %10 : i32 to index
      %c0_10 = arith.constant 0 : index
      %c0_11 = arith.constant 0 : index
      %12 = vector.load %arg2[%c0_9, %11, %c0_10, %c0_11] : memref<1x17x16x24xbf16, #tpu.memory_space<vmem>>, vector<1x1x16x24xbf16>
      %13 = vector.shape_cast %12 : vector<1x1x16x24xbf16> to vector<16x24xbf16>
      %c0_12 = arith.constant 0 : index
      %c0_13 = arith.constant 0 : index
      %c0_14 = arith.constant 0 : index
      %14 = vector.load %arg3[%c0_12, %c0_13, %c0_14] : memref<2x24x8xbf16, #tpu.memory_space<vmem>>, vector<1x24x8xbf16>
      %15 = vector.shape_cast %14 : vector<1x24x8xbf16> to vector<24x8xbf16>
      %cst_15 = arith.constant dense<0.000000e+00> : vector<16x8xf32>
      %16 = tpu.matmul %13, %15, %cst_15 {dimension_numbers = #tpu.dot_dimension_numbers<[1], [0], [0], [1], [0, 0, 1, 1], [], []>} : vector<16x24xbf16>, vector<24x8xbf16>, vector<16x8xf32> -> vector<16x8xf32>
      %c1_i32_16 = arith.constant 1 : i32
      %17 = arith.addi %10, %c1_i32_16 : i32
      %c0_17 = arith.constant 0 : index
      %18 = arith.index_cast %17 : i32 to index
      %c0_18 = arith.constant 0 : index
      %c0_19 = arith.constant 0 : index
      %19 = vector.load %arg2[%c0_17, %18, %c0_18, %c0_19] : memref<1x17x16x24xbf16, #tpu.memory_space<vmem>>, vector<1x1x16x24xbf16>
      %20 = vector.shape_cast %19 : vector<1x1x16x24xbf16> to vector<16x24xbf16>
      %c1 = arith.constant 1 : index
      %c0_20 = arith.constant 0 : index
      %c0_21 = arith.constant 0 : index
      %21 = vector.load %arg3[%c1, %c0_20, %c0_21] : memref<2x24x8xbf16, #tpu.memory_space<vmem>>, vector<1x24x8xbf16>
      %22 = vector.shape_cast %21 : vector<1x24x8xbf16> to vector<24x8xbf16>
      %cst_22 = arith.constant dense<0.000000e+00> : vector<16x8xf32>
      %23 = tpu.matmul %20, %22, %cst_22 {dimension_numbers = #tpu.dot_dimension_numbers<[1], [0], [0], [1], [0, 0, 1, 1], [], []>} : vector<16x24xbf16>, vector<24x8xbf16>, vector<16x8xf32> -> vector<16x8xf32>
      %24 = arith.addf %16, %23 : vector<16x8xf32>
      %25 = arith.truncf %24 : vector<16x8xf32> to vector<16x8xbf16>
      %c0_23 = arith.constant 0 : index
      %26 = arith.index_cast %arg7 : i32 to index
      %c0_24 = arith.constant 0 : index
      %c0_25 = arith.constant 0 : index
      %27 = vector.load %arg4[%c0_23, %26, %c0_24, %c0_25] : memref<1x16x16x8xbf16, #tpu.memory_space<vmem>>, vector<1x1x16x8xbf16>
      %28 = vector.shape_cast %27 : vector<1x1x16x8xbf16> to vector<16x8xbf16>
      %29 = vector.shape_cast %25 : vector<16x8xbf16> to vector<1x1x16x8xbf16>
      tpu.vector_store %arg4[%c0_23, %26, %c0_24, %c0_25], %29 {strides = array<i32>} : memref<1x16x16x8xbf16, #tpu.memory_space<vmem>>, vector<1x1x16x8xbf16>,
      %cst_26 = arith.constant dense<0.000000e+00> : vector<8xf32>
      %30 = vector.multi_reduction <add>, %24, %cst_26 [0] : vector<16x8xf32> to vector<8xf32>
      %31 = vector.shape_cast %30 : vector<8xf32> to vector<1x8xf32>
      %32 = arith.addf %arg8, %31 : vector<1x8xf32>
      %33 = arith.mulf %24, %24 : vector<16x8xf32>
      %cst_27 = arith.constant dense<0.000000e+00> : vector<8xf32>
      %34 = vector.multi_reduction <add>, %33, %cst_27 [0] : vector<16x8xf32> to vector<8xf32>
      %35 = vector.shape_cast %34 : vector<8xf32> to vector<1x8xf32>
      %36 = arith.addf %arg9, %35 : vector<1x8xf32>
      scf.yield %32, %36 : vector<1x8xf32>, vector<1x8xf32>
    }
    %c16_i32_1 = arith.constant 16 : i32
    %c0 = arith.constant 0 : index
    %c0_2 = arith.constant 0 : index
    %c0_3 = arith.constant 0 : index
    %c0_4 = arith.constant 0 : index
    %4 = vector.load %arg5[%c0, %c0_2, %c0_3, %c0_4] : memref<1x1x1x8xf32, #tpu.memory_space<vmem>>, vector<1x1x1x8xf32>
    %5 = vector.shape_cast %4 : vector<1x1x1x8xf32> to vector<1x8xf32>
    %6 = vector.shape_cast %3#0 : vector<1x8xf32> to vector<1x1x1x8xf32>
    tpu.vector_store %arg5[%c0, %c0_2, %c0_3, %c0_4], %6 {strides = array<i32>} : memref<1x1x1x8xf32, #tpu.memory_space<vmem>>, vector<1x1x1x8xf32>,
    %c0_5 = arith.constant 0 : index
    %c0_6 = arith.constant 0 : index
    %c0_7 = arith.constant 0 : index
    %c0_8 = arith.constant 0 : index
    %7 = vector.load %arg6[%c0_5, %c0_6, %c0_7, %c0_8] : memref<1x1x1x8xf32, #tpu.memory_space<vmem>>, vector<1x1x1x8xf32>
    %8 = vector.shape_cast %7 : vector<1x1x1x8xf32> to vector<1x8xf32>
    %9 = vector.shape_cast %3#1 : vector<1x8xf32> to vector<1x1x1x8xf32>
    tpu.vector_store %arg6[%c0_5, %c0_6, %c0_7, %c0_8], %9 {strides = array<i32>} : memref<1x1x1x8xf32, #tpu.memory_space<vmem>>, vector<1x1x1x8xf32>,
    return
  }
  func.func @transform_0(%arg0: i32, %arg1: i32) -> (i32, i32, i32, i32) {
    %c0_i32 = arith.constant 0 : i32
    %c0_i32_0 = arith.constant 0 : i32
    %c0_i32_1 = arith.constant 0 : i32
    %c0_i32_2 = arith.constant 0 : i32
    return %arg0, %c0_i32, %c0_i32_0, %c0_i32_1 : i32, i32, i32, i32
  }
  func.func @transform_1(%arg0: i32, %arg1: i32) -> (i32, i32, i32) {
    %c0_i32 = arith.constant 0 : i32
    %c0_i32_0 = arith.constant 0 : i32
    %c0_i32_1 = arith.constant 0 : i32
    %c0_i32_2 = arith.constant 0 : i32
    return %c0_i32, %c0_i32_0, %c0_i32_1 : i32, i32, i32
  }
  func.func @transform_2(%arg0: i32, %arg1: i32) -> (i32, i32, i32, i32) {
    %c0_i32 = arith.constant 0 : i32
    %c0_i32_0 = arith.constant 0 : i32
    %c0_i32_1 = arith.constant 0 : i32
    return %arg0, %arg1, %c0_i32, %c0_i32_0 : i32, i32, i32, i32
  }
  func.func @transform_3(%arg0: i32, %arg1: i32) -> (i32, i32, i32, i32) {
    %c0_i32 = arith.constant 0 : i32
    %c0_i32_0 = arith.constant 0 : i32
    %c0_i32_1 = arith.constant 0 : i32
    return %arg0, %arg1, %c0_i32, %c0_i32_0 : i32, i32, i32, i32
  }
  func.func @transform_4(%arg0: i32, %arg1: i32) -> (i32, i32, i32, i32) {
    %c0_i32 = arith.constant 0 : i32
    %c0_i32_0 = arith.constant 0 : i32
    %c0_i32_1 = arith.constant 0 : i32
    return %arg0, %arg1, %c0_i32, %c0_i32_0 : i32, i32, i32, i32
  }
}

module attributes {stable_mosaic.version = 11 : i64} {
  func.func @_conv_tap_kernel(%arg0: i32, %arg1: i32, %arg2: memref<1x9x8x64xbf16, #tpu.memory_space<vmem>>, %arg3: memref<2x64x16xbf16, #tpu.memory_space<vmem>>, %arg4: memref<1x8x8x16xbf16, #tpu.memory_space<vmem>>, %arg5: memref<1x1x1x16xf32, #tpu.memory_space<vmem>>, %arg6: memref<1x1x1x16xf32, #tpu.memory_space<vmem>>) attributes {dimension_semantics = [#tpu.dimension_semantics<parallel>, #tpu.dimension_semantics<parallel>], iteration_bounds = array<i64: 2, 1>, scalar_prefetch = 0 : i64, scratch_operands = 0 : i64, tpu.core_type = #tpu.core_type<tc>, window_params = [{transform_indices = @transform_0, window_bounds = array<i64: 1, 9, 8, 64>}, {pipeline_mode = #tpu.pipeline_mode<synchronous>, transform_indices = @transform_1, window_bounds = array<i64: 2, 64, 16>}, {transform_indices = @transform_2, window_bounds = array<i64: 1, 8, 8, 16>}, {transform_indices = @transform_3, window_bounds = array<i64: 1, 1, 1, 16>}, {transform_indices = @transform_4, window_bounds = array<i64: 1, 1, 1, 16>}]} {
    %c8_i32 = arith.constant 8 : i32
    %0 = arith.muli %arg1, %c8_i32 : i32
    %cst = arith.constant 0.000000e+00 : f32
    %1 = vector.broadcast %cst : f32 to vector<1x16xf32>
    %c0_i32 = arith.constant 0 : i32
    %2 = arith.addi %0, %c0_i32 : i32
    %c0 = arith.constant 0 : index
    %3 = arith.index_cast %2 : i32 to index
    %c0_0 = arith.constant 0 : index
    %c0_1 = arith.constant 0 : index
    %4 = vector.load %arg2[%c0, %3, %c0_0, %c0_1] : memref<1x9x8x64xbf16, #tpu.memory_space<vmem>>, vector<1x1x8x64xbf16>
    %5 = vector.shape_cast %4 : vector<1x1x8x64xbf16> to vector<8x64xbf16>
    %c0_2 = arith.constant 0 : index
    %c0_3 = arith.constant 0 : index
    %c0_4 = arith.constant 0 : index
    %6 = vector.load %arg3[%c0_2, %c0_3, %c0_4] : memref<2x64x16xbf16, #tpu.memory_space<vmem>>, vector<1x64x16xbf16>
    %7 = vector.shape_cast %6 : vector<1x64x16xbf16> to vector<64x16xbf16>
    %cst_5 = arith.constant dense<0.000000e+00> : vector<8x16xf32>
    %8 = tpu.matmul %5, %7, %cst_5 {dimension_numbers = #tpu.dot_dimension_numbers<[1], [0], [0], [1], [0, 0, 1, 1], [], []>} : vector<8x64xbf16>, vector<64x16xbf16>, vector<8x16xf32> -> vector<8x16xf32>
    %c1_i32 = arith.constant 1 : i32
    %9 = arith.addi %2, %c1_i32 : i32
    %c0_6 = arith.constant 0 : index
    %10 = arith.index_cast %9 : i32 to index
    %c0_7 = arith.constant 0 : index
    %c0_8 = arith.constant 0 : index
    %11 = vector.load %arg2[%c0_6, %10, %c0_7, %c0_8] : memref<1x9x8x64xbf16, #tpu.memory_space<vmem>>, vector<1x1x8x64xbf16>
    %12 = vector.shape_cast %11 : vector<1x1x8x64xbf16> to vector<8x64xbf16>
    %c1 = arith.constant 1 : index
    %c0_9 = arith.constant 0 : index
    %c0_10 = arith.constant 0 : index
    %13 = vector.load %arg3[%c1, %c0_9, %c0_10] : memref<2x64x16xbf16, #tpu.memory_space<vmem>>, vector<1x64x16xbf16>
    %14 = vector.shape_cast %13 : vector<1x64x16xbf16> to vector<64x16xbf16>
    %cst_11 = arith.constant dense<0.000000e+00> : vector<8x16xf32>
    %15 = tpu.matmul %12, %14, %cst_11 {dimension_numbers = #tpu.dot_dimension_numbers<[1], [0], [0], [1], [0, 0, 1, 1], [], []>} : vector<8x64xbf16>, vector<64x16xbf16>, vector<8x16xf32> -> vector<8x16xf32>
    %16 = arith.addf %8, %15 : vector<8x16xf32>
    %17 = arith.truncf %16 : vector<8x16xf32> to vector<8x16xbf16>
    %c0_12 = arith.constant 0 : index
    %18 = arith.index_cast %c0_i32 : i32 to index
    %c0_13 = arith.constant 0 : index
    %c0_14 = arith.constant 0 : index
    %19 = vector.load %arg4[%c0_12, %18, %c0_13, %c0_14] : memref<1x8x8x16xbf16, #tpu.memory_space<vmem>>, vector<1x1x8x16xbf16>
    %20 = vector.shape_cast %19 : vector<1x1x8x16xbf16> to vector<8x16xbf16>
    %21 = vector.shape_cast %17 : vector<8x16xbf16> to vector<1x1x8x16xbf16>
    tpu.vector_store %arg4[%c0_12, %18, %c0_13, %c0_14], %21 {strides = array<i32>} : memref<1x8x8x16xbf16, #tpu.memory_space<vmem>>, vector<1x1x8x16xbf16>,
    %cst_15 = arith.constant dense<0.000000e+00> : vector<16xf32>
    %22 = vector.multi_reduction <add>, %16, %cst_15 [0] : vector<8x16xf32> to vector<16xf32>
    %23 = vector.shape_cast %22 : vector<16xf32> to vector<1x16xf32>
    %24 = arith.addf %1, %23 : vector<1x16xf32>
    %25 = arith.mulf %16, %16 : vector<8x16xf32>
    %cst_16 = arith.constant dense<0.000000e+00> : vector<16xf32>
    %26 = vector.multi_reduction <add>, %25, %cst_16 [0] : vector<8x16xf32> to vector<16xf32>
    %27 = vector.shape_cast %26 : vector<16xf32> to vector<1x16xf32>
    %28 = arith.addf %1, %27 : vector<1x16xf32>
    %c1_i32_17 = arith.constant 1 : i32
    %29 = arith.addi %0, %c1_i32_17 : i32
    %c0_18 = arith.constant 0 : index
    %30 = arith.index_cast %29 : i32 to index
    %c0_19 = arith.constant 0 : index
    %c0_20 = arith.constant 0 : index
    %31 = vector.load %arg2[%c0_18, %30, %c0_19, %c0_20] : memref<1x9x8x64xbf16, #tpu.memory_space<vmem>>, vector<1x1x8x64xbf16>
    %32 = vector.shape_cast %31 : vector<1x1x8x64xbf16> to vector<8x64xbf16>
    %c0_21 = arith.constant 0 : index
    %c0_22 = arith.constant 0 : index
    %c0_23 = arith.constant 0 : index
    %33 = vector.load %arg3[%c0_21, %c0_22, %c0_23] : memref<2x64x16xbf16, #tpu.memory_space<vmem>>, vector<1x64x16xbf16>
    %34 = vector.shape_cast %33 : vector<1x64x16xbf16> to vector<64x16xbf16>
    %cst_24 = arith.constant dense<0.000000e+00> : vector<8x16xf32>
    %35 = tpu.matmul %32, %34, %cst_24 {dimension_numbers = #tpu.dot_dimension_numbers<[1], [0], [0], [1], [0, 0, 1, 1], [], []>} : vector<8x64xbf16>, vector<64x16xbf16>, vector<8x16xf32> -> vector<8x16xf32>
    %c1_i32_25 = arith.constant 1 : i32
    %36 = arith.addi %29, %c1_i32_25 : i32
    %c0_26 = arith.constant 0 : index
    %37 = arith.index_cast %36 : i32 to index
    %c0_27 = arith.constant 0 : index
    %c0_28 = arith.constant 0 : index
    %38 = vector.load %arg2[%c0_26, %37, %c0_27, %c0_28] : memref<1x9x8x64xbf16, #tpu.memory_space<vmem>>, vector<1x1x8x64xbf16>
    %39 = vector.shape_cast %38 : vector<1x1x8x64xbf16> to vector<8x64xbf16>
    %c1_29 = arith.constant 1 : index
    %c0_30 = arith.constant 0 : index
    %c0_31 = arith.constant 0 : index
    %40 = vector.load %arg3[%c1_29, %c0_30, %c0_31] : memref<2x64x16xbf16, #tpu.memory_space<vmem>>, vector<1x64x16xbf16>
    %41 = vector.shape_cast %40 : vector<1x64x16xbf16> to vector<64x16xbf16>
    %cst_32 = arith.constant dense<0.000000e+00> : vector<8x16xf32>
    %42 = tpu.matmul %39, %41, %cst_32 {dimension_numbers = #tpu.dot_dimension_numbers<[1], [0], [0], [1], [0, 0, 1, 1], [], []>} : vector<8x64xbf16>, vector<64x16xbf16>, vector<8x16xf32> -> vector<8x16xf32>
    %43 = arith.addf %35, %42 : vector<8x16xf32>
    %44 = arith.truncf %43 : vector<8x16xf32> to vector<8x16xbf16>
    %c0_33 = arith.constant 0 : index
    %45 = arith.index_cast %c1_i32_17 : i32 to index
    %c0_34 = arith.constant 0 : index
    %c0_35 = arith.constant 0 : index
    %46 = vector.load %arg4[%c0_33, %45, %c0_34, %c0_35] : memref<1x8x8x16xbf16, #tpu.memory_space<vmem>>, vector<1x1x8x16xbf16>
    %47 = vector.shape_cast %46 : vector<1x1x8x16xbf16> to vector<8x16xbf16>
    %48 = vector.shape_cast %44 : vector<8x16xbf16> to vector<1x1x8x16xbf16>
    tpu.vector_store %arg4[%c0_33, %45, %c0_34, %c0_35], %48 {strides = array<i32>} : memref<1x8x8x16xbf16, #tpu.memory_space<vmem>>, vector<1x1x8x16xbf16>,
    %cst_36 = arith.constant dense<0.000000e+00> : vector<16xf32>
    %49 = vector.multi_reduction <add>, %43, %cst_36 [0] : vector<8x16xf32> to vector<16xf32>
    %50 = vector.shape_cast %49 : vector<16xf32> to vector<1x16xf32>
    %51 = arith.addf %24, %50 : vector<1x16xf32>
    %52 = arith.mulf %43, %43 : vector<8x16xf32>
    %cst_37 = arith.constant dense<0.000000e+00> : vector<16xf32>
    %53 = vector.multi_reduction <add>, %52, %cst_37 [0] : vector<8x16xf32> to vector<16xf32>
    %54 = vector.shape_cast %53 : vector<16xf32> to vector<1x16xf32>
    %55 = arith.addf %28, %54 : vector<1x16xf32>
    %c2_i32 = arith.constant 2 : i32
    %56 = arith.addi %0, %c2_i32 : i32
    %c0_38 = arith.constant 0 : index
    %57 = arith.index_cast %56 : i32 to index
    %c0_39 = arith.constant 0 : index
    %c0_40 = arith.constant 0 : index
    %58 = vector.load %arg2[%c0_38, %57, %c0_39, %c0_40] : memref<1x9x8x64xbf16, #tpu.memory_space<vmem>>, vector<1x1x8x64xbf16>
    %59 = vector.shape_cast %58 : vector<1x1x8x64xbf16> to vector<8x64xbf16>
    %c0_41 = arith.constant 0 : index
    %c0_42 = arith.constant 0 : index
    %c0_43 = arith.constant 0 : index
    %60 = vector.load %arg3[%c0_41, %c0_42, %c0_43] : memref<2x64x16xbf16, #tpu.memory_space<vmem>>, vector<1x64x16xbf16>
    %61 = vector.shape_cast %60 : vector<1x64x16xbf16> to vector<64x16xbf16>
    %cst_44 = arith.constant dense<0.000000e+00> : vector<8x16xf32>
    %62 = tpu.matmul %59, %61, %cst_44 {dimension_numbers = #tpu.dot_dimension_numbers<[1], [0], [0], [1], [0, 0, 1, 1], [], []>} : vector<8x64xbf16>, vector<64x16xbf16>, vector<8x16xf32> -> vector<8x16xf32>
    %c1_i32_45 = arith.constant 1 : i32
    %63 = arith.addi %56, %c1_i32_45 : i32
    %c0_46 = arith.constant 0 : index
    %64 = arith.index_cast %63 : i32 to index
    %c0_47 = arith.constant 0 : index
    %c0_48 = arith.constant 0 : index
    %65 = vector.load %arg2[%c0_46, %64, %c0_47, %c0_48] : memref<1x9x8x64xbf16, #tpu.memory_space<vmem>>, vector<1x1x8x64xbf16>
    %66 = vector.shape_cast %65 : vector<1x1x8x64xbf16> to vector<8x64xbf16>
    %c1_49 = arith.constant 1 : index
    %c0_50 = arith.constant 0 : index
    %c0_51 = arith.constant 0 : index
    %67 = vector.load %arg3[%c1_49, %c0_50, %c0_51] : memref<2x64x16xbf16, #tpu.memory_space<vmem>>, vector<1x64x16xbf16>
    %68 = vector.shape_cast %67 : vector<1x64x16xbf16> to vector<64x16xbf16>
    %cst_52 = arith.constant dense<0.000000e+00> : vector<8x16xf32>
    %69 = tpu.matmul %66, %68, %cst_52 {dimension_numbers = #tpu.dot_dimension_numbers<[1], [0], [0], [1], [0, 0, 1, 1], [], []>} : vector<8x64xbf16>, vector<64x16xbf16>, vector<8x16xf32> -> vector<8x16xf32>
    %70 = arith.addf %62, %69 : vector<8x16xf32>
    %71 = arith.truncf %70 : vector<8x16xf32> to vector<8x16xbf16>
    %c0_53 = arith.constant 0 : index
    %72 = arith.index_cast %c2_i32 : i32 to index
    %c0_54 = arith.constant 0 : index
    %c0_55 = arith.constant 0 : index
    %73 = vector.load %arg4[%c0_53, %72, %c0_54, %c0_55] : memref<1x8x8x16xbf16, #tpu.memory_space<vmem>>, vector<1x1x8x16xbf16>
    %74 = vector.shape_cast %73 : vector<1x1x8x16xbf16> to vector<8x16xbf16>
    %75 = vector.shape_cast %71 : vector<8x16xbf16> to vector<1x1x8x16xbf16>
    tpu.vector_store %arg4[%c0_53, %72, %c0_54, %c0_55], %75 {strides = array<i32>} : memref<1x8x8x16xbf16, #tpu.memory_space<vmem>>, vector<1x1x8x16xbf16>,
    %cst_56 = arith.constant dense<0.000000e+00> : vector<16xf32>
    %76 = vector.multi_reduction <add>, %70, %cst_56 [0] : vector<8x16xf32> to vector<16xf32>
    %77 = vector.shape_cast %76 : vector<16xf32> to vector<1x16xf32>
    %78 = arith.addf %51, %77 : vector<1x16xf32>
    %79 = arith.mulf %70, %70 : vector<8x16xf32>
    %cst_57 = arith.constant dense<0.000000e+00> : vector<16xf32>
    %80 = vector.multi_reduction <add>, %79, %cst_57 [0] : vector<8x16xf32> to vector<16xf32>
    %81 = vector.shape_cast %80 : vector<16xf32> to vector<1x16xf32>
    %82 = arith.addf %55, %81 : vector<1x16xf32>
    %c3_i32 = arith.constant 3 : i32
    %83 = arith.addi %0, %c3_i32 : i32
    %c0_58 = arith.constant 0 : index
    %84 = arith.index_cast %83 : i32 to index
    %c0_59 = arith.constant 0 : index
    %c0_60 = arith.constant 0 : index
    %85 = vector.load %arg2[%c0_58, %84, %c0_59, %c0_60] : memref<1x9x8x64xbf16, #tpu.memory_space<vmem>>, vector<1x1x8x64xbf16>
    %86 = vector.shape_cast %85 : vector<1x1x8x64xbf16> to vector<8x64xbf16>
    %c0_61 = arith.constant 0 : index
    %c0_62 = arith.constant 0 : index
    %c0_63 = arith.constant 0 : index
    %87 = vector.load %arg3[%c0_61, %c0_62, %c0_63] : memref<2x64x16xbf16, #tpu.memory_space<vmem>>, vector<1x64x16xbf16>
    %88 = vector.shape_cast %87 : vector<1x64x16xbf16> to vector<64x16xbf16>
    %cst_64 = arith.constant dense<0.000000e+00> : vector<8x16xf32>
    %89 = tpu.matmul %86, %88, %cst_64 {dimension_numbers = #tpu.dot_dimension_numbers<[1], [0], [0], [1], [0, 0, 1, 1], [], []>} : vector<8x64xbf16>, vector<64x16xbf16>, vector<8x16xf32> -> vector<8x16xf32>
    %c1_i32_65 = arith.constant 1 : i32
    %90 = arith.addi %83, %c1_i32_65 : i32
    %c0_66 = arith.constant 0 : index
    %91 = arith.index_cast %90 : i32 to index
    %c0_67 = arith.constant 0 : index
    %c0_68 = arith.constant 0 : index
    %92 = vector.load %arg2[%c0_66, %91, %c0_67, %c0_68] : memref<1x9x8x64xbf16, #tpu.memory_space<vmem>>, vector<1x1x8x64xbf16>
    %93 = vector.shape_cast %92 : vector<1x1x8x64xbf16> to vector<8x64xbf16>
    %c1_69 = arith.constant 1 : index
    %c0_70 = arith.constant 0 : index
    %c0_71 = arith.constant 0 : index
    %94 = vector.load %arg3[%c1_69, %c0_70, %c0_71] : memref<2x64x16xbf16, #tpu.memory_space<vmem>>, vector<1x64x16xbf16>
    %95 = vector.shape_cast %94 : vector<1x64x16xbf16> to vector<64x16xbf16>
    %cst_72 = arith.constant dense<0.000000e+00> : vector<8x16xf32>
    %96 = tpu.matmul %93, %95, %cst_72 {dimension_numbers = #tpu.dot_dimension_numbers<[1], [0], [0], [1], [0, 0, 1, 1], [], []>} : vector<8x64xbf16>, vector<64x16xbf16>, vector<8x16xf32> -> vector<8x16xf32>
    %97 = arith.addf %89, %96 : vector<8x16xf32>
    %98 = arith.truncf %97 : vector<8x16xf32> to vector<8x16xbf16>
    %c0_73 = arith.constant 0 : index
    %99 = arith.index_cast %c3_i32 : i32 to index
    %c0_74 = arith.constant 0 : index
    %c0_75 = arith.constant 0 : index
    %100 = vector.load %arg4[%c0_73, %99, %c0_74, %c0_75] : memref<1x8x8x16xbf16, #tpu.memory_space<vmem>>, vector<1x1x8x16xbf16>
    %101 = vector.shape_cast %100 : vector<1x1x8x16xbf16> to vector<8x16xbf16>
    %102 = vector.shape_cast %98 : vector<8x16xbf16> to vector<1x1x8x16xbf16>
    tpu.vector_store %arg4[%c0_73, %99, %c0_74, %c0_75], %102 {strides = array<i32>} : memref<1x8x8x16xbf16, #tpu.memory_space<vmem>>, vector<1x1x8x16xbf16>,
    %cst_76 = arith.constant dense<0.000000e+00> : vector<16xf32>
    %103 = vector.multi_reduction <add>, %97, %cst_76 [0] : vector<8x16xf32> to vector<16xf32>
    %104 = vector.shape_cast %103 : vector<16xf32> to vector<1x16xf32>
    %105 = arith.addf %78, %104 : vector<1x16xf32>
    %106 = arith.mulf %97, %97 : vector<8x16xf32>
    %cst_77 = arith.constant dense<0.000000e+00> : vector<16xf32>
    %107 = vector.multi_reduction <add>, %106, %cst_77 [0] : vector<8x16xf32> to vector<16xf32>
    %108 = vector.shape_cast %107 : vector<16xf32> to vector<1x16xf32>
    %109 = arith.addf %82, %108 : vector<1x16xf32>
    %c4_i32 = arith.constant 4 : i32
    %110 = arith.addi %0, %c4_i32 : i32
    %c0_78 = arith.constant 0 : index
    %111 = arith.index_cast %110 : i32 to index
    %c0_79 = arith.constant 0 : index
    %c0_80 = arith.constant 0 : index
    %112 = vector.load %arg2[%c0_78, %111, %c0_79, %c0_80] : memref<1x9x8x64xbf16, #tpu.memory_space<vmem>>, vector<1x1x8x64xbf16>
    %113 = vector.shape_cast %112 : vector<1x1x8x64xbf16> to vector<8x64xbf16>
    %c0_81 = arith.constant 0 : index
    %c0_82 = arith.constant 0 : index
    %c0_83 = arith.constant 0 : index
    %114 = vector.load %arg3[%c0_81, %c0_82, %c0_83] : memref<2x64x16xbf16, #tpu.memory_space<vmem>>, vector<1x64x16xbf16>
    %115 = vector.shape_cast %114 : vector<1x64x16xbf16> to vector<64x16xbf16>
    %cst_84 = arith.constant dense<0.000000e+00> : vector<8x16xf32>
    %116 = tpu.matmul %113, %115, %cst_84 {dimension_numbers = #tpu.dot_dimension_numbers<[1], [0], [0], [1], [0, 0, 1, 1], [], []>} : vector<8x64xbf16>, vector<64x16xbf16>, vector<8x16xf32> -> vector<8x16xf32>
    %c1_i32_85 = arith.constant 1 : i32
    %117 = arith.addi %110, %c1_i32_85 : i32
    %c0_86 = arith.constant 0 : index
    %118 = arith.index_cast %117 : i32 to index
    %c0_87 = arith.constant 0 : index
    %c0_88 = arith.constant 0 : index
    %119 = vector.load %arg2[%c0_86, %118, %c0_87, %c0_88] : memref<1x9x8x64xbf16, #tpu.memory_space<vmem>>, vector<1x1x8x64xbf16>
    %120 = vector.shape_cast %119 : vector<1x1x8x64xbf16> to vector<8x64xbf16>
    %c1_89 = arith.constant 1 : index
    %c0_90 = arith.constant 0 : index
    %c0_91 = arith.constant 0 : index
    %121 = vector.load %arg3[%c1_89, %c0_90, %c0_91] : memref<2x64x16xbf16, #tpu.memory_space<vmem>>, vector<1x64x16xbf16>
    %122 = vector.shape_cast %121 : vector<1x64x16xbf16> to vector<64x16xbf16>
    %cst_92 = arith.constant dense<0.000000e+00> : vector<8x16xf32>
    %123 = tpu.matmul %120, %122, %cst_92 {dimension_numbers = #tpu.dot_dimension_numbers<[1], [0], [0], [1], [0, 0, 1, 1], [], []>} : vector<8x64xbf16>, vector<64x16xbf16>, vector<8x16xf32> -> vector<8x16xf32>
    %124 = arith.addf %116, %123 : vector<8x16xf32>
    %125 = arith.truncf %124 : vector<8x16xf32> to vector<8x16xbf16>
    %c0_93 = arith.constant 0 : index
    %126 = arith.index_cast %c4_i32 : i32 to index
    %c0_94 = arith.constant 0 : index
    %c0_95 = arith.constant 0 : index
    %127 = vector.load %arg4[%c0_93, %126, %c0_94, %c0_95] : memref<1x8x8x16xbf16, #tpu.memory_space<vmem>>, vector<1x1x8x16xbf16>
    %128 = vector.shape_cast %127 : vector<1x1x8x16xbf16> to vector<8x16xbf16>
    %129 = vector.shape_cast %125 : vector<8x16xbf16> to vector<1x1x8x16xbf16>
    tpu.vector_store %arg4[%c0_93, %126, %c0_94, %c0_95], %129 {strides = array<i32>} : memref<1x8x8x16xbf16, #tpu.memory_space<vmem>>, vector<1x1x8x16xbf16>,
    %cst_96 = arith.constant dense<0.000000e+00> : vector<16xf32>
    %130 = vector.multi_reduction <add>, %124, %cst_96 [0] : vector<8x16xf32> to vector<16xf32>
    %131 = vector.shape_cast %130 : vector<16xf32> to vector<1x16xf32>
    %132 = arith.addf %105, %131 : vector<1x16xf32>
    %133 = arith.mulf %124, %124 : vector<8x16xf32>
    %cst_97 = arith.constant dense<0.000000e+00> : vector<16xf32>
    %134 = vector.multi_reduction <add>, %133, %cst_97 [0] : vector<8x16xf32> to vector<16xf32>
    %135 = vector.shape_cast %134 : vector<16xf32> to vector<1x16xf32>
    %136 = arith.addf %109, %135 : vector<1x16xf32>
    %c5_i32 = arith.constant 5 : i32
    %137 = arith.addi %0, %c5_i32 : i32
    %c0_98 = arith.constant 0 : index
    %138 = arith.index_cast %137 : i32 to index
    %c0_99 = arith.constant 0 : index
    %c0_100 = arith.constant 0 : index
    %139 = vector.load %arg2[%c0_98, %138, %c0_99, %c0_100] : memref<1x9x8x64xbf16, #tpu.memory_space<vmem>>, vector<1x1x8x64xbf16>
    %140 = vector.shape_cast %139 : vector<1x1x8x64xbf16> to vector<8x64xbf16>
    %c0_101 = arith.constant 0 : index
    %c0_102 = arith.constant 0 : index
    %c0_103 = arith.constant 0 : index
    %141 = vector.load %arg3[%c0_101, %c0_102, %c0_103] : memref<2x64x16xbf16, #tpu.memory_space<vmem>>, vector<1x64x16xbf16>
    %142 = vector.shape_cast %141 : vector<1x64x16xbf16> to vector<64x16xbf16>
    %cst_104 = arith.constant dense<0.000000e+00> : vector<8x16xf32>
    %143 = tpu.matmul %140, %142, %cst_104 {dimension_numbers = #tpu.dot_dimension_numbers<[1], [0], [0], [1], [0, 0, 1, 1], [], []>} : vector<8x64xbf16>, vector<64x16xbf16>, vector<8x16xf32> -> vector<8x16xf32>
    %c1_i32_105 = arith.constant 1 : i32
    %144 = arith.addi %137, %c1_i32_105 : i32
    %c0_106 = arith.constant 0 : index
    %145 = arith.index_cast %144 : i32 to index
    %c0_107 = arith.constant 0 : index
    %c0_108 = arith.constant 0 : index
    %146 = vector.load %arg2[%c0_106, %145, %c0_107, %c0_108] : memref<1x9x8x64xbf16, #tpu.memory_space<vmem>>, vector<1x1x8x64xbf16>
    %147 = vector.shape_cast %146 : vector<1x1x8x64xbf16> to vector<8x64xbf16>
    %c1_109 = arith.constant 1 : index
    %c0_110 = arith.constant 0 : index
    %c0_111 = arith.constant 0 : index
    %148 = vector.load %arg3[%c1_109, %c0_110, %c0_111] : memref<2x64x16xbf16, #tpu.memory_space<vmem>>, vector<1x64x16xbf16>
    %149 = vector.shape_cast %148 : vector<1x64x16xbf16> to vector<64x16xbf16>
    %cst_112 = arith.constant dense<0.000000e+00> : vector<8x16xf32>
    %150 = tpu.matmul %147, %149, %cst_112 {dimension_numbers = #tpu.dot_dimension_numbers<[1], [0], [0], [1], [0, 0, 1, 1], [], []>} : vector<8x64xbf16>, vector<64x16xbf16>, vector<8x16xf32> -> vector<8x16xf32>
    %151 = arith.addf %143, %150 : vector<8x16xf32>
    %152 = arith.truncf %151 : vector<8x16xf32> to vector<8x16xbf16>
    %c0_113 = arith.constant 0 : index
    %153 = arith.index_cast %c5_i32 : i32 to index
    %c0_114 = arith.constant 0 : index
    %c0_115 = arith.constant 0 : index
    %154 = vector.load %arg4[%c0_113, %153, %c0_114, %c0_115] : memref<1x8x8x16xbf16, #tpu.memory_space<vmem>>, vector<1x1x8x16xbf16>
    %155 = vector.shape_cast %154 : vector<1x1x8x16xbf16> to vector<8x16xbf16>
    %156 = vector.shape_cast %152 : vector<8x16xbf16> to vector<1x1x8x16xbf16>
    tpu.vector_store %arg4[%c0_113, %153, %c0_114, %c0_115], %156 {strides = array<i32>} : memref<1x8x8x16xbf16, #tpu.memory_space<vmem>>, vector<1x1x8x16xbf16>,
    %cst_116 = arith.constant dense<0.000000e+00> : vector<16xf32>
    %157 = vector.multi_reduction <add>, %151, %cst_116 [0] : vector<8x16xf32> to vector<16xf32>
    %158 = vector.shape_cast %157 : vector<16xf32> to vector<1x16xf32>
    %159 = arith.addf %132, %158 : vector<1x16xf32>
    %160 = arith.mulf %151, %151 : vector<8x16xf32>
    %cst_117 = arith.constant dense<0.000000e+00> : vector<16xf32>
    %161 = vector.multi_reduction <add>, %160, %cst_117 [0] : vector<8x16xf32> to vector<16xf32>
    %162 = vector.shape_cast %161 : vector<16xf32> to vector<1x16xf32>
    %163 = arith.addf %136, %162 : vector<1x16xf32>
    %c6_i32 = arith.constant 6 : i32
    %164 = arith.addi %0, %c6_i32 : i32
    %c0_118 = arith.constant 0 : index
    %165 = arith.index_cast %164 : i32 to index
    %c0_119 = arith.constant 0 : index
    %c0_120 = arith.constant 0 : index
    %166 = vector.load %arg2[%c0_118, %165, %c0_119, %c0_120] : memref<1x9x8x64xbf16, #tpu.memory_space<vmem>>, vector<1x1x8x64xbf16>
    %167 = vector.shape_cast %166 : vector<1x1x8x64xbf16> to vector<8x64xbf16>
    %c0_121 = arith.constant 0 : index
    %c0_122 = arith.constant 0 : index
    %c0_123 = arith.constant 0 : index
    %168 = vector.load %arg3[%c0_121, %c0_122, %c0_123] : memref<2x64x16xbf16, #tpu.memory_space<vmem>>, vector<1x64x16xbf16>
    %169 = vector.shape_cast %168 : vector<1x64x16xbf16> to vector<64x16xbf16>
    %cst_124 = arith.constant dense<0.000000e+00> : vector<8x16xf32>
    %170 = tpu.matmul %167, %169, %cst_124 {dimension_numbers = #tpu.dot_dimension_numbers<[1], [0], [0], [1], [0, 0, 1, 1], [], []>} : vector<8x64xbf16>, vector<64x16xbf16>, vector<8x16xf32> -> vector<8x16xf32>
    %c1_i32_125 = arith.constant 1 : i32
    %171 = arith.addi %164, %c1_i32_125 : i32
    %c0_126 = arith.constant 0 : index
    %172 = arith.index_cast %171 : i32 to index
    %c0_127 = arith.constant 0 : index
    %c0_128 = arith.constant 0 : index
    %173 = vector.load %arg2[%c0_126, %172, %c0_127, %c0_128] : memref<1x9x8x64xbf16, #tpu.memory_space<vmem>>, vector<1x1x8x64xbf16>
    %174 = vector.shape_cast %173 : vector<1x1x8x64xbf16> to vector<8x64xbf16>
    %c1_129 = arith.constant 1 : index
    %c0_130 = arith.constant 0 : index
    %c0_131 = arith.constant 0 : index
    %175 = vector.load %arg3[%c1_129, %c0_130, %c0_131] : memref<2x64x16xbf16, #tpu.memory_space<vmem>>, vector<1x64x16xbf16>
    %176 = vector.shape_cast %175 : vector<1x64x16xbf16> to vector<64x16xbf16>
    %cst_132 = arith.constant dense<0.000000e+00> : vector<8x16xf32>
    %177 = tpu.matmul %174, %176, %cst_132 {dimension_numbers = #tpu.dot_dimension_numbers<[1], [0], [0], [1], [0, 0, 1, 1], [], []>} : vector<8x64xbf16>, vector<64x16xbf16>, vector<8x16xf32> -> vector<8x16xf32>
    %178 = arith.addf %170, %177 : vector<8x16xf32>
    %179 = arith.truncf %178 : vector<8x16xf32> to vector<8x16xbf16>
    %c0_133 = arith.constant 0 : index
    %180 = arith.index_cast %c6_i32 : i32 to index
    %c0_134 = arith.constant 0 : index
    %c0_135 = arith.constant 0 : index
    %181 = vector.load %arg4[%c0_133, %180, %c0_134, %c0_135] : memref<1x8x8x16xbf16, #tpu.memory_space<vmem>>, vector<1x1x8x16xbf16>
    %182 = vector.shape_cast %181 : vector<1x1x8x16xbf16> to vector<8x16xbf16>
    %183 = vector.shape_cast %179 : vector<8x16xbf16> to vector<1x1x8x16xbf16>
    tpu.vector_store %arg4[%c0_133, %180, %c0_134, %c0_135], %183 {strides = array<i32>} : memref<1x8x8x16xbf16, #tpu.memory_space<vmem>>, vector<1x1x8x16xbf16>,
    %cst_136 = arith.constant dense<0.000000e+00> : vector<16xf32>
    %184 = vector.multi_reduction <add>, %178, %cst_136 [0] : vector<8x16xf32> to vector<16xf32>
    %185 = vector.shape_cast %184 : vector<16xf32> to vector<1x16xf32>
    %186 = arith.addf %159, %185 : vector<1x16xf32>
    %187 = arith.mulf %178, %178 : vector<8x16xf32>
    %cst_137 = arith.constant dense<0.000000e+00> : vector<16xf32>
    %188 = vector.multi_reduction <add>, %187, %cst_137 [0] : vector<8x16xf32> to vector<16xf32>
    %189 = vector.shape_cast %188 : vector<16xf32> to vector<1x16xf32>
    %190 = arith.addf %163, %189 : vector<1x16xf32>
    %c7_i32 = arith.constant 7 : i32
    %191 = arith.addi %0, %c7_i32 : i32
    %c0_138 = arith.constant 0 : index
    %192 = arith.index_cast %191 : i32 to index
    %c0_139 = arith.constant 0 : index
    %c0_140 = arith.constant 0 : index
    %193 = vector.load %arg2[%c0_138, %192, %c0_139, %c0_140] : memref<1x9x8x64xbf16, #tpu.memory_space<vmem>>, vector<1x1x8x64xbf16>
    %194 = vector.shape_cast %193 : vector<1x1x8x64xbf16> to vector<8x64xbf16>
    %c0_141 = arith.constant 0 : index
    %c0_142 = arith.constant 0 : index
    %c0_143 = arith.constant 0 : index
    %195 = vector.load %arg3[%c0_141, %c0_142, %c0_143] : memref<2x64x16xbf16, #tpu.memory_space<vmem>>, vector<1x64x16xbf16>
    %196 = vector.shape_cast %195 : vector<1x64x16xbf16> to vector<64x16xbf16>
    %cst_144 = arith.constant dense<0.000000e+00> : vector<8x16xf32>
    %197 = tpu.matmul %194, %196, %cst_144 {dimension_numbers = #tpu.dot_dimension_numbers<[1], [0], [0], [1], [0, 0, 1, 1], [], []>} : vector<8x64xbf16>, vector<64x16xbf16>, vector<8x16xf32> -> vector<8x16xf32>
    %c1_i32_145 = arith.constant 1 : i32
    %198 = arith.addi %191, %c1_i32_145 : i32
    %c0_146 = arith.constant 0 : index
    %199 = arith.index_cast %198 : i32 to index
    %c0_147 = arith.constant 0 : index
    %c0_148 = arith.constant 0 : index
    %200 = vector.load %arg2[%c0_146, %199, %c0_147, %c0_148] : memref<1x9x8x64xbf16, #tpu.memory_space<vmem>>, vector<1x1x8x64xbf16>
    %201 = vector.shape_cast %200 : vector<1x1x8x64xbf16> to vector<8x64xbf16>
    %c1_149 = arith.constant 1 : index
    %c0_150 = arith.constant 0 : index
    %c0_151 = arith.constant 0 : index
    %202 = vector.load %arg3[%c1_149, %c0_150, %c0_151] : memref<2x64x16xbf16, #tpu.memory_space<vmem>>, vector<1x64x16xbf16>
    %203 = vector.shape_cast %202 : vector<1x64x16xbf16> to vector<64x16xbf16>
    %cst_152 = arith.constant dense<0.000000e+00> : vector<8x16xf32>
    %204 = tpu.matmul %201, %203, %cst_152 {dimension_numbers = #tpu.dot_dimension_numbers<[1], [0], [0], [1], [0, 0, 1, 1], [], []>} : vector<8x64xbf16>, vector<64x16xbf16>, vector<8x16xf32> -> vector<8x16xf32>
    %205 = arith.addf %197, %204 : vector<8x16xf32>
    %206 = arith.truncf %205 : vector<8x16xf32> to vector<8x16xbf16>
    %c0_153 = arith.constant 0 : index
    %207 = arith.index_cast %c7_i32 : i32 to index
    %c0_154 = arith.constant 0 : index
    %c0_155 = arith.constant 0 : index
    %208 = vector.load %arg4[%c0_153, %207, %c0_154, %c0_155] : memref<1x8x8x16xbf16, #tpu.memory_space<vmem>>, vector<1x1x8x16xbf16>
    %209 = vector.shape_cast %208 : vector<1x1x8x16xbf16> to vector<8x16xbf16>
    %210 = vector.shape_cast %206 : vector<8x16xbf16> to vector<1x1x8x16xbf16>
    tpu.vector_store %arg4[%c0_153, %207, %c0_154, %c0_155], %210 {strides = array<i32>} : memref<1x8x8x16xbf16, #tpu.memory_space<vmem>>, vector<1x1x8x16xbf16>,
    %cst_156 = arith.constant dense<0.000000e+00> : vector<16xf32>
    %211 = vector.multi_reduction <add>, %205, %cst_156 [0] : vector<8x16xf32> to vector<16xf32>
    %212 = vector.shape_cast %211 : vector<16xf32> to vector<1x16xf32>
    %213 = arith.addf %186, %212 : vector<1x16xf32>
    %214 = arith.mulf %205, %205 : vector<8x16xf32>
    %cst_157 = arith.constant dense<0.000000e+00> : vector<16xf32>
    %215 = vector.multi_reduction <add>, %214, %cst_157 [0] : vector<8x16xf32> to vector<16xf32>
    %216 = vector.shape_cast %215 : vector<16xf32> to vector<1x16xf32>
    %217 = arith.addf %190, %216 : vector<1x16xf32>
    %c8_i32_158 = arith.constant 8 : i32
    %c0_159 = arith.constant 0 : index
    %c0_160 = arith.constant 0 : index
    %c0_161 = arith.constant 0 : index
    %c0_162 = arith.constant 0 : index
    %218 = vector.load %arg5[%c0_159, %c0_160, %c0_161, %c0_162] : memref<1x1x1x16xf32, #tpu.memory_space<vmem>>, vector<1x1x1x16xf32>
    %219 = vector.shape_cast %218 : vector<1x1x1x16xf32> to vector<1x16xf32>
    %220 = vector.shape_cast %213 : vector<1x16xf32> to vector<1x1x1x16xf32>
    tpu.vector_store %arg5[%c0_159, %c0_160, %c0_161, %c0_162], %220 {strides = array<i32>} : memref<1x1x1x16xf32, #tpu.memory_space<vmem>>, vector<1x1x1x16xf32>,
    %c0_163 = arith.constant 0 : index
    %c0_164 = arith.constant 0 : index
    %c0_165 = arith.constant 0 : index
    %c0_166 = arith.constant 0 : index
    %221 = vector.load %arg6[%c0_163, %c0_164, %c0_165, %c0_166] : memref<1x1x1x16xf32, #tpu.memory_space<vmem>>, vector<1x1x1x16xf32>
    %222 = vector.shape_cast %221 : vector<1x1x1x16xf32> to vector<1x16xf32>
    %223 = vector.shape_cast %217 : vector<1x16xf32> to vector<1x1x1x16xf32>
    tpu.vector_store %arg6[%c0_163, %c0_164, %c0_165, %c0_166], %223 {strides = array<i32>} : memref<1x1x1x16xf32, #tpu.memory_space<vmem>>, vector<1x1x1x16xf32>,
    return
  }
  func.func @transform_0(%arg0: i32, %arg1: i32) -> (i32, i32, i32, i32) {
    %c0_i32 = arith.constant 0 : i32
    %c0_i32_0 = arith.constant 0 : i32
    %c0_i32_1 = arith.constant 0 : i32
    %c0_i32_2 = arith.constant 0 : i32
    return %arg0, %c0_i32, %c0_i32_0, %c0_i32_1 : i32, i32, i32, i32
  }
  func.func @transform_1(%arg0: i32, %arg1: i32) -> (i32, i32, i32) {
    %c0_i32 = arith.constant 0 : i32
    %c0_i32_0 = arith.constant 0 : i32
    %c0_i32_1 = arith.constant 0 : i32
    %c0_i32_2 = arith.constant 0 : i32
    return %c0_i32, %c0_i32_0, %c0_i32_1 : i32, i32, i32
  }
  func.func @transform_2(%arg0: i32, %arg1: i32) -> (i32, i32, i32, i32) {
    %c0_i32 = arith.constant 0 : i32
    %c0_i32_0 = arith.constant 0 : i32
    %c0_i32_1 = arith.constant 0 : i32
    return %arg0, %arg1, %c0_i32, %c0_i32_0 : i32, i32, i32, i32
  }
  func.func @transform_3(%arg0: i32, %arg1: i32) -> (i32, i32, i32, i32) {
    %c0_i32 = arith.constant 0 : i32
    %c0_i32_0 = arith.constant 0 : i32
    %c0_i32_1 = arith.constant 0 : i32
    return %arg0, %arg1, %c0_i32, %c0_i32_0 : i32, i32, i32, i32
  }
  func.func @transform_4(%arg0: i32, %arg1: i32) -> (i32, i32, i32, i32) {
    %c0_i32 = arith.constant 0 : i32
    %c0_i32_0 = arith.constant 0 : i32
    %c0_i32_1 = arith.constant 0 : i32
    return %arg0, %arg1, %c0_i32, %c0_i32_0 : i32, i32, i32, i32
  }
}

module attributes {stable_mosaic.version = 11 : i64} {
  func.func @_conv_tap_kernel(%arg0: i32, %arg1: i32, %arg2: memref<1x5x4x128xbf16, #tpu.memory_space<vmem>>, %arg3: memref<2x128x32xbf16, #tpu.memory_space<vmem>>, %arg4: memref<1x4x4x32xbf16, #tpu.memory_space<vmem>>, %arg5: memref<1x1x1x32xf32, #tpu.memory_space<vmem>>, %arg6: memref<1x1x1x32xf32, #tpu.memory_space<vmem>>) attributes {dimension_semantics = [#tpu.dimension_semantics<parallel>, #tpu.dimension_semantics<parallel>], iteration_bounds = array<i64: 2, 1>, scalar_prefetch = 0 : i64, scratch_operands = 0 : i64, tpu.core_type = #tpu.core_type<tc>, window_params = [{transform_indices = @transform_0, window_bounds = array<i64: 1, 5, 4, 128>}, {pipeline_mode = #tpu.pipeline_mode<synchronous>, transform_indices = @transform_1, window_bounds = array<i64: 2, 128, 32>}, {transform_indices = @transform_2, window_bounds = array<i64: 1, 4, 4, 32>}, {transform_indices = @transform_3, window_bounds = array<i64: 1, 1, 1, 32>}, {transform_indices = @transform_4, window_bounds = array<i64: 1, 1, 1, 32>}]} {
    %c4_i32 = arith.constant 4 : i32
    %0 = arith.muli %arg1, %c4_i32 : i32
    %cst = arith.constant 0.000000e+00 : f32
    %1 = vector.broadcast %cst : f32 to vector<1x32xf32>
    %c0_i32 = arith.constant 0 : i32
    %2 = arith.addi %0, %c0_i32 : i32
    %c0 = arith.constant 0 : index
    %3 = arith.index_cast %2 : i32 to index
    %c0_0 = arith.constant 0 : index
    %c0_1 = arith.constant 0 : index
    %4 = vector.load %arg2[%c0, %3, %c0_0, %c0_1] : memref<1x5x4x128xbf16, #tpu.memory_space<vmem>>, vector<1x1x4x128xbf16>
    %5 = vector.shape_cast %4 : vector<1x1x4x128xbf16> to vector<4x128xbf16>
    %c0_2 = arith.constant 0 : index
    %c0_3 = arith.constant 0 : index
    %c0_4 = arith.constant 0 : index
    %6 = vector.load %arg3[%c0_2, %c0_3, %c0_4] : memref<2x128x32xbf16, #tpu.memory_space<vmem>>, vector<1x128x32xbf16>
    %7 = vector.shape_cast %6 : vector<1x128x32xbf16> to vector<128x32xbf16>
    %cst_5 = arith.constant dense<0.000000e+00> : vector<4x32xf32>
    %8 = tpu.matmul %5, %7, %cst_5 {dimension_numbers = #tpu.dot_dimension_numbers<[1], [0], [0], [1], [0, 0, 1, 1], [], []>} : vector<4x128xbf16>, vector<128x32xbf16>, vector<4x32xf32> -> vector<4x32xf32>
    %c1_i32 = arith.constant 1 : i32
    %9 = arith.addi %2, %c1_i32 : i32
    %c0_6 = arith.constant 0 : index
    %10 = arith.index_cast %9 : i32 to index
    %c0_7 = arith.constant 0 : index
    %c0_8 = arith.constant 0 : index
    %11 = vector.load %arg2[%c0_6, %10, %c0_7, %c0_8] : memref<1x5x4x128xbf16, #tpu.memory_space<vmem>>, vector<1x1x4x128xbf16>
    %12 = vector.shape_cast %11 : vector<1x1x4x128xbf16> to vector<4x128xbf16>
    %c1 = arith.constant 1 : index
    %c0_9 = arith.constant 0 : index
    %c0_10 = arith.constant 0 : index
    %13 = vector.load %arg3[%c1, %c0_9, %c0_10] : memref<2x128x32xbf16, #tpu.memory_space<vmem>>, vector<1x128x32xbf16>
    %14 = vector.shape_cast %13 : vector<1x128x32xbf16> to vector<128x32xbf16>
    %cst_11 = arith.constant dense<0.000000e+00> : vector<4x32xf32>
    %15 = tpu.matmul %12, %14, %cst_11 {dimension_numbers = #tpu.dot_dimension_numbers<[1], [0], [0], [1], [0, 0, 1, 1], [], []>} : vector<4x128xbf16>, vector<128x32xbf16>, vector<4x32xf32> -> vector<4x32xf32>
    %16 = arith.addf %8, %15 : vector<4x32xf32>
    %17 = arith.truncf %16 : vector<4x32xf32> to vector<4x32xbf16>
    %c0_12 = arith.constant 0 : index
    %18 = arith.index_cast %c0_i32 : i32 to index
    %c0_13 = arith.constant 0 : index
    %c0_14 = arith.constant 0 : index
    %19 = vector.load %arg4[%c0_12, %18, %c0_13, %c0_14] : memref<1x4x4x32xbf16, #tpu.memory_space<vmem>>, vector<1x1x4x32xbf16>
    %20 = vector.shape_cast %19 : vector<1x1x4x32xbf16> to vector<4x32xbf16>
    %21 = vector.shape_cast %17 : vector<4x32xbf16> to vector<1x1x4x32xbf16>
    tpu.vector_store %arg4[%c0_12, %18, %c0_13, %c0_14], %21 {strides = array<i32>} : memref<1x4x4x32xbf16, #tpu.memory_space<vmem>>, vector<1x1x4x32xbf16>,
    %cst_15 = arith.constant dense<0.000000e+00> : vector<32xf32>
    %22 = vector.multi_reduction <add>, %16, %cst_15 [0] : vector<4x32xf32> to vector<32xf32>
    %23 = vector.shape_cast %22 : vector<32xf32> to vector<1x32xf32>
    %24 = arith.addf %1, %23 : vector<1x32xf32>
    %25 = arith.mulf %16, %16 : vector<4x32xf32>
    %cst_16 = arith.constant dense<0.000000e+00> : vector<32xf32>
    %26 = vector.multi_reduction <add>, %25, %cst_16 [0] : vector<4x32xf32> to vector<32xf32>
    %27 = vector.shape_cast %26 : vector<32xf32> to vector<1x32xf32>
    %28 = arith.addf %1, %27 : vector<1x32xf32>
    %c1_i32_17 = arith.constant 1 : i32
    %29 = arith.addi %0, %c1_i32_17 : i32
    %c0_18 = arith.constant 0 : index
    %30 = arith.index_cast %29 : i32 to index
    %c0_19 = arith.constant 0 : index
    %c0_20 = arith.constant 0 : index
    %31 = vector.load %arg2[%c0_18, %30, %c0_19, %c0_20] : memref<1x5x4x128xbf16, #tpu.memory_space<vmem>>, vector<1x1x4x128xbf16>
    %32 = vector.shape_cast %31 : vector<1x1x4x128xbf16> to vector<4x128xbf16>
    %c0_21 = arith.constant 0 : index
    %c0_22 = arith.constant 0 : index
    %c0_23 = arith.constant 0 : index
    %33 = vector.load %arg3[%c0_21, %c0_22, %c0_23] : memref<2x128x32xbf16, #tpu.memory_space<vmem>>, vector<1x128x32xbf16>
    %34 = vector.shape_cast %33 : vector<1x128x32xbf16> to vector<128x32xbf16>
    %cst_24 = arith.constant dense<0.000000e+00> : vector<4x32xf32>
    %35 = tpu.matmul %32, %34, %cst_24 {dimension_numbers = #tpu.dot_dimension_numbers<[1], [0], [0], [1], [0, 0, 1, 1], [], []>} : vector<4x128xbf16>, vector<128x32xbf16>, vector<4x32xf32> -> vector<4x32xf32>
    %c1_i32_25 = arith.constant 1 : i32
    %36 = arith.addi %29, %c1_i32_25 : i32
    %c0_26 = arith.constant 0 : index
    %37 = arith.index_cast %36 : i32 to index
    %c0_27 = arith.constant 0 : index
    %c0_28 = arith.constant 0 : index
    %38 = vector.load %arg2[%c0_26, %37, %c0_27, %c0_28] : memref<1x5x4x128xbf16, #tpu.memory_space<vmem>>, vector<1x1x4x128xbf16>
    %39 = vector.shape_cast %38 : vector<1x1x4x128xbf16> to vector<4x128xbf16>
    %c1_29 = arith.constant 1 : index
    %c0_30 = arith.constant 0 : index
    %c0_31 = arith.constant 0 : index
    %40 = vector.load %arg3[%c1_29, %c0_30, %c0_31] : memref<2x128x32xbf16, #tpu.memory_space<vmem>>, vector<1x128x32xbf16>
    %41 = vector.shape_cast %40 : vector<1x128x32xbf16> to vector<128x32xbf16>
    %cst_32 = arith.constant dense<0.000000e+00> : vector<4x32xf32>
    %42 = tpu.matmul %39, %41, %cst_32 {dimension_numbers = #tpu.dot_dimension_numbers<[1], [0], [0], [1], [0, 0, 1, 1], [], []>} : vector<4x128xbf16>, vector<128x32xbf16>, vector<4x32xf32> -> vector<4x32xf32>
    %43 = arith.addf %35, %42 : vector<4x32xf32>
    %44 = arith.truncf %43 : vector<4x32xf32> to vector<4x32xbf16>
    %c0_33 = arith.constant 0 : index
    %45 = arith.index_cast %c1_i32_17 : i32 to index
    %c0_34 = arith.constant 0 : index
    %c0_35 = arith.constant 0 : index
    %46 = vector.load %arg4[%c0_33, %45, %c0_34, %c0_35] : memref<1x4x4x32xbf16, #tpu.memory_space<vmem>>, vector<1x1x4x32xbf16>
    %47 = vector.shape_cast %46 : vector<1x1x4x32xbf16> to vector<4x32xbf16>
    %48 = vector.shape_cast %44 : vector<4x32xbf16> to vector<1x1x4x32xbf16>
    tpu.vector_store %arg4[%c0_33, %45, %c0_34, %c0_35], %48 {strides = array<i32>} : memref<1x4x4x32xbf16, #tpu.memory_space<vmem>>, vector<1x1x4x32xbf16>,
    %cst_36 = arith.constant dense<0.000000e+00> : vector<32xf32>
    %49 = vector.multi_reduction <add>, %43, %cst_36 [0] : vector<4x32xf32> to vector<32xf32>
    %50 = vector.shape_cast %49 : vector<32xf32> to vector<1x32xf32>
    %51 = arith.addf %24, %50 : vector<1x32xf32>
    %52 = arith.mulf %43, %43 : vector<4x32xf32>
    %cst_37 = arith.constant dense<0.000000e+00> : vector<32xf32>
    %53 = vector.multi_reduction <add>, %52, %cst_37 [0] : vector<4x32xf32> to vector<32xf32>
    %54 = vector.shape_cast %53 : vector<32xf32> to vector<1x32xf32>
    %55 = arith.addf %28, %54 : vector<1x32xf32>
    %c2_i32 = arith.constant 2 : i32
    %56 = arith.addi %0, %c2_i32 : i32
    %c0_38 = arith.constant 0 : index
    %57 = arith.index_cast %56 : i32 to index
    %c0_39 = arith.constant 0 : index
    %c0_40 = arith.constant 0 : index
    %58 = vector.load %arg2[%c0_38, %57, %c0_39, %c0_40] : memref<1x5x4x128xbf16, #tpu.memory_space<vmem>>, vector<1x1x4x128xbf16>
    %59 = vector.shape_cast %58 : vector<1x1x4x128xbf16> to vector<4x128xbf16>
    %c0_41 = arith.constant 0 : index
    %c0_42 = arith.constant 0 : index
    %c0_43 = arith.constant 0 : index
    %60 = vector.load %arg3[%c0_41, %c0_42, %c0_43] : memref<2x128x32xbf16, #tpu.memory_space<vmem>>, vector<1x128x32xbf16>
    %61 = vector.shape_cast %60 : vector<1x128x32xbf16> to vector<128x32xbf16>
    %cst_44 = arith.constant dense<0.000000e+00> : vector<4x32xf32>
    %62 = tpu.matmul %59, %61, %cst_44 {dimension_numbers = #tpu.dot_dimension_numbers<[1], [0], [0], [1], [0, 0, 1, 1], [], []>} : vector<4x128xbf16>, vector<128x32xbf16>, vector<4x32xf32> -> vector<4x32xf32>
    %c1_i32_45 = arith.constant 1 : i32
    %63 = arith.addi %56, %c1_i32_45 : i32
    %c0_46 = arith.constant 0 : index
    %64 = arith.index_cast %63 : i32 to index
    %c0_47 = arith.constant 0 : index
    %c0_48 = arith.constant 0 : index
    %65 = vector.load %arg2[%c0_46, %64, %c0_47, %c0_48] : memref<1x5x4x128xbf16, #tpu.memory_space<vmem>>, vector<1x1x4x128xbf16>
    %66 = vector.shape_cast %65 : vector<1x1x4x128xbf16> to vector<4x128xbf16>
    %c1_49 = arith.constant 1 : index
    %c0_50 = arith.constant 0 : index
    %c0_51 = arith.constant 0 : index
    %67 = vector.load %arg3[%c1_49, %c0_50, %c0_51] : memref<2x128x32xbf16, #tpu.memory_space<vmem>>, vector<1x128x32xbf16>
    %68 = vector.shape_cast %67 : vector<1x128x32xbf16> to vector<128x32xbf16>
    %cst_52 = arith.constant dense<0.000000e+00> : vector<4x32xf32>
    %69 = tpu.matmul %66, %68, %cst_52 {dimension_numbers = #tpu.dot_dimension_numbers<[1], [0], [0], [1], [0, 0, 1, 1], [], []>} : vector<4x128xbf16>, vector<128x32xbf16>, vector<4x32xf32> -> vector<4x32xf32>
    %70 = arith.addf %62, %69 : vector<4x32xf32>
    %71 = arith.truncf %70 : vector<4x32xf32> to vector<4x32xbf16>
    %c0_53 = arith.constant 0 : index
    %72 = arith.index_cast %c2_i32 : i32 to index
    %c0_54 = arith.constant 0 : index
    %c0_55 = arith.constant 0 : index
    %73 = vector.load %arg4[%c0_53, %72, %c0_54, %c0_55] : memref<1x4x4x32xbf16, #tpu.memory_space<vmem>>, vector<1x1x4x32xbf16>
    %74 = vector.shape_cast %73 : vector<1x1x4x32xbf16> to vector<4x32xbf16>
    %75 = vector.shape_cast %71 : vector<4x32xbf16> to vector<1x1x4x32xbf16>
    tpu.vector_store %arg4[%c0_53, %72, %c0_54, %c0_55], %75 {strides = array<i32>} : memref<1x4x4x32xbf16, #tpu.memory_space<vmem>>, vector<1x1x4x32xbf16>,
    %cst_56 = arith.constant dense<0.000000e+00> : vector<32xf32>
    %76 = vector.multi_reduction <add>, %70, %cst_56 [0] : vector<4x32xf32> to vector<32xf32>
    %77 = vector.shape_cast %76 : vector<32xf32> to vector<1x32xf32>
    %78 = arith.addf %51, %77 : vector<1x32xf32>
    %79 = arith.mulf %70, %70 : vector<4x32xf32>
    %cst_57 = arith.constant dense<0.000000e+00> : vector<32xf32>
    %80 = vector.multi_reduction <add>, %79, %cst_57 [0] : vector<4x32xf32> to vector<32xf32>
    %81 = vector.shape_cast %80 : vector<32xf32> to vector<1x32xf32>
    %82 = arith.addf %55, %81 : vector<1x32xf32>
    %c3_i32 = arith.constant 3 : i32
    %83 = arith.addi %0, %c3_i32 : i32
    %c0_58 = arith.constant 0 : index
    %84 = arith.index_cast %83 : i32 to index
    %c0_59 = arith.constant 0 : index
    %c0_60 = arith.constant 0 : index
    %85 = vector.load %arg2[%c0_58, %84, %c0_59, %c0_60] : memref<1x5x4x128xbf16, #tpu.memory_space<vmem>>, vector<1x1x4x128xbf16>
    %86 = vector.shape_cast %85 : vector<1x1x4x128xbf16> to vector<4x128xbf16>
    %c0_61 = arith.constant 0 : index
    %c0_62 = arith.constant 0 : index
    %c0_63 = arith.constant 0 : index
    %87 = vector.load %arg3[%c0_61, %c0_62, %c0_63] : memref<2x128x32xbf16, #tpu.memory_space<vmem>>, vector<1x128x32xbf16>
    %88 = vector.shape_cast %87 : vector<1x128x32xbf16> to vector<128x32xbf16>
    %cst_64 = arith.constant dense<0.000000e+00> : vector<4x32xf32>
    %89 = tpu.matmul %86, %88, %cst_64 {dimension_numbers = #tpu.dot_dimension_numbers<[1], [0], [0], [1], [0, 0, 1, 1], [], []>} : vector<4x128xbf16>, vector<128x32xbf16>, vector<4x32xf32> -> vector<4x32xf32>
    %c1_i32_65 = arith.constant 1 : i32
    %90 = arith.addi %83, %c1_i32_65 : i32
    %c0_66 = arith.constant 0 : index
    %91 = arith.index_cast %90 : i32 to index
    %c0_67 = arith.constant 0 : index
    %c0_68 = arith.constant 0 : index
    %92 = vector.load %arg2[%c0_66, %91, %c0_67, %c0_68] : memref<1x5x4x128xbf16, #tpu.memory_space<vmem>>, vector<1x1x4x128xbf16>
    %93 = vector.shape_cast %92 : vector<1x1x4x128xbf16> to vector<4x128xbf16>
    %c1_69 = arith.constant 1 : index
    %c0_70 = arith.constant 0 : index
    %c0_71 = arith.constant 0 : index
    %94 = vector.load %arg3[%c1_69, %c0_70, %c0_71] : memref<2x128x32xbf16, #tpu.memory_space<vmem>>, vector<1x128x32xbf16>
    %95 = vector.shape_cast %94 : vector<1x128x32xbf16> to vector<128x32xbf16>
    %cst_72 = arith.constant dense<0.000000e+00> : vector<4x32xf32>
    %96 = tpu.matmul %93, %95, %cst_72 {dimension_numbers = #tpu.dot_dimension_numbers<[1], [0], [0], [1], [0, 0, 1, 1], [], []>} : vector<4x128xbf16>, vector<128x32xbf16>, vector<4x32xf32> -> vector<4x32xf32>
    %97 = arith.addf %89, %96 : vector<4x32xf32>
    %98 = arith.truncf %97 : vector<4x32xf32> to vector<4x32xbf16>
    %c0_73 = arith.constant 0 : index
    %99 = arith.index_cast %c3_i32 : i32 to index
    %c0_74 = arith.constant 0 : index
    %c0_75 = arith.constant 0 : index
    %100 = vector.load %arg4[%c0_73, %99, %c0_74, %c0_75] : memref<1x4x4x32xbf16, #tpu.memory_space<vmem>>, vector<1x1x4x32xbf16>
    %101 = vector.shape_cast %100 : vector<1x1x4x32xbf16> to vector<4x32xbf16>
    %102 = vector.shape_cast %98 : vector<4x32xbf16> to vector<1x1x4x32xbf16>
    tpu.vector_store %arg4[%c0_73, %99, %c0_74, %c0_75], %102 {strides = array<i32>} : memref<1x4x4x32xbf16, #tpu.memory_space<vmem>>, vector<1x1x4x32xbf16>,
    %cst_76 = arith.constant dense<0.000000e+00> : vector<32xf32>
    %103 = vector.multi_reduction <add>, %97, %cst_76 [0] : vector<4x32xf32> to vector<32xf32>
    %104 = vector.shape_cast %103 : vector<32xf32> to vector<1x32xf32>
    %105 = arith.addf %78, %104 : vector<1x32xf32>
    %106 = arith.mulf %97, %97 : vector<4x32xf32>
    %cst_77 = arith.constant dense<0.000000e+00> : vector<32xf32>
    %107 = vector.multi_reduction <add>, %106, %cst_77 [0] : vector<4x32xf32> to vector<32xf32>
    %108 = vector.shape_cast %107 : vector<32xf32> to vector<1x32xf32>
    %109 = arith.addf %82, %108 : vector<1x32xf32>
    %c4_i32_78 = arith.constant 4 : i32
    %c0_79 = arith.constant 0 : index
    %c0_80 = arith.constant 0 : index
    %c0_81 = arith.constant 0 : index
    %c0_82 = arith.constant 0 : index
    %110 = vector.load %arg5[%c0_79, %c0_80, %c0_81, %c0_82] : memref<1x1x1x32xf32, #tpu.memory_space<vmem>>, vector<1x1x1x32xf32>
    %111 = vector.shape_cast %110 : vector<1x1x1x32xf32> to vector<1x32xf32>
    %112 = vector.shape_cast %105 : vector<1x32xf32> to vector<1x1x1x32xf32>
    tpu.vector_store %arg5[%c0_79, %c0_80, %c0_81, %c0_82], %112 {strides = array<i32>} : memref<1x1x1x32xf32, #tpu.memory_space<vmem>>, vector<1x1x1x32xf32>,
    %c0_83 = arith.constant 0 : index
    %c0_84 = arith.constant 0 : index
    %c0_85 = arith.constant 0 : index
    %c0_86 = arith.constant 0 : index
    %113 = vector.load %arg6[%c0_83, %c0_84, %c0_85, %c0_86] : memref<1x1x1x32xf32, #tpu.memory_space<vmem>>, vector<1x1x1x32xf32>
    %114 = vector.shape_cast %113 : vector<1x1x1x32xf32> to vector<1x32xf32>
    %115 = vector.shape_cast %109 : vector<1x32xf32> to vector<1x1x1x32xf32>
    tpu.vector_store %arg6[%c0_83, %c0_84, %c0_85, %c0_86], %115 {strides = array<i32>} : memref<1x1x1x32xf32, #tpu.memory_space<vmem>>, vector<1x1x1x32xf32>,
    return
  }
  func.func @transform_0(%arg0: i32, %arg1: i32) -> (i32, i32, i32, i32) {
    %c0_i32 = arith.constant 0 : i32
    %c0_i32_0 = arith.constant 0 : i32
    %c0_i32_1 = arith.constant 0 : i32
    %c0_i32_2 = arith.constant 0 : i32
    return %arg0, %c0_i32, %c0_i32_0, %c0_i32_1 : i32, i32, i32, i32
  }
  func.func @transform_1(%arg0: i32, %arg1: i32) -> (i32, i32, i32) {
    %c0_i32 = arith.constant 0 : i32
    %c0_i32_0 = arith.constant 0 : i32
    %c0_i32_1 = arith.constant 0 : i32
    %c0_i32_2 = arith.constant 0 : i32
    return %c0_i32, %c0_i32_0, %c0_i32_1 : i32, i32, i32
  }
  func.func @transform_2(%arg0: i32, %arg1: i32) -> (i32, i32, i32, i32) {
    %c0_i32 = arith.constant 0 : i32
    %c0_i32_0 = arith.constant 0 : i32
    %c0_i32_1 = arith.constant 0 : i32
    return %arg0, %arg1, %c0_i32, %c0_i32_0 : i32, i32, i32, i32
  }
  func.func @transform_3(%arg0: i32, %arg1: i32) -> (i32, i32, i32, i32) {
    %c0_i32 = arith.constant 0 : i32
    %c0_i32_0 = arith.constant 0 : i32
    %c0_i32_1 = arith.constant 0 : i32
    return %arg0, %arg1, %c0_i32, %c0_i32_0 : i32, i32, i32, i32
  }
  func.func @transform_4(%arg0: i32, %arg1: i32) -> (i32, i32, i32, i32) {
    %c0_i32 = arith.constant 0 : i32
    %c0_i32_0 = arith.constant 0 : i32
    %c0_i32_1 = arith.constant 0 : i32
    return %arg0, %arg1, %c0_i32, %c0_i32_0 : i32, i32, i32, i32
  }
}

module attributes {stable_mosaic.version = 11 : i64} {
  func.func @_conv_tap_kernel(%arg0: i32, %arg1: i32, %arg2: memref<1x3x2x256xbf16, #tpu.memory_space<vmem>>, %arg3: memref<2x256x64xbf16, #tpu.memory_space<vmem>>, %arg4: memref<1x2x2x64xbf16, #tpu.memory_space<vmem>>, %arg5: memref<1x1x1x64xf32, #tpu.memory_space<vmem>>, %arg6: memref<1x1x1x64xf32, #tpu.memory_space<vmem>>) attributes {dimension_semantics = [#tpu.dimension_semantics<parallel>, #tpu.dimension_semantics<parallel>], iteration_bounds = array<i64: 2, 1>, scalar_prefetch = 0 : i64, scratch_operands = 0 : i64, tpu.core_type = #tpu.core_type<tc>, window_params = [{transform_indices = @transform_0, window_bounds = array<i64: 1, 3, 2, 256>}, {pipeline_mode = #tpu.pipeline_mode<synchronous>, transform_indices = @transform_1, window_bounds = array<i64: 2, 256, 64>}, {transform_indices = @transform_2, window_bounds = array<i64: 1, 2, 2, 64>}, {transform_indices = @transform_3, window_bounds = array<i64: 1, 1, 1, 64>}, {transform_indices = @transform_4, window_bounds = array<i64: 1, 1, 1, 64>}]} {
    %c2_i32 = arith.constant 2 : i32
    %0 = arith.muli %arg1, %c2_i32 : i32
    %cst = arith.constant 0.000000e+00 : f32
    %1 = vector.broadcast %cst : f32 to vector<1x64xf32>
    %c0_i32 = arith.constant 0 : i32
    %2 = arith.addi %0, %c0_i32 : i32
    %c0 = arith.constant 0 : index
    %3 = arith.index_cast %2 : i32 to index
    %c0_0 = arith.constant 0 : index
    %c0_1 = arith.constant 0 : index
    %4 = vector.load %arg2[%c0, %3, %c0_0, %c0_1] : memref<1x3x2x256xbf16, #tpu.memory_space<vmem>>, vector<1x1x2x256xbf16>
    %5 = vector.shape_cast %4 : vector<1x1x2x256xbf16> to vector<2x256xbf16>
    %c0_2 = arith.constant 0 : index
    %c0_3 = arith.constant 0 : index
    %c0_4 = arith.constant 0 : index
    %6 = vector.load %arg3[%c0_2, %c0_3, %c0_4] : memref<2x256x64xbf16, #tpu.memory_space<vmem>>, vector<1x256x64xbf16>
    %7 = vector.shape_cast %6 : vector<1x256x64xbf16> to vector<256x64xbf16>
    %cst_5 = arith.constant dense<0.000000e+00> : vector<2x64xf32>
    %8 = tpu.matmul %5, %7, %cst_5 {dimension_numbers = #tpu.dot_dimension_numbers<[1], [0], [0], [1], [0, 0, 1, 1], [], []>} : vector<2x256xbf16>, vector<256x64xbf16>, vector<2x64xf32> -> vector<2x64xf32>
    %c1_i32 = arith.constant 1 : i32
    %9 = arith.addi %2, %c1_i32 : i32
    %c0_6 = arith.constant 0 : index
    %10 = arith.index_cast %9 : i32 to index
    %c0_7 = arith.constant 0 : index
    %c0_8 = arith.constant 0 : index
    %11 = vector.load %arg2[%c0_6, %10, %c0_7, %c0_8] : memref<1x3x2x256xbf16, #tpu.memory_space<vmem>>, vector<1x1x2x256xbf16>
    %12 = vector.shape_cast %11 : vector<1x1x2x256xbf16> to vector<2x256xbf16>
    %c1 = arith.constant 1 : index
    %c0_9 = arith.constant 0 : index
    %c0_10 = arith.constant 0 : index
    %13 = vector.load %arg3[%c1, %c0_9, %c0_10] : memref<2x256x64xbf16, #tpu.memory_space<vmem>>, vector<1x256x64xbf16>
    %14 = vector.shape_cast %13 : vector<1x256x64xbf16> to vector<256x64xbf16>
    %cst_11 = arith.constant dense<0.000000e+00> : vector<2x64xf32>
    %15 = tpu.matmul %12, %14, %cst_11 {dimension_numbers = #tpu.dot_dimension_numbers<[1], [0], [0], [1], [0, 0, 1, 1], [], []>} : vector<2x256xbf16>, vector<256x64xbf16>, vector<2x64xf32> -> vector<2x64xf32>
    %16 = arith.addf %8, %15 : vector<2x64xf32>
    %17 = arith.truncf %16 : vector<2x64xf32> to vector<2x64xbf16>
    %c0_12 = arith.constant 0 : index
    %18 = arith.index_cast %c0_i32 : i32 to index
    %c0_13 = arith.constant 0 : index
    %c0_14 = arith.constant 0 : index
    %19 = vector.load %arg4[%c0_12, %18, %c0_13, %c0_14] : memref<1x2x2x64xbf16, #tpu.memory_space<vmem>>, vector<1x1x2x64xbf16>
    %20 = vector.shape_cast %19 : vector<1x1x2x64xbf16> to vector<2x64xbf16>
    %21 = vector.shape_cast %17 : vector<2x64xbf16> to vector<1x1x2x64xbf16>
    tpu.vector_store %arg4[%c0_12, %18, %c0_13, %c0_14], %21 {strides = array<i32>} : memref<1x2x2x64xbf16, #tpu.memory_space<vmem>>, vector<1x1x2x64xbf16>,
    %cst_15 = arith.constant dense<0.000000e+00> : vector<64xf32>
    %22 = vector.multi_reduction <add>, %16, %cst_15 [0] : vector<2x64xf32> to vector<64xf32>
    %23 = vector.shape_cast %22 : vector<64xf32> to vector<1x64xf32>
    %24 = arith.addf %1, %23 : vector<1x64xf32>
    %25 = arith.mulf %16, %16 : vector<2x64xf32>
    %cst_16 = arith.constant dense<0.000000e+00> : vector<64xf32>
    %26 = vector.multi_reduction <add>, %25, %cst_16 [0] : vector<2x64xf32> to vector<64xf32>
    %27 = vector.shape_cast %26 : vector<64xf32> to vector<1x64xf32>
    %28 = arith.addf %1, %27 : vector<1x64xf32>
    %c1_i32_17 = arith.constant 1 : i32
    %29 = arith.addi %0, %c1_i32_17 : i32
    %c0_18 = arith.constant 0 : index
    %30 = arith.index_cast %29 : i32 to index
    %c0_19 = arith.constant 0 : index
    %c0_20 = arith.constant 0 : index
    %31 = vector.load %arg2[%c0_18, %30, %c0_19, %c0_20] : memref<1x3x2x256xbf16, #tpu.memory_space<vmem>>, vector<1x1x2x256xbf16>
    %32 = vector.shape_cast %31 : vector<1x1x2x256xbf16> to vector<2x256xbf16>
    %c0_21 = arith.constant 0 : index
    %c0_22 = arith.constant 0 : index
    %c0_23 = arith.constant 0 : index
    %33 = vector.load %arg3[%c0_21, %c0_22, %c0_23] : memref<2x256x64xbf16, #tpu.memory_space<vmem>>, vector<1x256x64xbf16>
    %34 = vector.shape_cast %33 : vector<1x256x64xbf16> to vector<256x64xbf16>
    %cst_24 = arith.constant dense<0.000000e+00> : vector<2x64xf32>
    %35 = tpu.matmul %32, %34, %cst_24 {dimension_numbers = #tpu.dot_dimension_numbers<[1], [0], [0], [1], [0, 0, 1, 1], [], []>} : vector<2x256xbf16>, vector<256x64xbf16>, vector<2x64xf32> -> vector<2x64xf32>
    %c1_i32_25 = arith.constant 1 : i32
    %36 = arith.addi %29, %c1_i32_25 : i32
    %c0_26 = arith.constant 0 : index
    %37 = arith.index_cast %36 : i32 to index
    %c0_27 = arith.constant 0 : index
    %c0_28 = arith.constant 0 : index
    %38 = vector.load %arg2[%c0_26, %37, %c0_27, %c0_28] : memref<1x3x2x256xbf16, #tpu.memory_space<vmem>>, vector<1x1x2x256xbf16>
    %39 = vector.shape_cast %38 : vector<1x1x2x256xbf16> to vector<2x256xbf16>
    %c1_29 = arith.constant 1 : index
    %c0_30 = arith.constant 0 : index
    %c0_31 = arith.constant 0 : index
    %40 = vector.load %arg3[%c1_29, %c0_30, %c0_31] : memref<2x256x64xbf16, #tpu.memory_space<vmem>>, vector<1x256x64xbf16>
    %41 = vector.shape_cast %40 : vector<1x256x64xbf16> to vector<256x64xbf16>
    %cst_32 = arith.constant dense<0.000000e+00> : vector<2x64xf32>
    %42 = tpu.matmul %39, %41, %cst_32 {dimension_numbers = #tpu.dot_dimension_numbers<[1], [0], [0], [1], [0, 0, 1, 1], [], []>} : vector<2x256xbf16>, vector<256x64xbf16>, vector<2x64xf32> -> vector<2x64xf32>
    %43 = arith.addf %35, %42 : vector<2x64xf32>
    %44 = arith.truncf %43 : vector<2x64xf32> to vector<2x64xbf16>
    %c0_33 = arith.constant 0 : index
    %45 = arith.index_cast %c1_i32_17 : i32 to index
    %c0_34 = arith.constant 0 : index
    %c0_35 = arith.constant 0 : index
    %46 = vector.load %arg4[%c0_33, %45, %c0_34, %c0_35] : memref<1x2x2x64xbf16, #tpu.memory_space<vmem>>, vector<1x1x2x64xbf16>
    %47 = vector.shape_cast %46 : vector<1x1x2x64xbf16> to vector<2x64xbf16>
    %48 = vector.shape_cast %44 : vector<2x64xbf16> to vector<1x1x2x64xbf16>
    tpu.vector_store %arg4[%c0_33, %45, %c0_34, %c0_35], %48 {strides = array<i32>} : memref<1x2x2x64xbf16, #tpu.memory_space<vmem>>, vector<1x1x2x64xbf16>,
    %cst_36 = arith.constant dense<0.000000e+00> : vector<64xf32>
    %49 = vector.multi_reduction <add>, %43, %cst_36 [0] : vector<2x64xf32> to vector<64xf32>
    %50 = vector.shape_cast %49 : vector<64xf32> to vector<1x64xf32>
    %51 = arith.addf %24, %50 : vector<1x64xf32>
    %52 = arith.mulf %43, %43 : vector<2x64xf32>
    %cst_37 = arith.constant dense<0.000000e+00> : vector<64xf32>
    %53 = vector.multi_reduction <add>, %52, %cst_37 [0] : vector<2x64xf32> to vector<64xf32>
    %54 = vector.shape_cast %53 : vector<64xf32> to vector<1x64xf32>
    %55 = arith.addf %28, %54 : vector<1x64xf32>
    %c2_i32_38 = arith.constant 2 : i32
    %c0_39 = arith.constant 0 : index
    %c0_40 = arith.constant 0 : index
    %c0_41 = arith.constant 0 : index
    %c0_42 = arith.constant 0 : index
    %56 = vector.load %arg5[%c0_39, %c0_40, %c0_41, %c0_42] : memref<1x1x1x64xf32, #tpu.memory_space<vmem>>, vector<1x1x1x64xf32>
    %57 = vector.shape_cast %56 : vector<1x1x1x64xf32> to vector<1x64xf32>
    %58 = vector.shape_cast %51 : vector<1x64xf32> to vector<1x1x1x64xf32>
    tpu.vector_store %arg5[%c0_39, %c0_40, %c0_41, %c0_42], %58 {strides = array<i32>} : memref<1x1x1x64xf32, #tpu.memory_space<vmem>>, vector<1x1x1x64xf32>,
    %c0_43 = arith.constant 0 : index
    %c0_44 = arith.constant 0 : index
    %c0_45 = arith.constant 0 : index
    %c0_46 = arith.constant 0 : index
    %59 = vector.load %arg6[%c0_43, %c0_44, %c0_45, %c0_46] : memref<1x1x1x64xf32, #tpu.memory_space<vmem>>, vector<1x1x1x64xf32>
    %60 = vector.shape_cast %59 : vector<1x1x1x64xf32> to vector<1x64xf32>
    %61 = vector.shape_cast %55 : vector<1x64xf32> to vector<1x1x1x64xf32>
    tpu.vector_store %arg6[%c0_43, %c0_44, %c0_45, %c0_46], %61 {strides = array<i32>} : memref<1x1x1x64xf32, #tpu.memory_space<vmem>>, vector<1x1x1x64xf32>,
    return
  }
  func.func @transform_0(%arg0: i32, %arg1: i32) -> (i32, i32, i32, i32) {
    %c0_i32 = arith.constant 0 : i32
    %c0_i32_0 = arith.constant 0 : i32
    %c0_i32_1 = arith.constant 0 : i32
    %c0_i32_2 = arith.constant 0 : i32
    return %arg0, %c0_i32, %c0_i32_0, %c0_i32_1 : i32, i32, i32, i32
  }
  func.func @transform_1(%arg0: i32, %arg1: i32) -> (i32, i32, i32) {
    %c0_i32 = arith.constant 0 : i32
    %c0_i32_0 = arith.constant 0 : i32
    %c0_i32_1 = arith.constant 0 : i32
    %c0_i32_2 = arith.constant 0 : i32
    return %c0_i32, %c0_i32_0, %c0_i32_1 : i32, i32, i32
  }
  func.func @transform_2(%arg0: i32, %arg1: i32) -> (i32, i32, i32, i32) {
    %c0_i32 = arith.constant 0 : i32
    %c0_i32_0 = arith.constant 0 : i32
    %c0_i32_1 = arith.constant 0 : i32
    return %arg0, %arg1, %c0_i32, %c0_i32_0 : i32, i32, i32, i32
  }
  func.func @transform_3(%arg0: i32, %arg1: i32) -> (i32, i32, i32, i32) {
    %c0_i32 = arith.constant 0 : i32
    %c0_i32_0 = arith.constant 0 : i32
    %c0_i32_1 = arith.constant 0 : i32
    return %arg0, %arg1, %c0_i32, %c0_i32_0 : i32, i32, i32, i32
  }
  func.func @transform_4(%arg0: i32, %arg1: i32) -> (i32, i32, i32, i32) {
    %c0_i32 = arith.constant 0 : i32
    %c0_i32_0 = arith.constant 0 : i32
    %c0_i32_1 = arith.constant 0 : i32
    return %arg0, %arg1, %c0_i32, %c0_i32_0 : i32, i32, i32, i32
  }
}

module attributes {stable_mosaic.version = 11 : i64} {
  func.func @_conv_tap_kernel(%arg0: i32, %arg1: i32, %arg2: memref<1x2x1x512xbf16, #tpu.memory_space<vmem>>, %arg3: memref<2x512x128xbf16, #tpu.memory_space<vmem>>, %arg4: memref<1x1x1x128xf32, #tpu.memory_space<vmem>>) attributes {dimension_semantics = [#tpu.dimension_semantics<parallel>, #tpu.dimension_semantics<parallel>], iteration_bounds = array<i64: 2, 1>, scalar_prefetch = 0 : i64, scratch_operands = 0 : i64, tpu.core_type = #tpu.core_type<tc>, window_params = [{transform_indices = @transform_0, window_bounds = array<i64: 1, 2, 1, 512>}, {pipeline_mode = #tpu.pipeline_mode<synchronous>, transform_indices = @transform_1, window_bounds = array<i64: 2, 512, 128>}, {transform_indices = @transform_2, window_bounds = array<i64: 1, 1, 1, 128>}]} {
    %c1_i32 = arith.constant 1 : i32
    %0 = arith.muli %arg1, %c1_i32 : i32
    %c0_i32 = arith.constant 0 : i32
    %1 = arith.addi %0, %c0_i32 : i32
    %c0 = arith.constant 0 : index
    %2 = arith.index_cast %1 : i32 to index
    %c0_0 = arith.constant 0 : index
    %c0_1 = arith.constant 0 : index
    %3 = vector.load %arg2[%c0, %2, %c0_0, %c0_1] : memref<1x2x1x512xbf16, #tpu.memory_space<vmem>>, vector<1x1x1x512xbf16>
    %4 = vector.shape_cast %3 : vector<1x1x1x512xbf16> to vector<1x512xbf16>
    %c0_2 = arith.constant 0 : index
    %c0_3 = arith.constant 0 : index
    %c0_4 = arith.constant 0 : index
    %5 = vector.load %arg3[%c0_2, %c0_3, %c0_4] : memref<2x512x128xbf16, #tpu.memory_space<vmem>>, vector<1x512x128xbf16>
    %6 = vector.shape_cast %5 : vector<1x512x128xbf16> to vector<512x128xbf16>
    %cst = arith.constant dense<0.000000e+00> : vector<1x128xf32>
    %7 = tpu.matmul %4, %6, %cst {dimension_numbers = #tpu.dot_dimension_numbers<[1], [0], [0], [1], [0, 0, 1, 1], [], []>} : vector<1x512xbf16>, vector<512x128xbf16>, vector<1x128xf32> -> vector<1x128xf32>
    %c1_i32_5 = arith.constant 1 : i32
    %8 = arith.addi %1, %c1_i32_5 : i32
    %c0_6 = arith.constant 0 : index
    %9 = arith.index_cast %8 : i32 to index
    %c0_7 = arith.constant 0 : index
    %c0_8 = arith.constant 0 : index
    %10 = vector.load %arg2[%c0_6, %9, %c0_7, %c0_8] : memref<1x2x1x512xbf16, #tpu.memory_space<vmem>>, vector<1x1x1x512xbf16>
    %11 = vector.shape_cast %10 : vector<1x1x1x512xbf16> to vector<1x512xbf16>
    %c1 = arith.constant 1 : index
    %c0_9 = arith.constant 0 : index
    %c0_10 = arith.constant 0 : index
    %12 = vector.load %arg3[%c1, %c0_9, %c0_10] : memref<2x512x128xbf16, #tpu.memory_space<vmem>>, vector<1x512x128xbf16>
    %13 = vector.shape_cast %12 : vector<1x512x128xbf16> to vector<512x128xbf16>
    %cst_11 = arith.constant dense<0.000000e+00> : vector<1x128xf32>
    %14 = tpu.matmul %11, %13, %cst_11 {dimension_numbers = #tpu.dot_dimension_numbers<[1], [0], [0], [1], [0, 0, 1, 1], [], []>} : vector<1x512xbf16>, vector<512x128xbf16>, vector<1x128xf32> -> vector<1x128xf32>
    %15 = arith.addf %7, %14 : vector<1x128xf32>
    %cst_12 = arith.constant 0.000000e+00 : f32
    %16 = vector.broadcast %cst_12 : f32 to vector<1x128xf32>
    %17 = arith.subf %16, %15 : vector<1x128xf32>
    %18 = math.exp %17 : vector<1x128xf32>
    %cst_13 = arith.constant 1.000000e+00 : f32
    %19 = vector.broadcast %cst_13 : f32 to vector<1x128xf32>
    %20 = arith.addf %19, %18 : vector<1x128xf32>
    %cst_14 = arith.constant 1.000000e+00 : f32
    %21 = vector.broadcast %cst_14 : f32 to vector<1x128xf32>
    %22 = arith.divf %21, %20 : vector<1x128xf32>
    %c0_15 = arith.constant 0 : index
    %23 = arith.index_cast %c0_i32 : i32 to index
    %c0_16 = arith.constant 0 : index
    %c0_17 = arith.constant 0 : index
    %24 = vector.load %arg4[%c0_15, %23, %c0_16, %c0_17] : memref<1x1x1x128xf32, #tpu.memory_space<vmem>>, vector<1x1x1x128xf32>
    %25 = vector.shape_cast %24 : vector<1x1x1x128xf32> to vector<1x128xf32>
    %26 = vector.shape_cast %22 : vector<1x128xf32> to vector<1x1x1x128xf32>
    tpu.vector_store %arg4[%c0_15, %23, %c0_16, %c0_17], %26 {strides = array<i32>} : memref<1x1x1x128xf32, #tpu.memory_space<vmem>>, vector<1x1x1x128xf32>,
    %c1_i32_18 = arith.constant 1 : i32
    return
  }
  func.func @transform_0(%arg0: i32, %arg1: i32) -> (i32, i32, i32, i32) {
    %c0_i32 = arith.constant 0 : i32
    %c0_i32_0 = arith.constant 0 : i32
    %c0_i32_1 = arith.constant 0 : i32
    %c0_i32_2 = arith.constant 0 : i32
    return %arg0, %c0_i32, %c0_i32_0, %c0_i32_1 : i32, i32, i32, i32
  }
  func.func @transform_1(%arg0: i32, %arg1: i32) -> (i32, i32, i32) {
    %c0_i32 = arith.constant 0 : i32
    %c0_i32_0 = arith.constant 0 : i32
    %c0_i32_1 = arith.constant 0 : i32
    %c0_i32_2 = arith.constant 0 : i32
    return %c0_i32, %c0_i32_0, %c0_i32_1 : i32, i32, i32
  }
  func.func @transform_2(%arg0: i32, %arg1: i32) -> (i32, i32, i32, i32) {
    %c0_i32 = arith.constant 0 : i32
    %c0_i32_0 = arith.constant 0 : i32
    %c0_i32_1 = arith.constant 0 : i32
    return %arg0, %arg1, %c0_i32, %c0_i32_0 : i32, i32, i32, i32
  }
}

</mosaic_0001>

<llo_original>
// kernel: dcgan_discriminator.5
$region0: #{dcgan_discriminator.5}
  #allocation0 [shape = 'u32[]', space=smem, size = 0x4, offset = 0x4, fixed_abs, tag = 'smem constant byte address 0x4 - core index']
  #allocation1 [shape = 'u32[144,128]{1,0:T(1,128)}', space=vmem, size = 0x12000, scoped, tag = 'internal scratch']
  %s0 = inlined_call_operand.hbm [shape: bf16[2,17,16,24], index: 0, kind: input, shape index: {}]
  %s1 = inlined_call_operand.hbm [shape: bf16[2,24,8], index: 1, kind: input, shape index: {}]
  %s2 = inlined_call_operand.hbm [shape: bf16[2,16,16,8], index: 2, kind: output, shape index: {0}]
  %s3 = inlined_call_operand.hbm [shape: f32[2,1,1,8], index: 3, kind: output, shape index: {1}]
  %s4 = inlined_call_operand.hbm [shape: f32[2,1,1,8], index: 4, kind: output, shape index: {2}]
  %5 = xla_tuple %s2, %s3, %s4
  %s6 = sld [smem:[#allocation0]]
  $region72: #{dcgan_discriminator.5} parent=0
    _
  %s8 = ssub.s32 1, %s6
  %s9 = scalar_select 0, %s8, %s6
  $region1: #{dcgan_discriminator.5} parent=0
    #allocation2 [shape = 'u8[139264]{0}', space=vmem, size = 0x22000, scoped, tag = 'input window, operand 0']
    #allocation3 [shape = 's32[2]{0}', space=sflag, size = 0x8, scoped, tag = 'scoped memory for dcgan_discriminator.5']
    #allocation4 [shape = 's32[2]{0}', space=sflag, size = 0x8, scoped, tag = 'scoped memory for dcgan_discriminator.5']
    #allocation5 [shape = 'u8[12288]{0}', space=vmem, size = 0x3000, scoped, tag = 'input window, operand 1, single buffered']
    #allocation6 [shape = 's32[1]{0}', space=sflag, size = 0x4, scoped, tag = 'scoped memory for dcgan_discriminator.5']
    #allocation7 [shape = 'u8[131072]{0}', space=vmem, size = 0x20000, scoped, tag = 'output window, operand 0']
    #allocation8 [shape = 'u8[1024]{0}', space=vmem, size = 0x400, scoped, tag = 'output window, operand 1']
    #allocation9 [shape = 's32[2]{0}', space=sflag, size = 0x8, scoped, tag = 'scoped memory for dcgan_discriminator.5']
    #allocation10 [shape = 'u8[1024]{0}', space=vmem, size = 0x400, scoped, tag = 'output window, operand 2']
    %10 = vsyncpa [#allocation3], 0
    %s11 = scalar_lea.sflag [#allocation3], 1
    %12 = vsyncpa %s11, 0
    %13 = vsyncpa [#allocation6], 0
    %14 = vsyncpa [#allocation4], 0
    %s15 = scalar_lea.sflag [#allocation4], 1
    %16 = vsyncpa %s15, 0
    %17 = vsyncpa [#allocation9], 0
    %s18 = scalar_lea.sflag [#allocation9], 1
    %19 = vsyncpa %s18, 0
    loop: start=0, step=1, limit=4
    $region2: #{dcgan_discriminator.5} parent=1 // loop_pre_header
      _
    $region3: #{dcgan_discriminator.5} parent=1 // loop_header
      %s21 = sphi 0, %s25
      %p22 = scmp.ge.s32.totalorder %s21, 4
      %s28 = sphi 0, %s40
      %s29 = sphi 0, %s36
      %s30 = sphi 0, %s28
      %s31 = sphi 0, %s29
      %s32 = sphi 0, %s30
      %s33 = sphi 0, %s31
      %s43 = sphi 0, %s45
      %s46 = sphi 0, %s43
      %s47 = sphi 0, %s46
      %s63 = sphi 0, %s47
      %s67 = sphi 0, %s67
      %s69 = sphi 0, %s67
      %s70 = sphi 0, %s69
      %s84 = sphi 0, %s70
      %s92 = sphi 0, %s94
      %s95 = sphi 0, %s92
      %s96 = sphi 0, %s95
      %s112 = sphi 0, %s96
      %s120 = sphi 0, %s122
      %s123 = sphi 0, %s120
      %s124 = sphi 0, %s123
      %s140 = sphi 0, %s124
      %s148 = sphi 0, %s150
      %s151 = sphi 0, %s148
      %s152 = sphi 0, %s151
      %s168 = sphi 0, %s152
    $region4: #{dcgan_discriminator.5} parent=1 // loop_header_branch
      %24 = sbr.rel (%p22) target = $region8
    $region5: #{dcgan_discriminator.5} parent=1 // loop_body
      %s26 = ssub.s32 %s21, 1
      %s27 = ssub.s32 %s21, 2
      %s34 = sadd.s32 1, %s29
      %p35 = scmp.ge.s32.totalorder %s34, 1
      %s36 = scalar_select %p35, 0, %s34
      %s37 = sadd.s32 1, %s28
      %s38 = scalar_select %p35, %s37, %s28
      %p39 = scmp.ge.s32.totalorder %s38, 2
      %s40 = scalar_select %p39, 0, %s38
      %s41 = ssub.s32 %s28, %s40
      %p42 = scmp.eq.s32.totalorder %s41, 0
      %s44 = sadd.s32 %s43, 1
      %s45 = scalar_select %p42, %s43, %s44
      %p48 = pneg %p42
      %p49 = scmp.eq.s32.totalorder %s21, 1
      %p50 = por %p48, %p49
      %p51 = scmp.ne.s32.totalorder %s43, %s46
      %p52 = scmp.eq.s32.totalorder %s21, 0
      %p53 = por %p51, %p52
      %p54 = scmp.ne.s32.totalorder %s43, %s46
      %p55 = scmp.eq.s32.totalorder %s26, 1
      %p56 = por %p54, %p55
      %p57 = scmp.ne.s32.totalorder %s46, %s47
      %p58 = scmp.eq.s32.totalorder %s26, 0
      %p59 = por %p57, %p58
      %p60 = scmp.ne.s32.totalorder %s46, %s47
      %p61 = scmp.eq.s32.totalorder %s27, 1
      %p62 = por %p60, %p61
      %p64 = scmp.ne.s32.totalorder %s47, %s63
      %p65 = scmp.eq.s32.totalorder %s27, 0
      %p66 = por %p64, %p65
      %s68 = sadd.s32 %s67, 1
      %p71 = scmp.eq.s32.totalorder %s21, 1
      %p72 = scmp.ne.s32.totalorder %s67, %s69
      %p73 = scmp.eq.s32.totalorder %s21, 0
      %p74 = por %p72, %p73
      %p75 = scmp.ne.s32.totalorder %s67, %s69
      %p76 = scmp.eq.s32.totalorder %s26, 1
      %p77 = por %p75, %p76
      %p78 = scmp.ne.s32.totalorder %s69, %s70
      %p79 = scmp.eq.s32.totalorder %s26, 0
      %p80 = por %p78, %p79
      %p81 = scmp.ne.s32.totalorder %s69, %s70
      %p82 = scmp.eq.s32.totalorder %s27, 1
      %p83 = por %p81, %p82
      %p85 = scmp.ne.s32.totalorder %s70, %s84
      %p86 = scmp.eq.s32.totalorder %s27, 0
      %p87 = por %p85, %p86
      %s88 = ssub.s32 %s28, %s40
      %s89 = ssub.s32 %s29, %s36
      %s90 = sor.u32 %s88, %s89
      %p91 = scmp.eq.s32.totalorder %s90, 0
      %s93 = sadd.s32 %s92, 1
      %s94 = scalar_select %p91, %s92, %s93
      %p97 = pneg %p91
      %p98 = scmp.eq.s32.totalorder %s21, 1
      %p99 = por %p97, %p98
      %p100 = scmp.ne.s32.totalorder %s92, %s95
      %p101 = scmp.eq.s32.totalorder %s21, 0
      %p102 = por %p100, %p101
      %p103 = scmp.ne.s32.totalorder %s92, %s95
      %p104 = scmp.eq.s32.totalorder %s26, 1
      %p105 = por %p103, %p104
      %p106 = scmp.ne.s32.totalorder %s95, %s96
      %p107 = scmp.eq.s32.totalorder %s26, 0
      %p108 = por %p106, %p107
      %p109 = scmp.ne.s32.totalorder %s95, %s96
      %p110 = scmp.eq.s32.totalorder %s27, 1
      %p111 = por %p109, %p110
      %p113 = scmp.ne.s32.totalorder %s96, %s112
      %p114 = scmp.eq.s32.totalorder %s27, 0
      %p115 = por %p113, %p114
      %s116 = ssub.s32 %s28, %s40
      %s117 = ssub.s32 %s29, %s36
      %s118 = sor.u32 %s116, %s117
      %p119 = scmp.eq.s32.totalorder %s118, 0
      %s121 = sadd.s32 %s120, 1
      %s122 = scalar_select %p119, %s120, %s121
      %p125 = pneg %p119
      %p126 = scmp.eq.s32.totalorder %s21, 1
      %p127 = por %p125, %p126
      %p128 = scmp.ne.s32.totalorder %s120, %s123
      %p129 = scmp.eq.s32.totalorder %s21, 0
      %p130 = por %p128, %p129
      %p131 = scmp.ne.s32.totalorder %s120, %s123
      %p132 = scmp.eq.s32.totalorder %s26, 1
      %p133 = por %p131, %p132
      %p134 = scmp.ne.s32.totalorder %s123, %s124
      %p135 = scmp.eq.s32.totalorder %s26, 0
      %p136 = por %p134, %p135
      %p137 = scmp.ne.s32.totalorder %s123, %s124
      %p138 = scmp.eq.s32.totalorder %s27, 1
      %p139 = por %p137, %p138
      %p141 = scmp.ne.s32.totalorder %s124, %s140
      %p142 = scmp.eq.s32.totalorder %s27, 0
      %p143 = por %p141, %p142
      %s144 = ssub.s32 %s28, %s40
      %s145 = ssub.s32 %s29, %s36
      %s146 = sor.u32 %s144, %s145
      %p147 = scmp.eq.s32.totalorder %s146, 0
      %s149 = sadd.s32 %s148, 1
      %s150 = scalar_select %p147, %s148, %s149
      %p153 = pneg %p147
      %p154 = scmp.eq.s32.totalorder %s21, 1
      %p155 = por %p153, %p154
      %p156 = scmp.ne.s32.totalorder %s148, %s151
      %p157 = scmp.eq.s32.totalorder %s21, 0
      %p158 = por %p156, %p157
      %p159 = scmp.ne.s32.totalorder %s148, %s151
      %p160 = scmp.eq.s32.totalorder %s26, 1
      %p161 = por %p159, %p160
      %p162 = scmp.ne.s32.totalorder %s151, %s152
      %p163 = scmp.eq.s32.totalorder %s26, 0
      %p164 = por %p162, %p163
      %p165 = scmp.ne.s32.totalorder %s151, %s152
      %p166 = scmp.eq.s32.totalorder %s27, 1
      %p167 = por %p165, %p166
      %p169 = scmp.ne.s32.totalorder %s152, %s168
      %p170 = scmp.eq.s32.totalorder %s27, 0
      %p171 = por %p169, %p170
      %p172 = scmp.le.s32.totalorder 1, %s21
      %p173 = scmp.lt.s32.totalorder %s21, 3
      %p174 = pnand %p172, %p173
      %p175 = pneg %p174
      // Predicated region
      $region9: #{dcgan_discriminator.5} parent=5 // pred_check
        _
      $region10: #{dcgan_discriminator.5} parent=5 // pred_check_branch
        %177 = sbr.rel (%p174) target = $region12
      $region11: #{dcgan_discriminator.5} parent=5 // pred_region
        %s178 = ssub.s32 %s21, 1
        // Predicated region
        $region13: #{dcgan_discriminator.5} parent=11 // pred_check
          %p179 = pneg %p80
        $region14: #{dcgan_discriminator.5} parent=11 // pred_check_branch
          %181 = sbr.rel (%p179) target = $region16
        $region15: #{dcgan_discriminator.5} parent=11 // pred_region
          %s183 = ssub.s32 384, 384
          %184 = vsyncadd [#allocation6], %s183
          %s185 = sshll.u32 [#allocation5], 4
          %s186 = int_to_ptr.vmem [resolvable:$true] %s185
          %191 = dma.hbm_to_vmem [thread:$0]  %s1, 384, %s186, [#allocation6], 64, 64, 4
        $region16: #{dcgan_discriminator.5} parent=11 // pred_fallthru
          _
      $region12: #{dcgan_discriminator.5} parent=5 // pred_fallthru
        _
      %p192 = scmp.lt.s32.totalorder %s21, 2
      // Predicated region
      $region17: #{dcgan_discriminator.5} parent=5 // pred_check
        %p193 = pneg %p192
      $region18: #{dcgan_discriminator.5} parent=5 // pred_check_branch
        %195 = sbr.rel (%p193) target = $region20
      $region19: #{dcgan_discriminator.5} parent=5 // pred_region
        // Predicated region
        $region21: #{dcgan_discriminator.5} parent=19 // pred_check
          %p196 = pneg %p53
        $region22: #{dcgan_discriminator.5} parent=19 // pred_check_branch
          %198 = sbr.rel (%p196) target = $region24
        $region23: #{dcgan_discriminator.5} parent=19 // pred_region
          %s199 = sand.u32 %s43, 1
          %s200 = scalar_lea.sflag [#allocation3], %s199
          %s201 = sand.u32 %s43, 1
          %s202 = smul.addr %s201, 136
          %s203 = scalar_lea.vmem [#allocation2], %s202
          %s205 = ssub.s32 2176, 2176
          %206 = vsyncadd %s200, %s205
          %s207 = smul.addr %s28, 34
          %s208 = smul.addr %s207, 64
          %s209 = scalar_lea.hbm %s0, %s208
          %s210 = sshll.u32 %s203, 4
          %s211 = int_to_ptr.vmem [resolvable:$true] %s210
          %216 = dma.hbm_to_vmem [thread:$0]  %s209, 2176, %s211, %s200, 64, 64, 4
        $region24: #{dcgan_discriminator.5} parent=19 // pred_fallthru
          _
      $region20: #{dcgan_discriminator.5} parent=5 // pred_fallthru
        _
      %p217 = scmp.le.s32.totalorder 1, %s21
      %p218 = scmp.lt.s32.totalorder %s21, 3
      %p219 = pnand %p217, %p218
      %p220 = pneg %p219
      // Predicated region
      $region25: #{dcgan_discriminator.5} parent=5 // pred_check
        _
      $region26: #{dcgan_discriminator.5} parent=5 // pred_check_branch
        %222 = sbr.rel (%p219) target = $region28
      $region27: #{dcgan_discriminator.5} parent=5 // pred_region
        %s223 = ssub.s32 %s21, 1
        %s224 = sand.u32 %s46, 1
        %s225 = scalar_lea.sflag [#allocation3], %s224
        %s226 = sand.u32 %s46, 1
        %s227 = smul.addr %s226, 136
        %s228 = scalar_lea.vmem [#allocation2], %s227
        // Predicated region
        $region29: #{dcgan_discriminator.5} parent=27 // pred_check
          %p229 = pneg %p59
        $region30: #{dcgan_discriminator.5} parent=27 // pred_check_branch
          %231 = sbr.rel (%p229) target = $region32
        $region31: #{dcgan_discriminator.5} parent=27 // pred_region
          %232 = dma.done %s225, 2176
        $region32: #{dcgan_discriminator.5} parent=27 // pred_fallthru
          _
        // Predicated region
        $region33: #{dcgan_discriminator.5} parent=27 // pred_check
          %p233 = pneg %p80
        $region34: #{dcgan_discriminator.5} parent=27 // pred_check_branch
          %235 = sbr.rel (%p233) target = $region36
        $region35: #{dcgan_discriminator.5} parent=27 // pred_region
          %236 = dma.done [#allocation6], 384
        $region36: #{dcgan_discriminator.5} parent=27 // pred_fallthru
          _
        %s237 = sand.u32 %s46, 1
        %s238 = scalar_lea.sflag [#allocation3], %s237
        %s239 = sand.u32 %s46, 1
        %s240 = smul.addr %s239, 136
        %s241 = scalar_lea.vmem [#allocation2], %s240
        %p242 = pneg %p59
        %p243 = pneg %p56
        %p244 = pneg %p80
        %p245 = pneg %p77
        %p246 = pneg %p108
        %p247 = pneg %p105
        %s248 = sand.u32 %s95, 1
        %s249 = scalar_lea.sflag [#allocation4], %s248
        %s250 = sand.u32 %s95, 1
        %s251 = smul.addr %s250, 128
        %s252 = scalar_lea.vmem [#allocation7], %s251
        %p253 = pneg %p136
        %p254 = pneg %p133
        %s255 = sand.u32 %s26, 1
        %s256 = scalar_lea.sflag [#allocation9], %s255
        %s257 = sand.u32 %s123, 1
        %s258 = scalar_lea.vmem [#allocation8], %s257
        %p259 = pneg %p164
        %p260 = pneg %p161
        %s261 = sand.u32 %s26, 1
        %s262 = scalar_lea.sflag [#allocation9], %s261
        %s263 = sand.u32 %s151, 1
        %s264 = scalar_lea.vmem [#allocation10], %s263
        %s265 = smul.u32 16, %s31
        %s267 = smul.u32 %s31, 16
        loop: start=0, step=1, limit=16
        $region37: #{dcgan_discriminator.5} parent=27 // loop_pre_header
          _
        $region38: #{dcgan_discriminator.5} parent=27 // loop_header
          %s269 = sphi 0, %s273
          %p270 = scmp.ge.s32.totalorder %s269, 16
          %v274 = vphi 0.0, %v443
          %v275 = vphi 0.0, %v455
        $region39: #{dcgan_discriminator.5} parent=27 // loop_header_branch
          %272 = sbr.rel (%p270) target = $region43
        $region40: #{dcgan_discriminator.5} parent=27 // loop_body
          %s276 = sadd.s32 %s267, %s269
          %s277 = smul.u32 %s276, 2
          %s278 = smul.addr %s277, 4
          %s279 = scalar_lea.vmem %s228, %s278 [#allocation2]
          %v280 = vld [vmem:[%s279] sm:$0xf]
          %v281 = vld [vmem:[%s279 + $0x4] sm:$0xf]
          %v282 = vld [vmem:[#allocation5] sm:$0xf]
          %v283 = vld [vmem:[#allocation5 + $0x4] sm:$0xf]
          %v284 = vld [vmem:[#allocation5 + $0x8] sm:$0xf]
          %s285 = sadd.s32 %s276, 1
          %s286 = smul.u32 %s285, 2
          %s287 = smul.addr %s286, 4
          %s288 = scalar_lea.vmem %s228, %s287 [#allocation2]
          %v289 = vld [vmem:[%s288] sm:$0xf]
          %v290 = vld [vmem:[%s288 + $0x4] sm:$0xf]
          %s291 = scalar_lea.vmem [#allocation5], 12
          %v292 = vld [vmem:[%s291] sm:$0xf]
          %v293 = vld [vmem:[%s291 + $0x4] sm:$0xf]
          %v294 = vld [vmem:[%s291 + $0x8] sm:$0xf]
          %v297 = vunpack.c.l.b16 %v289
          %v298 = vunpack.c.l.b16 %v290
          %v299 = vpack.c.b16 %v298, %v297
          %v303 = vunpack.c.l.b16 %v292
          %v304 = vunpack.c.l.b16 %v293
          %v305 = vunpack.c.l.b16 %v294
          %v306 = vpack.c.b16 %v304, %v303
          %v307 = vpack.c.b16 %v305, %v305
          %vm309 = vcmask 195584
          %v311 = vsel %vm309, %v299, 0
          %vm313 = vcmask 1043456
          %v315 = vsel %vm313, %v307, 0
          %317 = vmatprep.subr.bf16.mxu0 0
          %318 = vmatpush1.bf16.msra.mxu0 %v306
          %319 = vmatprep.subr.bf16.mxu0 0
          %320 = vmatpush1.bf16.msra.mxu0 %v315
          %321 = vmatprep.subr.bf16.mxu0 0
          %322 = vmatpush1.bf16.msra.mxu0 0
          %323 = vmatprep.subr.bf16.mxu0 0
          %324 = vmatpush1.bf16.msra.mxu0 0
          %325 = vmatprep.subr.bf16.mxu0 0
          %326 = vmatpush1.bf16.msra.mxu0 0
          %327 = vmatprep.subr.bf16.mxu0 0
          %328 = vmatpush1.bf16.msra.mxu0 0
          %329 = vmatprep.subr.bf16.mxu0 0
          %330 = vmatpush1.bf16.msra.mxu0 0
          %331 = vmatprep.subr.bf16.mxu0 0
          %332 = vmatpush1.bf16.msra.mxu0 0
          %333 = vmatprep.subr.bf16.mxu0 0
          %334 = vmatpush1.bf16.msra.mxu0 0
          %335 = vmatprep.subr.bf16.mxu0 0
          %336 = vmatpush1.bf16.msra.mxu0 0
          %337 = vmatprep.subr.bf16.mxu0 0
          %338 = vmatpush1.bf16.msra.mxu0 0
          %339 = vmatprep.subr.bf16.mxu0 0
          %340 = vmatpush1.bf16.msra.mxu0 0
          %341 = vmatprep.subr.bf16.mxu0 0
          %342 = vmatpush1.bf16.msra.mxu0 0
          %343 = vmatprep.subr.bf16.mxu0 0
          %344 = vmatpush1.bf16.msra.mxu0 0
          %345 = vmatprep.subr.bf16.mxu0 0
          %346 = vmatpush1.bf16.msra.mxu0 0
          %347 = vmatprep.subr.bf16.mxu0 0
          %348 = vmatpush1.bf16.msra.mxu0 0
          %349 = vmatprep.mubr.bf16.mxu0 0
          %350 = vmatmul.mubr.bf16.gmra.mrb[0].mxu0 %v311
          %v351 = vpop.f32.mrb[0].mxu0
          %v352 = vadd.f32 0.0, %v351
          %v353 = vpop.f32.mrb[0].mxu0
          %v354 = vpop.f32.mrb[0].mxu0
          %v355 = vadd.f32 0.0, %v354
          %v356 = vpop.f32.mrb[0].mxu0
          %357 = vdwg.mxu0
          %v360 = vunpack.c.l.b16 %v280
          %v361 = vunpack.c.l.b16 %v281
          %v362 = vpack.c.b16 %v361, %v360
          %v366 = vunpack.c.l.b16 %v282
          %v367 = vunpack.c.l.b16 %v283
          %v368 = vunpack.c.l.b16 %v284
          %v369 = vpack.c.b16 %v367, %v366
          %v370 = vpack.c.b16 %v368, %v368
          %v373 = vsel %vm309, %v362, 0
          %v376 = vsel %vm313, %v370, 0
          %378 = vmatprep.subr.bf16.mxu0 0
          %379 = vmatpush1.bf16.msra.mxu0 %v369
          %380 = vmatprep.subr.bf16.mxu0 0
          %381 = vmatpush1.bf16.msra.mxu0 %v376
          %382 = vmatprep.subr.bf16.mxu0 0
          %383 = vmatpush1.bf16.msra.mxu0 0
          %384 = vmatprep.subr.bf16.mxu0 0
          %385 = vmatpush1.bf16.msra.mxu0 0
          %386 = vmatprep.subr.bf16.mxu0 0
          %387 = vmatpush1.bf16.msra.mxu0 0
          %388 = vmatprep.subr.bf16.mxu0 0
          %389 = vmatpush1.bf16.msra.mxu0 0
          %390 = vmatprep.subr.bf16.mxu0 0
          %391 = vmatpush1.bf16.msra.mxu0 0
          %392 = vmatprep.subr.bf16.mxu0 0
          %393 = vmatpush1.bf16.msra.mxu0 0
          %394 = vmatprep.subr.bf16.mxu0 0
          %395 = vmatpush1.bf16.msra.mxu0 0
          %396 = vmatprep.subr.bf16.mxu0 0
          %397 = vmatpush1.bf16.msra.mxu0 0
          %398 = vmatprep.subr.bf16.mxu0 0
          %399 = vmatpush1.bf16.msra.mxu0 0
          %400 = vmatprep.subr.bf16.mxu0 0
          %401 = vmatpush1.bf16.msra.mxu0 0
          %402 = vmatprep.subr.bf16.mxu0 0
          %403 = vmatpush1.bf16.msra.mxu0 0
          %404 = vmatprep.subr.bf16.mxu0 0
          %405 = vmatpush1.bf16.msra.mxu0 0
          %406 = vmatprep.subr.bf16.mxu0 0
          %407 = vmatpush1.bf16.msra.mxu0 0
          %408 = vmatprep.subr.bf16.mxu0 0
          %409 = vmatpush1.bf16.msra.mxu0 0
          %410 = vmatprep.mubr.bf16.mxu0 0
          %411 = vmatmul.mubr.bf16.gmra.mrb[0].mxu0 %v373
          %v412 = vpop.f32.mrb[0].mxu0
          %v413 = vadd.f32 %v352, %v412
          %v414 = vpop.f32.mrb[0].mxu0
          %v415 = vpop.f32.mrb[0].mxu0
          %v416 = vadd.f32 %v355, %v415
          %v417 = vpop.f32.mrb[0].mxu0
          %418 = vdwg.mxu0
          %v419 = vpack.c.bf16 %v416, %v413
          %v421 = vunpack.c.l.b16 %v419
          %v422 = vunpack.c.h.b16 %v419
          %v423 = vpack.c.b16 %v421, %v421
          %v424 = vpack.c.b16 %v422, %v422
          %s427 = smul.u32 %s269, 2
          %s428 = smul.addr %s427, 4
          %s429 = scalar_lea.vmem %s252, %s428 [#allocation7]
          %vm430 = vcmask 60416
          %431 = vst.msk [vmem:[%s429] sm:$0xf] %vm430, %v423
          %432 = vst.msk [vmem:[%s429 + $0x4] sm:$0xf] %vm430, %v424
          %vm433 = vcmask 64512
          %v434 = vsel %vm433, %v413, 0.0
          %v435 = vsel %vm433, %v416, 0.0
          %v436 = vadd.f32 %v434, %v435
          %v437 = vrot.slane %v436, 4
          %v438 = vadd.f32 %v436, %v437
          %v439 = vrot.slane %v438, 2
          %v440 = vadd.f32 %v438, %v439
          %v441 = vrot.slane %v440, 1
          %v442 = vadd.f32 %v440, %v441
          %v443 = vadd.f32 %v274, %v442
          %v444 = vmul.f32 %v413, %v413
          %v445 = vmul.f32 %v416, %v416
          %v446 = vsel %vm433, %v444, 0.0
          %v447 = vsel %vm433, %v445, 0.0
          %v448 = vadd.f32 %v446, %v447
          %v449 = vrot.slane %v448, 4
          %v450 = vadd.f32 %v448, %v449
          %v451 = vrot.slane %v450, 2
          %v452 = vadd.f32 %v450, %v451
          %v453 = vrot.slane %v452, 1
          %v454 = vadd.f32 %v452, %v453
          %v455 = vadd.f32 %v275, %v454
        $region41: #{dcgan_discriminator.5} parent=27 // loop_footer
          %s273 = sadd.s32 1, %s269
        $region42: #{dcgan_discriminator.5} parent=27 // loop_footer_branch
          %268 = sbr.rel target = $region38
        $region43: #{dcgan_discriminator.5} parent=27 // loop_exit
          _
        %vm456 = vcmask 57344
        %457 = vst.msk [vmem:[%s258] sm:$0x1] %vm456, %v274
        %458 = vst.msk [vmem:[%s264] sm:$0x1] %vm456, %v275
        %s459 = sand.u32 %s95, 1
        %s460 = scalar_lea.sflag [#allocation4], %s459
        %s461 = sand.u32 %s95, 1
        %s462 = smul.addr %s461, 128
        %s463 = scalar_lea.vmem [#allocation7], %s462
        %s464 = sand.u32 %s26, 1
        %s465 = scalar_lea.sflag [#allocation9], %s464
        %s466 = sand.u32 %s123, 1
        %s467 = scalar_lea.vmem [#allocation8], %s466
        %s468 = sand.u32 %s26, 1
        %s469 = scalar_lea.sflag [#allocation9], %s468
        %s470 = sand.u32 %s151, 1
        %s471 = scalar_lea.vmem [#allocation10], %s470
        // Predicated region
        $region44: #{dcgan_discriminator.5} parent=27 // pred_check
          %p472 = pneg %p105
        $region45: #{dcgan_discriminator.5} parent=27 // pred_check_branch
          %474 = sbr.rel (%p472) target = $region47
        $region46: #{dcgan_discriminator.5} parent=27 // pred_region
          %s475 = smul.u32 16, %s31
          %s477 = ssub.s32 2048, 2048
          %478 = vsyncadd %s460, %s477
          %s479 = smul.addr %s475, 2
          %s480 = smul.addr %s30, 32
          %s481 = sadd.s32 %s479, %s480
          %s482 = smul.addr %s481, 64
          %s483 = scalar_lea.hbm %s2, %s482
          %s484 = sshll.u32 %s463, 4
          %s485 = int_to_ptr.vmem [resolvable:$true] %s484
          %490 = dma.vmem_to_hbm [thread:$0]  %s485, 2048, %s483, %s460, 64, 64, 4
        $region47: #{dcgan_discriminator.5} parent=27 // pred_fallthru
          _
        // Predicated region
        $region48: #{dcgan_discriminator.5} parent=27 // pred_check
          %p491 = pneg %p133
        $region49: #{dcgan_discriminator.5} parent=27 // pred_check_branch
          %493 = sbr.rel (%p491) target = $region51
        $region50: #{dcgan_discriminator.5} parent=27 // pred_region
          %s495 = ssub.s32 16, 16
          %496 = vsyncadd %s465, %s495
          %s497 = sadd.s32 %s31, %s30
          %s498 = smul.addr %s497, 16
          %s499 = scalar_lea.hbm %s3, %s498
          %s501 = sshll.u32 %s467, 4
          %s502 = int_to_ptr.vmem [resolvable:$true] %s501
          %504 = dma.vmem_to_hbm [thread:$0]  %s502, 16, %s499, %s465
        $region51: #{dcgan_discriminator.5} parent=27 // pred_fallthru
          _
        // Predicated region
        $region52: #{dcgan_discriminator.5} parent=27 // pred_check
          %p505 = pneg %p161
        $region53: #{dcgan_discriminator.5} parent=27 // pred_check_branch
          %507 = sbr.rel (%p505) target = $region55
        $region54: #{dcgan_discriminator.5} parent=27 // pred_region
          %s509 = ssub.s32 16, 16
          %510 = vsyncadd %s469, %s509
          %s511 = sadd.s32 %s31, %s30
          %s512 = smul.addr %s511, 16
          %s513 = scalar_lea.hbm %s4, %s512
          %s515 = sshll.u32 %s471, 4
          %s516 = int_to_ptr.vmem [resolvable:$true] %s515
          %518 = dma.vmem_to_hbm [thread:$0]  %s516, 16, %s513, %s469
        $region55: #{dcgan_discriminator.5} parent=27 // pred_fallthru
          _
      $region28: #{dcgan_discriminator.5} parent=5 // pred_fallthru
        _
      %p519 = scmp.le.s32.totalorder 2, %s21
      // Predicated region
      $region56: #{dcgan_discriminator.5} parent=5 // pred_check
        %p520 = pneg %p519
      $region57: #{dcgan_discriminator.5} parent=5 // pred_check_branch
        %522 = sbr.rel (%p520) target = $region59
      $region58: #{dcgan_discriminator.5} parent=5 // pred_region
        %s523 = ssub.s32 %s21, 2
        // Predicated region
        $region60: #{dcgan_discriminator.5} parent=58 // pred_check
          %p524 = pneg %p111
        $region61: #{dcgan_discriminator.5} parent=58 // pred_check_branch
          %526 = sbr.rel (%p524) target = $region63
        $region62: #{dcgan_discriminator.5} parent=58 // pred_region
          %s527 = sand.u32 %s96, 1
          %s528 = scalar_lea.sflag [#allocation4], %s527
          %s529 = sand.u32 %s96, 1
          %s530 = smul.addr %s529, 128
          %s531 = scalar_lea.vmem [#allocation7], %s530
          %532 = dma.done %s528, 2048
        $region63: #{dcgan_discriminator.5} parent=58 // pred_fallthru
          _
        // Predicated region
        $region64: #{dcgan_discriminator.5} parent=58 // pred_check
          %p533 = pneg %p139
        $region65: #{dcgan_discriminator.5} parent=58 // pred_check_branch
          %535 = sbr.rel (%p533) target = $region67
        $region66: #{dcgan_discriminator.5} parent=58 // pred_region
          %s536 = sand.u32 %s27, 1
          %s537 = scalar_lea.sflag [#allocation9], %s536
          %s538 = sand.u32 %s124, 1
          %s539 = scalar_lea.vmem [#allocation8], %s538
          %540 = dma.done %s537, 16
        $region67: #{dcgan_discriminator.5} parent=58 // pred_fallthru
          _
        // Predicated region
        $region68: #{dcgan_discriminator.5} parent=58 // pred_check
          %p541 = pneg %p167
        $region69: #{dcgan_discriminator.5} parent=58 // pred_check_branch
          %543 = sbr.rel (%p541) target = $region71
        $region70: #{dcgan_discriminator.5} parent=58 // pred_region
          %s544 = sand.u32 %s27, 1
          %s545 = scalar_lea.sflag [#allocation9], %s544
          %s546 = sand.u32 %s152, 1
          %s547 = scalar_lea.vmem [#allocation10], %s546
          %548 = dma.done %s545, 16
        $region71: #{dcgan_discriminator.5} parent=58 // pred_fallthru
          _
      $region59: #{dcgan_discriminator.5} parent=5 // pred_fallthru
        _
    $region6: #{dcgan_discriminator.5} parent=1 // loop_footer
      %s25 = sadd.s32 1, %s21
    $region7: #{dcgan_discriminator.5} parent=1 // loop_footer_branch
      %20 = sbr.rel target = $region3
    $region8: #{dcgan_discriminator.5} parent=1 // loop_exit
      _
    %549 = vsyncpa [#allocation3], 1
    %s550 = scalar_lea.sflag [#allocation3], 1
    %551 = vsyncpa %s550, 1
    %552 = vsyncpa [#allocation6], 1
    %553 = vsyncpa [#allocation4], 1
    %s554 = scalar_lea.sflag [#allocation4], 1
    %555 = vsyncpa %s554, 1
    %556 = vsyncpa [#allocation9], 1
    %s557 = scalar_lea.sflag [#allocation9], 1
    %558 = vsyncpa %s557, 1

// kernel: dcgan_discriminator.6
$region0: #{dcgan_discriminator.6}
  #allocation0 [shape = 'u32[]', space=smem, size = 0x4, offset = 0x4, fixed_abs, tag = 'smem constant byte address 0x4 - core index']
  #allocation1 [shape = 'u32[144,128]{1,0:T(1,128)}', space=vmem, size = 0x12000, scoped, tag = 'internal scratch']
  %s0 = inlined_call_operand.hbm [shape: bf16[2,9,8,64], index: 0, kind: input, shape index: {}]
  %s1 = inlined_call_operand.hbm [shape: bf16[2,64,16], index: 1, kind: input, shape index: {}]
  %s2 = inlined_call_operand.hbm [shape: bf16[2,8,8,16], index: 2, kind: output, shape index: {0}]
  %s3 = inlined_call_operand.hbm [shape: f32[2,1,1,16], index: 3, kind: output, shape index: {1}]
  %s4 = inlined_call_operand.hbm [shape: f32[2,1,1,16], index: 4, kind: output, shape index: {2}]
  %5 = xla_tuple %s2, %s3, %s4
  %s6 = sld [smem:[#allocation0]]
  $region65: #{dcgan_discriminator.6} parent=0
    _
  %s8 = ssub.s32 1, %s6
  %s9 = scalar_select 0, %s8, %s6
  $region1: #{dcgan_discriminator.6} parent=0
    #allocation2 [shape = 'u8[36864]{0}', space=vmem, size = 0x9000, scoped, tag = 'input window, operand 0']
    #allocation3 [shape = 's32[2]{0}', space=sflag, size = 0x8, scoped, tag = 'scoped memory for dcgan_discriminator.6']
    #allocation4 [shape = 's32[2]{0}', space=sflag, size = 0x8, scoped, tag = 'scoped memory for dcgan_discriminator.6']
    #allocation5 [shape = 'u8[32768]{0}', space=vmem, size = 0x8000, scoped, tag = 'input window, operand 1, single buffered']
    #allocation6 [shape = 's32[1]{0}', space=sflag, size = 0x4, scoped, tag = 'scoped memory for dcgan_discriminator.6']
    #allocation7 [shape = 'u8[32768]{0}', space=vmem, size = 0x8000, scoped, tag = 'output window, operand 0']
    #allocation8 [shape = 'u8[1024]{0}', space=vmem, size = 0x400, scoped, tag = 'output window, operand 1']
    #allocation9 [shape = 's32[2]{0}', space=sflag, size = 0x8, scoped, tag = 'scoped memory for dcgan_discriminator.6']
    #allocation10 [shape = 'u8[1024]{0}', space=vmem, size = 0x400, scoped, tag = 'output window, operand 2']
    %10 = vsyncpa [#allocation3], 0
    %s11 = scalar_lea.sflag [#allocation3], 1
    %12 = vsyncpa %s11, 0
    %13 = vsyncpa [#allocation6], 0
    %14 = vsyncpa [#allocation4], 0
    %s15 = scalar_lea.sflag [#allocation4], 1
    %16 = vsyncpa %s15, 0
    %17 = vsyncpa [#allocation9], 0
    %s18 = scalar_lea.sflag [#allocation9], 1
    %19 = vsyncpa %s18, 0
    loop: start=0, step=1, limit=4
    $region2: #{dcgan_discriminator.6} parent=1 // loop_pre_header
      _
    $region3: #{dcgan_discriminator.6} parent=1 // loop_header
      %s21 = sphi 0, %s25
      %p22 = scmp.ge.s32.totalorder %s21, 4
      %s28 = sphi 0, %s40
      %s29 = sphi 0, %s36
      %s30 = sphi 0, %s28
      %s31 = sphi 0, %s29
      %s32 = sphi 0, %s30
      %s33 = sphi 0, %s31
      %s43 = sphi 0, %s45
      %s46 = sphi 0, %s43
      %s47 = sphi 0, %s46
      %s63 = sphi 0, %s47
      %s67 = sphi 0, %s67
      %s69 = sphi 0, %s67
      %s70 = sphi 0, %s69
      %s84 = sphi 0, %s70
      %s92 = sphi 0, %s94
      %s95 = sphi 0, %s92
      %s96 = sphi 0, %s95
      %s112 = sphi 0, %s96
      %s120 = sphi 0, %s122
      %s123 = sphi 0, %s120
      %s124 = sphi 0, %s123
      %s140 = sphi 0, %s124
      %s148 = sphi 0, %s150
      %s151 = sphi 0, %s148
      %s152 = sphi 0, %s151
      %s168 = sphi 0, %s152
    $region4: #{dcgan_discriminator.6} parent=1 // loop_header_branch
      %24 = sbr.rel (%p22) target = $region8
    $region5: #{dcgan_discriminator.6} parent=1 // loop_body
      %s26 = ssub.s32 %s21, 1
      %s27 = ssub.s32 %s21, 2
      %s34 = sadd.s32 1, %s29
      %p35 = scmp.ge.s32.totalorder %s34, 1
      %s36 = scalar_select %p35, 0, %s34
      %s37 = sadd.s32 1, %s28
      %s38 = scalar_select %p35, %s37, %s28
      %p39 = scmp.ge.s32.totalorder %s38, 2
      %s40 = scalar_select %p39, 0, %s38
      %s41 = ssub.s32 %s28, %s40
      %p42 = scmp.eq.s32.totalorder %s41, 0
      %s44 = sadd.s32 %s43, 1
      %s45 = scalar_select %p42, %s43, %s44
      %p48 = pneg %p42
      %p49 = scmp.eq.s32.totalorder %s21, 1
      %p50 = por %p48, %p49
      %p51 = scmp.ne.s32.totalorder %s43, %s46
      %p52 = scmp.eq.s32.totalorder %s21, 0
      %p53 = por %p51, %p52
      %p54 = scmp.ne.s32.totalorder %s43, %s46
      %p55 = scmp.eq.s32.totalorder %s26, 1
      %p56 = por %p54, %p55
      %p57 = scmp.ne.s32.totalorder %s46, %s47
      %p58 = scmp.eq.s32.totalorder %s26, 0
      %p59 = por %p57, %p58
      %p60 = scmp.ne.s32.totalorder %s46, %s47
      %p61 = scmp.eq.s32.totalorder %s27, 1
      %p62 = por %p60, %p61
      %p64 = scmp.ne.s32.totalorder %s47, %s63
      %p65 = scmp.eq.s32.totalorder %s27, 0
      %p66 = por %p64, %p65
      %s68 = sadd.s32 %s67, 1
      %p71 = scmp.eq.s32.totalorder %s21, 1
      %p72 = scmp.ne.s32.totalorder %s67, %s69
      %p73 = scmp.eq.s32.totalorder %s21, 0
      %p74 = por %p72, %p73
      %p75 = scmp.ne.s32.totalorder %s67, %s69
      %p76 = scmp.eq.s32.totalorder %s26, 1
      %p77 = por %p75, %p76
      %p78 = scmp.ne.s32.totalorder %s69, %s70
      %p79 = scmp.eq.s32.totalorder %s26, 0
      %p80 = por %p78, %p79
      %p81 = scmp.ne.s32.totalorder %s69, %s70
      %p82 = scmp.eq.s32.totalorder %s27, 1
      %p83 = por %p81, %p82
      %p85 = scmp.ne.s32.totalorder %s70, %s84
      %p86 = scmp.eq.s32.totalorder %s27, 0
      %p87 = por %p85, %p86
      %s88 = ssub.s32 %s28, %s40
      %s89 = ssub.s32 %s29, %s36
      %s90 = sor.u32 %s88, %s89
      %p91 = scmp.eq.s32.totalorder %s90, 0
      %s93 = sadd.s32 %s92, 1
      %s94 = scalar_select %p91, %s92, %s93
      %p97 = pneg %p91
      %p98 = scmp.eq.s32.totalorder %s21, 1
      %p99 = por %p97, %p98
      %p100 = scmp.ne.s32.totalorder %s92, %s95
      %p101 = scmp.eq.s32.totalorder %s21, 0
      %p102 = por %p100, %p101
      %p103 = scmp.ne.s32.totalorder %s92, %s95
      %p104 = scmp.eq.s32.totalorder %s26, 1
      %p105 = por %p103, %p104
      %p106 = scmp.ne.s32.totalorder %s95, %s96
      %p107 = scmp.eq.s32.totalorder %s26, 0
      %p108 = por %p106, %p107
      %p109 = scmp.ne.s32.totalorder %s95, %s96
      %p110 = scmp.eq.s32.totalorder %s27, 1
      %p111 = por %p109, %p110
      %p113 = scmp.ne.s32.totalorder %s96, %s112
      %p114 = scmp.eq.s32.totalorder %s27, 0
      %p115 = por %p113, %p114
      %s116 = ssub.s32 %s28, %s40
      %s117 = ssub.s32 %s29, %s36
      %s118 = sor.u32 %s116, %s117
      %p119 = scmp.eq.s32.totalorder %s118, 0
      %s121 = sadd.s32 %s120, 1
      %s122 = scalar_select %p119, %s120, %s121
      %p125 = pneg %p119
      %p126 = scmp.eq.s32.totalorder %s21, 1
      %p127 = por %p125, %p126
      %p128 = scmp.ne.s32.totalorder %s120, %s123
      %p129 = scmp.eq.s32.totalorder %s21, 0
      %p130 = por %p128, %p129
      %p131 = scmp.ne.s32.totalorder %s120, %s123
      %p132 = scmp.eq.s32.totalorder %s26, 1
      %p133 = por %p131, %p132
      %p134 = scmp.ne.s32.totalorder %s123, %s124
      %p135 = scmp.eq.s32.totalorder %s26, 0
      %p136 = por %p134, %p135
      %p137 = scmp.ne.s32.totalorder %s123, %s124
      %p138 = scmp.eq.s32.totalorder %s27, 1
      %p139 = por %p137, %p138
      %p141 = scmp.ne.s32.totalorder %s124, %s140
      %p142 = scmp.eq.s32.totalorder %s27, 0
      %p143 = por %p141, %p142
      %s144 = ssub.s32 %s28, %s40
      %s145 = ssub.s32 %s29, %s36
      %s146 = sor.u32 %s144, %s145
      %p147 = scmp.eq.s32.totalorder %s146, 0
      %s149 = sadd.s32 %s148, 1
      %s150 = scalar_select %p147, %s148, %s149
      %p153 = pneg %p147
      %p154 = scmp.eq.s32.totalorder %s21, 1
      %p155 = por %p153, %p154
      %p156 = scmp.ne.s32.totalorder %s148, %s151
      %p157 = scmp.eq.s32.totalorder %s21, 0
      %p158 = por %p156, %p157
      %p159 = scmp.ne.s32.totalorder %s148, %s151
      %p160 = scmp.eq.s32.totalorder %s26, 1
      %p161 = por %p159, %p160
      %p162 = scmp.ne.s32.totalorder %s151, %s152
      %p163 = scmp.eq.s32.totalorder %s26, 0
      %p164 = por %p162, %p163
      %p165 = scmp.ne.s32.totalorder %s151, %s152
      %p166 = scmp.eq.s32.totalorder %s27, 1
      %p167 = por %p165, %p166
      %p169 = scmp.ne.s32.totalorder %s152, %s168
      %p170 = scmp.eq.s32.totalorder %s27, 0
      %p171 = por %p169, %p170
      %p172 = scmp.le.s32.totalorder 1, %s21
      %p173 = scmp.lt.s32.totalorder %s21, 3
      %p174 = pnand %p172, %p173
      %p175 = pneg %p174
      // Predicated region
      $region9: #{dcgan_discriminator.6} parent=5 // pred_check
        _
      $region10: #{dcgan_discriminator.6} parent=5 // pred_check_branch
        %177 = sbr.rel (%p174) target = $region12
      $region11: #{dcgan_discriminator.6} parent=5 // pred_region
        %s178 = ssub.s32 %s21, 1
        // Predicated region
        $region13: #{dcgan_discriminator.6} parent=11 // pred_check
          %p179 = pneg %p80
        $region14: #{dcgan_discriminator.6} parent=11 // pred_check_branch
          %181 = sbr.rel (%p179) target = $region16
        $region15: #{dcgan_discriminator.6} parent=11 // pred_region
          %s183 = ssub.s32 1024, 1024
          %184 = vsyncadd [#allocation6], %s183
          %s185 = sshll.u32 [#allocation5], 4
          %s186 = int_to_ptr.vmem [resolvable:$true] %s185
          %191 = dma.hbm_to_vmem [thread:$0]  %s1, 1024, %s186, [#allocation6], 64, 64, 4
        $region16: #{dcgan_discriminator.6} parent=11 // pred_fallthru
          _
      $region12: #{dcgan_discriminator.6} parent=5 // pred_fallthru
        _
      %p192 = scmp.lt.s32.totalorder %s21, 2
      // Predicated region
      $region17: #{dcgan_discriminator.6} parent=5 // pred_check
        %p193 = pneg %p192
      $region18: #{dcgan_discriminator.6} parent=5 // pred_check_branch
        %195 = sbr.rel (%p193) target = $region20
      $region19: #{dcgan_discriminator.6} parent=5 // pred_region
        // Predicated region
        $region21: #{dcgan_discriminator.6} parent=19 // pred_check
          %p196 = pneg %p53
        $region22: #{dcgan_discriminator.6} parent=19 // pred_check_branch
          %198 = sbr.rel (%p196) target = $region24
        $region23: #{dcgan_discriminator.6} parent=19 // pred_region
          %s199 = sand.u32 %s43, 1
          %s200 = scalar_lea.sflag [#allocation3], %s199
          %s201 = sand.u32 %s43, 1
          %s202 = smul.addr %s201, 36
          %s203 = scalar_lea.vmem [#allocation2], %s202
          %s205 = ssub.s32 576, 576
          %206 = vsyncadd %s200, %s205
          %s207 = smul.addr %s28, 9
          %s208 = smul.addr %s207, 64
          %s209 = scalar_lea.hbm %s0, %s208
          %s210 = sshll.u32 %s203, 4
          %s211 = int_to_ptr.vmem [resolvable:$true] %s210
          %216 = dma.hbm_to_vmem [thread:$0]  %s209, 576, %s211, %s200, 64, 64, 4
        $region24: #{dcgan_discriminator.6} parent=19 // pred_fallthru
          _
      $region20: #{dcgan_discriminator.6} parent=5 // pred_fallthru
        _
      %p217 = scmp.le.s32.totalorder 1, %s21
      %p218 = scmp.lt.s32.totalorder %s21, 3
      %p219 = pnand %p217, %p218
      %p220 = pneg %p219
      // Predicated region
      $region25: #{dcgan_discriminator.6} parent=5 // pred_check
        _
      $region26: #{dcgan_discriminator.6} parent=5 // pred_check_branch
        %222 = sbr.rel (%p219) target = $region28
      $region27: #{dcgan_discriminator.6} parent=5 // pred_region
        %s223 = ssub.s32 %s21, 1
        %s224 = sand.u32 %s46, 1
        %s225 = scalar_lea.sflag [#allocation3], %s224
        %s226 = sand.u32 %s46, 1
        %s227 = smul.addr %s226, 36
        %s228 = scalar_lea.vmem [#allocation2], %s227
        // Predicated region
        $region29: #{dcgan_discriminator.6} parent=27 // pred_check
          %p229 = pneg %p59
        $region30: #{dcgan_discriminator.6} parent=27 // pred_check_branch
          %231 = sbr.rel (%p229) target = $region32
        $region31: #{dcgan_discriminator.6} parent=27 // pred_region
          %232 = dma.done %s225, 576
        $region32: #{dcgan_discriminator.6} parent=27 // pred_fallthru
          _
        // Predicated region
        $region33: #{dcgan_discriminator.6} parent=27 // pred_check
          %p233 = pneg %p80
        $region34: #{dcgan_discriminator.6} parent=27 // pred_check_branch
          %235 = sbr.rel (%p233) target = $region36
        $region35: #{dcgan_discriminator.6} parent=27 // pred_region
          %236 = dma.done [#allocation6], 1024
        $region36: #{dcgan_discriminator.6} parent=27 // pred_fallthru
          _
        %s237 = sand.u32 %s46, 1
        %s238 = scalar_lea.sflag [#allocation3], %s237
        %s239 = sand.u32 %s46, 1
        %s240 = smul.addr %s239, 36
        %s241 = scalar_lea.vmem [#allocation2], %s240
        %p242 = pneg %p59
        %p243 = pneg %p56
        %p244 = pneg %p80
        %p245 = pneg %p77
        %p246 = pneg %p108
        %p247 = pneg %p105
        %s248 = sand.u32 %s95, 1
        %s249 = scalar_lea.sflag [#allocation4], %s248
        %s250 = sand.u32 %s95, 1
        %s251 = smul.addr %s250, 32
        %s252 = scalar_lea.vmem [#allocation7], %s251
        %p253 = pneg %p136
        %p254 = pneg %p133
        %s255 = sand.u32 %s26, 1
        %s256 = scalar_lea.sflag [#allocation9], %s255
        %s257 = sand.u32 %s123, 1
        %s258 = scalar_lea.vmem [#allocation8], %s257
        %p259 = pneg %p164
        %p260 = pneg %p161
        %s261 = sand.u32 %s26, 1
        %s262 = scalar_lea.sflag [#allocation9], %s261
        %s263 = sand.u32 %s151, 1
        %s264 = scalar_lea.vmem [#allocation10], %s263
        %s265 = smul.u32 8, %s31
        %s267 = smul.u32 %s31, 8
        %s268 = smul.addr %s267, 4
        %s269 = scalar_lea.vmem %s228, %s268 [#allocation2]
        %v270 = vld [vmem:[%s269] sm:$0xf]
        %v271 = vld [vmem:[#allocation5] sm:$0xf]
        %v272 = vld [vmem:[#allocation5 + $0x4] sm:$0xf]
        %v273 = vld [vmem:[#allocation5 + $0x8] sm:$0xf]
        %v274 = vld [vmem:[#allocation5 + $0xc] sm:$0xf]
        %v275 = vld [vmem:[#allocation5 + $0x10] sm:$0xf]
        %v276 = vld [vmem:[#allocation5 + $0x14] sm:$0xf]
        %v277 = vld [vmem:[#allocation5 + $0x18] sm:$0xf]
        %v278 = vld [vmem:[#allocation5 + $0x1c] sm:$0xf]
        %s279 = sadd.s32 %s267, 1
        %s280 = smul.addr %s279, 4
        %s281 = scalar_lea.vmem %s228, %s280 [#allocation2]
        %v282 = vld [vmem:[%s281] sm:$0xf]
        %s283 = scalar_lea.vmem [#allocation5], 32
        %v284 = vld [vmem:[%s283] sm:$0xf]
        %v285 = vld [vmem:[%s283 + $0x4] sm:$0xf]
        %v286 = vld [vmem:[%s283 + $0x8] sm:$0xf]
        %v287 = vld [vmem:[%s283 + $0xc] sm:$0xf]
        %v288 = vld [vmem:[%s283 + $0x10] sm:$0xf]
        %v289 = vld [vmem:[%s283 + $0x14] sm:$0xf]
        %v290 = vld [vmem:[%s283 + $0x18] sm:$0xf]
        %v291 = vld [vmem:[%s283 + $0x1c] sm:$0xf]
        %v300 = vunpack.c.l.b16 %v284
        %v301 = vunpack.c.l.b16 %v285
        %v302 = vunpack.c.l.b16 %v286
        %v303 = vunpack.c.l.b16 %v287
        %v304 = vunpack.c.l.b16 %v288
        %v305 = vunpack.c.l.b16 %v289
        %v306 = vunpack.c.l.b16 %v290
        %v307 = vunpack.c.l.b16 %v291
        %v308 = vpack.c.b16 %v301, %v300
        %v309 = vpack.c.b16 %v303, %v302
        %v310 = vpack.c.b16 %v305, %v304
        %v311 = vpack.c.b16 %v307, %v306
        %vm316 = vcmask 523264
        %v318 = vsel %vm316, %v282, 0
        %320 = vmatprep.subr.bf16.mxu0 0
        %321 = vmatpush1.bf16.msra.mxu0 %v308
        %322 = vmatprep.subr.bf16.mxu0 0
        %323 = vmatpush1.bf16.msra.mxu0 %v309
        %324 = vmatprep.subr.bf16.mxu0 0
        %325 = vmatpush1.bf16.msra.mxu0 %v310
        %326 = vmatprep.subr.bf16.mxu0 0
        %327 = vmatpush1.bf16.msra.mxu0 %v311
        %328 = vmatprep.subr.bf16.mxu0 0
        %329 = vmatpush1.bf16.msra.mxu0 0
        %330 = vmatprep.subr.bf16.mxu0 0
        %331 = vmatpush1.bf16.msra.mxu0 0
        %332 = vmatprep.subr.bf16.mxu0 0
        %333 = vmatpush1.bf16.msra.mxu0 0
        %334 = vmatprep.subr.bf16.mxu0 0
        %335 = vmatpush1.bf16.msra.mxu0 0
        %336 = vmatprep.subr.bf16.mxu0 0
        %337 = vmatpush1.bf16.msra.mxu0 0
        %338 = vmatprep.subr.bf16.mxu0 0
        %339 = vmatpush1.bf16.msra.mxu0 0
        %340 = vmatprep.subr.bf16.mxu0 0
        %341 = vmatpush1.bf16.msra.mxu0 0
        %342 = vmatprep.subr.bf16.mxu0 0
        %343 = vmatpush1.bf16.msra.mxu0 0
        %344 = vmatprep.subr.bf16.mxu0 0
        %345 = vmatpush1.bf16.msra.mxu0 0
        %346 = vmatprep.subr.bf16.mxu0 0
        %347 = vmatpush1.bf16.msra.mxu0 0
        %348 = vmatprep.subr.bf16.mxu0 0
        %349 = vmatpush1.bf16.msra.mxu0 0
        %350 = vmatprep.subr.bf16.mxu0 0
        %351 = vmatpush1.bf16.msra.mxu0 0
        %352 = vmatprep.mubr.bf16.mxu0 0
        %353 = vmatmul.mubr.bf16.gmra.mrb[0].mxu0 %v318
        %v354 = vpop.f32.mrb[0].mxu0
        %v355 = vadd.f32 0.0, %v354
        %v356 = vpop.f32.mrb[0].mxu0
        %v357 = vpop.f32.mrb[0].mxu0
        %v358 = vpop.f32.mrb[0].mxu0
        %359 = vdwg.mxu0
        %v368 = vunpack.c.l.b16 %v271
        %v369 = vunpack.c.l.b16 %v272
        %v370 = vunpack.c.l.b16 %v273
        %v371 = vunpack.c.l.b16 %v274
        %v372 = vunpack.c.l.b16 %v275
        %v373 = vunpack.c.l.b16 %v276
        %v374 = vunpack.c.l.b16 %v277
        %v375 = vunpack.c.l.b16 %v278
        %v376 = vpack.c.b16 %v369, %v368
        %v377 = vpack.c.b16 %v371, %v370
        %v378 = vpack.c.b16 %v373, %v372
        %v379 = vpack.c.b16 %v375, %v374
        %v385 = vsel %vm316, %v270, 0
        %387 = vmatprep.subr.bf16.mxu0 0
        %388 = vmatpush1.bf16.msra.mxu0 %v376
        %389 = vmatprep.subr.bf16.mxu0 0
        %390 = vmatpush1.bf16.msra.mxu0 %v377
        %391 = vmatprep.subr.bf16.mxu0 0
        %392 = vmatpush1.bf16.msra.mxu0 %v378
        %393 = vmatprep.subr.bf16.mxu0 0
        %394 = vmatpush1.bf16.msra.mxu0 %v379
        %395 = vmatprep.subr.bf16.mxu0 0
        %396 = vmatpush1.bf16.msra.mxu0 0
        %397 = vmatprep.subr.bf16.mxu0 0
        %398 = vmatpush1.bf16.msra.mxu0 0
        %399 = vmatprep.subr.bf16.mxu0 0
        %400 = vmatpush1.bf16.msra.mxu0 0
        %401 = vmatprep.subr.bf16.mxu0 0
        %402 = vmatpush1.bf16.msra.mxu0 0
        %403 = vmatprep.subr.bf16.mxu0 0
        %404 = vmatpush1.bf16.msra.mxu0 0
        %405 = vmatprep.subr.bf16.mxu0 0
        %406 = vmatpush1.bf16.msra.mxu0 0
        %407 = vmatprep.subr.bf16.mxu0 0
        %408 = vmatpush1.bf16.msra.mxu0 0
        %409 = vmatprep.subr.bf16.mxu0 0
        %410 = vmatpush1.bf16.msra.mxu0 0
        %411 = vmatprep.subr.bf16.mxu0 0
        %412 = vmatpush1.bf16.msra.mxu0 0
        %413 = vmatprep.subr.bf16.mxu0 0
        %414 = vmatpush1.bf16.msra.mxu0 0
        %415 = vmatprep.subr.bf16.mxu0 0
        %416 = vmatpush1.bf16.msra.mxu0 0
        %417 = vmatprep.subr.bf16.mxu0 0
        %418 = vmatpush1.bf16.msra.mxu0 0
        %419 = vmatprep.mubr.bf16.mxu0 0
        %420 = vmatmul.mubr.bf16.gmra.mrb[0].mxu0 %v385
        %v421 = vpop.f32.mrb[0].mxu0
        %v422 = vadd.f32 %v355, %v421
        %v423 = vpop.f32.mrb[0].mxu0
        %v424 = vpop.f32.mrb[0].mxu0
        %v425 = vpop.f32.mrb[0].mxu0
        %426 = vdwg.mxu0
        %v427 = vpack.c.bf16 %v422, %v422
        %vm428 = vcmask 125952
        %429 = vst.msk [vmem:[%s252] sm:$0xf] %vm428, %v427
        %vm430 = vcmask 130048
        %v431 = vsel %vm430, %v422, 0.0
        %v432 = vrot.slane %v431, 4
        %v433 = vadd.f32 %v431, %v432
        %v434 = vrot.slane %v433, 2
        %v435 = vadd.f32 %v433, %v434
        %v436 = vrot.slane %v435, 1
        %v437 = vadd.f32 %v435, %v436
        %v438 = vadd.f32 %v437, 0.0
        %v439 = vmul.f32 %v422, %v422
        %v440 = vsel %vm430, %v439, 0.0
        %v441 = vrot.slane %v440, 4
        %v442 = vadd.f32 %v440, %v441
        %v443 = vrot.slane %v442, 2
        %v444 = vadd.f32 %v442, %v443
        %v445 = vrot.slane %v444, 1
        %v446 = vadd.f32 %v444, %v445
        %v447 = vadd.f32 %v446, 0.0
        %v448 = vld [vmem:[%s281] sm:$0xf]
        %v449 = vld [vmem:[#allocation5] sm:$0xf]
        %v450 = vld [vmem:[#allocation5 + $0x4] sm:$0xf]
        %v451 = vld [vmem:[#allocation5 + $0x8] sm:$0xf]
        %v452 = vld [vmem:[#allocation5 + $0xc] sm:$0xf]
        %v453 = vld [vmem:[#allocation5 + $0x10] sm:$0xf]
        %v454 = vld [vmem:[#allocation5 + $0x14] sm:$0xf]
        %v455 = vld [vmem:[#allocation5 + $0x18] sm:$0xf]
        %v456 = vld [vmem:[#allocation5 + $0x1c] sm:$0xf]
        %s457 = sadd.s32 %s267, 2
        %s458 = smul.addr %s457, 4
        %s459 = scalar_lea.vmem %s228, %s458 [#allocation2]
        %v460 = vld [vmem:[%s459] sm:$0xf]
        %v461 = vld [vmem:[%s283] sm:$0xf]
        %v462 = vld [vmem:[%s283 + $0x4] sm:$0xf]
        %v463 = vld [vmem:[%s283 + $0x8] sm:$0xf]
        %v464 = vld [vmem:[%s283 + $0xc] sm:$0xf]
        %v465 = vld [vmem:[%s283 + $0x10] sm:$0xf]
        %v466 = vld [vmem:[%s283 + $0x14] sm:$0xf]
        %v467 = vld [vmem:[%s283 + $0x18] sm:$0xf]
        %v468 = vld [vmem:[%s283 + $0x1c] sm:$0xf]
        %v477 = vunpack.c.l.b16 %v461
        %v478 = vunpack.c.l.b16 %v462
        %v479 = vunpack.c.l.b16 %v463
        %v480 = vunpack.c.l.b16 %v464
        %v481 = vunpack.c.l.b16 %v465
        %v482 = vunpack.c.l.b16 %v466
        %v483 = vunpack.c.l.b16 %v467
        %v484 = vunpack.c.l.b16 %v468
        %v485 = vpack.c.b16 %v478, %v477
        %v486 = vpack.c.b16 %v480, %v479
        %v487 = vpack.c.b16 %v482, %v481
        %v488 = vpack.c.b16 %v484, %v483
        %v494 = vsel %vm316, %v460, 0
        %496 = vmatprep.subr.bf16.mxu0 0
        %497 = vmatpush1.bf16.msra.mxu0 %v485
        %498 = vmatprep.subr.bf16.mxu0 0
        %499 = vmatpush1.bf16.msra.mxu0 %v486
        %500 = vmatprep.subr.bf16.mxu0 0
        %501 = vmatpush1.bf16.msra.mxu0 %v487
        %502 = vmatprep.subr.bf16.mxu0 0
        %503 = vmatpush1.bf16.msra.mxu0 %v488
        %504 = vmatprep.subr.bf16.mxu0 0
        %505 = vmatpush1.bf16.msra.mxu0 0
        %506 = vmatprep.subr.bf16.mxu0 0
        %507 = vmatpush1.bf16.msra.mxu0 0
        %508 = vmatprep.subr.bf16.mxu0 0
        %509 = vmatpush1.bf16.msra.mxu0 0
        %510 = vmatprep.subr.bf16.mxu0 0
        %511 = vmatpush1.bf16.msra.mxu0 0
        %512 = vmatprep.subr.bf16.mxu0 0
        %513 = vmatpush1.bf16.msra.mxu0 0
        %514 = vmatprep.subr.bf16.mxu0 0
        %515 = vmatpush1.bf16.msra.mxu0 0
        %516 = vmatprep.subr.bf16.mxu0 0
        %517 = vmatpush1.bf16.msra.mxu0 0
        %518 = vmatprep.subr.bf16.mxu0 0
        %519 = vmatpush1.bf16.msra.mxu0 0
        %520 = vmatprep.subr.bf16.mxu0 0
        %521 = vmatpush1.bf16.msra.mxu0 0
        %522 = vmatprep.subr.bf16.mxu0 0
        %523 = vmatpush1.bf16.msra.mxu0 0
        %524 = vmatprep.subr.bf16.mxu0 0
        %525 = vmatpush1.bf16.msra.mxu0 0
        %526 = vmatprep.subr.bf16.mxu0 0
        %527 = vmatpush1.bf16.msra.mxu0 0
        %528 = vmatprep.mubr.bf16.mxu0 0
        %529 = vmatmul.mubr.bf16.gmra.mrb[0].mxu0 %v494
        %v530 = vpop.f32.mrb[0].mxu0
        %v531 = vadd.f32 0.0, %v530
        %v532 = vpop.f32.mrb[0].mxu0
        %v533 = vpop.f32.mrb[0].mxu0
        %v534 = vpop.f32.mrb[0].mxu0
        %535 = vdwg.mxu0
        %v544 = vunpack.c.l.b16 %v449
        %v545 = vunpack.c.l.b16 %v450
        %v546 = vunpack.c.l.b16 %v451
        %v547 = vunpack.c.l.b16 %v452
        %v548 = vunpack.c.l.b16 %v453
        %v549 = vunpack.c.l.b16 %v454
        %v550 = vunpack.c.l.b16 %v455
        %v551 = vunpack.c.l.b16 %v456
        %v552 = vpack.c.b16 %v545, %v544
        %v553 = vpack.c.b16 %v547, %v546
        %v554 = vpack.c.b16 %v549, %v548
        %v555 = vpack.c.b16 %v551, %v550
        %v561 = vsel %vm316, %v448, 0
        %563 = vmatprep.subr.bf16.mxu0 0
        %564 = vmatpush1.bf16.msra.mxu0 %v552
        %565 = vmatprep.subr.bf16.mxu0 0
        %566 = vmatpush1.bf16.msra.mxu0 %v553
        %567 = vmatprep.subr.bf16.mxu0 0
        %568 = vmatpush1.bf16.msra.mxu0 %v554
        %569 = vmatprep.subr.bf16.mxu0 0
        %570 = vmatpush1.bf16.msra.mxu0 %v555
        %571 = vmatprep.subr.bf16.mxu0 0
        %572 = vmatpush1.bf16.msra.mxu0 0
        %573 = vmatprep.subr.bf16.mxu0 0
        %574 = vmatpush1.bf16.msra.mxu0 0
        %575 = vmatprep.subr.bf16.mxu0 0
        %576 = vmatpush1.bf16.msra.mxu0 0
        %577 = vmatprep.subr.bf16.mxu0 0
        %578 = vmatpush1.bf16.msra.mxu0 0
        %579 = vmatprep.subr.bf16.mxu0 0
        %580 = vmatpush1.bf16.msra.mxu0 0
        %581 = vmatprep.subr.bf16.mxu0 0
        %582 = vmatpush1.bf16.msra.mxu0 0
        %583 = vmatprep.subr.bf16.mxu0 0
        %584 = vmatpush1.bf16.msra.mxu0 0
        %585 = vmatprep.subr.bf16.mxu0 0
        %586 = vmatpush1.bf16.msra.mxu0 0
        %587 = vmatprep.subr.bf16.mxu0 0
        %588 = vmatpush1.bf16.msra.mxu0 0
        %589 = vmatprep.subr.bf16.mxu0 0
        %590 = vmatpush1.bf16.msra.mxu0 0
        %591 = vmatprep.subr.bf16.mxu0 0
        %592 = vmatpush1.bf16.msra.mxu0 0
        %593 = vmatprep.subr.bf16.mxu0 0
        %594 = vmatpush1.bf16.msra.mxu0 0
        %595 = vmatprep.mubr.bf16.mxu0 0
        %596 = vmatmul.mubr.bf16.gmra.mrb[0].mxu0 %v561
        %v597 = vpop.f32.mrb[0].mxu0
        %v598 = vadd.f32 %v531, %v597
        %v599 = vpop.f32.mrb[0].mxu0
        %v600 = vpop.f32.mrb[0].mxu0
        %v601 = vpop.f32.mrb[0].mxu0
        %602 = vdwg.mxu0
        %v603 = vpack.c.bf16 %v598, %v598
        %s604 = scalar_lea.vmem %s252, 4 [#allocation7]
        %605 = vst.msk [vmem:[%s604] sm:$0xf] %vm428, %v603
        %v606 = vsel %vm430, %v598, 0.0
        %v607 = vrot.slane %v606, 4
        %v608 = vadd.f32 %v606, %v607
        %v609 = vrot.slane %v608, 2
        %v610 = vadd.f32 %v608, %v609
        %v611 = vrot.slane %v610, 1
        %v612 = vadd.f32 %v610, %v611
        %v613 = vadd.f32 %v438, %v612
        %v614 = vmul.f32 %v598, %v598
        %v615 = vsel %vm430, %v614, 0.0
        %v616 = vrot.slane %v615, 4
        %v617 = vadd.f32 %v615, %v616
        %v618 = vrot.slane %v617, 2
        %v619 = vadd.f32 %v617, %v618
        %v620 = vrot.slane %v619, 1
        %v621 = vadd.f32 %v619, %v620
        %v622 = vadd.f32 %v447, %v621
        %v623 = vld [vmem:[%s459] sm:$0xf]
        %v624 = vld [vmem:[#allocation5] sm:$0xf]
        %v625 = vld [vmem:[#allocation5 + $0x4] sm:$0xf]
        %v626 = vld [vmem:[#allocation5 + $0x8] sm:$0xf]
        %v627 = vld [vmem:[#allocation5 + $0xc] sm:$0xf]
        %v628 = vld [vmem:[#allocation5 + $0x10] sm:$0xf]
        %v629 = vld [vmem:[#allocation5 + $0x14] sm:$0xf]
        %v630 = vld [vmem:[#allocation5 + $0x18] sm:$0xf]
        %v631 = vld [vmem:[#allocation5 + $0x1c] sm:$0xf]
        %s632 = sadd.s32 %s267, 3
        %s633 = smul.addr %s632, 4
        %s634 = scalar_lea.vmem %s228, %s633 [#allocation2]
        %v635 = vld [vmem:[%s634] sm:$0xf]
        %v636 = vld [vmem:[%s283] sm:$0xf]
        %v637 = vld [vmem:[%s283 + $0x4] sm:$0xf]
        %v638 = vld [vmem:[%s283 + $0x8] sm:$0xf]
        %v639 = vld [vmem:[%s283 + $0xc] sm:$0xf]
        %v640 = vld [vmem:[%s283 + $0x10] sm:$0xf]
        %v641 = vld [vmem:[%s283 + $0x14] sm:$0xf]
        %v642 = vld [vmem:[%s283 + $0x18] sm:$0xf]
        %v643 = vld [vmem:[%s283 + $0x1c] sm:$0xf]
        %v652 = vunpack.c.l.b16 %v636
        %v653 = vunpack.c.l.b16 %v637
        %v654 = vunpack.c.l.b16 %v638
        %v655 = vunpack.c.l.b16 %v639
        %v656 = vunpack.c.l.b16 %v640
        %v657 = vunpack.c.l.b16 %v641
        %v658 = vunpack.c.l.b16 %v642
        %v659 = vunpack.c.l.b16 %v643
        %v660 = vpack.c.b16 %v653, %v652
        %v661 = vpack.c.b16 %v655, %v654
        %v662 = vpack.c.b16 %v657, %v656
        %v663 = vpack.c.b16 %v659, %v658
        %v669 = vsel %vm316, %v635, 0
        %671 = vmatprep.subr.bf16.mxu0 0
        %672 = vmatpush1.bf16.msra.mxu0 %v660
        %673 = vmatprep.subr.bf16.mxu0 0
        %674 = vmatpush1.bf16.msra.mxu0 %v661
        %675 = vmatprep.subr.bf16.mxu0 0
        %676 = vmatpush1.bf16.msra.mxu0 %v662
        %677 = vmatprep.subr.bf16.mxu0 0
        %678 = vmatpush1.bf16.msra.mxu0 %v663
        %679 = vmatprep.subr.bf16.mxu0 0
        %680 = vmatpush1.bf16.msra.mxu0 0
        %681 = vmatprep.subr.bf16.mxu0 0
        %682 = vmatpush1.bf16.msra.mxu0 0
        %683 = vmatprep.subr.bf16.mxu0 0
        %684 = vmatpush1.bf16.msra.mxu0 0
        %685 = vmatprep.subr.bf16.mxu0 0
        %686 = vmatpush1.bf16.msra.mxu0 0
        %687 = vmatprep.subr.bf16.mxu0 0
        %688 = vmatpush1.bf16.msra.mxu0 0
        %689 = vmatprep.subr.bf16.mxu0 0
        %690 = vmatpush1.bf16.msra.mxu0 0
        %691 = vmatprep.subr.bf16.mxu0 0
        %692 = vmatpush1.bf16.msra.mxu0 0
        %693 = vmatprep.subr.bf16.mxu0 0
        %694 = vmatpush1.bf16.msra.mxu0 0
        %695 = vmatprep.subr.bf16.mxu0 0
        %696 = vmatpush1.bf16.msra.mxu0 0
        %697 = vmatprep.subr.bf16.mxu0 0
        %698 = vmatpush1.bf16.msra.mxu0 0
        %699 = vmatprep.subr.bf16.mxu0 0
        %700 = vmatpush1.bf16.msra.mxu0 0
        %701 = vmatprep.subr.bf16.mxu0 0
        %702 = vmatpush1.bf16.msra.mxu0 0
        %703 = vmatprep.mubr.bf16.mxu0 0
        %704 = vmatmul.mubr.bf16.gmra.mrb[0].mxu0 %v669
        %v705 = vpop.f32.mrb[0].mxu0
        %v706 = vadd.f32 0.0, %v705
        %v707 = vpop.f32.mrb[0].mxu0
        %v708 = vpop.f32.mrb[0].mxu0
        %v709 = vpop.f32.mrb[0].mxu0
        %710 = vdwg.mxu0
        %v719 = vunpack.c.l.b16 %v624
        %v720 = vunpack.c.l.b16 %v625
        %v721 = vunpack.c.l.b16 %v626
        %v722 = vunpack.c.l.b16 %v627
        %v723 = vunpack.c.l.b16 %v628
        %v724 = vunpack.c.l.b16 %v629
        %v725 = vunpack.c.l.b16 %v630
        %v726 = vunpack.c.l.b16 %v631
        %v727 = vpack.c.b16 %v720, %v719
        %v728 = vpack.c.b16 %v722, %v721
        %v729 = vpack.c.b16 %v724, %v723
        %v730 = vpack.c.b16 %v726, %v725
        %v736 = vsel %vm316, %v623, 0
        %738 = vmatprep.subr.bf16.mxu0 0
        %739 = vmatpush1.bf16.msra.mxu0 %v727
        %740 = vmatprep.subr.bf16.mxu0 0
        %741 = vmatpush1.bf16.msra.mxu0 %v728
        %742 = vmatprep.subr.bf16.mxu0 0
        %743 = vmatpush1.bf16.msra.mxu0 %v729
        %744 = vmatprep.subr.bf16.mxu0 0
        %745 = vmatpush1.bf16.msra.mxu0 %v730
        %746 = vmatprep.subr.bf16.mxu0 0
        %747 = vmatpush1.bf16.msra.mxu0 0
        %748 = vmatprep.subr.bf16.mxu0 0
        %749 = vmatpush1.bf16.msra.mxu0 0
        %750 = vmatprep.subr.bf16.mxu0 0
        %751 = vmatpush1.bf16.msra.mxu0 0
        %752 = vmatprep.subr.bf16.mxu0 0
        %753 = vmatpush1.bf16.msra.mxu0 0
        %754 = vmatprep.subr.bf16.mxu0 0
        %755 = vmatpush1.bf16.msra.mxu0 0
        %756 = vmatprep.subr.bf16.mxu0 0
        %757 = vmatpush1.bf16.msra.mxu0 0
        %758 = vmatprep.subr.bf16.mxu0 0
        %759 = vmatpush1.bf16.msra.mxu0 0
        %760 = vmatprep.subr.bf16.mxu0 0
        %761 = vmatpush1.bf16.msra.mxu0 0
        %762 = vmatprep.subr.bf16.mxu0 0
        %763 = vmatpush1.bf16.msra.mxu0 0
        %764 = vmatprep.subr.bf16.mxu0 0
        %765 = vmatpush1.bf16.msra.mxu0 0
        %766 = vmatprep.subr.bf16.mxu0 0
        %767 = vmatpush1.bf16.msra.mxu0 0
        %768 = vmatprep.subr.bf16.mxu0 0
        %769 = vmatpush1.bf16.msra.mxu0 0
        %770 = vmatprep.mubr.bf16.mxu0 0
        %771 = vmatmul.mubr.bf16.gmra.mrb[0].mxu0 %v736
        %v772 = vpop.f32.mrb[0].mxu0
        %v773 = vadd.f32 %v706, %v772
        %v774 = vpop.f32.mrb[0].mxu0
        %v775 = vpop.f32.mrb[0].mxu0
        %v776 = vpop.f32.mrb[0].mxu0
        %777 = vdwg.mxu0
        %v778 = vpack.c.bf16 %v773, %v773
        %s779 = scalar_lea.vmem %s252, 8 [#allocation7]
        %780 = vst.msk [vmem:[%s779] sm:$0xf] %vm428, %v778
        %v781 = vsel %vm430, %v773, 0.0
        %v782 = vrot.slane %v781, 4
        %v783 = vadd.f32 %v781, %v782
        %v784 = vrot.slane %v783, 2
        %v785 = vadd.f32 %v783, %v784
        %v786 = vrot.slane %v785, 1
        %v787 = vadd.f32 %v785, %v786
        %v788 = vadd.f32 %v613, %v787
        %v789 = vmul.f32 %v773, %v773
        %v790 = vsel %vm430, %v789, 0.0
        %v791 = vrot.slane %v790, 4
        %v792 = vadd.f32 %v790, %v791
        %v793 = vrot.slane %v792, 2
        %v794 = vadd.f32 %v792, %v793
        %v795 = vrot.slane %v794, 1
        %v796 = vadd.f32 %v794, %v795
        %v797 = vadd.f32 %v622, %v796
        %v798 = vld [vmem:[%s634] sm:$0xf]
        %v799 = vld [vmem:[#allocation5] sm:$0xf]
        %v800 = vld [vmem:[#allocation5 + $0x4] sm:$0xf]
        %v801 = vld [vmem:[#allocation5 + $0x8] sm:$0xf]
        %v802 = vld [vmem:[#allocation5 + $0xc] sm:$0xf]
        %v803 = vld [vmem:[#allocation5 + $0x10] sm:$0xf]
        %v804 = vld [vmem:[#allocation5 + $0x14] sm:$0xf]
        %v805 = vld [vmem:[#allocation5 + $0x18] sm:$0xf]
        %v806 = vld [vmem:[#allocation5 + $0x1c] sm:$0xf]
        %s807 = sadd.s32 %s267, 4
        %s808 = smul.addr %s807, 4
        %s809 = scalar_lea.vmem %s228, %s808 [#allocation2]
        %v810 = vld [vmem:[%s809] sm:$0xf]
        %v811 = vld [vmem:[%s283] sm:$0xf]
        %v812 = vld [vmem:[%s283 + $0x4] sm:$0xf]
        %v813 = vld [vmem:[%s283 + $0x8] sm:$0xf]
        %v814 = vld [vmem:[%s283 + $0xc] sm:$0xf]
        %v815 = vld [vmem:[%s283 + $0x10] sm:$0xf]
        %v816 = vld [vmem:[%s283 + $0x14] sm:$0xf]
        %v817 = vld [vmem:[%s283 + $0x18] sm:$0xf]
        %v818 = vld [vmem:[%s283 + $0x1c] sm:$0xf]
        %v827 = vunpack.c.l.b16 %v811
        %v828 = vunpack.c.l.b16 %v812
        %v829 = vunpack.c.l.b16 %v813
        %v830 = vunpack.c.l.b16 %v814
        %v831 = vunpack.c.l.b16 %v815
        %v832 = vunpack.c.l.b16 %v816
        %v833 = vunpack.c.l.b16 %v817
        %v834 = vunpack.c.l.b16 %v818
        %v835 = vpack.c.b16 %v828, %v827
        %v836 = vpack.c.b16 %v830, %v829
        %v837 = vpack.c.b16 %v832, %v831
        %v838 = vpack.c.b16 %v834, %v833
        %v844 = vsel %vm316, %v810, 0
        %846 = vmatprep.subr.bf16.mxu0 0
        %847 = vmatpush1.bf16.msra.mxu0 %v835
        %848 = vmatprep.subr.bf16.mxu0 0
        %849 = vmatpush1.bf16.msra.mxu0 %v836
        %850 = vmatprep.subr.bf16.mxu0 0
        %851 = vmatpush1.bf16.msra.mxu0 %v837
        %852 = vmatprep.subr.bf16.mxu0 0
        %853 = vmatpush1.bf16.msra.mxu0 %v838
        %854 = vmatprep.subr.bf16.mxu0 0
        %855 = vmatpush1.bf16.msra.mxu0 0
        %856 = vmatprep.subr.bf16.mxu0 0
        %857 = vmatpush1.bf16.msra.mxu0 0
        %858 = vmatprep.subr.bf16.mxu0 0
        %859 = vmatpush1.bf16.msra.mxu0 0
        %860 = vmatprep.subr.bf16.mxu0 0
        %861 = vmatpush1.bf16.msra.mxu0 0
        %862 = vmatprep.subr.bf16.mxu0 0
        %863 = vmatpush1.bf16.msra.mxu0 0
        %864 = vmatprep.subr.bf16.mxu0 0
        %865 = vmatpush1.bf16.msra.mxu0 0
        %866 = vmatprep.subr.bf16.mxu0 0
        %867 = vmatpush1.bf16.msra.mxu0 0
        %868 = vmatprep.subr.bf16.mxu0 0
        %869 = vmatpush1.bf16.msra.mxu0 0
        %870 = vmatprep.subr.bf16.mxu0 0
        %871 = vmatpush1.bf16.msra.mxu0 0
        %872 = vmatprep.subr.bf16.mxu0 0
        %873 = vmatpush1.bf16.msra.mxu0 0
        %874 = vmatprep.subr.bf16.mxu0 0
        %875 = vmatpush1.bf16.msra.mxu0 0
        %876 = vmatprep.subr.bf16.mxu0 0
        %877 = vmatpush1.bf16.msra.mxu0 0
        %878 = vmatprep.mubr.bf16.mxu0 0
        %879 = vmatmul.mubr.bf16.gmra.mrb[0].mxu0 %v844
        %v880 = vpop.f32.mrb[0].mxu0
        %v881 = vadd.f32 0.0, %v880
        %v882 = vpop.f32.mrb[0].mxu0
        %v883 = vpop.f32.mrb[0].mxu0
        %v884 = vpop.f32.mrb[0].mxu0
        %885 = vdwg.mxu0
        %v894 = vunpack.c.l.b16 %v799
        %v895 = vunpack.c.l.b16 %v800
        %v896 = vunpack.c.l.b16 %v801
        %v897 = vunpack.c.l.b16 %v802
        %v898 = vunpack.c.l.b16 %v803
        %v899 = vunpack.c.l.b16 %v804
        %v900 = vunpack.c.l.b16 %v805
        %v901 = vunpack.c.l.b16 %v806
        %v902 = vpack.c.b16 %v895, %v894
        %v903 = vpack.c.b16 %v897, %v896
        %v904 = vpack.c.b16 %v899, %v898
        %v905 = vpack.c.b16 %v901, %v900
        %v911 = vsel %vm316, %v798, 0
        %913 = vmatprep.subr.bf16.mxu0 0
        %914 = vmatpush1.bf16.msra.mxu0 %v902
        %915 = vmatprep.subr.bf16.mxu0 0
        %916 = vmatpush1.bf16.msra.mxu0 %v903
        %917 = vmatprep.subr.bf16.mxu0 0
        %918 = vmatpush1.bf16.msra.mxu0 %v904
        %919 = vmatprep.subr.bf16.mxu0 0
        %920 = vmatpush1.bf16.msra.mxu0 %v905
        %921 = vmatprep.subr.bf16.mxu0 0
        %922 = vmatpush1.bf16.msra.mxu0 0
        %923 = vmatprep.subr.bf16.mxu0 0
        %924 = vmatpush1.bf16.msra.mxu0 0
        %925 = vmatprep.subr.bf16.mxu0 0
        %926 = vmatpush1.bf16.msra.mxu0 0
        %927 = vmatprep.subr.bf16.mxu0 0
        %928 = vmatpush1.bf16.msra.mxu0 0
        %929 = vmatprep.subr.bf16.mxu0 0
        %930 = vmatpush1.bf16.msra.mxu0 0
        %931 = vmatprep.subr.bf16.mxu0 0
        %932 = vmatpush1.bf16.msra.mxu0 0
        %933 = vmatprep.subr.bf16.mxu0 0
        %934 = vmatpush1.bf16.msra.mxu0 0
        %935 = vmatprep.subr.bf16.mxu0 0
        %936 = vmatpush1.bf16.msra.mxu0 0
        %937 = vmatprep.subr.bf16.mxu0 0
        %938 = vmatpush1.bf16.msra.mxu0 0
        %939 = vmatprep.subr.bf16.mxu0 0
        %940 = vmatpush1.bf16.msra.mxu0 0
        %941 = vmatprep.subr.bf16.mxu0 0
        %942 = vmatpush1.bf16.msra.mxu0 0
        %943 = vmatprep.subr.bf16.mxu0 0
        %944 = vmatpush1.bf16.msra.mxu0 0
        %945 = vmatprep.mubr.bf16.mxu0 0
        %946 = vmatmul.mubr.bf16.gmra.mrb[0].mxu0 %v911
        %v947 = vpop.f32.mrb[0].mxu0
        %v948 = vadd.f32 %v881, %v947
        %v949 = vpop.f32.mrb[0].mxu0
        %v950 = vpop.f32.mrb[0].mxu0
        %v951 = vpop.f32.mrb[0].mxu0
        %952 = vdwg.mxu0
        %v953 = vpack.c.bf16 %v948, %v948
        %s954 = scalar_lea.vmem %s252, 12 [#allocation7]
        %955 = vst.msk [vmem:[%s954] sm:$0xf] %vm428, %v953
        %v956 = vsel %vm430, %v948, 0.0
        %v957 = vrot.slane %v956, 4
        %v958 = vadd.f32 %v956, %v957
        %v959 = vrot.slane %v958, 2
        %v960 = vadd.f32 %v958, %v959
        %v961 = vrot.slane %v960, 1
        %v962 = vadd.f32 %v960, %v961
        %v963 = vadd.f32 %v788, %v962
        %v964 = vmul.f32 %v948, %v948
        %v965 = vsel %vm430, %v964, 0.0
        %v966 = vrot.slane %v965, 4
        %v967 = vadd.f32 %v965, %v966
        %v968 = vrot.slane %v967, 2
        %v969 = vadd.f32 %v967, %v968
        %v970 = vrot.slane %v969, 1
        %v971 = vadd.f32 %v969, %v970
        %v972 = vadd.f32 %v797, %v971
        %v973 = vld [vmem:[%s809] sm:$0xf]
        %v974 = vld [vmem:[#allocation5] sm:$0xf]
        %v975 = vld [vmem:[#allocation5 + $0x4] sm:$0xf]
        %v976 = vld [vmem:[#allocation5 + $0x8] sm:$0xf]
        %v977 = vld [vmem:[#allocation5 + $0xc] sm:$0xf]
        %v978 = vld [vmem:[#allocation5 + $0x10] sm:$0xf]
        %v979 = vld [vmem:[#allocation5 + $0x14] sm:$0xf]
        %v980 = vld [vmem:[#allocation5 + $0x18] sm:$0xf]
        %v981 = vld [vmem:[#allocation5 + $0x1c] sm:$0xf]
        %s982 = sadd.s32 %s267, 5
        %s983 = smul.addr %s982, 4
        %s984 = scalar_lea.vmem %s228, %s983 [#allocation2]
        %v985 = vld [vmem:[%s984] sm:$0xf]
        %v986 = vld [vmem:[%s283] sm:$0xf]
        %v987 = vld [vmem:[%s283 + $0x4] sm:$0xf]
        %v988 = vld [vmem:[%s283 + $0x8] sm:$0xf]
        %v989 = vld [vmem:[%s283 + $0xc] sm:$0xf]
        %v990 = vld [vmem:[%s283 + $0x10] sm:$0xf]
        %v991 = vld [vmem:[%s283 + $0x14] sm:$0xf]
        %v992 = vld [vmem:[%s283 + $0x18] sm:$0xf]
        %v993 = vld [vmem:[%s283 + $0x1c] sm:$0xf]
        %v1002 = vunpack.c.l.b16 %v986
        %v1003 = vunpack.c.l.b16 %v987
        %v1004 = vunpack.c.l.b16 %v988
        %v1005 = vunpack.c.l.b16 %v989
        %v1006 = vunpack.c.l.b16 %v990
        %v1007 = vunpack.c.l.b16 %v991
        %v1008 = vunpack.c.l.b16 %v992
        %v1009 = vunpack.c.l.b16 %v993
        %v1010 = vpack.c.b16 %v1003, %v1002
        %v1011 = vpack.c.b16 %v1005, %v1004
        %v1012 = vpack.c.b16 %v1007, %v1006
        %v1013 = vpack.c.b16 %v1009, %v1008
        %v1019 = vsel %vm316, %v985, 0
        %1021 = vmatprep.subr.bf16.mxu0 0
        %1022 = vmatpush1.bf16.msra.mxu0 %v1010
        %1023 = vmatprep.subr.bf16.mxu0 0
        %1024 = vmatpush1.bf16.msra.mxu0 %v1011
        %1025 = vmatprep.subr.bf16.mxu0 0
        %1026 = vmatpush1.bf16.msra.mxu0 %v1012
        %1027 = vmatprep.subr.bf16.mxu0 0
        %1028 = vmatpush1.bf16.msra.mxu0 %v1013
        %1029 = vmatprep.subr.bf16.mxu0 0
        %1030 = vmatpush1.bf16.msra.mxu0 0
        %1031 = vmatprep.subr.bf16.mxu0 0
        %1032 = vmatpush1.bf16.msra.mxu0 0
        %1033 = vmatprep.subr.bf16.mxu0 0
        %1034 = vmatpush1.bf16.msra.mxu0 0
        %1035 = vmatprep.subr.bf16.mxu0 0
        %1036 = vmatpush1.bf16.msra.mxu0 0
        %1037 = vmatprep.subr.bf16.mxu0 0
        %1038 = vmatpush1.bf16.msra.mxu0 0
        %1039 = vmatprep.subr.bf16.mxu0 0
        %1040 = vmatpush1.bf16.msra.mxu0 0
        %1041 = vmatprep.subr.bf16.mxu0 0
        %1042 = vmatpush1.bf16.msra.mxu0 0
        %1043 = vmatprep.subr.bf16.mxu0 0
        %1044 = vmatpush1.bf16.msra.mxu0 0
        %1045 = vmatprep.subr.bf16.mxu0 0
        %1046 = vmatpush1.bf16.msra.mxu0 0
        %1047 = vmatprep.subr.bf16.mxu0 0
        %1048 = vmatpush1.bf16.msra.mxu0 0
        %1049 = vmatprep.subr.bf16.mxu0 0
        %1050 = vmatpush1.bf16.msra.mxu0 0
        %1051 = vmatprep.subr.bf16.mxu0 0
        %1052 = vmatpush1.bf16.msra.mxu0 0
        %1053 = vmatprep.mubr.bf16.mxu0 0
        %1054 = vmatmul.mubr.bf16.gmra.mrb[0].mxu0 %v1019
        %v1055 = vpop.f32.mrb[0].mxu0
        %v1056 = vadd.f32 0.0, %v1055
        %v1057 = vpop.f32.mrb[0].mxu0
        %v1058 = vpop.f32.mrb[0].mxu0
        %v1059 = vpop.f32.mrb[0].mxu0
        %1060 = vdwg.mxu0
        %v1069 = vunpack.c.l.b16 %v974
        %v1070 = vunpack.c.l.b16 %v975
        %v1071 = vunpack.c.l.b16 %v976
        %v1072 = vunpack.c.l.b16 %v977
        %v1073 = vunpack.c.l.b16 %v978
        %v1074 = vunpack.c.l.b16 %v979
        %v1075 = vunpack.c.l.b16 %v980
        %v1076 = vunpack.c.l.b16 %v981
        %v1077 = vpack.c.b16 %v1070, %v1069
        %v1078 = vpack.c.b16 %v1072, %v1071
        %v1079 = vpack.c.b16 %v1074, %v1073
        %v1080 = vpack.c.b16 %v1076, %v1075
        %v1086 = vsel %vm316, %v973, 0
        %1088 = vmatprep.subr.bf16.mxu0 0
        %1089 = vmatpush1.bf16.msra.mxu0 %v1077
        %1090 = vmatprep.subr.bf16.mxu0 0
        %1091 = vmatpush1.bf16.msra.mxu0 %v1078
        %1092 = vmatprep.subr.bf16.mxu0 0
        %1093 = vmatpush1.bf16.msra.mxu0 %v1079
        %1094 = vmatprep.subr.bf16.mxu0 0
        %1095 = vmatpush1.bf16.msra.mxu0 %v1080
        %1096 = vmatprep.subr.bf16.mxu0 0
        %1097 = vmatpush1.bf16.msra.mxu0 0
        %1098 = vmatprep.subr.bf16.mxu0 0
        %1099 = vmatpush1.bf16.msra.mxu0 0
        %1100 = vmatprep.subr.bf16.mxu0 0
        %1101 = vmatpush1.bf16.msra.mxu0 0
        %1102 = vmatprep.subr.bf16.mxu0 0
        %1103 = vmatpush1.bf16.msra.mxu0 0
        %1104 = vmatprep.subr.bf16.mxu0 0
        %1105 = vmatpush1.bf16.msra.mxu0 0
        %1106 = vmatprep.subr.bf16.mxu0 0
        %1107 = vmatpush1.bf16.msra.mxu0 0
        %1108 = vmatprep.subr.bf16.mxu0 0
        %1109 = vmatpush1.bf16.msra.mxu0 0
        %1110 = vmatprep.subr.bf16.mxu0 0
        %1111 = vmatpush1.bf16.msra.mxu0 0
        %1112 = vmatprep.subr.bf16.mxu0 0
        %1113 = vmatpush1.bf16.msra.mxu0 0
        %1114 = vmatprep.subr.bf16.mxu0 0
        %1115 = vmatpush1.bf16.msra.mxu0 0
        %1116 = vmatprep.subr.bf16.mxu0 0
        %1117 = vmatpush1.bf16.msra.mxu0 0
        %1118 = vmatprep.subr.bf16.mxu0 0
        %1119 = vmatpush1.bf16.msra.mxu0 0
        %1120 = vmatprep.mubr.bf16.mxu0 0
        %1121 = vmatmul.mubr.bf16.gmra.mrb[0].mxu0 %v1086
        %v1122 = vpop.f32.mrb[0].mxu0
        %v1123 = vadd.f32 %v1056, %v1122
        %v1124 = vpop.f32.mrb[0].mxu0
        %v1125 = vpop.f32.mrb[0].mxu0
        %v1126 = vpop.f32.mrb[0].mxu0
        %1127 = vdwg.mxu0
        %v1128 = vpack.c.bf16 %v1123, %v1123
        %s1129 = scalar_lea.vmem %s252, 16 [#allocation7]
        %1130 = vst.msk [vmem:[%s1129] sm:$0xf] %vm428, %v1128
        %v1131 = vsel %vm430, %v1123, 0.0
        %v1132 = vrot.slane %v1131, 4
        %v1133 = vadd.f32 %v1131, %v1132
        %v1134 = vrot.slane %v1133, 2
        %v1135 = vadd.f32 %v1133, %v1134
        %v1136 = vrot.slane %v1135, 1
        %v1137 = vadd.f32 %v1135, %v1136
        %v1138 = vadd.f32 %v963, %v1137
        %v1139 = vmul.f32 %v1123, %v1123
        %v1140 = vsel %vm430, %v1139, 0.0
        %v1141 = vrot.slane %v1140, 4
        %v1142 = vadd.f32 %v1140, %v1141
        %v1143 = vrot.slane %v1142, 2
        %v1144 = vadd.f32 %v1142, %v1143
        %v1145 = vrot.slane %v1144, 1
        %v1146 = vadd.f32 %v1144, %v1145
        %v1147 = vadd.f32 %v972, %v1146
        %v1148 = vld [vmem:[%s984] sm:$0xf]
        %v1149 = vld [vmem:[#allocation5] sm:$0xf]
        %v1150 = vld [vmem:[#allocation5 + $0x4] sm:$0xf]
        %v1151 = vld [vmem:[#allocation5 + $0x8] sm:$0xf]
        %v1152 = vld [vmem:[#allocation5 + $0xc] sm:$0xf]
        %v1153 = vld [vmem:[#allocation5 + $0x10] sm:$0xf]
        %v1154 = vld [vmem:[#allocation5 + $0x14] sm:$0xf]
        %v1155 = vld [vmem:[#allocation5 + $0x18] sm:$0xf]
        %v1156 = vld [vmem:[#allocation5 + $0x1c] sm:$0xf]
        %s1157 = sadd.s32 %s267, 6
        %s1158 = smul.addr %s1157, 4
        %s1159 = scalar_lea.vmem %s228, %s1158 [#allocation2]
        %v1160 = vld [vmem:[%s1159] sm:$0xf]
        %v1161 = vld [vmem:[%s283] sm:$0xf]
        %v1162 = vld [vmem:[%s283 + $0x4] sm:$0xf]
        %v1163 = vld [vmem:[%s283 + $0x8] sm:$0xf]
        %v1164 = vld [vmem:[%s283 + $0xc] sm:$0xf]
        %v1165 = vld [vmem:[%s283 + $0x10] sm:$0xf]
        %v1166 = vld [vmem:[%s283 + $0x14] sm:$0xf]
        %v1167 = vld [vmem:[%s283 + $0x18] sm:$0xf]
        %v1168 = vld [vmem:[%s283 + $0x1c] sm:$0xf]
        %v1177 = vunpack.c.l.b16 %v1161
        %v1178 = vunpack.c.l.b16 %v1162
        %v1179 = vunpack.c.l.b16 %v1163
        %v1180 = vunpack.c.l.b16 %v1164
        %v1181 = vunpack.c.l.b16 %v1165
        %v1182 = vunpack.c.l.b16 %v1166
        %v1183 = vunpack.c.l.b16 %v1167
        %v1184 = vunpack.c.l.b16 %v1168
        %v1185 = vpack.c.b16 %v1178, %v1177
        %v1186 = vpack.c.b16 %v1180, %v1179
        %v1187 = vpack.c.b16 %v1182, %v1181
        %v1188 = vpack.c.b16 %v1184, %v1183
        %v1194 = vsel %vm316, %v1160, 0
        %1196 = vmatprep.subr.bf16.mxu0 0
        %1197 = vmatpush1.bf16.msra.mxu0 %v1185
        %1198 = vmatprep.subr.bf16.mxu0 0
        %1199 = vmatpush1.bf16.msra.mxu0 %v1186
        %1200 = vmatprep.subr.bf16.mxu0 0
        %1201 = vmatpush1.bf16.msra.mxu0 %v1187
        %1202 = vmatprep.subr.bf16.mxu0 0
        %1203 = vmatpush1.bf16.msra.mxu0 %v1188
        %1204 = vmatprep.subr.bf16.mxu0 0
        %1205 = vmatpush1.bf16.msra.mxu0 0
        %1206 = vmatprep.subr.bf16.mxu0 0
        %1207 = vmatpush1.bf16.msra.mxu0 0
        %1208 = vmatprep.subr.bf16.mxu0 0
        %1209 = vmatpush1.bf16.msra.mxu0 0
        %1210 = vmatprep.subr.bf16.mxu0 0
        %1211 = vmatpush1.bf16.msra.mxu0 0
        %1212 = vmatprep.subr.bf16.mxu0 0
        %1213 = vmatpush1.bf16.msra.mxu0 0
        %1214 = vmatprep.subr.bf16.mxu0 0
        %1215 = vmatpush1.bf16.msra.mxu0 0
        %1216 = vmatprep.subr.bf16.mxu0 0
        %1217 = vmatpush1.bf16.msra.mxu0 0
        %1218 = vmatprep.subr.bf16.mxu0 0
        %1219 = vmatpush1.bf16.msra.mxu0 0
        %1220 = vmatprep.subr.bf16.mxu0 0
        %1221 = vmatpush1.bf16.msra.mxu0 0
        %1222 = vmatprep.subr.bf16.mxu0 0
        %1223 = vmatpush1.bf16.msra.mxu0 0
        %1224 = vmatprep.subr.bf16.mxu0 0
        %1225 = vmatpush1.bf16.msra.mxu0 0
        %1226 = vmatprep.subr.bf16.mxu0 0
        %1227 = vmatpush1.bf16.msra.mxu0 0
        %1228 = vmatprep.mubr.bf16.mxu0 0
        %1229 = vmatmul.mubr.bf16.gmra.mrb[0].mxu0 %v1194
        %v1230 = vpop.f32.mrb[0].mxu0
        %v1231 = vadd.f32 0.0, %v1230
        %v1232 = vpop.f32.mrb[0].mxu0
        %v1233 = vpop.f32.mrb[0].mxu0
        %v1234 = vpop.f32.mrb[0].mxu0
        %1235 = vdwg.mxu0
        %v1244 = vunpack.c.l.b16 %v1149
        %v1245 = vunpack.c.l.b16 %v1150
        %v1246 = vunpack.c.l.b16 %v1151
        %v1247 = vunpack.c.l.b16 %v1152
        %v1248 = vunpack.c.l.b16 %v1153
        %v1249 = vunpack.c.l.b16 %v1154
        %v1250 = vunpack.c.l.b16 %v1155
        %v1251 = vunpack.c.l.b16 %v1156
        %v1252 = vpack.c.b16 %v1245, %v1244
        %v1253 = vpack.c.b16 %v1247, %v1246
        %v1254 = vpack.c.b16 %v1249, %v1248
        %v1255 = vpack.c.b16 %v1251, %v1250
        %v1261 = vsel %vm316, %v1148, 0
        %1263 = vmatprep.subr.bf16.mxu0 0
        %1264 = vmatpush1.bf16.msra.mxu0 %v1252
        %1265 = vmatprep.subr.bf16.mxu0 0
        %1266 = vmatpush1.bf16.msra.mxu0 %v1253
        %1267 = vmatprep.subr.bf16.mxu0 0
        %1268 = vmatpush1.bf16.msra.mxu0 %v1254
        %1269 = vmatprep.subr.bf16.mxu0 0
        %1270 = vmatpush1.bf16.msra.mxu0 %v1255
        %1271 = vmatprep.subr.bf16.mxu0 0
        %1272 = vmatpush1.bf16.msra.mxu0 0
        %1273 = vmatprep.subr.bf16.mxu0 0
        %1274 = vmatpush1.bf16.msra.mxu0 0
        %1275 = vmatprep.subr.bf16.mxu0 0
        %1276 = vmatpush1.bf16.msra.mxu0 0
        %1277 = vmatprep.subr.bf16.mxu0 0
        %1278 = vmatpush1.bf16.msra.mxu0 0
        %1279 = vmatprep.subr.bf16.mxu0 0
        %1280 = vmatpush1.bf16.msra.mxu0 0
        %1281 = vmatprep.subr.bf16.mxu0 0
        %1282 = vmatpush1.bf16.msra.mxu0 0
        %1283 = vmatprep.subr.bf16.mxu0 0
        %1284 = vmatpush1.bf16.msra.mxu0 0
        %1285 = vmatprep.subr.bf16.mxu0 0
        %1286 = vmatpush1.bf16.msra.mxu0 0
        %1287 = vmatprep.subr.bf16.mxu0 0
        %1288 = vmatpush1.bf16.msra.mxu0 0
        %1289 = vmatprep.subr.bf16.mxu0 0
        %1290 = vmatpush1.bf16.msra.mxu0 0
        %1291 = vmatprep.subr.bf16.mxu0 0
        %1292 = vmatpush1.bf16.msra.mxu0 0
        %1293 = vmatprep.subr.bf16.mxu0 0
        %1294 = vmatpush1.bf16.msra.mxu0 0
        %1295 = vmatprep.mubr.bf16.mxu0 0
        %1296 = vmatmul.mubr.bf16.gmra.mrb[0].mxu0 %v1261
        %v1297 = vpop.f32.mrb[0].mxu0
        %v1298 = vadd.f32 %v1231, %v1297
        %v1299 = vpop.f32.mrb[0].mxu0
        %v1300 = vpop.f32.mrb[0].mxu0
        %v1301 = vpop.f32.mrb[0].mxu0
        %1302 = vdwg.mxu0
        %v1303 = vpack.c.bf16 %v1298, %v1298
        %s1304 = scalar_lea.vmem %s252, 20 [#allocation7]
        %1305 = vst.msk [vmem:[%s1304] sm:$0xf] %vm428, %v1303
        %v1306 = vsel %vm430, %v1298, 0.0
        %v1307 = vrot.slane %v1306, 4
        %v1308 = vadd.f32 %v1306, %v1307
        %v1309 = vrot.slane %v1308, 2
        %v1310 = vadd.f32 %v1308, %v1309
        %v1311 = vrot.slane %v1310, 1
        %v1312 = vadd.f32 %v1310, %v1311
        %v1313 = vadd.f32 %v1138, %v1312
        %v1314 = vmul.f32 %v1298, %v1298
        %v1315 = vsel %vm430, %v1314, 0.0
        %v1316 = vrot.slane %v1315, 4
        %v1317 = vadd.f32 %v1315, %v1316
        %v1318 = vrot.slane %v1317, 2
        %v1319 = vadd.f32 %v1317, %v1318
        %v1320 = vrot.slane %v1319, 1
        %v1321 = vadd.f32 %v1319, %v1320
        %v1322 = vadd.f32 %v1147, %v1321
        %v1323 = vld [vmem:[%s1159] sm:$0xf]
        %v1324 = vld [vmem:[#allocation5] sm:$0xf]
        %v1325 = vld [vmem:[#allocation5 + $0x4] sm:$0xf]
        %v1326 = vld [vmem:[#allocation5 + $0x8] sm:$0xf]
        %v1327 = vld [vmem:[#allocation5 + $0xc] sm:$0xf]
        %v1328 = vld [vmem:[#allocation5 + $0x10] sm:$0xf]
        %v1329 = vld [vmem:[#allocation5 + $0x14] sm:$0xf]
        %v1330 = vld [vmem:[#allocation5 + $0x18] sm:$0xf]
        %v1331 = vld [vmem:[#allocation5 + $0x1c] sm:$0xf]
        %s1332 = sadd.s32 %s267, 7
        %s1333 = smul.addr %s1332, 4
        %s1334 = scalar_lea.vmem %s228, %s1333 [#allocation2]
        %v1335 = vld [vmem:[%s1334] sm:$0xf]
        %v1336 = vld [vmem:[%s283] sm:$0xf]
        %v1337 = vld [vmem:[%s283 + $0x4] sm:$0xf]
        %v1338 = vld [vmem:[%s283 + $0x8] sm:$0xf]
        %v1339 = vld [vmem:[%s283 + $0xc] sm:$0xf]
        %v1340 = vld [vmem:[%s283 + $0x10] sm:$0xf]
        %v1341 = vld [vmem:[%s283 + $0x14] sm:$0xf]
        %v1342 = vld [vmem:[%s283 + $0x18] sm:$0xf]
        %v1343 = vld [vmem:[%s283 + $0x1c] sm:$0xf]
        %v1352 = vunpack.c.l.b16 %v1336
        %v1353 = vunpack.c.l.b16 %v1337
        %v1354 = vunpack.c.l.b16 %v1338
        %v1355 = vunpack.c.l.b16 %v1339
        %v1356 = vunpack.c.l.b16 %v1340
        %v1357 = vunpack.c.l.b16 %v1341
        %v1358 = vunpack.c.l.b16 %v1342
        %v1359 = vunpack.c.l.b16 %v1343
        %v1360 = vpack.c.b16 %v1353, %v1352
        %v1361 = vpack.c.b16 %v1355, %v1354
        %v1362 = vpack.c.b16 %v1357, %v1356
        %v1363 = vpack.c.b16 %v1359, %v1358
        %v1369 = vsel %vm316, %v1335, 0
        %1371 = vmatprep.subr.bf16.mxu0 0
        %1372 = vmatpush1.bf16.msra.mxu0 %v1360
        %1373 = vmatprep.subr.bf16.mxu0 0
        %1374 = vmatpush1.bf16.msra.mxu0 %v1361
        %1375 = vmatprep.subr.bf16.mxu0 0
        %1376 = vmatpush1.bf16.msra.mxu0 %v1362
        %1377 = vmatprep.subr.bf16.mxu0 0
        %1378 = vmatpush1.bf16.msra.mxu0 %v1363
        %1379 = vmatprep.subr.bf16.mxu0 0
        %1380 = vmatpush1.bf16.msra.mxu0 0
        %1381 = vmatprep.subr.bf16.mxu0 0
        %1382 = vmatpush1.bf16.msra.mxu0 0
        %1383 = vmatprep.subr.bf16.mxu0 0
        %1384 = vmatpush1.bf16.msra.mxu0 0
        %1385 = vmatprep.subr.bf16.mxu0 0
        %1386 = vmatpush1.bf16.msra.mxu0 0
        %1387 = vmatprep.subr.bf16.mxu0 0
        %1388 = vmatpush1.bf16.msra.mxu0 0
        %1389 = vmatprep.subr.bf16.mxu0 0
        %1390 = vmatpush1.bf16.msra.mxu0 0
        %1391 = vmatprep.subr.bf16.mxu0 0
        %1392 = vmatpush1.bf16.msra.mxu0 0
        %1393 = vmatprep.subr.bf16.mxu0 0
        %1394 = vmatpush1.bf16.msra.mxu0 0
        %1395 = vmatprep.subr.bf16.mxu0 0
        %1396 = vmatpush1.bf16.msra.mxu0 0
        %1397 = vmatprep.subr.bf16.mxu0 0
        %1398 = vmatpush1.bf16.msra.mxu0 0
        %1399 = vmatprep.subr.bf16.mxu0 0
        %1400 = vmatpush1.bf16.msra.mxu0 0
        %1401 = vmatprep.subr.bf16.mxu0 0
        %1402 = vmatpush1.bf16.msra.mxu0 0
        %1403 = vmatprep.mubr.bf16.mxu0 0
        %1404 = vmatmul.mubr.bf16.gmra.mrb[0].mxu0 %v1369
        %v1405 = vpop.f32.mrb[0].mxu0
        %v1406 = vadd.f32 0.0, %v1405
        %v1407 = vpop.f32.mrb[0].mxu0
        %v1408 = vpop.f32.mrb[0].mxu0
        %v1409 = vpop.f32.mrb[0].mxu0
        %1410 = vdwg.mxu0
        %v1419 = vunpack.c.l.b16 %v1324
        %v1420 = vunpack.c.l.b16 %v1325
        %v1421 = vunpack.c.l.b16 %v1326
        %v1422 = vunpack.c.l.b16 %v1327
        %v1423 = vunpack.c.l.b16 %v1328
        %v1424 = vunpack.c.l.b16 %v1329
        %v1425 = vunpack.c.l.b16 %v1330
        %v1426 = vunpack.c.l.b16 %v1331
        %v1427 = vpack.c.b16 %v1420, %v1419
        %v1428 = vpack.c.b16 %v1422, %v1421
        %v1429 = vpack.c.b16 %v1424, %v1423
        %v1430 = vpack.c.b16 %v1426, %v1425
        %v1436 = vsel %vm316, %v1323, 0
        %1438 = vmatprep.subr.bf16.mxu0 0
        %1439 = vmatpush1.bf16.msra.mxu0 %v1427
        %1440 = vmatprep.subr.bf16.mxu0 0
        %1441 = vmatpush1.bf16.msra.mxu0 %v1428
        %1442 = vmatprep.subr.bf16.mxu0 0
        %1443 = vmatpush1.bf16.msra.mxu0 %v1429
        %1444 = vmatprep.subr.bf16.mxu0 0
        %1445 = vmatpush1.bf16.msra.mxu0 %v1430
        %1446 = vmatprep.subr.bf16.mxu0 0
        %1447 = vmatpush1.bf16.msra.mxu0 0
        %1448 = vmatprep.subr.bf16.mxu0 0
        %1449 = vmatpush1.bf16.msra.mxu0 0
        %1450 = vmatprep.subr.bf16.mxu0 0
        %1451 = vmatpush1.bf16.msra.mxu0 0
        %1452 = vmatprep.subr.bf16.mxu0 0
        %1453 = vmatpush1.bf16.msra.mxu0 0
        %1454 = vmatprep.subr.bf16.mxu0 0
        %1455 = vmatpush1.bf16.msra.mxu0 0
        %1456 = vmatprep.subr.bf16.mxu0 0
        %1457 = vmatpush1.bf16.msra.mxu0 0
        %1458 = vmatprep.subr.bf16.mxu0 0
        %1459 = vmatpush1.bf16.msra.mxu0 0
        %1460 = vmatprep.subr.bf16.mxu0 0
        %1461 = vmatpush1.bf16.msra.mxu0 0
        %1462 = vmatprep.subr.bf16.mxu0 0
        %1463 = vmatpush1.bf16.msra.mxu0 0
        %1464 = vmatprep.subr.bf16.mxu0 0
        %1465 = vmatpush1.bf16.msra.mxu0 0
        %1466 = vmatprep.subr.bf16.mxu0 0
        %1467 = vmatpush1.bf16.msra.mxu0 0
        %1468 = vmatprep.subr.bf16.mxu0 0
        %1469 = vmatpush1.bf16.msra.mxu0 0
        %1470 = vmatprep.mubr.bf16.mxu0 0
        %1471 = vmatmul.mubr.bf16.gmra.mrb[0].mxu0 %v1436
        %v1472 = vpop.f32.mrb[0].mxu0
        %v1473 = vadd.f32 %v1406, %v1472
        %v1474 = vpop.f32.mrb[0].mxu0
        %v1475 = vpop.f32.mrb[0].mxu0
        %v1476 = vpop.f32.mrb[0].mxu0
        %1477 = vdwg.mxu0
        %v1478 = vpack.c.bf16 %v1473, %v1473
        %s1479 = scalar_lea.vmem %s252, 24 [#allocation7]
        %1480 = vst.msk [vmem:[%s1479] sm:$0xf] %vm428, %v1478
        %v1481 = vsel %vm430, %v1473, 0.0
        %v1482 = vrot.slane %v1481, 4
        %v1483 = vadd.f32 %v1481, %v1482
        %v1484 = vrot.slane %v1483, 2
        %v1485 = vadd.f32 %v1483, %v1484
        %v1486 = vrot.slane %v1485, 1
        %v1487 = vadd.f32 %v1485, %v1486
        %v1488 = vadd.f32 %v1313, %v1487
        %v1489 = vmul.f32 %v1473, %v1473
        %v1490 = vsel %vm430, %v1489, 0.0
        %v1491 = vrot.slane %v1490, 4
        %v1492 = vadd.f32 %v1490, %v1491
        %v1493 = vrot.slane %v1492, 2
        %v1494 = vadd.f32 %v1492, %v1493
        %v1495 = vrot.slane %v1494, 1
        %v1496 = vadd.f32 %v1494, %v1495
        %v1497 = vadd.f32 %v1322, %v1496
        %v1498 = vld [vmem:[%s1334] sm:$0xf]
        %v1499 = vld [vmem:[#allocation5] sm:$0xf]
        %v1500 = vld [vmem:[#allocation5 + $0x4] sm:$0xf]
        %v1501 = vld [vmem:[#allocation5 + $0x8] sm:$0xf]
        %v1502 = vld [vmem:[#allocation5 + $0xc] sm:$0xf]
        %v1503 = vld [vmem:[#allocation5 + $0x10] sm:$0xf]
        %v1504 = vld [vmem:[#allocation5 + $0x14] sm:$0xf]
        %v1505 = vld [vmem:[#allocation5 + $0x18] sm:$0xf]
        %v1506 = vld [vmem:[#allocation5 + $0x1c] sm:$0xf]
        %s1507 = sadd.s32 %s267, 8
        %s1508 = smul.addr %s1507, 4
        %s1509 = scalar_lea.vmem %s228, %s1508 [#allocation2]
        %v1510 = vld [vmem:[%s1509] sm:$0xf]
        %v1511 = vld [vmem:[%s283] sm:$0xf]
        %v1512 = vld [vmem:[%s283 + $0x4] sm:$0xf]
        %v1513 = vld [vmem:[%s283 + $0x8] sm:$0xf]
        %v1514 = vld [vmem:[%s283 + $0xc] sm:$0xf]
        %v1515 = vld [vmem:[%s283 + $0x10] sm:$0xf]
        %v1516 = vld [vmem:[%s283 + $0x14] sm:$0xf]
        %v1517 = vld [vmem:[%s283 + $0x18] sm:$0xf]
        %v1518 = vld [vmem:[%s283 + $0x1c] sm:$0xf]
        %v1527 = vunpack.c.l.b16 %v1511
        %v1528 = vunpack.c.l.b16 %v1512
        %v1529 = vunpack.c.l.b16 %v1513
        %v1530 = vunpack.c.l.b16 %v1514
        %v1531 = vunpack.c.l.b16 %v1515
        %v1532 = vunpack.c.l.b16 %v1516
        %v1533 = vunpack.c.l.b16 %v1517
        %v1534 = vunpack.c.l.b16 %v1518
        %v1535 = vpack.c.b16 %v1528, %v1527
        %v1536 = vpack.c.b16 %v1530, %v1529
        %v1537 = vpack.c.b16 %v1532, %v1531
        %v1538 = vpack.c.b16 %v1534, %v1533
        %v1544 = vsel %vm316, %v1510, 0
        %1546 = vmatprep.subr.bf16.mxu0 0
        %1547 = vmatpush1.bf16.msra.mxu0 %v1535
        %1548 = vmatprep.subr.bf16.mxu0 0
        %1549 = vmatpush1.bf16.msra.mxu0 %v1536
        %1550 = vmatprep.subr.bf16.mxu0 0
        %1551 = vmatpush1.bf16.msra.mxu0 %v1537
        %1552 = vmatprep.subr.bf16.mxu0 0
        %1553 = vmatpush1.bf16.msra.mxu0 %v1538
        %1554 = vmatprep.subr.bf16.mxu0 0
        %1555 = vmatpush1.bf16.msra.mxu0 0
        %1556 = vmatprep.subr.bf16.mxu0 0
        %1557 = vmatpush1.bf16.msra.mxu0 0
        %1558 = vmatprep.subr.bf16.mxu0 0
        %1559 = vmatpush1.bf16.msra.mxu0 0
        %1560 = vmatprep.subr.bf16.mxu0 0
        %1561 = vmatpush1.bf16.msra.mxu0 0
        %1562 = vmatprep.subr.bf16.mxu0 0
        %1563 = vmatpush1.bf16.msra.mxu0 0
        %1564 = vmatprep.subr.bf16.mxu0 0
        %1565 = vmatpush1.bf16.msra.mxu0 0
        %1566 = vmatprep.subr.bf16.mxu0 0
        %1567 = vmatpush1.bf16.msra.mxu0 0
        %1568 = vmatprep.subr.bf16.mxu0 0
        %1569 = vmatpush1.bf16.msra.mxu0 0
        %1570 = vmatprep.subr.bf16.mxu0 0
        %1571 = vmatpush1.bf16.msra.mxu0 0
        %1572 = vmatprep.subr.bf16.mxu0 0
        %1573 = vmatpush1.bf16.msra.mxu0 0
        %1574 = vmatprep.subr.bf16.mxu0 0
        %1575 = vmatpush1.bf16.msra.mxu0 0
        %1576 = vmatprep.subr.bf16.mxu0 0
        %1577 = vmatpush1.bf16.msra.mxu0 0
        %1578 = vmatprep.mubr.bf16.mxu0 0
        %1579 = vmatmul.mubr.bf16.gmra.mrb[0].mxu0 %v1544
        %v1580 = vpop.f32.mrb[0].mxu0
        %v1581 = vadd.f32 0.0, %v1580
        %v1582 = vpop.f32.mrb[0].mxu0
        %v1583 = vpop.f32.mrb[0].mxu0
        %v1584 = vpop.f32.mrb[0].mxu0
        %1585 = vdwg.mxu0
        %v1594 = vunpack.c.l.b16 %v1499
        %v1595 = vunpack.c.l.b16 %v1500
        %v1596 = vunpack.c.l.b16 %v1501
        %v1597 = vunpack.c.l.b16 %v1502
        %v1598 = vunpack.c.l.b16 %v1503
        %v1599 = vunpack.c.l.b16 %v1504
        %v1600 = vunpack.c.l.b16 %v1505
        %v1601 = vunpack.c.l.b16 %v1506
        %v1602 = vpack.c.b16 %v1595, %v1594
        %v1603 = vpack.c.b16 %v1597, %v1596
        %v1604 = vpack.c.b16 %v1599, %v1598
        %v1605 = vpack.c.b16 %v1601, %v1600
        %v1611 = vsel %vm316, %v1498, 0
        %1613 = vmatprep.subr.bf16.mxu0 0
        %1614 = vmatpush1.bf16.msra.mxu0 %v1602
        %1615 = vmatprep.subr.bf16.mxu0 0
        %1616 = vmatpush1.bf16.msra.mxu0 %v1603
        %1617 = vmatprep.subr.bf16.mxu0 0
        %1618 = vmatpush1.bf16.msra.mxu0 %v1604
        %1619 = vmatprep.subr.bf16.mxu0 0
        %1620 = vmatpush1.bf16.msra.mxu0 %v1605
        %1621 = vmatprep.subr.bf16.mxu0 0
        %1622 = vmatpush1.bf16.msra.mxu0 0
        %1623 = vmatprep.subr.bf16.mxu0 0
        %1624 = vmatpush1.bf16.msra.mxu0 0
        %1625 = vmatprep.subr.bf16.mxu0 0
        %1626 = vmatpush1.bf16.msra.mxu0 0
        %1627 = vmatprep.subr.bf16.mxu0 0
        %1628 = vmatpush1.bf16.msra.mxu0 0
        %1629 = vmatprep.subr.bf16.mxu0 0
        %1630 = vmatpush1.bf16.msra.mxu0 0
        %1631 = vmatprep.subr.bf16.mxu0 0
        %1632 = vmatpush1.bf16.msra.mxu0 0
        %1633 = vmatprep.subr.bf16.mxu0 0
        %1634 = vmatpush1.bf16.msra.mxu0 0
        %1635 = vmatprep.subr.bf16.mxu0 0
        %1636 = vmatpush1.bf16.msra.mxu0 0
        %1637 = vmatprep.subr.bf16.mxu0 0
        %1638 = vmatpush1.bf16.msra.mxu0 0
        %1639 = vmatprep.subr.bf16.mxu0 0
        %1640 = vmatpush1.bf16.msra.mxu0 0
        %1641 = vmatprep.subr.bf16.mxu0 0
        %1642 = vmatpush1.bf16.msra.mxu0 0
        %1643 = vmatprep.subr.bf16.mxu0 0
        %1644 = vmatpush1.bf16.msra.mxu0 0
        %1645 = vmatprep.mubr.bf16.mxu0 0
        %1646 = vmatmul.mubr.bf16.gmra.mrb[0].mxu0 %v1611
        %v1647 = vpop.f32.mrb[0].mxu0
        %v1648 = vadd.f32 %v1581, %v1647
        %v1649 = vpop.f32.mrb[0].mxu0
        %v1650 = vpop.f32.mrb[0].mxu0
        %v1651 = vpop.f32.mrb[0].mxu0
        %1652 = vdwg.mxu0
        %v1653 = vpack.c.bf16 %v1648, %v1648
        %s1654 = scalar_lea.vmem %s252, 28 [#allocation7]
        %1655 = vst.msk [vmem:[%s1654] sm:$0xf] %vm428, %v1653
        %v1656 = vsel %vm430, %v1648, 0.0
        %v1657 = vrot.slane %v1656, 4
        %v1658 = vadd.f32 %v1656, %v1657
        %v1659 = vrot.slane %v1658, 2
        %v1660 = vadd.f32 %v1658, %v1659
        %v1661 = vrot.slane %v1660, 1
        %v1662 = vadd.f32 %v1660, %v1661
        %v1663 = vadd.f32 %v1488, %v1662
        %v1664 = vmul.f32 %v1648, %v1648
        %v1665 = vsel %vm430, %v1664, 0.0
        %v1666 = vrot.slane %v1665, 4
        %v1667 = vadd.f32 %v1665, %v1666
        %v1668 = vrot.slane %v1667, 2
        %v1669 = vadd.f32 %v1667, %v1668
        %v1670 = vrot.slane %v1669, 1
        %v1671 = vadd.f32 %v1669, %v1670
        %v1672 = vadd.f32 %v1497, %v1671
        %vm1673 = vcmask 122880
        %1674 = vst.msk [vmem:[%s258] sm:$0x1] %vm1673, %v1663
        %1675 = vst.msk [vmem:[%s264] sm:$0x1] %vm1673, %v1672
        %s1676 = sand.u32 %s95, 1
        %s1677 = scalar_lea.sflag [#allocation4], %s1676
        %s1678 = sand.u32 %s95, 1
        %s1679 = smul.addr %s1678, 32
        %s1680 = scalar_lea.vmem [#allocation7], %s1679
        %s1681 = sand.u32 %s26, 1
        %s1682 = scalar_lea.sflag [#allocation9], %s1681
        %s1683 = sand.u32 %s123, 1
        %s1684 = scalar_lea.vmem [#allocation8], %s1683
        %s1685 = sand.u32 %s26, 1
        %s1686 = scalar_lea.sflag [#allocation9], %s1685
        %s1687 = sand.u32 %s151, 1
        %s1688 = scalar_lea.vmem [#allocation10], %s1687
        // Predicated region
        $region37: #{dcgan_discriminator.6} parent=27 // pred_check
          %p1689 = pneg %p105
        $region38: #{dcgan_discriminator.6} parent=27 // pred_check_branch
          %1691 = sbr.rel (%p1689) target = $region40
        $region39: #{dcgan_discriminator.6} parent=27 // pred_region
          %s1692 = smul.u32 8, %s31
          %s1694 = ssub.s32 512, 512
          %1695 = vsyncadd %s1677, %s1694
          %s1696 = smul.addr %s30, 8
          %s1697 = sadd.s32 %s1692, %s1696
          %s1698 = smul.addr %s1697, 64
          %s1699 = scalar_lea.hbm %s2, %s1698
          %s1700 = sshll.u32 %s1680, 4
          %s1701 = int_to_ptr.vmem [resolvable:$true] %s1700
          %1706 = dma.vmem_to_hbm [thread:$0]  %s1701, 512, %s1699, %s1677, 64, 64, 4
        $region40: #{dcgan_discriminator.6} parent=27 // pred_fallthru
          _
        // Predicated region
        $region41: #{dcgan_discriminator.6} parent=27 // pred_check
          %p1707 = pneg %p133
        $region42: #{dcgan_discriminator.6} parent=27 // pred_check_branch
          %1709 = sbr.rel (%p1707) target = $region44
        $region43: #{dcgan_discriminator.6} parent=27 // pred_region
          %s1711 = ssub.s32 16, 16
          %1712 = vsyncadd %s1682, %s1711
          %s1713 = sadd.s32 %s31, %s30
          %s1714 = smul.addr %s1713, 16
          %s1715 = scalar_lea.hbm %s3, %s1714
          %s1717 = sshll.u32 %s1684, 4
          %s1718 = int_to_ptr.vmem [resolvable:$true] %s1717
          %1720 = dma.vmem_to_hbm [thread:$0]  %s1718, 16, %s1715, %s1682
        $region44: #{dcgan_discriminator.6} parent=27 // pred_fallthru
          _
        // Predicated region
        $region45: #{dcgan_discriminator.6} parent=27 // pred_check
          %p1721 = pneg %p161
        $region46: #{dcgan_discriminator.6} parent=27 // pred_check_branch
          %1723 = sbr.rel (%p1721) target = $region48
        $region47: #{dcgan_discriminator.6} parent=27 // pred_region
          %s1725 = ssub.s32 16, 16
          %1726 = vsyncadd %s1686, %s1725
          %s1727 = sadd.s32 %s31, %s30
          %s1728 = smul.addr %s1727, 16
          %s1729 = scalar_lea.hbm %s4, %s1728
          %s1731 = sshll.u32 %s1688, 4
          %s1732 = int_to_ptr.vmem [resolvable:$true] %s1731
          %1734 = dma.vmem_to_hbm [thread:$0]  %s1732, 16, %s1729, %s1686
        $region48: #{dcgan_discriminator.6} parent=27 // pred_fallthru
          _
      $region28: #{dcgan_discriminator.6} parent=5 // pred_fallthru
        _
      %p1735 = scmp.le.s32.totalorder 2, %s21
      // Predicated region
      $region49: #{dcgan_discriminator.6} parent=5 // pred_check
        %p1736 = pneg %p1735
      $region50: #{dcgan_discriminator.6} parent=5 // pred_check_branch
        %1738 = sbr.rel (%p1736) target = $region52
      $region51: #{dcgan_discriminator.6} parent=5 // pred_region
        %s1739 = ssub.s32 %s21, 2
        // Predicated region
        $region53: #{dcgan_discriminator.6} parent=51 // pred_check
          %p1740 = pneg %p111
        $region54: #{dcgan_discriminator.6} parent=51 // pred_check_branch
          %1742 = sbr.rel (%p1740) target = $region56
        $region55: #{dcgan_discriminator.6} parent=51 // pred_region
          %s1743 = sand.u32 %s96, 1
          %s1744 = scalar_lea.sflag [#allocation4], %s1743
          %s1745 = sand.u32 %s96, 1
          %s1746 = smul.addr %s1745, 32
          %s1747 = scalar_lea.vmem [#allocation7], %s1746
          %1748 = dma.done %s1744, 512
        $region56: #{dcgan_discriminator.6} parent=51 // pred_fallthru
          _
        // Predicated region
        $region57: #{dcgan_discriminator.6} parent=51 // pred_check
          %p1749 = pneg %p139
        $region58: #{dcgan_discriminator.6} parent=51 // pred_check_branch
          %1751 = sbr.rel (%p1749) target = $region60
        $region59: #{dcgan_discriminator.6} parent=51 // pred_region
          %s1752 = sand.u32 %s27, 1
          %s1753 = scalar_lea.sflag [#allocation9], %s1752
          %s1754 = sand.u32 %s124, 1
          %s1755 = scalar_lea.vmem [#allocation8], %s1754
          %1756 = dma.done %s1753, 16
        $region60: #{dcgan_discriminator.6} parent=51 // pred_fallthru
          _
        // Predicated region
        $region61: #{dcgan_discriminator.6} parent=51 // pred_check
          %p1757 = pneg %p167
        $region62: #{dcgan_discriminator.6} parent=51 // pred_check_branch
          %1759 = sbr.rel (%p1757) target = $region64
        $region63: #{dcgan_discriminator.6} parent=51 // pred_region
          %s1760 = sand.u32 %s27, 1
          %s1761 = scalar_lea.sflag [#allocation9], %s1760
          %s1762 = sand.u32 %s152, 1
          %s1763 = scalar_lea.vmem [#allocation10], %s1762
          %1764 = dma.done %s1761, 16
        $region64: #{dcgan_discriminator.6} parent=51 // pred_fallthru
          _
      $region52: #{dcgan_discriminator.6} parent=5 // pred_fallthru
        _
    $region6: #{dcgan_discriminator.6} parent=1 // loop_footer
      %s25 = sadd.s32 1, %s21
    $region7: #{dcgan_discriminator.6} parent=1 // loop_footer_branch
      %20 = sbr.rel target = $region3
    $region8: #{dcgan_discriminator.6} parent=1 // loop_exit
      _
    %1765 = vsyncpa [#allocation3], 1
    %s1766 = scalar_lea.sflag [#allocation3], 1
    %1767 = vsyncpa %s1766, 1
    %1768 = vsyncpa [#allocation6], 1
    %1769 = vsyncpa [#allocation4], 1
    %s1770 = scalar_lea.sflag [#allocation4], 1
    %1771 = vsyncpa %s1770, 1
    %1772 = vsyncpa [#allocation9], 1
    %s1773 = scalar_lea.sflag [#allocation9], 1
    %1774 = vsyncpa %s1773, 1

// kernel: dcgan_discriminator.7
$region0: #{dcgan_discriminator.7}
  #allocation0 [shape = 'u32[]', space=smem, size = 0x4, offset = 0x4, fixed_abs, tag = 'smem constant byte address 0x4 - core index']
  #allocation1 [shape = 'u32[144,128]{1,0:T(1,128)}', space=vmem, size = 0x12000, scoped, tag = 'internal scratch']
  %s0 = inlined_call_operand.hbm [shape: bf16[2,5,4,128], index: 0, kind: input, shape index: {}]
  %s1 = inlined_call_operand.hbm [shape: bf16[2,128,32], index: 1, kind: input, shape index: {}]
  %s2 = inlined_call_operand.hbm [shape: bf16[2,4,4,32], index: 2, kind: output, shape index: {0}]
  %s3 = inlined_call_operand.hbm [shape: f32[2,1,1,32], index: 3, kind: output, shape index: {1}]
  %s4 = inlined_call_operand.hbm [shape: f32[2,1,1,32], index: 4, kind: output, shape index: {2}]
  %5 = xla_tuple %s2, %s3, %s4
  %s6 = sld [smem:[#allocation0]]
  $region65: #{dcgan_discriminator.7} parent=0
    _
  %s8 = ssub.s32 1, %s6
  %s9 = scalar_select 0, %s8, %s6
  $region1: #{dcgan_discriminator.7} parent=0
    #allocation2 [shape = 'u8[10240]{0}', space=vmem, size = 0x2800, scoped, tag = 'input window, operand 0']
    #allocation3 [shape = 's32[2]{0}', space=sflag, size = 0x8, scoped, tag = 'scoped memory for dcgan_discriminator.7']
    #allocation4 [shape = 's32[2]{0}', space=sflag, size = 0x8, scoped, tag = 'scoped memory for dcgan_discriminator.7']
    #allocation5 [shape = 'u8[65536]{0}', space=vmem, size = 0x10000, scoped, tag = 'input window, operand 1, single buffered']
    #allocation6 [shape = 's32[1]{0}', space=sflag, size = 0x4, scoped, tag = 'scoped memory for dcgan_discriminator.7']
    #allocation7 [shape = 'u8[8192]{0}', space=vmem, size = 0x2000, scoped, tag = 'output window, operand 0']
    #allocation8 [shape = 'u8[1024]{0}', space=vmem, size = 0x400, scoped, tag = 'output window, operand 1']
    #allocation9 [shape = 's32[2]{0}', space=sflag, size = 0x8, scoped, tag = 'scoped memory for dcgan_discriminator.7']
    #allocation10 [shape = 'u8[1024]{0}', space=vmem, size = 0x400, scoped, tag = 'output window, operand 2']
    %10 = vsyncpa [#allocation3], 0
    %s11 = scalar_lea.sflag [#allocation3], 1
    %12 = vsyncpa %s11, 0
    %13 = vsyncpa [#allocation6], 0
    %14 = vsyncpa [#allocation4], 0
    %s15 = scalar_lea.sflag [#allocation4], 1
    %16 = vsyncpa %s15, 0
    %17 = vsyncpa [#allocation9], 0
    %s18 = scalar_lea.sflag [#allocation9], 1
    %19 = vsyncpa %s18, 0
    loop: start=0, step=1, limit=4
    $region2: #{dcgan_discriminator.7} parent=1 // loop_pre_header
      _
    $region3: #{dcgan_discriminator.7} parent=1 // loop_header
      %s21 = sphi 0, %s25
      %p22 = scmp.ge.s32.totalorder %s21, 4
      %s28 = sphi 0, %s40
      %s29 = sphi 0, %s36
      %s30 = sphi 0, %s28
      %s31 = sphi 0, %s29
      %s32 = sphi 0, %s30
      %s33 = sphi 0, %s31
      %s43 = sphi 0, %s45
      %s46 = sphi 0, %s43
      %s47 = sphi 0, %s46
      %s63 = sphi 0, %s47
      %s67 = sphi 0, %s67
      %s69 = sphi 0, %s67
      %s70 = sphi 0, %s69
      %s84 = sphi 0, %s70
      %s92 = sphi 0, %s94
      %s95 = sphi 0, %s92
      %s96 = sphi 0, %s95
      %s112 = sphi 0, %s96
      %s120 = sphi 0, %s122
      %s123 = sphi 0, %s120
      %s124 = sphi 0, %s123
      %s140 = sphi 0, %s124
      %s148 = sphi 0, %s150
      %s151 = sphi 0, %s148
      %s152 = sphi 0, %s151
      %s168 = sphi 0, %s152
    $region4: #{dcgan_discriminator.7} parent=1 // loop_header_branch
      %24 = sbr.rel (%p22) target = $region8
    $region5: #{dcgan_discriminator.7} parent=1 // loop_body
      %s26 = ssub.s32 %s21, 1
      %s27 = ssub.s32 %s21, 2
      %s34 = sadd.s32 1, %s29
      %p35 = scmp.ge.s32.totalorder %s34, 1
      %s36 = scalar_select %p35, 0, %s34
      %s37 = sadd.s32 1, %s28
      %s38 = scalar_select %p35, %s37, %s28
      %p39 = scmp.ge.s32.totalorder %s38, 2
      %s40 = scalar_select %p39, 0, %s38
      %s41 = ssub.s32 %s28, %s40
      %p42 = scmp.eq.s32.totalorder %s41, 0
      %s44 = sadd.s32 %s43, 1
      %s45 = scalar_select %p42, %s43, %s44
      %p48 = pneg %p42
      %p49 = scmp.eq.s32.totalorder %s21, 1
      %p50 = por %p48, %p49
      %p51 = scmp.ne.s32.totalorder %s43, %s46
      %p52 = scmp.eq.s32.totalorder %s21, 0
      %p53 = por %p51, %p52
      %p54 = scmp.ne.s32.totalorder %s43, %s46
      %p55 = scmp.eq.s32.totalorder %s26, 1
      %p56 = por %p54, %p55
      %p57 = scmp.ne.s32.totalorder %s46, %s47
      %p58 = scmp.eq.s32.totalorder %s26, 0
      %p59 = por %p57, %p58
      %p60 = scmp.ne.s32.totalorder %s46, %s47
      %p61 = scmp.eq.s32.totalorder %s27, 1
      %p62 = por %p60, %p61
      %p64 = scmp.ne.s32.totalorder %s47, %s63
      %p65 = scmp.eq.s32.totalorder %s27, 0
      %p66 = por %p64, %p65
      %s68 = sadd.s32 %s67, 1
      %p71 = scmp.eq.s32.totalorder %s21, 1
      %p72 = scmp.ne.s32.totalorder %s67, %s69
      %p73 = scmp.eq.s32.totalorder %s21, 0
      %p74 = por %p72, %p73
      %p75 = scmp.ne.s32.totalorder %s67, %s69
      %p76 = scmp.eq.s32.totalorder %s26, 1
      %p77 = por %p75, %p76
      %p78 = scmp.ne.s32.totalorder %s69, %s70
      %p79 = scmp.eq.s32.totalorder %s26, 0
      %p80 = por %p78, %p79
      %p81 = scmp.ne.s32.totalorder %s69, %s70
      %p82 = scmp.eq.s32.totalorder %s27, 1
      %p83 = por %p81, %p82
      %p85 = scmp.ne.s32.totalorder %s70, %s84
      %p86 = scmp.eq.s32.totalorder %s27, 0
      %p87 = por %p85, %p86
      %s88 = ssub.s32 %s28, %s40
      %s89 = ssub.s32 %s29, %s36
      %s90 = sor.u32 %s88, %s89
      %p91 = scmp.eq.s32.totalorder %s90, 0
      %s93 = sadd.s32 %s92, 1
      %s94 = scalar_select %p91, %s92, %s93
      %p97 = pneg %p91
      %p98 = scmp.eq.s32.totalorder %s21, 1
      %p99 = por %p97, %p98
      %p100 = scmp.ne.s32.totalorder %s92, %s95
      %p101 = scmp.eq.s32.totalorder %s21, 0
      %p102 = por %p100, %p101
      %p103 = scmp.ne.s32.totalorder %s92, %s95
      %p104 = scmp.eq.s32.totalorder %s26, 1
      %p105 = por %p103, %p104
      %p106 = scmp.ne.s32.totalorder %s95, %s96
      %p107 = scmp.eq.s32.totalorder %s26, 0
      %p108 = por %p106, %p107
      %p109 = scmp.ne.s32.totalorder %s95, %s96
      %p110 = scmp.eq.s32.totalorder %s27, 1
      %p111 = por %p109, %p110
      %p113 = scmp.ne.s32.totalorder %s96, %s112
      %p114 = scmp.eq.s32.totalorder %s27, 0
      %p115 = por %p113, %p114
      %s116 = ssub.s32 %s28, %s40
      %s117 = ssub.s32 %s29, %s36
      %s118 = sor.u32 %s116, %s117
      %p119 = scmp.eq.s32.totalorder %s118, 0
      %s121 = sadd.s32 %s120, 1
      %s122 = scalar_select %p119, %s120, %s121
      %p125 = pneg %p119
      %p126 = scmp.eq.s32.totalorder %s21, 1
      %p127 = por %p125, %p126
      %p128 = scmp.ne.s32.totalorder %s120, %s123
      %p129 = scmp.eq.s32.totalorder %s21, 0
      %p130 = por %p128, %p129
      %p131 = scmp.ne.s32.totalorder %s120, %s123
      %p132 = scmp.eq.s32.totalorder %s26, 1
      %p133 = por %p131, %p132
      %p134 = scmp.ne.s32.totalorder %s123, %s124
      %p135 = scmp.eq.s32.totalorder %s26, 0
      %p136 = por %p134, %p135
      %p137 = scmp.ne.s32.totalorder %s123, %s124
      %p138 = scmp.eq.s32.totalorder %s27, 1
      %p139 = por %p137, %p138
      %p141 = scmp.ne.s32.totalorder %s124, %s140
      %p142 = scmp.eq.s32.totalorder %s27, 0
      %p143 = por %p141, %p142
      %s144 = ssub.s32 %s28, %s40
      %s145 = ssub.s32 %s29, %s36
      %s146 = sor.u32 %s144, %s145
      %p147 = scmp.eq.s32.totalorder %s146, 0
      %s149 = sadd.s32 %s148, 1
      %s150 = scalar_select %p147, %s148, %s149
      %p153 = pneg %p147
      %p154 = scmp.eq.s32.totalorder %s21, 1
      %p155 = por %p153, %p154
      %p156 = scmp.ne.s32.totalorder %s148, %s151
      %p157 = scmp.eq.s32.totalorder %s21, 0
      %p158 = por %p156, %p157
      %p159 = scmp.ne.s32.totalorder %s148, %s151
      %p160 = scmp.eq.s32.totalorder %s26, 1
      %p161 = por %p159, %p160
      %p162 = scmp.ne.s32.totalorder %s151, %s152
      %p163 = scmp.eq.s32.totalorder %s26, 0
      %p164 = por %p162, %p163
      %p165 = scmp.ne.s32.totalorder %s151, %s152
      %p166 = scmp.eq.s32.totalorder %s27, 1
      %p167 = por %p165, %p166
      %p169 = scmp.ne.s32.totalorder %s152, %s168
      %p170 = scmp.eq.s32.totalorder %s27, 0
      %p171 = por %p169, %p170
      %p172 = scmp.le.s32.totalorder 1, %s21
      %p173 = scmp.lt.s32.totalorder %s21, 3
      %p174 = pnand %p172, %p173
      %p175 = pneg %p174
      // Predicated region
      $region9: #{dcgan_discriminator.7} parent=5 // pred_check
        _
      $region10: #{dcgan_discriminator.7} parent=5 // pred_check_branch
        %177 = sbr.rel (%p174) target = $region12
      $region11: #{dcgan_discriminator.7} parent=5 // pred_region
        %s178 = ssub.s32 %s21, 1
        // Predicated region
        $region13: #{dcgan_discriminator.7} parent=11 // pred_check
          %p179 = pneg %p80
        $region14: #{dcgan_discriminator.7} parent=11 // pred_check_branch
          %181 = sbr.rel (%p179) target = $region16
        $region15: #{dcgan_discriminator.7} parent=11 // pred_region
          %s183 = ssub.s32 2048, 2048
          %184 = vsyncadd [#allocation6], %s183
          %s185 = sshll.u32 [#allocation5], 4
          %s186 = int_to_ptr.vmem [resolvable:$true] %s185
          %191 = dma.hbm_to_vmem [thread:$0]  %s1, 2048, %s186, [#allocation6], 64, 64, 4
        $region16: #{dcgan_discriminator.7} parent=11 // pred_fallthru
          _
      $region12: #{dcgan_discriminator.7} parent=5 // pred_fallthru
        _
      %p192 = scmp.lt.s32.totalorder %s21, 2
      // Predicated region
      $region17: #{dcgan_discriminator.7} parent=5 // pred_check
        %p193 = pneg %p192
      $region18: #{dcgan_discriminator.7} parent=5 // pred_check_branch
        %195 = sbr.rel (%p193) target = $region20
      $region19: #{dcgan_discriminator.7} parent=5 // pred_region
        // Predicated region
        $region21: #{dcgan_discriminator.7} parent=19 // pred_check
          %p196 = pneg %p53
        $region22: #{dcgan_discriminator.7} parent=19 // pred_check_branch
          %198 = sbr.rel (%p196) target = $region24
        $region23: #{dcgan_discriminator.7} parent=19 // pred_region
          %s199 = sand.u32 %s43, 1
          %s200 = scalar_lea.sflag [#allocation3], %s199
          %s201 = sand.u32 %s43, 1
          %s202 = smul.addr %s201, 10
          %s203 = scalar_lea.vmem [#allocation2], %s202
          %s205 = ssub.s32 160, 160
          %206 = vsyncadd %s200, %s205
          %s207 = smul.addr %s28, 5
          %s208 = smul.addr %s207, 32
          %s209 = scalar_lea.hbm %s0, %s208
          %s210 = sshll.u32 %s203, 4
          %s211 = int_to_ptr.vmem [resolvable:$true] %s210
          %216 = dma.hbm_to_vmem [thread:$0]  %s209, 160, %s211, %s200, 32, 32, 2
        $region24: #{dcgan_discriminator.7} parent=19 // pred_fallthru
          _
      $region20: #{dcgan_discriminator.7} parent=5 // pred_fallthru
        _
      %p217 = scmp.le.s32.totalorder 1, %s21
      %p218 = scmp.lt.s32.totalorder %s21, 3
      %p219 = pnand %p217, %p218
      %p220 = pneg %p219
      // Predicated region
      $region25: #{dcgan_discriminator.7} parent=5 // pred_check
        _
      $region26: #{dcgan_discriminator.7} parent=5 // pred_check_branch
        %222 = sbr.rel (%p219) target = $region28
      $region27: #{dcgan_discriminator.7} parent=5 // pred_region
        %s223 = ssub.s32 %s21, 1
        %s224 = sand.u32 %s46, 1
        %s225 = scalar_lea.sflag [#allocation3], %s224
        %s226 = sand.u32 %s46, 1
        %s227 = smul.addr %s226, 10
        %s228 = scalar_lea.vmem [#allocation2], %s227
        // Predicated region
        $region29: #{dcgan_discriminator.7} parent=27 // pred_check
          %p229 = pneg %p59
        $region30: #{dcgan_discriminator.7} parent=27 // pred_check_branch
          %231 = sbr.rel (%p229) target = $region32
        $region31: #{dcgan_discriminator.7} parent=27 // pred_region
          %232 = dma.done %s225, 160
        $region32: #{dcgan_discriminator.7} parent=27 // pred_fallthru
          _
        // Predicated region
        $region33: #{dcgan_discriminator.7} parent=27 // pred_check
          %p233 = pneg %p80
        $region34: #{dcgan_discriminator.7} parent=27 // pred_check_branch
          %235 = sbr.rel (%p233) target = $region36
        $region35: #{dcgan_discriminator.7} parent=27 // pred_region
          %236 = dma.done [#allocation6], 2048
        $region36: #{dcgan_discriminator.7} parent=27 // pred_fallthru
          _
        %s237 = sand.u32 %s46, 1
        %s238 = scalar_lea.sflag [#allocation3], %s237
        %s239 = sand.u32 %s46, 1
        %s240 = smul.addr %s239, 10
        %s241 = scalar_lea.vmem [#allocation2], %s240
        %p242 = pneg %p59
        %p243 = pneg %p56
        %p244 = pneg %p80
        %p245 = pneg %p77
        %p246 = pneg %p108
        %p247 = pneg %p105
        %s248 = sand.u32 %s95, 1
        %s249 = scalar_lea.sflag [#allocation4], %s248
        %s250 = sand.u32 %s95, 1
        %s251 = smul.addr %s250, 8
        %s252 = scalar_lea.vmem [#allocation7], %s251
        %p253 = pneg %p136
        %p254 = pneg %p133
        %s255 = sand.u32 %s26, 1
        %s256 = scalar_lea.sflag [#allocation9], %s255
        %s257 = sand.u32 %s123, 1
        %s258 = scalar_lea.vmem [#allocation8], %s257
        %p259 = pneg %p164
        %p260 = pneg %p161
        %s261 = sand.u32 %s26, 1
        %s262 = scalar_lea.sflag [#allocation9], %s261
        %s263 = sand.u32 %s151, 1
        %s264 = scalar_lea.vmem [#allocation10], %s263
        %s265 = smul.u32 4, %s31
        %s267 = smul.u32 %s31, 4
        %s268 = smul.addr %s267, 2
        %s269 = scalar_lea.vmem %s228, %s268 [#allocation2]
        %v270 = vld [vmem:[%s269] sm:$0x3]
        %v271 = vld [vmem:[#allocation5] sm:$0xf]
        %v272 = vld [vmem:[#allocation5 + $0x4] sm:$0xf]
        %v273 = vld [vmem:[#allocation5 + $0x8] sm:$0xf]
        %v274 = vld [vmem:[#allocation5 + $0xc] sm:$0xf]
        %v275 = vld [vmem:[#allocation5 + $0x10] sm:$0xf]
        %v276 = vld [vmem:[#allocation5 + $0x14] sm:$0xf]
        %v277 = vld [vmem:[#allocation5 + $0x18] sm:$0xf]
        %v278 = vld [vmem:[#allocation5 + $0x1c] sm:$0xf]
        %v279 = vld [vmem:[#allocation5 + $0x20] sm:$0xf]
        %v280 = vld [vmem:[#allocation5 + $0x24] sm:$0xf]
        %v281 = vld [vmem:[#allocation5 + $0x28] sm:$0xf]
        %v282 = vld [vmem:[#allocation5 + $0x2c] sm:$0xf]
        %v283 = vld [vmem:[#allocation5 + $0x30] sm:$0xf]
        %v284 = vld [vmem:[#allocation5 + $0x34] sm:$0xf]
        %v285 = vld [vmem:[#allocation5 + $0x38] sm:$0xf]
        %v286 = vld [vmem:[#allocation5 + $0x3c] sm:$0xf]
        %s287 = sadd.s32 %s267, 1
        %s288 = smul.addr %s287, 2
        %s289 = scalar_lea.vmem %s228, %s288 [#allocation2]
        %v290 = vld [vmem:[%s289] sm:$0x3]
        %s291 = scalar_lea.vmem [#allocation5], 64
        %v292 = vld [vmem:[%s291] sm:$0xf]
        %v293 = vld [vmem:[%s291 + $0x4] sm:$0xf]
        %v294 = vld [vmem:[%s291 + $0x8] sm:$0xf]
        %v295 = vld [vmem:[%s291 + $0xc] sm:$0xf]
        %v296 = vld [vmem:[%s291 + $0x10] sm:$0xf]
        %v297 = vld [vmem:[%s291 + $0x14] sm:$0xf]
        %v298 = vld [vmem:[%s291 + $0x18] sm:$0xf]
        %v299 = vld [vmem:[%s291 + $0x1c] sm:$0xf]
        %v300 = vld [vmem:[%s291 + $0x20] sm:$0xf]
        %v301 = vld [vmem:[%s291 + $0x24] sm:$0xf]
        %v302 = vld [vmem:[%s291 + $0x28] sm:$0xf]
        %v303 = vld [vmem:[%s291 + $0x2c] sm:$0xf]
        %v304 = vld [vmem:[%s291 + $0x30] sm:$0xf]
        %v305 = vld [vmem:[%s291 + $0x34] sm:$0xf]
        %v306 = vld [vmem:[%s291 + $0x38] sm:$0xf]
        %v307 = vld [vmem:[%s291 + $0x3c] sm:$0xf]
        %v324 = vunpack.c.l.b16 %v292
        %v325 = vunpack.c.l.b16 %v293
        %v326 = vunpack.c.l.b16 %v294
        %v327 = vunpack.c.l.b16 %v295
        %v328 = vunpack.c.l.b16 %v296
        %v329 = vunpack.c.l.b16 %v297
        %v330 = vunpack.c.l.b16 %v298
        %v331 = vunpack.c.l.b16 %v299
        %v332 = vunpack.c.l.b16 %v300
        %v333 = vunpack.c.l.b16 %v301
        %v334 = vunpack.c.l.b16 %v302
        %v335 = vunpack.c.l.b16 %v303
        %v336 = vunpack.c.l.b16 %v304
        %v337 = vunpack.c.l.b16 %v305
        %v338 = vunpack.c.l.b16 %v306
        %v339 = vunpack.c.l.b16 %v307
        %v340 = vpack.c.b16 %v325, %v324
        %v341 = vpack.c.b16 %v327, %v326
        %v342 = vpack.c.b16 %v329, %v328
        %v343 = vpack.c.b16 %v331, %v330
        %v344 = vpack.c.b16 %v333, %v332
        %v345 = vpack.c.b16 %v335, %v334
        %v346 = vpack.c.b16 %v337, %v336
        %v347 = vpack.c.b16 %v339, %v338
        %356 = vmatprep.subr.bf16.mxu0 0
        %357 = vmatpush1.bf16.msra.mxu0 %v340
        %358 = vmatprep.subr.bf16.mxu0 0
        %359 = vmatpush1.bf16.msra.mxu0 %v341
        %360 = vmatprep.subr.bf16.mxu0 0
        %361 = vmatpush1.bf16.msra.mxu0 %v342
        %362 = vmatprep.subr.bf16.mxu0 0
        %363 = vmatpush1.bf16.msra.mxu0 %v343
        %364 = vmatprep.subr.bf16.mxu0 0
        %365 = vmatpush1.bf16.msra.mxu0 %v344
        %366 = vmatprep.subr.bf16.mxu0 0
        %367 = vmatpush1.bf16.msra.mxu0 %v345
        %368 = vmatprep.subr.bf16.mxu0 0
        %369 = vmatpush1.bf16.msra.mxu0 %v346
        %370 = vmatprep.subr.bf16.mxu0 0
        %371 = vmatpush1.bf16.msra.mxu0 %v347
        %372 = vmatprep.subr.bf16.mxu0 0
        %373 = vmatpush1.bf16.msra.mxu0 0
        %374 = vmatprep.subr.bf16.mxu0 0
        %375 = vmatpush1.bf16.msra.mxu0 0
        %376 = vmatprep.subr.bf16.mxu0 0
        %377 = vmatpush1.bf16.msra.mxu0 0
        %378 = vmatprep.subr.bf16.mxu0 0
        %379 = vmatpush1.bf16.msra.mxu0 0
        %380 = vmatprep.subr.bf16.mxu0 0
        %381 = vmatpush1.bf16.msra.mxu0 0
        %382 = vmatprep.subr.bf16.mxu0 0
        %383 = vmatpush1.bf16.msra.mxu0 0
        %384 = vmatprep.subr.bf16.mxu0 0
        %385 = vmatpush1.bf16.msra.mxu0 0
        %386 = vmatprep.subr.bf16.mxu0 0
        %387 = vmatpush1.bf16.msra.mxu0 0
        %388 = vmatprep.mubr.bf16.mxu0 0
        %389 = vmatmul.mubr.bf16.gmra.mrb[0].mxu0 %v290
        %v390 = vpop.f32.mrb[0].mxu0
        %v391 = vadd.f32 0.0, %v390
        %v392 = vpop.f32.mrb[0].mxu0
        %v393 = vpop.f32.mrb[0].mxu0
        %v394 = vpop.f32.mrb[0].mxu0
        %395 = vdwg.mxu0
        %v412 = vunpack.c.l.b16 %v271
        %v413 = vunpack.c.l.b16 %v272
        %v414 = vunpack.c.l.b16 %v273
        %v415 = vunpack.c.l.b16 %v274
        %v416 = vunpack.c.l.b16 %v275
        %v417 = vunpack.c.l.b16 %v276
        %v418 = vunpack.c.l.b16 %v277
        %v419 = vunpack.c.l.b16 %v278
        %v420 = vunpack.c.l.b16 %v279
        %v421 = vunpack.c.l.b16 %v280
        %v422 = vunpack.c.l.b16 %v281
        %v423 = vunpack.c.l.b16 %v282
        %v424 = vunpack.c.l.b16 %v283
        %v425 = vunpack.c.l.b16 %v284
        %v426 = vunpack.c.l.b16 %v285
        %v427 = vunpack.c.l.b16 %v286
        %v428 = vpack.c.b16 %v413, %v412
        %v429 = vpack.c.b16 %v415, %v414
        %v430 = vpack.c.b16 %v417, %v416
        %v431 = vpack.c.b16 %v419, %v418
        %v432 = vpack.c.b16 %v421, %v420
        %v433 = vpack.c.b16 %v423, %v422
        %v434 = vpack.c.b16 %v425, %v424
        %v435 = vpack.c.b16 %v427, %v426
        %444 = vmatprep.subr.bf16.mxu0 0
        %445 = vmatpush1.bf16.msra.mxu0 %v428
        %446 = vmatprep.subr.bf16.mxu0 0
        %447 = vmatpush1.bf16.msra.mxu0 %v429
        %448 = vmatprep.subr.bf16.mxu0 0
        %449 = vmatpush1.bf16.msra.mxu0 %v430
        %450 = vmatprep.subr.bf16.mxu0 0
        %451 = vmatpush1.bf16.msra.mxu0 %v431
        %452 = vmatprep.subr.bf16.mxu0 0
        %453 = vmatpush1.bf16.msra.mxu0 %v432
        %454 = vmatprep.subr.bf16.mxu0 0
        %455 = vmatpush1.bf16.msra.mxu0 %v433
        %456 = vmatprep.subr.bf16.mxu0 0
        %457 = vmatpush1.bf16.msra.mxu0 %v434
        %458 = vmatprep.subr.bf16.mxu0 0
        %459 = vmatpush1.bf16.msra.mxu0 %v435
        %460 = vmatprep.subr.bf16.mxu0 0
        %461 = vmatpush1.bf16.msra.mxu0 0
        %462 = vmatprep.subr.bf16.mxu0 0
        %463 = vmatpush1.bf16.msra.mxu0 0
        %464 = vmatprep.subr.bf16.mxu0 0
        %465 = vmatpush1.bf16.msra.mxu0 0
        %466 = vmatprep.subr.bf16.mxu0 0
        %467 = vmatpush1.bf16.msra.mxu0 0
        %468 = vmatprep.subr.bf16.mxu0 0
        %469 = vmatpush1.bf16.msra.mxu0 0
        %470 = vmatprep.subr.bf16.mxu0 0
        %471 = vmatpush1.bf16.msra.mxu0 0
        %472 = vmatprep.subr.bf16.mxu0 0
        %473 = vmatpush1.bf16.msra.mxu0 0
        %474 = vmatprep.subr.bf16.mxu0 0
        %475 = vmatpush1.bf16.msra.mxu0 0
        %476 = vmatprep.mubr.bf16.mxu0 0
        %477 = vmatmul.mubr.bf16.gmra.mrb[0].mxu0 %v270
        %v478 = vpop.f32.mrb[0].mxu0
        %v479 = vadd.f32 %v391, %v478
        %v480 = vpop.f32.mrb[0].mxu0
        %v481 = vpop.f32.mrb[0].mxu0
        %v482 = vpop.f32.mrb[0].mxu0
        %483 = vdwg.mxu0
        %v484 = vpack.c.bf16 %v479, %v479
        %vm485 = vcmask 254976
        %486 = vst.msk [vmem:[%s252] sm:$0x3] %vm485, %v484
        %vm487 = vcmask 257024
        %v488 = vsel %vm487, %v479, 0.0
        %v489 = vrot.slane %v488, 4
        %v490 = vadd.f32 %v488, %v489
        %v491 = vrot.slane %v490, 2
        %v492 = vadd.f32 %v490, %v491
        %v493 = vrot.slane %v492, 1
        %v494 = vadd.f32 %v492, %v493
        %v495 = vadd.f32 %v494, 0.0
        %v496 = vmul.f32 %v479, %v479
        %v497 = vsel %vm487, %v496, 0.0
        %v498 = vrot.slane %v497, 4
        %v499 = vadd.f32 %v497, %v498
        %v500 = vrot.slane %v499, 2
        %v501 = vadd.f32 %v499, %v500
        %v502 = vrot.slane %v501, 1
        %v503 = vadd.f32 %v501, %v502
        %v504 = vadd.f32 %v503, 0.0
        %v505 = vld [vmem:[%s289] sm:$0x3]
        %v506 = vld [vmem:[#allocation5] sm:$0xf]
        %v507 = vld [vmem:[#allocation5 + $0x4] sm:$0xf]
        %v508 = vld [vmem:[#allocation5 + $0x8] sm:$0xf]
        %v509 = vld [vmem:[#allocation5 + $0xc] sm:$0xf]
        %v510 = vld [vmem:[#allocation5 + $0x10] sm:$0xf]
        %v511 = vld [vmem:[#allocation5 + $0x14] sm:$0xf]
        %v512 = vld [vmem:[#allocation5 + $0x18] sm:$0xf]
        %v513 = vld [vmem:[#allocation5 + $0x1c] sm:$0xf]
        %v514 = vld [vmem:[#allocation5 + $0x20] sm:$0xf]
        %v515 = vld [vmem:[#allocation5 + $0x24] sm:$0xf]
        %v516 = vld [vmem:[#allocation5 + $0x28] sm:$0xf]
        %v517 = vld [vmem:[#allocation5 + $0x2c] sm:$0xf]
        %v518 = vld [vmem:[#allocation5 + $0x30] sm:$0xf]
        %v519 = vld [vmem:[#allocation5 + $0x34] sm:$0xf]
        %v520 = vld [vmem:[#allocation5 + $0x38] sm:$0xf]
        %v521 = vld [vmem:[#allocation5 + $0x3c] sm:$0xf]
        %s522 = sadd.s32 %s267, 2
        %s523 = smul.addr %s522, 2
        %s524 = scalar_lea.vmem %s228, %s523 [#allocation2]
        %v525 = vld [vmem:[%s524] sm:$0x3]
        %v526 = vld [vmem:[%s291] sm:$0xf]
        %v527 = vld [vmem:[%s291 + $0x4] sm:$0xf]
        %v528 = vld [vmem:[%s291 + $0x8] sm:$0xf]
        %v529 = vld [vmem:[%s291 + $0xc] sm:$0xf]
        %v530 = vld [vmem:[%s291 + $0x10] sm:$0xf]
        %v531 = vld [vmem:[%s291 + $0x14] sm:$0xf]
        %v532 = vld [vmem:[%s291 + $0x18] sm:$0xf]
        %v533 = vld [vmem:[%s291 + $0x1c] sm:$0xf]
        %v534 = vld [vmem:[%s291 + $0x20] sm:$0xf]
        %v535 = vld [vmem:[%s291 + $0x24] sm:$0xf]
        %v536 = vld [vmem:[%s291 + $0x28] sm:$0xf]
        %v537 = vld [vmem:[%s291 + $0x2c] sm:$0xf]
        %v538 = vld [vmem:[%s291 + $0x30] sm:$0xf]
        %v539 = vld [vmem:[%s291 + $0x34] sm:$0xf]
        %v540 = vld [vmem:[%s291 + $0x38] sm:$0xf]
        %v541 = vld [vmem:[%s291 + $0x3c] sm:$0xf]
        %v558 = vunpack.c.l.b16 %v526
        %v559 = vunpack.c.l.b16 %v527
        %v560 = vunpack.c.l.b16 %v528
        %v561 = vunpack.c.l.b16 %v529
        %v562 = vunpack.c.l.b16 %v530
        %v563 = vunpack.c.l.b16 %v531
        %v564 = vunpack.c.l.b16 %v532
        %v565 = vunpack.c.l.b16 %v533
        %v566 = vunpack.c.l.b16 %v534
        %v567 = vunpack.c.l.b16 %v535
        %v568 = vunpack.c.l.b16 %v536
        %v569 = vunpack.c.l.b16 %v537
        %v570 = vunpack.c.l.b16 %v538
        %v571 = vunpack.c.l.b16 %v539
        %v572 = vunpack.c.l.b16 %v540
        %v573 = vunpack.c.l.b16 %v541
        %v574 = vpack.c.b16 %v559, %v558
        %v575 = vpack.c.b16 %v561, %v560
        %v576 = vpack.c.b16 %v563, %v562
        %v577 = vpack.c.b16 %v565, %v564
        %v578 = vpack.c.b16 %v567, %v566
        %v579 = vpack.c.b16 %v569, %v568
        %v580 = vpack.c.b16 %v571, %v570
        %v581 = vpack.c.b16 %v573, %v572
        %590 = vmatprep.subr.bf16.mxu0 0
        %591 = vmatpush1.bf16.msra.mxu0 %v574
        %592 = vmatprep.subr.bf16.mxu0 0
        %593 = vmatpush1.bf16.msra.mxu0 %v575
        %594 = vmatprep.subr.bf16.mxu0 0
        %595 = vmatpush1.bf16.msra.mxu0 %v576
        %596 = vmatprep.subr.bf16.mxu0 0
        %597 = vmatpush1.bf16.msra.mxu0 %v577
        %598 = vmatprep.subr.bf16.mxu0 0
        %599 = vmatpush1.bf16.msra.mxu0 %v578
        %600 = vmatprep.subr.bf16.mxu0 0
        %601 = vmatpush1.bf16.msra.mxu0 %v579
        %602 = vmatprep.subr.bf16.mxu0 0
        %603 = vmatpush1.bf16.msra.mxu0 %v580
        %604 = vmatprep.subr.bf16.mxu0 0
        %605 = vmatpush1.bf16.msra.mxu0 %v581
        %606 = vmatprep.subr.bf16.mxu0 0
        %607 = vmatpush1.bf16.msra.mxu0 0
        %608 = vmatprep.subr.bf16.mxu0 0
        %609 = vmatpush1.bf16.msra.mxu0 0
        %610 = vmatprep.subr.bf16.mxu0 0
        %611 = vmatpush1.bf16.msra.mxu0 0
        %612 = vmatprep.subr.bf16.mxu0 0
        %613 = vmatpush1.bf16.msra.mxu0 0
        %614 = vmatprep.subr.bf16.mxu0 0
        %615 = vmatpush1.bf16.msra.mxu0 0
        %616 = vmatprep.subr.bf16.mxu0 0
        %617 = vmatpush1.bf16.msra.mxu0 0
        %618 = vmatprep.subr.bf16.mxu0 0
        %619 = vmatpush1.bf16.msra.mxu0 0
        %620 = vmatprep.subr.bf16.mxu0 0
        %621 = vmatpush1.bf16.msra.mxu0 0
        %622 = vmatprep.mubr.bf16.mxu0 0
        %623 = vmatmul.mubr.bf16.gmra.mrb[0].mxu0 %v525
        %v624 = vpop.f32.mrb[0].mxu0
        %v625 = vadd.f32 0.0, %v624
        %v626 = vpop.f32.mrb[0].mxu0
        %v627 = vpop.f32.mrb[0].mxu0
        %v628 = vpop.f32.mrb[0].mxu0
        %629 = vdwg.mxu0
        %v646 = vunpack.c.l.b16 %v506
        %v647 = vunpack.c.l.b16 %v507
        %v648 = vunpack.c.l.b16 %v508
        %v649 = vunpack.c.l.b16 %v509
        %v650 = vunpack.c.l.b16 %v510
        %v651 = vunpack.c.l.b16 %v511
        %v652 = vunpack.c.l.b16 %v512
        %v653 = vunpack.c.l.b16 %v513
        %v654 = vunpack.c.l.b16 %v514
        %v655 = vunpack.c.l.b16 %v515
        %v656 = vunpack.c.l.b16 %v516
        %v657 = vunpack.c.l.b16 %v517
        %v658 = vunpack.c.l.b16 %v518
        %v659 = vunpack.c.l.b16 %v519
        %v660 = vunpack.c.l.b16 %v520
        %v661 = vunpack.c.l.b16 %v521
        %v662 = vpack.c.b16 %v647, %v646
        %v663 = vpack.c.b16 %v649, %v648
        %v664 = vpack.c.b16 %v651, %v650
        %v665 = vpack.c.b16 %v653, %v652
        %v666 = vpack.c.b16 %v655, %v654
        %v667 = vpack.c.b16 %v657, %v656
        %v668 = vpack.c.b16 %v659, %v658
        %v669 = vpack.c.b16 %v661, %v660
        %678 = vmatprep.subr.bf16.mxu0 0
        %679 = vmatpush1.bf16.msra.mxu0 %v662
        %680 = vmatprep.subr.bf16.mxu0 0
        %681 = vmatpush1.bf16.msra.mxu0 %v663
        %682 = vmatprep.subr.bf16.mxu0 0
        %683 = vmatpush1.bf16.msra.mxu0 %v664
        %684 = vmatprep.subr.bf16.mxu0 0
        %685 = vmatpush1.bf16.msra.mxu0 %v665
        %686 = vmatprep.subr.bf16.mxu0 0
        %687 = vmatpush1.bf16.msra.mxu0 %v666
        %688 = vmatprep.subr.bf16.mxu0 0
        %689 = vmatpush1.bf16.msra.mxu0 %v667
        %690 = vmatprep.subr.bf16.mxu0 0
        %691 = vmatpush1.bf16.msra.mxu0 %v668
        %692 = vmatprep.subr.bf16.mxu0 0
        %693 = vmatpush1.bf16.msra.mxu0 %v669
        %694 = vmatprep.subr.bf16.mxu0 0
        %695 = vmatpush1.bf16.msra.mxu0 0
        %696 = vmatprep.subr.bf16.mxu0 0
        %697 = vmatpush1.bf16.msra.mxu0 0
        %698 = vmatprep.subr.bf16.mxu0 0
        %699 = vmatpush1.bf16.msra.mxu0 0
        %700 = vmatprep.subr.bf16.mxu0 0
        %701 = vmatpush1.bf16.msra.mxu0 0
        %702 = vmatprep.subr.bf16.mxu0 0
        %703 = vmatpush1.bf16.msra.mxu0 0
        %704 = vmatprep.subr.bf16.mxu0 0
        %705 = vmatpush1.bf16.msra.mxu0 0
        %706 = vmatprep.subr.bf16.mxu0 0
        %707 = vmatpush1.bf16.msra.mxu0 0
        %708 = vmatprep.subr.bf16.mxu0 0
        %709 = vmatpush1.bf16.msra.mxu0 0
        %710 = vmatprep.mubr.bf16.mxu0 0
        %711 = vmatmul.mubr.bf16.gmra.mrb[0].mxu0 %v505
        %v712 = vpop.f32.mrb[0].mxu0
        %v713 = vadd.f32 %v625, %v712
        %v714 = vpop.f32.mrb[0].mxu0
        %v715 = vpop.f32.mrb[0].mxu0
        %v716 = vpop.f32.mrb[0].mxu0
        %717 = vdwg.mxu0
        %v718 = vpack.c.bf16 %v713, %v713
        %s719 = scalar_lea.vmem %s252, 2 [#allocation7]
        %720 = vst.msk [vmem:[%s719] sm:$0x3] %vm485, %v718
        %v721 = vsel %vm487, %v713, 0.0
        %v722 = vrot.slane %v721, 4
        %v723 = vadd.f32 %v721, %v722
        %v724 = vrot.slane %v723, 2
        %v725 = vadd.f32 %v723, %v724
        %v726 = vrot.slane %v725, 1
        %v727 = vadd.f32 %v725, %v726
        %v728 = vadd.f32 %v495, %v727
        %v729 = vmul.f32 %v713, %v713
        %v730 = vsel %vm487, %v729, 0.0
        %v731 = vrot.slane %v730, 4
        %v732 = vadd.f32 %v730, %v731
        %v733 = vrot.slane %v732, 2
        %v734 = vadd.f32 %v732, %v733
        %v735 = vrot.slane %v734, 1
        %v736 = vadd.f32 %v734, %v735
        %v737 = vadd.f32 %v504, %v736
        %v738 = vld [vmem:[%s524] sm:$0x3]
        %v739 = vld [vmem:[#allocation5] sm:$0xf]
        %v740 = vld [vmem:[#allocation5 + $0x4] sm:$0xf]
        %v741 = vld [vmem:[#allocation5 + $0x8] sm:$0xf]
        %v742 = vld [vmem:[#allocation5 + $0xc] sm:$0xf]
        %v743 = vld [vmem:[#allocation5 + $0x10] sm:$0xf]
        %v744 = vld [vmem:[#allocation5 + $0x14] sm:$0xf]
        %v745 = vld [vmem:[#allocation5 + $0x18] sm:$0xf]
        %v746 = vld [vmem:[#allocation5 + $0x1c] sm:$0xf]
        %v747 = vld [vmem:[#allocation5 + $0x20] sm:$0xf]
        %v748 = vld [vmem:[#allocation5 + $0x24] sm:$0xf]
        %v749 = vld [vmem:[#allocation5 + $0x28] sm:$0xf]
        %v750 = vld [vmem:[#allocation5 + $0x2c] sm:$0xf]
        %v751 = vld [vmem:[#allocation5 + $0x30] sm:$0xf]
        %v752 = vld [vmem:[#allocation5 + $0x34] sm:$0xf]
        %v753 = vld [vmem:[#allocation5 + $0x38] sm:$0xf]
        %v754 = vld [vmem:[#allocation5 + $0x3c] sm:$0xf]
        %s755 = sadd.s32 %s267, 3
        %s756 = smul.addr %s755, 2
        %s757 = scalar_lea.vmem %s228, %s756 [#allocation2]
        %v758 = vld [vmem:[%s757] sm:$0x3]
        %v759 = vld [vmem:[%s291] sm:$0xf]
        %v760 = vld [vmem:[%s291 + $0x4] sm:$0xf]
        %v761 = vld [vmem:[%s291 + $0x8] sm:$0xf]
        %v762 = vld [vmem:[%s291 + $0xc] sm:$0xf]
        %v763 = vld [vmem:[%s291 + $0x10] sm:$0xf]
        %v764 = vld [vmem:[%s291 + $0x14] sm:$0xf]
        %v765 = vld [vmem:[%s291 + $0x18] sm:$0xf]
        %v766 = vld [vmem:[%s291 + $0x1c] sm:$0xf]
        %v767 = vld [vmem:[%s291 + $0x20] sm:$0xf]
        %v768 = vld [vmem:[%s291 + $0x24] sm:$0xf]
        %v769 = vld [vmem:[%s291 + $0x28] sm:$0xf]
        %v770 = vld [vmem:[%s291 + $0x2c] sm:$0xf]
        %v771 = vld [vmem:[%s291 + $0x30] sm:$0xf]
        %v772 = vld [vmem:[%s291 + $0x34] sm:$0xf]
        %v773 = vld [vmem:[%s291 + $0x38] sm:$0xf]
        %v774 = vld [vmem:[%s291 + $0x3c] sm:$0xf]
        %v791 = vunpack.c.l.b16 %v759
        %v792 = vunpack.c.l.b16 %v760
        %v793 = vunpack.c.l.b16 %v761
        %v794 = vunpack.c.l.b16 %v762
        %v795 = vunpack.c.l.b16 %v763
        %v796 = vunpack.c.l.b16 %v764
        %v797 = vunpack.c.l.b16 %v765
        %v798 = vunpack.c.l.b16 %v766
        %v799 = vunpack.c.l.b16 %v767
        %v800 = vunpack.c.l.b16 %v768
        %v801 = vunpack.c.l.b16 %v769
        %v802 = vunpack.c.l.b16 %v770
        %v803 = vunpack.c.l.b16 %v771
        %v804 = vunpack.c.l.b16 %v772
        %v805 = vunpack.c.l.b16 %v773
        %v806 = vunpack.c.l.b16 %v774
        %v807 = vpack.c.b16 %v792, %v791
        %v808 = vpack.c.b16 %v794, %v793
        %v809 = vpack.c.b16 %v796, %v795
        %v810 = vpack.c.b16 %v798, %v797
        %v811 = vpack.c.b16 %v800, %v799
        %v812 = vpack.c.b16 %v802, %v801
        %v813 = vpack.c.b16 %v804, %v803
        %v814 = vpack.c.b16 %v806, %v805
        %823 = vmatprep.subr.bf16.mxu0 0
        %824 = vmatpush1.bf16.msra.mxu0 %v807
        %825 = vmatprep.subr.bf16.mxu0 0
        %826 = vmatpush1.bf16.msra.mxu0 %v808
        %827 = vmatprep.subr.bf16.mxu0 0
        %828 = vmatpush1.bf16.msra.mxu0 %v809
        %829 = vmatprep.subr.bf16.mxu0 0
        %830 = vmatpush1.bf16.msra.mxu0 %v810
        %831 = vmatprep.subr.bf16.mxu0 0
        %832 = vmatpush1.bf16.msra.mxu0 %v811
        %833 = vmatprep.subr.bf16.mxu0 0
        %834 = vmatpush1.bf16.msra.mxu0 %v812
        %835 = vmatprep.subr.bf16.mxu0 0
        %836 = vmatpush1.bf16.msra.mxu0 %v813
        %837 = vmatprep.subr.bf16.mxu0 0
        %838 = vmatpush1.bf16.msra.mxu0 %v814
        %839 = vmatprep.subr.bf16.mxu0 0
        %840 = vmatpush1.bf16.msra.mxu0 0
        %841 = vmatprep.subr.bf16.mxu0 0
        %842 = vmatpush1.bf16.msra.mxu0 0
        %843 = vmatprep.subr.bf16.mxu0 0
        %844 = vmatpush1.bf16.msra.mxu0 0
        %845 = vmatprep.subr.bf16.mxu0 0
        %846 = vmatpush1.bf16.msra.mxu0 0
        %847 = vmatprep.subr.bf16.mxu0 0
        %848 = vmatpush1.bf16.msra.mxu0 0
        %849 = vmatprep.subr.bf16.mxu0 0
        %850 = vmatpush1.bf16.msra.mxu0 0
        %851 = vmatprep.subr.bf16.mxu0 0
        %852 = vmatpush1.bf16.msra.mxu0 0
        %853 = vmatprep.subr.bf16.mxu0 0
        %854 = vmatpush1.bf16.msra.mxu0 0
        %855 = vmatprep.mubr.bf16.mxu0 0
        %856 = vmatmul.mubr.bf16.gmra.mrb[0].mxu0 %v758
        %v857 = vpop.f32.mrb[0].mxu0
        %v858 = vadd.f32 0.0, %v857
        %v859 = vpop.f32.mrb[0].mxu0
        %v860 = vpop.f32.mrb[0].mxu0
        %v861 = vpop.f32.mrb[0].mxu0
        %862 = vdwg.mxu0
        %v879 = vunpack.c.l.b16 %v739
        %v880 = vunpack.c.l.b16 %v740
        %v881 = vunpack.c.l.b16 %v741
        %v882 = vunpack.c.l.b16 %v742
        %v883 = vunpack.c.l.b16 %v743
        %v884 = vunpack.c.l.b16 %v744
        %v885 = vunpack.c.l.b16 %v745
        %v886 = vunpack.c.l.b16 %v746
        %v887 = vunpack.c.l.b16 %v747
        %v888 = vunpack.c.l.b16 %v748
        %v889 = vunpack.c.l.b16 %v749
        %v890 = vunpack.c.l.b16 %v750
        %v891 = vunpack.c.l.b16 %v751
        %v892 = vunpack.c.l.b16 %v752
        %v893 = vunpack.c.l.b16 %v753
        %v894 = vunpack.c.l.b16 %v754
        %v895 = vpack.c.b16 %v880, %v879
        %v896 = vpack.c.b16 %v882, %v881
        %v897 = vpack.c.b16 %v884, %v883
        %v898 = vpack.c.b16 %v886, %v885
        %v899 = vpack.c.b16 %v888, %v887
        %v900 = vpack.c.b16 %v890, %v889
        %v901 = vpack.c.b16 %v892, %v891
        %v902 = vpack.c.b16 %v894, %v893
        %911 = vmatprep.subr.bf16.mxu0 0
        %912 = vmatpush1.bf16.msra.mxu0 %v895
        %913 = vmatprep.subr.bf16.mxu0 0
        %914 = vmatpush1.bf16.msra.mxu0 %v896
        %915 = vmatprep.subr.bf16.mxu0 0
        %916 = vmatpush1.bf16.msra.mxu0 %v897
        %917 = vmatprep.subr.bf16.mxu0 0
        %918 = vmatpush1.bf16.msra.mxu0 %v898
        %919 = vmatprep.subr.bf16.mxu0 0
        %920 = vmatpush1.bf16.msra.mxu0 %v899
        %921 = vmatprep.subr.bf16.mxu0 0
        %922 = vmatpush1.bf16.msra.mxu0 %v900
        %923 = vmatprep.subr.bf16.mxu0 0
        %924 = vmatpush1.bf16.msra.mxu0 %v901
        %925 = vmatprep.subr.bf16.mxu0 0
        %926 = vmatpush1.bf16.msra.mxu0 %v902
        %927 = vmatprep.subr.bf16.mxu0 0
        %928 = vmatpush1.bf16.msra.mxu0 0
        %929 = vmatprep.subr.bf16.mxu0 0
        %930 = vmatpush1.bf16.msra.mxu0 0
        %931 = vmatprep.subr.bf16.mxu0 0
        %932 = vmatpush1.bf16.msra.mxu0 0
        %933 = vmatprep.subr.bf16.mxu0 0
        %934 = vmatpush1.bf16.msra.mxu0 0
        %935 = vmatprep.subr.bf16.mxu0 0
        %936 = vmatpush1.bf16.msra.mxu0 0
        %937 = vmatprep.subr.bf16.mxu0 0
        %938 = vmatpush1.bf16.msra.mxu0 0
        %939 = vmatprep.subr.bf16.mxu0 0
        %940 = vmatpush1.bf16.msra.mxu0 0
        %941 = vmatprep.subr.bf16.mxu0 0
        %942 = vmatpush1.bf16.msra.mxu0 0
        %943 = vmatprep.mubr.bf16.mxu0 0
        %944 = vmatmul.mubr.bf16.gmra.mrb[0].mxu0 %v738
        %v945 = vpop.f32.mrb[0].mxu0
        %v946 = vadd.f32 %v858, %v945
        %v947 = vpop.f32.mrb[0].mxu0
        %v948 = vpop.f32.mrb[0].mxu0
        %v949 = vpop.f32.mrb[0].mxu0
        %950 = vdwg.mxu0
        %v951 = vpack.c.bf16 %v946, %v946
        %s952 = scalar_lea.vmem %s252, 4 [#allocation7]
        %953 = vst.msk [vmem:[%s952] sm:$0x3] %vm485, %v951
        %v954 = vsel %vm487, %v946, 0.0
        %v955 = vrot.slane %v954, 4
        %v956 = vadd.f32 %v954, %v955
        %v957 = vrot.slane %v956, 2
        %v958 = vadd.f32 %v956, %v957
        %v959 = vrot.slane %v958, 1
        %v960 = vadd.f32 %v958, %v959
        %v961 = vadd.f32 %v728, %v960
        %v962 = vmul.f32 %v946, %v946
        %v963 = vsel %vm487, %v962, 0.0
        %v964 = vrot.slane %v963, 4
        %v965 = vadd.f32 %v963, %v964
        %v966 = vrot.slane %v965, 2
        %v967 = vadd.f32 %v965, %v966
        %v968 = vrot.slane %v967, 1
        %v969 = vadd.f32 %v967, %v968
        %v970 = vadd.f32 %v737, %v969
        %v971 = vld [vmem:[%s757] sm:$0x3]
        %v972 = vld [vmem:[#allocation5] sm:$0xf]
        %v973 = vld [vmem:[#allocation5 + $0x4] sm:$0xf]
        %v974 = vld [vmem:[#allocation5 + $0x8] sm:$0xf]
        %v975 = vld [vmem:[#allocation5 + $0xc] sm:$0xf]
        %v976 = vld [vmem:[#allocation5 + $0x10] sm:$0xf]
        %v977 = vld [vmem:[#allocation5 + $0x14] sm:$0xf]
        %v978 = vld [vmem:[#allocation5 + $0x18] sm:$0xf]
        %v979 = vld [vmem:[#allocation5 + $0x1c] sm:$0xf]
        %v980 = vld [vmem:[#allocation5 + $0x20] sm:$0xf]
        %v981 = vld [vmem:[#allocation5 + $0x24] sm:$0xf]
        %v982 = vld [vmem:[#allocation5 + $0x28] sm:$0xf]
        %v983 = vld [vmem:[#allocation5 + $0x2c] sm:$0xf]
        %v984 = vld [vmem:[#allocation5 + $0x30] sm:$0xf]
        %v985 = vld [vmem:[#allocation5 + $0x34] sm:$0xf]
        %v986 = vld [vmem:[#allocation5 + $0x38] sm:$0xf]
        %v987 = vld [vmem:[#allocation5 + $0x3c] sm:$0xf]
        %s988 = sadd.s32 %s267, 4
        %s989 = smul.addr %s988, 2
        %s990 = scalar_lea.vmem %s228, %s989 [#allocation2]
        %v991 = vld [vmem:[%s990] sm:$0x3]
        %v992 = vld [vmem:[%s291] sm:$0xf]
        %v993 = vld [vmem:[%s291 + $0x4] sm:$0xf]
        %v994 = vld [vmem:[%s291 + $0x8] sm:$0xf]
        %v995 = vld [vmem:[%s291 + $0xc] sm:$0xf]
        %v996 = vld [vmem:[%s291 + $0x10] sm:$0xf]
        %v997 = vld [vmem:[%s291 + $0x14] sm:$0xf]
        %v998 = vld [vmem:[%s291 + $0x18] sm:$0xf]
        %v999 = vld [vmem:[%s291 + $0x1c] sm:$0xf]
        %v1000 = vld [vmem:[%s291 + $0x20] sm:$0xf]
        %v1001 = vld [vmem:[%s291 + $0x24] sm:$0xf]
        %v1002 = vld [vmem:[%s291 + $0x28] sm:$0xf]
        %v1003 = vld [vmem:[%s291 + $0x2c] sm:$0xf]
        %v1004 = vld [vmem:[%s291 + $0x30] sm:$0xf]
        %v1005 = vld [vmem:[%s291 + $0x34] sm:$0xf]
        %v1006 = vld [vmem:[%s291 + $0x38] sm:$0xf]
        %v1007 = vld [vmem:[%s291 + $0x3c] sm:$0xf]
        %v1024 = vunpack.c.l.b16 %v992
        %v1025 = vunpack.c.l.b16 %v993
        %v1026 = vunpack.c.l.b16 %v994
        %v1027 = vunpack.c.l.b16 %v995
        %v1028 = vunpack.c.l.b16 %v996
        %v1029 = vunpack.c.l.b16 %v997
        %v1030 = vunpack.c.l.b16 %v998
        %v1031 = vunpack.c.l.b16 %v999
        %v1032 = vunpack.c.l.b16 %v1000
        %v1033 = vunpack.c.l.b16 %v1001
        %v1034 = vunpack.c.l.b16 %v1002
        %v1035 = vunpack.c.l.b16 %v1003
        %v1036 = vunpack.c.l.b16 %v1004
        %v1037 = vunpack.c.l.b16 %v1005
        %v1038 = vunpack.c.l.b16 %v1006
        %v1039 = vunpack.c.l.b16 %v1007
        %v1040 = vpack.c.b16 %v1025, %v1024
        %v1041 = vpack.c.b16 %v1027, %v1026
        %v1042 = vpack.c.b16 %v1029, %v1028
        %v1043 = vpack.c.b16 %v1031, %v1030
        %v1044 = vpack.c.b16 %v1033, %v1032
        %v1045 = vpack.c.b16 %v1035, %v1034
        %v1046 = vpack.c.b16 %v1037, %v1036
        %v1047 = vpack.c.b16 %v1039, %v1038
        %1056 = vmatprep.subr.bf16.mxu0 0
        %1057 = vmatpush1.bf16.msra.mxu0 %v1040
        %1058 = vmatprep.subr.bf16.mxu0 0
        %1059 = vmatpush1.bf16.msra.mxu0 %v1041
        %1060 = vmatprep.subr.bf16.mxu0 0
        %1061 = vmatpush1.bf16.msra.mxu0 %v1042
        %1062 = vmatprep.subr.bf16.mxu0 0
        %1063 = vmatpush1.bf16.msra.mxu0 %v1043
        %1064 = vmatprep.subr.bf16.mxu0 0
        %1065 = vmatpush1.bf16.msra.mxu0 %v1044
        %1066 = vmatprep.subr.bf16.mxu0 0
        %1067 = vmatpush1.bf16.msra.mxu0 %v1045
        %1068 = vmatprep.subr.bf16.mxu0 0
        %1069 = vmatpush1.bf16.msra.mxu0 %v1046
        %1070 = vmatprep.subr.bf16.mxu0 0
        %1071 = vmatpush1.bf16.msra.mxu0 %v1047
        %1072 = vmatprep.subr.bf16.mxu0 0
        %1073 = vmatpush1.bf16.msra.mxu0 0
        %1074 = vmatprep.subr.bf16.mxu0 0
        %1075 = vmatpush1.bf16.msra.mxu0 0
        %1076 = vmatprep.subr.bf16.mxu0 0
        %1077 = vmatpush1.bf16.msra.mxu0 0
        %1078 = vmatprep.subr.bf16.mxu0 0
        %1079 = vmatpush1.bf16.msra.mxu0 0
        %1080 = vmatprep.subr.bf16.mxu0 0
        %1081 = vmatpush1.bf16.msra.mxu0 0
        %1082 = vmatprep.subr.bf16.mxu0 0
        %1083 = vmatpush1.bf16.msra.mxu0 0
        %1084 = vmatprep.subr.bf16.mxu0 0
        %1085 = vmatpush1.bf16.msra.mxu0 0
        %1086 = vmatprep.subr.bf16.mxu0 0
        %1087 = vmatpush1.bf16.msra.mxu0 0
        %1088 = vmatprep.mubr.bf16.mxu0 0
        %1089 = vmatmul.mubr.bf16.gmra.mrb[0].mxu0 %v991
        %v1090 = vpop.f32.mrb[0].mxu0
        %v1091 = vadd.f32 0.0, %v1090
        %v1092 = vpop.f32.mrb[0].mxu0
        %v1093 = vpop.f32.mrb[0].mxu0
        %v1094 = vpop.f32.mrb[0].mxu0
        %1095 = vdwg.mxu0
        %v1112 = vunpack.c.l.b16 %v972
        %v1113 = vunpack.c.l.b16 %v973
        %v1114 = vunpack.c.l.b16 %v974
        %v1115 = vunpack.c.l.b16 %v975
        %v1116 = vunpack.c.l.b16 %v976
        %v1117 = vunpack.c.l.b16 %v977
        %v1118 = vunpack.c.l.b16 %v978
        %v1119 = vunpack.c.l.b16 %v979
        %v1120 = vunpack.c.l.b16 %v980
        %v1121 = vunpack.c.l.b16 %v981
        %v1122 = vunpack.c.l.b16 %v982
        %v1123 = vunpack.c.l.b16 %v983
        %v1124 = vunpack.c.l.b16 %v984
        %v1125 = vunpack.c.l.b16 %v985
        %v1126 = vunpack.c.l.b16 %v986
        %v1127 = vunpack.c.l.b16 %v987
        %v1128 = vpack.c.b16 %v1113, %v1112
        %v1129 = vpack.c.b16 %v1115, %v1114
        %v1130 = vpack.c.b16 %v1117, %v1116
        %v1131 = vpack.c.b16 %v1119, %v1118
        %v1132 = vpack.c.b16 %v1121, %v1120
        %v1133 = vpack.c.b16 %v1123, %v1122
        %v1134 = vpack.c.b16 %v1125, %v1124
        %v1135 = vpack.c.b16 %v1127, %v1126
        %1144 = vmatprep.subr.bf16.mxu0 0
        %1145 = vmatpush1.bf16.msra.mxu0 %v1128
        %1146 = vmatprep.subr.bf16.mxu0 0
        %1147 = vmatpush1.bf16.msra.mxu0 %v1129
        %1148 = vmatprep.subr.bf16.mxu0 0
        %1149 = vmatpush1.bf16.msra.mxu0 %v1130
        %1150 = vmatprep.subr.bf16.mxu0 0
        %1151 = vmatpush1.bf16.msra.mxu0 %v1131
        %1152 = vmatprep.subr.bf16.mxu0 0
        %1153 = vmatpush1.bf16.msra.mxu0 %v1132
        %1154 = vmatprep.subr.bf16.mxu0 0
        %1155 = vmatpush1.bf16.msra.mxu0 %v1133
        %1156 = vmatprep.subr.bf16.mxu0 0
        %1157 = vmatpush1.bf16.msra.mxu0 %v1134
        %1158 = vmatprep.subr.bf16.mxu0 0
        %1159 = vmatpush1.bf16.msra.mxu0 %v1135
        %1160 = vmatprep.subr.bf16.mxu0 0
        %1161 = vmatpush1.bf16.msra.mxu0 0
        %1162 = vmatprep.subr.bf16.mxu0 0
        %1163 = vmatpush1.bf16.msra.mxu0 0
        %1164 = vmatprep.subr.bf16.mxu0 0
        %1165 = vmatpush1.bf16.msra.mxu0 0
        %1166 = vmatprep.subr.bf16.mxu0 0
        %1167 = vmatpush1.bf16.msra.mxu0 0
        %1168 = vmatprep.subr.bf16.mxu0 0
        %1169 = vmatpush1.bf16.msra.mxu0 0
        %1170 = vmatprep.subr.bf16.mxu0 0
        %1171 = vmatpush1.bf16.msra.mxu0 0
        %1172 = vmatprep.subr.bf16.mxu0 0
        %1173 = vmatpush1.bf16.msra.mxu0 0
        %1174 = vmatprep.subr.bf16.mxu0 0
        %1175 = vmatpush1.bf16.msra.mxu0 0
        %1176 = vmatprep.mubr.bf16.mxu0 0
        %1177 = vmatmul.mubr.bf16.gmra.mrb[0].mxu0 %v971
        %v1178 = vpop.f32.mrb[0].mxu0
        %v1179 = vadd.f32 %v1091, %v1178
        %v1180 = vpop.f32.mrb[0].mxu0
        %v1181 = vpop.f32.mrb[0].mxu0
        %v1182 = vpop.f32.mrb[0].mxu0
        %1183 = vdwg.mxu0
        %v1184 = vpack.c.bf16 %v1179, %v1179
        %s1185 = scalar_lea.vmem %s252, 6 [#allocation7]
        %1186 = vst.msk [vmem:[%s1185] sm:$0x3] %vm485, %v1184
        %v1187 = vsel %vm487, %v1179, 0.0
        %v1188 = vrot.slane %v1187, 4
        %v1189 = vadd.f32 %v1187, %v1188
        %v1190 = vrot.slane %v1189, 2
        %v1191 = vadd.f32 %v1189, %v1190
        %v1192 = vrot.slane %v1191, 1
        %v1193 = vadd.f32 %v1191, %v1192
        %v1194 = vadd.f32 %v961, %v1193
        %v1195 = vmul.f32 %v1179, %v1179
        %v1196 = vsel %vm487, %v1195, 0.0
        %v1197 = vrot.slane %v1196, 4
        %v1198 = vadd.f32 %v1196, %v1197
        %v1199 = vrot.slane %v1198, 2
        %v1200 = vadd.f32 %v1198, %v1199
        %v1201 = vrot.slane %v1200, 1
        %v1202 = vadd.f32 %v1200, %v1201
        %v1203 = vadd.f32 %v970, %v1202
        %vm1204 = vcmask 253952
        %1205 = vst.msk [vmem:[%s258] sm:$0x1] %vm1204, %v1194
        %1206 = vst.msk [vmem:[%s264] sm:$0x1] %vm1204, %v1203
        %s1207 = sand.u32 %s95, 1
        %s1208 = scalar_lea.sflag [#allocation4], %s1207
        %s1209 = sand.u32 %s95, 1
        %s1210 = smul.addr %s1209, 8
        %s1211 = scalar_lea.vmem [#allocation7], %s1210
        %s1212 = sand.u32 %s26, 1
        %s1213 = scalar_lea.sflag [#allocation9], %s1212
        %s1214 = sand.u32 %s123, 1
        %s1215 = scalar_lea.vmem [#allocation8], %s1214
        %s1216 = sand.u32 %s26, 1
        %s1217 = scalar_lea.sflag [#allocation9], %s1216
        %s1218 = sand.u32 %s151, 1
        %s1219 = scalar_lea.vmem [#allocation10], %s1218
        // Predicated region
        $region37: #{dcgan_discriminator.7} parent=27 // pred_check
          %p1220 = pneg %p105
        $region38: #{dcgan_discriminator.7} parent=27 // pred_check_branch
          %1222 = sbr.rel (%p1220) target = $region40
        $region39: #{dcgan_discriminator.7} parent=27 // pred_region
          %s1223 = smul.u32 4, %s31
          %s1225 = ssub.s32 128, 128
          %1226 = vsyncadd %s1208, %s1225
          %s1227 = smul.addr %s30, 4
          %s1228 = sadd.s32 %s1223, %s1227
          %s1229 = smul.addr %s1228, 32
          %s1230 = scalar_lea.hbm %s2, %s1229
          %s1231 = sshll.u32 %s1211, 4
          %s1232 = int_to_ptr.vmem [resolvable:$true] %s1231
          %1237 = dma.vmem_to_hbm [thread:$0]  %s1232, 128, %s1230, %s1208, 32, 32, 2
        $region40: #{dcgan_discriminator.7} parent=27 // pred_fallthru
          _
        // Predicated region
        $region41: #{dcgan_discriminator.7} parent=27 // pred_check
          %p1238 = pneg %p133
        $region42: #{dcgan_discriminator.7} parent=27 // pred_check_branch
          %1240 = sbr.rel (%p1238) target = $region44
        $region43: #{dcgan_discriminator.7} parent=27 // pred_region
          %s1242 = ssub.s32 16, 16
          %1243 = vsyncadd %s1213, %s1242
          %s1244 = sadd.s32 %s31, %s30
          %s1245 = smul.addr %s1244, 16
          %s1246 = scalar_lea.hbm %s3, %s1245
          %s1248 = sshll.u32 %s1215, 4
          %s1249 = int_to_ptr.vmem [resolvable:$true] %s1248
          %1251 = dma.vmem_to_hbm [thread:$0]  %s1249, 16, %s1246, %s1213
        $region44: #{dcgan_discriminator.7} parent=27 // pred_fallthru
          _
        // Predicated region
        $region45: #{dcgan_discriminator.7} parent=27 // pred_check
          %p1252 = pneg %p161
        $region46: #{dcgan_discriminator.7} parent=27 // pred_check_branch
          %1254 = sbr.rel (%p1252) target = $region48
        $region47: #{dcgan_discriminator.7} parent=27 // pred_region
          %s1256 = ssub.s32 16, 16
          %1257 = vsyncadd %s1217, %s1256
          %s1258 = sadd.s32 %s31, %s30
          %s1259 = smul.addr %s1258, 16
          %s1260 = scalar_lea.hbm %s4, %s1259
          %s1262 = sshll.u32 %s1219, 4
          %s1263 = int_to_ptr.vmem [resolvable:$true] %s1262
          %1265 = dma.vmem_to_hbm [thread:$0]  %s1263, 16, %s1260, %s1217
        $region48: #{dcgan_discriminator.7} parent=27 // pred_fallthru
          _
      $region28: #{dcgan_discriminator.7} parent=5 // pred_fallthru
        _
      %p1266 = scmp.le.s32.totalorder 2, %s21
      // Predicated region
      $region49: #{dcgan_discriminator.7} parent=5 // pred_check
        %p1267 = pneg %p1266
      $region50: #{dcgan_discriminator.7} parent=5 // pred_check_branch
        %1269 = sbr.rel (%p1267) target = $region52
      $region51: #{dcgan_discriminator.7} parent=5 // pred_region
        %s1270 = ssub.s32 %s21, 2
        // Predicated region
        $region53: #{dcgan_discriminator.7} parent=51 // pred_check
          %p1271 = pneg %p111
        $region54: #{dcgan_discriminator.7} parent=51 // pred_check_branch
          %1273 = sbr.rel (%p1271) target = $region56
        $region55: #{dcgan_discriminator.7} parent=51 // pred_region
          %s1274 = sand.u32 %s96, 1
          %s1275 = scalar_lea.sflag [#allocation4], %s1274
          %s1276 = sand.u32 %s96, 1
          %s1277 = smul.addr %s1276, 8
          %s1278 = scalar_lea.vmem [#allocation7], %s1277
          %1279 = dma.done %s1275, 128
        $region56: #{dcgan_discriminator.7} parent=51 // pred_fallthru
          _
        // Predicated region
        $region57: #{dcgan_discriminator.7} parent=51 // pred_check
          %p1280 = pneg %p139
        $region58: #{dcgan_discriminator.7} parent=51 // pred_check_branch
          %1282 = sbr.rel (%p1280) target = $region60
        $region59: #{dcgan_discriminator.7} parent=51 // pred_region
          %s1283 = sand.u32 %s27, 1
          %s1284 = scalar_lea.sflag [#allocation9], %s1283
          %s1285 = sand.u32 %s124, 1
          %s1286 = scalar_lea.vmem [#allocation8], %s1285
          %1287 = dma.done %s1284, 16
        $region60: #{dcgan_discriminator.7} parent=51 // pred_fallthru
          _
        // Predicated region
        $region61: #{dcgan_discriminator.7} parent=51 // pred_check
          %p1288 = pneg %p167
        $region62: #{dcgan_discriminator.7} parent=51 // pred_check_branch
          %1290 = sbr.rel (%p1288) target = $region64
        $region63: #{dcgan_discriminator.7} parent=51 // pred_region
          %s1291 = sand.u32 %s27, 1
          %s1292 = scalar_lea.sflag [#allocation9], %s1291
          %s1293 = sand.u32 %s152, 1
          %s1294 = scalar_lea.vmem [#allocation10], %s1293
          %1295 = dma.done %s1292, 16
        $region64: #{dcgan_discriminator.7} parent=51 // pred_fallthru
          _
      $region52: #{dcgan_discriminator.7} parent=5 // pred_fallthru
        _
    $region6: #{dcgan_discriminator.7} parent=1 // loop_footer
      %s25 = sadd.s32 1, %s21
    $region7: #{dcgan_discriminator.7} parent=1 // loop_footer_branch
      %20 = sbr.rel target = $region3
    $region8: #{dcgan_discriminator.7} parent=1 // loop_exit
      _
    %1296 = vsyncpa [#allocation3], 1
    %s1297 = scalar_lea.sflag [#allocation3], 1
    %1298 = vsyncpa %s1297, 1
    %1299 = vsyncpa [#allocation6], 1
    %1300 = vsyncpa [#allocation4], 1
    %s1301 = scalar_lea.sflag [#allocation4], 1
    %1302 = vsyncpa %s1301, 1
    %1303 = vsyncpa [#allocation9], 1
    %s1304 = scalar_lea.sflag [#allocation9], 1
    %1305 = vsyncpa %s1304, 1

// kernel: dcgan_discriminator.8
$region0: #{dcgan_discriminator.8}
  #allocation0 [shape = 'u32[]', space=smem, size = 0x4, offset = 0x4, fixed_abs, tag = 'smem constant byte address 0x4 - core index']
  #allocation1 [shape = 'u32[144,128]{1,0:T(1,128)}', space=vmem, size = 0x12000, scoped, tag = 'internal scratch']
  %s0 = inlined_call_operand.hbm [shape: bf16[2,3,2,256], index: 0, kind: input, shape index: {}]
  %s1 = inlined_call_operand.hbm [shape: bf16[2,256,64], index: 1, kind: input, shape index: {}]
  %s2 = inlined_call_operand.hbm [shape: bf16[2,2,2,64], index: 2, kind: output, shape index: {0}]
  %s3 = inlined_call_operand.hbm [shape: f32[2,1,1,64], index: 3, kind: output, shape index: {1}]
  %s4 = inlined_call_operand.hbm [shape: f32[2,1,1,64], index: 4, kind: output, shape index: {2}]
  %5 = xla_tuple %s2, %s3, %s4
  %s6 = sld [smem:[#allocation0]]
  $region65: #{dcgan_discriminator.8} parent=0
    _
  %s8 = ssub.s32 1, %s6
  %s9 = scalar_select 0, %s8, %s6
  $region1: #{dcgan_discriminator.8} parent=0
    #allocation2 [shape = 'u8[6144]{0}', space=vmem, size = 0x1800, scoped, tag = 'input window, operand 0']
    #allocation3 [shape = 's32[2]{0}', space=sflag, size = 0x8, scoped, tag = 'scoped memory for dcgan_discriminator.8']
    #allocation4 [shape = 's32[2]{0}', space=sflag, size = 0x8, scoped, tag = 'scoped memory for dcgan_discriminator.8']
    #allocation5 [shape = 'u8[131072]{0}', space=vmem, size = 0x20000, scoped, tag = 'input window, operand 1, single buffered']
    #allocation6 [shape = 's32[1]{0}', space=sflag, size = 0x4, scoped, tag = 'scoped memory for dcgan_discriminator.8']
    #allocation7 [shape = 'u8[2048]{0}', space=vmem, size = 0x800, scoped, tag = 'output window, operand 0']
    #allocation8 [shape = 'u8[1024]{0}', space=vmem, size = 0x400, scoped, tag = 'output window, operand 1']
    #allocation9 [shape = 's32[2]{0}', space=sflag, size = 0x8, scoped, tag = 'scoped memory for dcgan_discriminator.8']
    #allocation10 [shape = 'u8[1024]{0}', space=vmem, size = 0x400, scoped, tag = 'output window, operand 2']
    %10 = vsyncpa [#allocation3], 0
    %s11 = scalar_lea.sflag [#allocation3], 1
    %12 = vsyncpa %s11, 0
    %13 = vsyncpa [#allocation6], 0
    %14 = vsyncpa [#allocation4], 0
    %s15 = scalar_lea.sflag [#allocation4], 1
    %16 = vsyncpa %s15, 0
    %17 = vsyncpa [#allocation9], 0
    %s18 = scalar_lea.sflag [#allocation9], 1
    %19 = vsyncpa %s18, 0
    loop: start=0, step=1, limit=4
    $region2: #{dcgan_discriminator.8} parent=1 // loop_pre_header
      _
    $region3: #{dcgan_discriminator.8} parent=1 // loop_header
      %s21 = sphi 0, %s25
      %p22 = scmp.ge.s32.totalorder %s21, 4
      %s28 = sphi 0, %s40
      %s29 = sphi 0, %s36
      %s30 = sphi 0, %s28
      %s31 = sphi 0, %s29
      %s32 = sphi 0, %s30
      %s33 = sphi 0, %s31
      %s43 = sphi 0, %s45
      %s46 = sphi 0, %s43
      %s47 = sphi 0, %s46
      %s63 = sphi 0, %s47
      %s67 = sphi 0, %s67
      %s69 = sphi 0, %s67
      %s70 = sphi 0, %s69
      %s84 = sphi 0, %s70
      %s92 = sphi 0, %s94
      %s95 = sphi 0, %s92
      %s96 = sphi 0, %s95
      %s112 = sphi 0, %s96
      %s120 = sphi 0, %s122
      %s123 = sphi 0, %s120
      %s124 = sphi 0, %s123
      %s140 = sphi 0, %s124
      %s148 = sphi 0, %s150
      %s151 = sphi 0, %s148
      %s152 = sphi 0, %s151
      %s168 = sphi 0, %s152
    $region4: #{dcgan_discriminator.8} parent=1 // loop_header_branch
      %24 = sbr.rel (%p22) target = $region8
    $region5: #{dcgan_discriminator.8} parent=1 // loop_body
      %s26 = ssub.s32 %s21, 1
      %s27 = ssub.s32 %s21, 2
      %s34 = sadd.s32 1, %s29
      %p35 = scmp.ge.s32.totalorder %s34, 1
      %s36 = scalar_select %p35, 0, %s34
      %s37 = sadd.s32 1, %s28
      %s38 = scalar_select %p35, %s37, %s28
      %p39 = scmp.ge.s32.totalorder %s38, 2
      %s40 = scalar_select %p39, 0, %s38
      %s41 = ssub.s32 %s28, %s40
      %p42 = scmp.eq.s32.totalorder %s41, 0
      %s44 = sadd.s32 %s43, 1
      %s45 = scalar_select %p42, %s43, %s44
      %p48 = pneg %p42
      %p49 = scmp.eq.s32.totalorder %s21, 1
      %p50 = por %p48, %p49
      %p51 = scmp.ne.s32.totalorder %s43, %s46
      %p52 = scmp.eq.s32.totalorder %s21, 0
      %p53 = por %p51, %p52
      %p54 = scmp.ne.s32.totalorder %s43, %s46
      %p55 = scmp.eq.s32.totalorder %s26, 1
      %p56 = por %p54, %p55
      %p57 = scmp.ne.s32.totalorder %s46, %s47
      %p58 = scmp.eq.s32.totalorder %s26, 0
      %p59 = por %p57, %p58
      %p60 = scmp.ne.s32.totalorder %s46, %s47
      %p61 = scmp.eq.s32.totalorder %s27, 1
      %p62 = por %p60, %p61
      %p64 = scmp.ne.s32.totalorder %s47, %s63
      %p65 = scmp.eq.s32.totalorder %s27, 0
      %p66 = por %p64, %p65
      %s68 = sadd.s32 %s67, 1
      %p71 = scmp.eq.s32.totalorder %s21, 1
      %p72 = scmp.ne.s32.totalorder %s67, %s69
      %p73 = scmp.eq.s32.totalorder %s21, 0
      %p74 = por %p72, %p73
      %p75 = scmp.ne.s32.totalorder %s67, %s69
      %p76 = scmp.eq.s32.totalorder %s26, 1
      %p77 = por %p75, %p76
      %p78 = scmp.ne.s32.totalorder %s69, %s70
      %p79 = scmp.eq.s32.totalorder %s26, 0
      %p80 = por %p78, %p79
      %p81 = scmp.ne.s32.totalorder %s69, %s70
      %p82 = scmp.eq.s32.totalorder %s27, 1
      %p83 = por %p81, %p82
      %p85 = scmp.ne.s32.totalorder %s70, %s84
      %p86 = scmp.eq.s32.totalorder %s27, 0
      %p87 = por %p85, %p86
      %s88 = ssub.s32 %s28, %s40
      %s89 = ssub.s32 %s29, %s36
      %s90 = sor.u32 %s88, %s89
      %p91 = scmp.eq.s32.totalorder %s90, 0
      %s93 = sadd.s32 %s92, 1
      %s94 = scalar_select %p91, %s92, %s93
      %p97 = pneg %p91
      %p98 = scmp.eq.s32.totalorder %s21, 1
      %p99 = por %p97, %p98
      %p100 = scmp.ne.s32.totalorder %s92, %s95
      %p101 = scmp.eq.s32.totalorder %s21, 0
      %p102 = por %p100, %p101
      %p103 = scmp.ne.s32.totalorder %s92, %s95
      %p104 = scmp.eq.s32.totalorder %s26, 1
      %p105 = por %p103, %p104
      %p106 = scmp.ne.s32.totalorder %s95, %s96
      %p107 = scmp.eq.s32.totalorder %s26, 0
      %p108 = por %p106, %p107
      %p109 = scmp.ne.s32.totalorder %s95, %s96
      %p110 = scmp.eq.s32.totalorder %s27, 1
      %p111 = por %p109, %p110
      %p113 = scmp.ne.s32.totalorder %s96, %s112
      %p114 = scmp.eq.s32.totalorder %s27, 0
      %p115 = por %p113, %p114
      %s116 = ssub.s32 %s28, %s40
      %s117 = ssub.s32 %s29, %s36
      %s118 = sor.u32 %s116, %s117
      %p119 = scmp.eq.s32.totalorder %s118, 0
      %s121 = sadd.s32 %s120, 1
      %s122 = scalar_select %p119, %s120, %s121
      %p125 = pneg %p119
      %p126 = scmp.eq.s32.totalorder %s21, 1
      %p127 = por %p125, %p126
      %p128 = scmp.ne.s32.totalorder %s120, %s123
      %p129 = scmp.eq.s32.totalorder %s21, 0
      %p130 = por %p128, %p129
      %p131 = scmp.ne.s32.totalorder %s120, %s123
      %p132 = scmp.eq.s32.totalorder %s26, 1
      %p133 = por %p131, %p132
      %p134 = scmp.ne.s32.totalorder %s123, %s124
      %p135 = scmp.eq.s32.totalorder %s26, 0
      %p136 = por %p134, %p135
      %p137 = scmp.ne.s32.totalorder %s123, %s124
      %p138 = scmp.eq.s32.totalorder %s27, 1
      %p139 = por %p137, %p138
      %p141 = scmp.ne.s32.totalorder %s124, %s140
      %p142 = scmp.eq.s32.totalorder %s27, 0
      %p143 = por %p141, %p142
      %s144 = ssub.s32 %s28, %s40
      %s145 = ssub.s32 %s29, %s36
      %s146 = sor.u32 %s144, %s145
      %p147 = scmp.eq.s32.totalorder %s146, 0
      %s149 = sadd.s32 %s148, 1
      %s150 = scalar_select %p147, %s148, %s149
      %p153 = pneg %p147
      %p154 = scmp.eq.s32.totalorder %s21, 1
      %p155 = por %p153, %p154
      %p156 = scmp.ne.s32.totalorder %s148, %s151
      %p157 = scmp.eq.s32.totalorder %s21, 0
      %p158 = por %p156, %p157
      %p159 = scmp.ne.s32.totalorder %s148, %s151
      %p160 = scmp.eq.s32.totalorder %s26, 1
      %p161 = por %p159, %p160
      %p162 = scmp.ne.s32.totalorder %s151, %s152
      %p163 = scmp.eq.s32.totalorder %s26, 0
      %p164 = por %p162, %p163
      %p165 = scmp.ne.s32.totalorder %s151, %s152
      %p166 = scmp.eq.s32.totalorder %s27, 1
      %p167 = por %p165, %p166
      %p169 = scmp.ne.s32.totalorder %s152, %s168
      %p170 = scmp.eq.s32.totalorder %s27, 0
      %p171 = por %p169, %p170
      %p172 = scmp.le.s32.totalorder 1, %s21
      %p173 = scmp.lt.s32.totalorder %s21, 3
      %p174 = pnand %p172, %p173
      %p175 = pneg %p174
      // Predicated region
      $region9: #{dcgan_discriminator.8} parent=5 // pred_check
        _
      $region10: #{dcgan_discriminator.8} parent=5 // pred_check_branch
        %177 = sbr.rel (%p174) target = $region12
      $region11: #{dcgan_discriminator.8} parent=5 // pred_region
        %s178 = ssub.s32 %s21, 1
        // Predicated region
        $region13: #{dcgan_discriminator.8} parent=11 // pred_check
          %p179 = pneg %p80
        $region14: #{dcgan_discriminator.8} parent=11 // pred_check_branch
          %181 = sbr.rel (%p179) target = $region16
        $region15: #{dcgan_discriminator.8} parent=11 // pred_region
          %s183 = ssub.s32 4096, 4096
          %184 = vsyncadd [#allocation6], %s183
          %s185 = sshll.u32 [#allocation5], 4
          %s186 = int_to_ptr.vmem [resolvable:$true] %s185
          %191 = dma.hbm_to_vmem [thread:$0]  %s1, 4096, %s186, [#allocation6], 64, 64, 4
        $region16: #{dcgan_discriminator.8} parent=11 // pred_fallthru
          _
      $region12: #{dcgan_discriminator.8} parent=5 // pred_fallthru
        _
      %p192 = scmp.lt.s32.totalorder %s21, 2
      // Predicated region
      $region17: #{dcgan_discriminator.8} parent=5 // pred_check
        %p193 = pneg %p192
      $region18: #{dcgan_discriminator.8} parent=5 // pred_check_branch
        %195 = sbr.rel (%p193) target = $region20
      $region19: #{dcgan_discriminator.8} parent=5 // pred_region
        // Predicated region
        $region21: #{dcgan_discriminator.8} parent=19 // pred_check
          %p196 = pneg %p53
        $region22: #{dcgan_discriminator.8} parent=19 // pred_check_branch
          %198 = sbr.rel (%p196) target = $region24
        $region23: #{dcgan_discriminator.8} parent=19 // pred_region
          %s199 = sand.u32 %s43, 1
          %s200 = scalar_lea.sflag [#allocation3], %s199
          %s201 = sand.u32 %s43, 1
          %s202 = smul.addr %s201, 6
          %s203 = scalar_lea.vmem [#allocation2], %s202
          %s205 = ssub.s32 96, 96
          %206 = vsyncadd %s200, %s205
          %s207 = smul.addr %s28, 6
          %s208 = smul.addr %s207, 16
          %s209 = scalar_lea.hbm %s0, %s208
          %s210 = sshll.u32 %s203, 4
          %s211 = int_to_ptr.vmem [resolvable:$true] %s210
          %216 = dma.hbm_to_vmem [thread:$0]  %s209, 96, %s211, %s200, 32, 32, 2
        $region24: #{dcgan_discriminator.8} parent=19 // pred_fallthru
          _
      $region20: #{dcgan_discriminator.8} parent=5 // pred_fallthru
        _
      %p217 = scmp.le.s32.totalorder 1, %s21
      %p218 = scmp.lt.s32.totalorder %s21, 3
      %p219 = pnand %p217, %p218
      %p220 = pneg %p219
      // Predicated region
      $region25: #{dcgan_discriminator.8} parent=5 // pred_check
        _
      $region26: #{dcgan_discriminator.8} parent=5 // pred_check_branch
        %222 = sbr.rel (%p219) target = $region28
      $region27: #{dcgan_discriminator.8} parent=5 // pred_region
        %s223 = ssub.s32 %s21, 1
        %s224 = sand.u32 %s46, 1
        %s225 = scalar_lea.sflag [#allocation3], %s224
        %s226 = sand.u32 %s46, 1
        %s227 = smul.addr %s226, 6
        %s228 = scalar_lea.vmem [#allocation2], %s227
        // Predicated region
        $region29: #{dcgan_discriminator.8} parent=27 // pred_check
          %p229 = pneg %p59
        $region30: #{dcgan_discriminator.8} parent=27 // pred_check_branch
          %231 = sbr.rel (%p229) target = $region32
        $region31: #{dcgan_discriminator.8} parent=27 // pred_region
          %232 = dma.done %s225, 96
        $region32: #{dcgan_discriminator.8} parent=27 // pred_fallthru
          _
        // Predicated region
        $region33: #{dcgan_discriminator.8} parent=27 // pred_check
          %p233 = pneg %p80
        $region34: #{dcgan_discriminator.8} parent=27 // pred_check_branch
          %235 = sbr.rel (%p233) target = $region36
        $region35: #{dcgan_discriminator.8} parent=27 // pred_region
          %236 = dma.done [#allocation6], 4096
        $region36: #{dcgan_discriminator.8} parent=27 // pred_fallthru
          _
        %s237 = sand.u32 %s46, 1
        %s238 = scalar_lea.sflag [#allocation3], %s237
        %s239 = sand.u32 %s46, 1
        %s240 = smul.addr %s239, 6
        %s241 = scalar_lea.vmem [#allocation2], %s240
        %p242 = pneg %p59
        %p243 = pneg %p56
        %p244 = pneg %p80
        %p245 = pneg %p77
        %p246 = pneg %p108
        %p247 = pneg %p105
        %s248 = sand.u32 %s95, 1
        %s249 = scalar_lea.sflag [#allocation4], %s248
        %s250 = sand.u32 %s95, 1
        %s251 = smul.addr %s250, 2
        %s252 = scalar_lea.vmem [#allocation7], %s251
        %p253 = pneg %p136
        %p254 = pneg %p133
        %s255 = sand.u32 %s26, 1
        %s256 = scalar_lea.sflag [#allocation9], %s255
        %s257 = sand.u32 %s123, 1
        %s258 = scalar_lea.vmem [#allocation8], %s257
        %p259 = pneg %p164
        %p260 = pneg %p161
        %s261 = sand.u32 %s26, 1
        %s262 = scalar_lea.sflag [#allocation9], %s261
        %s263 = sand.u32 %s151, 1
        %s264 = scalar_lea.vmem [#allocation10], %s263
        %s265 = smul.u32 2, %s31
        %s267 = smul.u32 %s31, 2
        %s268 = smul.u32 %s267, 2
        %s269 = scalar_lea.vmem %s228, %s268 [#allocation2]
        %v270 = vld [vmem:[%s269] sm:$0x3]
        %v271 = vld [vmem:[#allocation5] sm:$0xf]
        %v272 = vld [vmem:[#allocation5 + $0x4] sm:$0xf]
        %v273 = vld [vmem:[#allocation5 + $0x8] sm:$0xf]
        %v274 = vld [vmem:[#allocation5 + $0xc] sm:$0xf]
        %v275 = vld [vmem:[#allocation5 + $0x10] sm:$0xf]
        %v276 = vld [vmem:[#allocation5 + $0x14] sm:$0xf]
        %v277 = vld [vmem:[#allocation5 + $0x18] sm:$0xf]
        %v278 = vld [vmem:[#allocation5 + $0x1c] sm:$0xf]
        %v279 = vld [vmem:[#allocation5 + $0x20] sm:$0xf]
        %v280 = vld [vmem:[#allocation5 + $0x24] sm:$0xf]
        %v281 = vld [vmem:[#allocation5 + $0x28] sm:$0xf]
        %v282 = vld [vmem:[#allocation5 + $0x2c] sm:$0xf]
        %v283 = vld [vmem:[#allocation5 + $0x30] sm:$0xf]
        %v284 = vld [vmem:[#allocation5 + $0x34] sm:$0xf]
        %v285 = vld [vmem:[#allocation5 + $0x38] sm:$0xf]
        %v286 = vld [vmem:[#allocation5 + $0x3c] sm:$0xf]
        %v287 = vld [vmem:[#allocation5 + $0x40] sm:$0xf]
        %v288 = vld [vmem:[#allocation5 + $0x44] sm:$0xf]
        %v289 = vld [vmem:[#allocation5 + $0x48] sm:$0xf]
        %v290 = vld [vmem:[#allocation5 + $0x4c] sm:$0xf]
        %v291 = vld [vmem:[#allocation5 + $0x50] sm:$0xf]
        %v292 = vld [vmem:[#allocation5 + $0x54] sm:$0xf]
        %v293 = vld [vmem:[#allocation5 + $0x58] sm:$0xf]
        %v294 = vld [vmem:[#allocation5 + $0x5c] sm:$0xf]
        %v295 = vld [vmem:[#allocation5 + $0x60] sm:$0xf]
        %v296 = vld [vmem:[#allocation5 + $0x64] sm:$0xf]
        %v297 = vld [vmem:[#allocation5 + $0x68] sm:$0xf]
        %v298 = vld [vmem:[#allocation5 + $0x6c] sm:$0xf]
        %v299 = vld [vmem:[#allocation5 + $0x70] sm:$0xf]
        %v300 = vld [vmem:[#allocation5 + $0x74] sm:$0xf]
        %v301 = vld [vmem:[#allocation5 + $0x78] sm:$0xf]
        %v302 = vld [vmem:[#allocation5 + $0x7c] sm:$0xf]
        %s303 = sadd.s32 %s267, 1
        %s304 = smul.u32 %s303, 2
        %s305 = scalar_lea.vmem %s228, %s304 [#allocation2]
        %v306 = vld [vmem:[%s305] sm:$0x3]
        %s307 = scalar_lea.vmem [#allocation5], 128
        %v308 = vld [vmem:[%s307] sm:$0xf]
        %v309 = vld [vmem:[%s307 + $0x4] sm:$0xf]
        %v310 = vld [vmem:[%s307 + $0x8] sm:$0xf]
        %v311 = vld [vmem:[%s307 + $0xc] sm:$0xf]
        %v312 = vld [vmem:[%s307 + $0x10] sm:$0xf]
        %v313 = vld [vmem:[%s307 + $0x14] sm:$0xf]
        %v314 = vld [vmem:[%s307 + $0x18] sm:$0xf]
        %v315 = vld [vmem:[%s307 + $0x1c] sm:$0xf]
        %v316 = vld [vmem:[%s307 + $0x20] sm:$0xf]
        %v317 = vld [vmem:[%s307 + $0x24] sm:$0xf]
        %v318 = vld [vmem:[%s307 + $0x28] sm:$0xf]
        %v319 = vld [vmem:[%s307 + $0x2c] sm:$0xf]
        %v320 = vld [vmem:[%s307 + $0x30] sm:$0xf]
        %v321 = vld [vmem:[%s307 + $0x34] sm:$0xf]
        %v322 = vld [vmem:[%s307 + $0x38] sm:$0xf]
        %v323 = vld [vmem:[%s307 + $0x3c] sm:$0xf]
        %v324 = vld [vmem:[%s307 + $0x40] sm:$0xf]
        %v325 = vld [vmem:[%s307 + $0x44] sm:$0xf]
        %v326 = vld [vmem:[%s307 + $0x48] sm:$0xf]
        %v327 = vld [vmem:[%s307 + $0x4c] sm:$0xf]
        %v328 = vld [vmem:[%s307 + $0x50] sm:$0xf]
        %v329 = vld [vmem:[%s307 + $0x54] sm:$0xf]
        %v330 = vld [vmem:[%s307 + $0x58] sm:$0xf]
        %v331 = vld [vmem:[%s307 + $0x5c] sm:$0xf]
        %v332 = vld [vmem:[%s307 + $0x60] sm:$0xf]
        %v333 = vld [vmem:[%s307 + $0x64] sm:$0xf]
        %v334 = vld [vmem:[%s307 + $0x68] sm:$0xf]
        %v335 = vld [vmem:[%s307 + $0x6c] sm:$0xf]
        %v336 = vld [vmem:[%s307 + $0x70] sm:$0xf]
        %v337 = vld [vmem:[%s307 + $0x74] sm:$0xf]
        %v338 = vld [vmem:[%s307 + $0x78] sm:$0xf]
        %v339 = vld [vmem:[%s307 + $0x7c] sm:$0xf]
        %v342 = vunpack.c.l.s4 1966171168
        %v343 = vunpack.c.0.s8 %v342
        %v344 = vlaneseq
        %v345 = vshrl.u32 %v344, 7
        %v346 = vsub.s32 %v343, %v345
        %v347 = vrot.slane %v306, %v346
        %v348 = vcombine.high %v347, %v347
        %v350 = vunpack.c.l.s4 1966171168
        %v351 = vunpack.c.0.s8 %v350
        %v352 = vlaneseq
        %v353 = vshrl.u32 %v352, 7
        %v354 = vsub.s32 %v351, %v353
        %v355 = vrot.slane %v347, %v354
        %v357 = vunpack.c.l.s4 1966171168
        %v358 = vunpack.c.0.s8 %v357
        %v359 = vlaneseq
        %v360 = vshrl.u32 %v359, 7
        %v361 = vsub.s32 %v358, %v360
        %v362 = vrot.slane %v348, %v361
        %v397 = vunpack.c.l.b16 %v308
        %v398 = vunpack.c.l.b16 %v309
        %v399 = vunpack.c.l.b16 %v310
        %v400 = vunpack.c.l.b16 %v311
        %v401 = vunpack.c.l.b16 %v312
        %v402 = vunpack.c.l.b16 %v313
        %v403 = vunpack.c.l.b16 %v314
        %v404 = vunpack.c.l.b16 %v315
        %v405 = vunpack.c.l.b16 %v316
        %v406 = vunpack.c.l.b16 %v317
        %v407 = vunpack.c.l.b16 %v318
        %v408 = vunpack.c.l.b16 %v319
        %v409 = vunpack.c.l.b16 %v320
        %v410 = vunpack.c.l.b16 %v321
        %v411 = vunpack.c.l.b16 %v322
        %v412 = vunpack.c.l.b16 %v323
        %v413 = vunpack.c.l.b16 %v324
        %v414 = vunpack.c.l.b16 %v325
        %v415 = vunpack.c.l.b16 %v326
        %v416 = vunpack.c.l.b16 %v327
        %v417 = vunpack.c.l.b16 %v328
        %v418 = vunpack.c.l.b16 %v329
        %v419 = vunpack.c.l.b16 %v330
        %v420 = vunpack.c.l.b16 %v331
        %v421 = vunpack.c.l.b16 %v332
        %v422 = vunpack.c.l.b16 %v333
        %v423 = vunpack.c.l.b16 %v334
        %v424 = vunpack.c.l.b16 %v335
        %v425 = vunpack.c.l.b16 %v336
        %v426 = vunpack.c.l.b16 %v337
        %v427 = vunpack.c.l.b16 %v338
        %v428 = vunpack.c.l.b16 %v339
        %v429 = vpack.c.b16 %v398, %v397
        %v430 = vpack.c.b16 %v400, %v399
        %v431 = vpack.c.b16 %v402, %v401
        %v432 = vpack.c.b16 %v404, %v403
        %v433 = vpack.c.b16 %v406, %v405
        %v434 = vpack.c.b16 %v408, %v407
        %v435 = vpack.c.b16 %v410, %v409
        %v436 = vpack.c.b16 %v412, %v411
        %v437 = vpack.c.b16 %v414, %v413
        %v438 = vpack.c.b16 %v416, %v415
        %v439 = vpack.c.b16 %v418, %v417
        %v440 = vpack.c.b16 %v420, %v419
        %v441 = vpack.c.b16 %v422, %v421
        %v442 = vpack.c.b16 %v424, %v423
        %v443 = vpack.c.b16 %v426, %v425
        %v444 = vpack.c.b16 %v428, %v427
        %461 = vmatprep.subr.bf16.mxu0 0
        %462 = vmatpush1.bf16.msra.mxu0 %v429
        %463 = vmatprep.subr.bf16.mxu0 0
        %464 = vmatpush1.bf16.msra.mxu0 %v430
        %465 = vmatprep.subr.bf16.mxu0 0
        %466 = vmatpush1.bf16.msra.mxu0 %v431
        %467 = vmatprep.subr.bf16.mxu0 0
        %468 = vmatpush1.bf16.msra.mxu0 %v432
        %469 = vmatprep.subr.bf16.mxu0 0
        %470 = vmatpush1.bf16.msra.mxu0 %v433
        %471 = vmatprep.subr.bf16.mxu0 0
        %472 = vmatpush1.bf16.msra.mxu0 %v434
        %473 = vmatprep.subr.bf16.mxu0 0
        %474 = vmatpush1.bf16.msra.mxu0 %v435
        %475 = vmatprep.subr.bf16.mxu0 0
        %476 = vmatpush1.bf16.msra.mxu0 %v436
        %477 = vmatprep.subr.bf16.mxu0 0
        %478 = vmatpush1.bf16.msra.mxu0 %v437
        %479 = vmatprep.subr.bf16.mxu0 0
        %480 = vmatpush1.bf16.msra.mxu0 %v438
        %481 = vmatprep.subr.bf16.mxu0 0
        %482 = vmatpush1.bf16.msra.mxu0 %v439
        %483 = vmatprep.subr.bf16.mxu0 0
        %484 = vmatpush1.bf16.msra.mxu0 %v440
        %485 = vmatprep.subr.bf16.mxu0 0
        %486 = vmatpush1.bf16.msra.mxu0 %v441
        %487 = vmatprep.subr.bf16.mxu0 0
        %488 = vmatpush1.bf16.msra.mxu0 %v442
        %489 = vmatprep.subr.bf16.mxu0 0
        %490 = vmatpush1.bf16.msra.mxu0 %v443
        %491 = vmatprep.subr.bf16.mxu0 0
        %492 = vmatpush1.bf16.msra.mxu0 %v444
        %493 = vmatprep.mubr.bf16.mxu0 %v362
        %494 = vmatmul.mubr.bf16.gmra.mrb[0].mxu0 %v355
        %v495 = vpop.f32.mrb[0].mxu0
        %v496 = vadd.f32 0.0, %v495
        %v497 = vpop.f32.mrb[0].mxu0
        %v498 = vpop.f32.mrb[0].mxu0
        %v499 = vpop.f32.mrb[0].mxu0
        %500 = vdwg.mxu0
        %v503 = vunpack.c.l.s4 1966171168
        %v504 = vunpack.c.0.s8 %v503
        %v505 = vlaneseq
        %v506 = vshrl.u32 %v505, 7
        %v507 = vsub.s32 %v504, %v506
        %v508 = vrot.slane %v270, %v507
        %v509 = vcombine.high %v508, %v508
        %v511 = vunpack.c.l.s4 1966171168
        %v512 = vunpack.c.0.s8 %v511
        %v513 = vlaneseq
        %v514 = vshrl.u32 %v513, 7
        %v515 = vsub.s32 %v512, %v514
        %v516 = vrot.slane %v508, %v515
        %v518 = vunpack.c.l.s4 1966171168
        %v519 = vunpack.c.0.s8 %v518
        %v520 = vlaneseq
        %v521 = vshrl.u32 %v520, 7
        %v522 = vsub.s32 %v519, %v521
        %v523 = vrot.slane %v509, %v522
        %v558 = vunpack.c.l.b16 %v271
        %v559 = vunpack.c.l.b16 %v272
        %v560 = vunpack.c.l.b16 %v273
        %v561 = vunpack.c.l.b16 %v274
        %v562 = vunpack.c.l.b16 %v275
        %v563 = vunpack.c.l.b16 %v276
        %v564 = vunpack.c.l.b16 %v277
        %v565 = vunpack.c.l.b16 %v278
        %v566 = vunpack.c.l.b16 %v279
        %v567 = vunpack.c.l.b16 %v280
        %v568 = vunpack.c.l.b16 %v281
        %v569 = vunpack.c.l.b16 %v282
        %v570 = vunpack.c.l.b16 %v283
        %v571 = vunpack.c.l.b16 %v284
        %v572 = vunpack.c.l.b16 %v285
        %v573 = vunpack.c.l.b16 %v286
        %v574 = vunpack.c.l.b16 %v287
        %v575 = vunpack.c.l.b16 %v288
        %v576 = vunpack.c.l.b16 %v289
        %v577 = vunpack.c.l.b16 %v290
        %v578 = vunpack.c.l.b16 %v291
        %v579 = vunpack.c.l.b16 %v292
        %v580 = vunpack.c.l.b16 %v293
        %v581 = vunpack.c.l.b16 %v294
        %v582 = vunpack.c.l.b16 %v295
        %v583 = vunpack.c.l.b16 %v296
        %v584 = vunpack.c.l.b16 %v297
        %v585 = vunpack.c.l.b16 %v298
        %v586 = vunpack.c.l.b16 %v299
        %v587 = vunpack.c.l.b16 %v300
        %v588 = vunpack.c.l.b16 %v301
        %v589 = vunpack.c.l.b16 %v302
        %v590 = vpack.c.b16 %v559, %v558
        %v591 = vpack.c.b16 %v561, %v560
        %v592 = vpack.c.b16 %v563, %v562
        %v593 = vpack.c.b16 %v565, %v564
        %v594 = vpack.c.b16 %v567, %v566
        %v595 = vpack.c.b16 %v569, %v568
        %v596 = vpack.c.b16 %v571, %v570
        %v597 = vpack.c.b16 %v573, %v572
        %v598 = vpack.c.b16 %v575, %v574
        %v599 = vpack.c.b16 %v577, %v576
        %v600 = vpack.c.b16 %v579, %v578
        %v601 = vpack.c.b16 %v581, %v580
        %v602 = vpack.c.b16 %v583, %v582
        %v603 = vpack.c.b16 %v585, %v584
        %v604 = vpack.c.b16 %v587, %v586
        %v605 = vpack.c.b16 %v589, %v588
        %622 = vmatprep.subr.bf16.mxu0 0
        %623 = vmatpush1.bf16.msra.mxu0 %v590
        %624 = vmatprep.subr.bf16.mxu0 0
        %625 = vmatpush1.bf16.msra.mxu0 %v591
        %626 = vmatprep.subr.bf16.mxu0 0
        %627 = vmatpush1.bf16.msra.mxu0 %v592
        %628 = vmatprep.subr.bf16.mxu0 0
        %629 = vmatpush1.bf16.msra.mxu0 %v593
        %630 = vmatprep.subr.bf16.mxu0 0
        %631 = vmatpush1.bf16.msra.mxu0 %v594
        %632 = vmatprep.subr.bf16.mxu0 0
        %633 = vmatpush1.bf16.msra.mxu0 %v595
        %634 = vmatprep.subr.bf16.mxu0 0
        %635 = vmatpush1.bf16.msra.mxu0 %v596
        %636 = vmatprep.subr.bf16.mxu0 0
        %637 = vmatpush1.bf16.msra.mxu0 %v597
        %638 = vmatprep.subr.bf16.mxu0 0
        %639 = vmatpush1.bf16.msra.mxu0 %v598
        %640 = vmatprep.subr.bf16.mxu0 0
        %641 = vmatpush1.bf16.msra.mxu0 %v599
        %642 = vmatprep.subr.bf16.mxu0 0
        %643 = vmatpush1.bf16.msra.mxu0 %v600
        %644 = vmatprep.subr.bf16.mxu0 0
        %645 = vmatpush1.bf16.msra.mxu0 %v601
        %646 = vmatprep.subr.bf16.mxu0 0
        %647 = vmatpush1.bf16.msra.mxu0 %v602
        %648 = vmatprep.subr.bf16.mxu0 0
        %649 = vmatpush1.bf16.msra.mxu0 %v603
        %650 = vmatprep.subr.bf16.mxu0 0
        %651 = vmatpush1.bf16.msra.mxu0 %v604
        %652 = vmatprep.subr.bf16.mxu0 0
        %653 = vmatpush1.bf16.msra.mxu0 %v605
        %654 = vmatprep.mubr.bf16.mxu0 %v523
        %655 = vmatmul.mubr.bf16.gmra.mrb[0].mxu0 %v516
        %v656 = vpop.f32.mrb[0].mxu0
        %v657 = vadd.f32 %v496, %v656
        %v658 = vpop.f32.mrb[0].mxu0
        %v659 = vpop.f32.mrb[0].mxu0
        %v660 = vpop.f32.mrb[0].mxu0
        %661 = vdwg.mxu0
        %v662 = vpack.c.bf16 %v657, %v657
        %vm663 = vcmask 516096
        %664 = vst.msk [vmem:[%s252] sm:$0x1] %vm663, %v662
        %vm665 = vcmask 517120
        %v666 = vsel %vm665, %v657, 0.0
        %v667 = vrot.slane %v666, 4
        %v668 = vadd.f32 %v666, %v667
        %v669 = vrot.slane %v668, 2
        %v670 = vadd.f32 %v668, %v669
        %v671 = vrot.slane %v670, 1
        %v672 = vadd.f32 %v670, %v671
        %v673 = vadd.f32 %v672, 0.0
        %v674 = vmul.f32 %v657, %v657
        %v675 = vsel %vm665, %v674, 0.0
        %v676 = vrot.slane %v675, 4
        %v677 = vadd.f32 %v675, %v676
        %v678 = vrot.slane %v677, 2
        %v679 = vadd.f32 %v677, %v678
        %v680 = vrot.slane %v679, 1
        %v681 = vadd.f32 %v679, %v680
        %v682 = vadd.f32 %v681, 0.0
        %v683 = vld [vmem:[%s305] sm:$0x3]
        %v684 = vld [vmem:[#allocation5] sm:$0xf]
        %v685 = vld [vmem:[#allocation5 + $0x4] sm:$0xf]
        %v686 = vld [vmem:[#allocation5 + $0x8] sm:$0xf]
        %v687 = vld [vmem:[#allocation5 + $0xc] sm:$0xf]
        %v688 = vld [vmem:[#allocation5 + $0x10] sm:$0xf]
        %v689 = vld [vmem:[#allocation5 + $0x14] sm:$0xf]
        %v690 = vld [vmem:[#allocation5 + $0x18] sm:$0xf]
        %v691 = vld [vmem:[#allocation5 + $0x1c] sm:$0xf]
        %v692 = vld [vmem:[#allocation5 + $0x20] sm:$0xf]
        %v693 = vld [vmem:[#allocation5 + $0x24] sm:$0xf]
        %v694 = vld [vmem:[#allocation5 + $0x28] sm:$0xf]
        %v695 = vld [vmem:[#allocation5 + $0x2c] sm:$0xf]
        %v696 = vld [vmem:[#allocation5 + $0x30] sm:$0xf]
        %v697 = vld [vmem:[#allocation5 + $0x34] sm:$0xf]
        %v698 = vld [vmem:[#allocation5 + $0x38] sm:$0xf]
        %v699 = vld [vmem:[#allocation5 + $0x3c] sm:$0xf]
        %v700 = vld [vmem:[#allocation5 + $0x40] sm:$0xf]
        %v701 = vld [vmem:[#allocation5 + $0x44] sm:$0xf]
        %v702 = vld [vmem:[#allocation5 + $0x48] sm:$0xf]
        %v703 = vld [vmem:[#allocation5 + $0x4c] sm:$0xf]
        %v704 = vld [vmem:[#allocation5 + $0x50] sm:$0xf]
        %v705 = vld [vmem:[#allocation5 + $0x54] sm:$0xf]
        %v706 = vld [vmem:[#allocation5 + $0x58] sm:$0xf]
        %v707 = vld [vmem:[#allocation5 + $0x5c] sm:$0xf]
        %v708 = vld [vmem:[#allocation5 + $0x60] sm:$0xf]
        %v709 = vld [vmem:[#allocation5 + $0x64] sm:$0xf]
        %v710 = vld [vmem:[#allocation5 + $0x68] sm:$0xf]
        %v711 = vld [vmem:[#allocation5 + $0x6c] sm:$0xf]
        %v712 = vld [vmem:[#allocation5 + $0x70] sm:$0xf]
        %v713 = vld [vmem:[#allocation5 + $0x74] sm:$0xf]
        %v714 = vld [vmem:[#allocation5 + $0x78] sm:$0xf]
        %v715 = vld [vmem:[#allocation5 + $0x7c] sm:$0xf]
        %s716 = sadd.s32 %s267, 2
        %s717 = smul.u32 %s716, 2
        %s718 = scalar_lea.vmem %s228, %s717 [#allocation2]
        %v719 = vld [vmem:[%s718] sm:$0x3]
        %v720 = vld [vmem:[%s307] sm:$0xf]
        %v721 = vld [vmem:[%s307 + $0x4] sm:$0xf]
        %v722 = vld [vmem:[%s307 + $0x8] sm:$0xf]
        %v723 = vld [vmem:[%s307 + $0xc] sm:$0xf]
        %v724 = vld [vmem:[%s307 + $0x10] sm:$0xf]
        %v725 = vld [vmem:[%s307 + $0x14] sm:$0xf]
        %v726 = vld [vmem:[%s307 + $0x18] sm:$0xf]
        %v727 = vld [vmem:[%s307 + $0x1c] sm:$0xf]
        %v728 = vld [vmem:[%s307 + $0x20] sm:$0xf]
        %v729 = vld [vmem:[%s307 + $0x24] sm:$0xf]
        %v730 = vld [vmem:[%s307 + $0x28] sm:$0xf]
        %v731 = vld [vmem:[%s307 + $0x2c] sm:$0xf]
        %v732 = vld [vmem:[%s307 + $0x30] sm:$0xf]
        %v733 = vld [vmem:[%s307 + $0x34] sm:$0xf]
        %v734 = vld [vmem:[%s307 + $0x38] sm:$0xf]
        %v735 = vld [vmem:[%s307 + $0x3c] sm:$0xf]
        %v736 = vld [vmem:[%s307 + $0x40] sm:$0xf]
        %v737 = vld [vmem:[%s307 + $0x44] sm:$0xf]
        %v738 = vld [vmem:[%s307 + $0x48] sm:$0xf]
        %v739 = vld [vmem:[%s307 + $0x4c] sm:$0xf]
        %v740 = vld [vmem:[%s307 + $0x50] sm:$0xf]
        %v741 = vld [vmem:[%s307 + $0x54] sm:$0xf]
        %v742 = vld [vmem:[%s307 + $0x58] sm:$0xf]
        %v743 = vld [vmem:[%s307 + $0x5c] sm:$0xf]
        %v744 = vld [vmem:[%s307 + $0x60] sm:$0xf]
        %v745 = vld [vmem:[%s307 + $0x64] sm:$0xf]
        %v746 = vld [vmem:[%s307 + $0x68] sm:$0xf]
        %v747 = vld [vmem:[%s307 + $0x6c] sm:$0xf]
        %v748 = vld [vmem:[%s307 + $0x70] sm:$0xf]
        %v749 = vld [vmem:[%s307 + $0x74] sm:$0xf]
        %v750 = vld [vmem:[%s307 + $0x78] sm:$0xf]
        %v751 = vld [vmem:[%s307 + $0x7c] sm:$0xf]
        %v754 = vunpack.c.l.s4 1966171168
        %v755 = vunpack.c.0.s8 %v754
        %v756 = vlaneseq
        %v757 = vshrl.u32 %v756, 7
        %v758 = vsub.s32 %v755, %v757
        %v759 = vrot.slane %v719, %v758
        %v760 = vcombine.high %v759, %v759
        %v762 = vunpack.c.l.s4 1966171168
        %v763 = vunpack.c.0.s8 %v762
        %v764 = vlaneseq
        %v765 = vshrl.u32 %v764, 7
        %v766 = vsub.s32 %v763, %v765
        %v767 = vrot.slane %v759, %v766
        %v769 = vunpack.c.l.s4 1966171168
        %v770 = vunpack.c.0.s8 %v769
        %v771 = vlaneseq
        %v772 = vshrl.u32 %v771, 7
        %v773 = vsub.s32 %v770, %v772
        %v774 = vrot.slane %v760, %v773
        %v809 = vunpack.c.l.b16 %v720
        %v810 = vunpack.c.l.b16 %v721
        %v811 = vunpack.c.l.b16 %v722
        %v812 = vunpack.c.l.b16 %v723
        %v813 = vunpack.c.l.b16 %v724
        %v814 = vunpack.c.l.b16 %v725
        %v815 = vunpack.c.l.b16 %v726
        %v816 = vunpack.c.l.b16 %v727
        %v817 = vunpack.c.l.b16 %v728
        %v818 = vunpack.c.l.b16 %v729
        %v819 = vunpack.c.l.b16 %v730
        %v820 = vunpack.c.l.b16 %v731
        %v821 = vunpack.c.l.b16 %v732
        %v822 = vunpack.c.l.b16 %v733
        %v823 = vunpack.c.l.b16 %v734
        %v824 = vunpack.c.l.b16 %v735
        %v825 = vunpack.c.l.b16 %v736
        %v826 = vunpack.c.l.b16 %v737
        %v827 = vunpack.c.l.b16 %v738
        %v828 = vunpack.c.l.b16 %v739
        %v829 = vunpack.c.l.b16 %v740
        %v830 = vunpack.c.l.b16 %v741
        %v831 = vunpack.c.l.b16 %v742
        %v832 = vunpack.c.l.b16 %v743
        %v833 = vunpack.c.l.b16 %v744
        %v834 = vunpack.c.l.b16 %v745
        %v835 = vunpack.c.l.b16 %v746
        %v836 = vunpack.c.l.b16 %v747
        %v837 = vunpack.c.l.b16 %v748
        %v838 = vunpack.c.l.b16 %v749
        %v839 = vunpack.c.l.b16 %v750
        %v840 = vunpack.c.l.b16 %v751
        %v841 = vpack.c.b16 %v810, %v809
        %v842 = vpack.c.b16 %v812, %v811
        %v843 = vpack.c.b16 %v814, %v813
        %v844 = vpack.c.b16 %v816, %v815
        %v845 = vpack.c.b16 %v818, %v817
        %v846 = vpack.c.b16 %v820, %v819
        %v847 = vpack.c.b16 %v822, %v821
        %v848 = vpack.c.b16 %v824, %v823
        %v849 = vpack.c.b16 %v826, %v825
        %v850 = vpack.c.b16 %v828, %v827
        %v851 = vpack.c.b16 %v830, %v829
        %v852 = vpack.c.b16 %v832, %v831
        %v853 = vpack.c.b16 %v834, %v833
        %v854 = vpack.c.b16 %v836, %v835
        %v855 = vpack.c.b16 %v838, %v837
        %v856 = vpack.c.b16 %v840, %v839
        %873 = vmatprep.subr.bf16.mxu0 0
        %874 = vmatpush1.bf16.msra.mxu0 %v841
        %875 = vmatprep.subr.bf16.mxu0 0
        %876 = vmatpush1.bf16.msra.mxu0 %v842
        %877 = vmatprep.subr.bf16.mxu0 0
        %878 = vmatpush1.bf16.msra.mxu0 %v843
        %879 = vmatprep.subr.bf16.mxu0 0
        %880 = vmatpush1.bf16.msra.mxu0 %v844
        %881 = vmatprep.subr.bf16.mxu0 0
        %882 = vmatpush1.bf16.msra.mxu0 %v845
        %883 = vmatprep.subr.bf16.mxu0 0
        %884 = vmatpush1.bf16.msra.mxu0 %v846
        %885 = vmatprep.subr.bf16.mxu0 0
        %886 = vmatpush1.bf16.msra.mxu0 %v847
        %887 = vmatprep.subr.bf16.mxu0 0
        %888 = vmatpush1.bf16.msra.mxu0 %v848
        %889 = vmatprep.subr.bf16.mxu0 0
        %890 = vmatpush1.bf16.msra.mxu0 %v849
        %891 = vmatprep.subr.bf16.mxu0 0
        %892 = vmatpush1.bf16.msra.mxu0 %v850
        %893 = vmatprep.subr.bf16.mxu0 0
        %894 = vmatpush1.bf16.msra.mxu0 %v851
        %895 = vmatprep.subr.bf16.mxu0 0
        %896 = vmatpush1.bf16.msra.mxu0 %v852
        %897 = vmatprep.subr.bf16.mxu0 0
        %898 = vmatpush1.bf16.msra.mxu0 %v853
        %899 = vmatprep.subr.bf16.mxu0 0
        %900 = vmatpush1.bf16.msra.mxu0 %v854
        %901 = vmatprep.subr.bf16.mxu0 0
        %902 = vmatpush1.bf16.msra.mxu0 %v855
        %903 = vmatprep.subr.bf16.mxu0 0
        %904 = vmatpush1.bf16.msra.mxu0 %v856
        %905 = vmatprep.mubr.bf16.mxu0 %v774
        %906 = vmatmul.mubr.bf16.gmra.mrb[0].mxu0 %v767
        %v907 = vpop.f32.mrb[0].mxu0
        %v908 = vadd.f32 0.0, %v907
        %v909 = vpop.f32.mrb[0].mxu0
        %v910 = vpop.f32.mrb[0].mxu0
        %v911 = vpop.f32.mrb[0].mxu0
        %912 = vdwg.mxu0
        %v915 = vunpack.c.l.s4 1966171168
        %v916 = vunpack.c.0.s8 %v915
        %v917 = vlaneseq
        %v918 = vshrl.u32 %v917, 7
        %v919 = vsub.s32 %v916, %v918
        %v920 = vrot.slane %v683, %v919
        %v921 = vcombine.high %v920, %v920
        %v923 = vunpack.c.l.s4 1966171168
        %v924 = vunpack.c.0.s8 %v923
        %v925 = vlaneseq
        %v926 = vshrl.u32 %v925, 7
        %v927 = vsub.s32 %v924, %v926
        %v928 = vrot.slane %v920, %v927
        %v930 = vunpack.c.l.s4 1966171168
        %v931 = vunpack.c.0.s8 %v930
        %v932 = vlaneseq
        %v933 = vshrl.u32 %v932, 7
        %v934 = vsub.s32 %v931, %v933
        %v935 = vrot.slane %v921, %v934
        %v970 = vunpack.c.l.b16 %v684
        %v971 = vunpack.c.l.b16 %v685
        %v972 = vunpack.c.l.b16 %v686
        %v973 = vunpack.c.l.b16 %v687
        %v974 = vunpack.c.l.b16 %v688
        %v975 = vunpack.c.l.b16 %v689
        %v976 = vunpack.c.l.b16 %v690
        %v977 = vunpack.c.l.b16 %v691
        %v978 = vunpack.c.l.b16 %v692
        %v979 = vunpack.c.l.b16 %v693
        %v980 = vunpack.c.l.b16 %v694
        %v981 = vunpack.c.l.b16 %v695
        %v982 = vunpack.c.l.b16 %v696
        %v983 = vunpack.c.l.b16 %v697
        %v984 = vunpack.c.l.b16 %v698
        %v985 = vunpack.c.l.b16 %v699
        %v986 = vunpack.c.l.b16 %v700
        %v987 = vunpack.c.l.b16 %v701
        %v988 = vunpack.c.l.b16 %v702
        %v989 = vunpack.c.l.b16 %v703
        %v990 = vunpack.c.l.b16 %v704
        %v991 = vunpack.c.l.b16 %v705
        %v992 = vunpack.c.l.b16 %v706
        %v993 = vunpack.c.l.b16 %v707
        %v994 = vunpack.c.l.b16 %v708
        %v995 = vunpack.c.l.b16 %v709
        %v996 = vunpack.c.l.b16 %v710
        %v997 = vunpack.c.l.b16 %v711
        %v998 = vunpack.c.l.b16 %v712
        %v999 = vunpack.c.l.b16 %v713
        %v1000 = vunpack.c.l.b16 %v714
        %v1001 = vunpack.c.l.b16 %v715
        %v1002 = vpack.c.b16 %v971, %v970
        %v1003 = vpack.c.b16 %v973, %v972
        %v1004 = vpack.c.b16 %v975, %v974
        %v1005 = vpack.c.b16 %v977, %v976
        %v1006 = vpack.c.b16 %v979, %v978
        %v1007 = vpack.c.b16 %v981, %v980
        %v1008 = vpack.c.b16 %v983, %v982
        %v1009 = vpack.c.b16 %v985, %v984
        %v1010 = vpack.c.b16 %v987, %v986
        %v1011 = vpack.c.b16 %v989, %v988
        %v1012 = vpack.c.b16 %v991, %v990
        %v1013 = vpack.c.b16 %v993, %v992
        %v1014 = vpack.c.b16 %v995, %v994
        %v1015 = vpack.c.b16 %v997, %v996
        %v1016 = vpack.c.b16 %v999, %v998
        %v1017 = vpack.c.b16 %v1001, %v1000
        %1034 = vmatprep.subr.bf16.mxu0 0
        %1035 = vmatpush1.bf16.msra.mxu0 %v1002
        %1036 = vmatprep.subr.bf16.mxu0 0
        %1037 = vmatpush1.bf16.msra.mxu0 %v1003
        %1038 = vmatprep.subr.bf16.mxu0 0
        %1039 = vmatpush1.bf16.msra.mxu0 %v1004
        %1040 = vmatprep.subr.bf16.mxu0 0
        %1041 = vmatpush1.bf16.msra.mxu0 %v1005
        %1042 = vmatprep.subr.bf16.mxu0 0
        %1043 = vmatpush1.bf16.msra.mxu0 %v1006
        %1044 = vmatprep.subr.bf16.mxu0 0
        %1045 = vmatpush1.bf16.msra.mxu0 %v1007
        %1046 = vmatprep.subr.bf16.mxu0 0
        %1047 = vmatpush1.bf16.msra.mxu0 %v1008
        %1048 = vmatprep.subr.bf16.mxu0 0
        %1049 = vmatpush1.bf16.msra.mxu0 %v1009
        %1050 = vmatprep.subr.bf16.mxu0 0
        %1051 = vmatpush1.bf16.msra.mxu0 %v1010
        %1052 = vmatprep.subr.bf16.mxu0 0
        %1053 = vmatpush1.bf16.msra.mxu0 %v1011
        %1054 = vmatprep.subr.bf16.mxu0 0
        %1055 = vmatpush1.bf16.msra.mxu0 %v1012
        %1056 = vmatprep.subr.bf16.mxu0 0
        %1057 = vmatpush1.bf16.msra.mxu0 %v1013
        %1058 = vmatprep.subr.bf16.mxu0 0
        %1059 = vmatpush1.bf16.msra.mxu0 %v1014
        %1060 = vmatprep.subr.bf16.mxu0 0
        %1061 = vmatpush1.bf16.msra.mxu0 %v1015
        %1062 = vmatprep.subr.bf16.mxu0 0
        %1063 = vmatpush1.bf16.msra.mxu0 %v1016
        %1064 = vmatprep.subr.bf16.mxu0 0
        %1065 = vmatpush1.bf16.msra.mxu0 %v1017
        %1066 = vmatprep.mubr.bf16.mxu0 %v935
        %1067 = vmatmul.mubr.bf16.gmra.mrb[0].mxu0 %v928
        %v1068 = vpop.f32.mrb[0].mxu0
        %v1069 = vadd.f32 %v908, %v1068
        %v1070 = vpop.f32.mrb[0].mxu0
        %v1071 = vpop.f32.mrb[0].mxu0
        %v1072 = vpop.f32.mrb[0].mxu0
        %1073 = vdwg.mxu0
        %v1074 = vpack.c.bf16 %v1069, %v1069
        %s1075 = scalar_lea.vmem %s252, 1 [#allocation7]
        %1076 = vst.msk [vmem:[%s1075] sm:$0x1] %vm663, %v1074
        %v1077 = vsel %vm665, %v1069, 0.0
        %v1078 = vrot.slane %v1077, 4
        %v1079 = vadd.f32 %v1077, %v1078
        %v1080 = vrot.slane %v1079, 2
        %v1081 = vadd.f32 %v1079, %v1080
        %v1082 = vrot.slane %v1081, 1
        %v1083 = vadd.f32 %v1081, %v1082
        %v1084 = vadd.f32 %v673, %v1083
        %v1085 = vmul.f32 %v1069, %v1069
        %v1086 = vsel %vm665, %v1085, 0.0
        %v1087 = vrot.slane %v1086, 4
        %v1088 = vadd.f32 %v1086, %v1087
        %v1089 = vrot.slane %v1088, 2
        %v1090 = vadd.f32 %v1088, %v1089
        %v1091 = vrot.slane %v1090, 1
        %v1092 = vadd.f32 %v1090, %v1091
        %v1093 = vadd.f32 %v682, %v1092
        %1094 = vst.msk [vmem:[%s258] sm:$0x1] %vm663, %v1084
        %1095 = vst.msk [vmem:[%s264] sm:$0x1] %vm663, %v1093
        %s1096 = sand.u32 %s95, 1
        %s1097 = scalar_lea.sflag [#allocation4], %s1096
        %s1098 = sand.u32 %s95, 1
        %s1099 = smul.addr %s1098, 2
        %s1100 = scalar_lea.vmem [#allocation7], %s1099
        %s1101 = sand.u32 %s26, 1
        %s1102 = scalar_lea.sflag [#allocation9], %s1101
        %s1103 = sand.u32 %s123, 1
        %s1104 = scalar_lea.vmem [#allocation8], %s1103
        %s1105 = sand.u32 %s26, 1
        %s1106 = scalar_lea.sflag [#allocation9], %s1105
        %s1107 = sand.u32 %s151, 1
        %s1108 = scalar_lea.vmem [#allocation10], %s1107
        // Predicated region
        $region37: #{dcgan_discriminator.8} parent=27 // pred_check
          %p1109 = pneg %p105
        $region38: #{dcgan_discriminator.8} parent=27 // pred_check_branch
          %1111 = sbr.rel (%p1109) target = $region40
        $region39: #{dcgan_discriminator.8} parent=27 // pred_region
          %s1112 = smul.u32 2, %s31
          %s1114 = ssub.s32 32, 32
          %1115 = vsyncadd %s1097, %s1114
          %s1116 = smul.addr %s30, 2
          %s1117 = sadd.s32 %s1112, %s1116
          %s1118 = smul.addr %s1117, 16
          %s1119 = scalar_lea.hbm %s2, %s1118
          %s1120 = sshll.u32 %s1100, 4
          %s1121 = int_to_ptr.vmem [resolvable:$true] %s1120
          %1126 = dma.vmem_to_hbm [thread:$0]  %s1121, 32, %s1119, %s1097, 16, 16, 1
        $region40: #{dcgan_discriminator.8} parent=27 // pred_fallthru
          _
        // Predicated region
        $region41: #{dcgan_discriminator.8} parent=27 // pred_check
          %p1127 = pneg %p133
        $region42: #{dcgan_discriminator.8} parent=27 // pred_check_branch
          %1129 = sbr.rel (%p1127) target = $region44
        $region43: #{dcgan_discriminator.8} parent=27 // pred_region
          %s1131 = ssub.s32 16, 16
          %1132 = vsyncadd %s1102, %s1131
          %s1133 = sadd.s32 %s31, %s30
          %s1134 = smul.addr %s1133, 16
          %s1135 = scalar_lea.hbm %s3, %s1134
          %s1137 = sshll.u32 %s1104, 4
          %s1138 = int_to_ptr.vmem [resolvable:$true] %s1137
          %1140 = dma.vmem_to_hbm [thread:$0]  %s1138, 16, %s1135, %s1102
        $region44: #{dcgan_discriminator.8} parent=27 // pred_fallthru
          _
        // Predicated region
        $region45: #{dcgan_discriminator.8} parent=27 // pred_check
          %p1141 = pneg %p161
        $region46: #{dcgan_discriminator.8} parent=27 // pred_check_branch
          %1143 = sbr.rel (%p1141) target = $region48
        $region47: #{dcgan_discriminator.8} parent=27 // pred_region
          %s1145 = ssub.s32 16, 16
          %1146 = vsyncadd %s1106, %s1145
          %s1147 = sadd.s32 %s31, %s30
          %s1148 = smul.addr %s1147, 16
          %s1149 = scalar_lea.hbm %s4, %s1148
          %s1151 = sshll.u32 %s1108, 4
          %s1152 = int_to_ptr.vmem [resolvable:$true] %s1151
          %1154 = dma.vmem_to_hbm [thread:$0]  %s1152, 16, %s1149, %s1106
        $region48: #{dcgan_discriminator.8} parent=27 // pred_fallthru
          _
      $region28: #{dcgan_discriminator.8} parent=5 // pred_fallthru
        _
      %p1155 = scmp.le.s32.totalorder 2, %s21
      // Predicated region
      $region49: #{dcgan_discriminator.8} parent=5 // pred_check
        %p1156 = pneg %p1155
      $region50: #{dcgan_discriminator.8} parent=5 // pred_check_branch
        %1158 = sbr.rel (%p1156) target = $region52
      $region51: #{dcgan_discriminator.8} parent=5 // pred_region
        %s1159 = ssub.s32 %s21, 2
        // Predicated region
        $region53: #{dcgan_discriminator.8} parent=51 // pred_check
          %p1160 = pneg %p111
        $region54: #{dcgan_discriminator.8} parent=51 // pred_check_branch
          %1162 = sbr.rel (%p1160) target = $region56
        $region55: #{dcgan_discriminator.8} parent=51 // pred_region
          %s1163 = sand.u32 %s96, 1
          %s1164 = scalar_lea.sflag [#allocation4], %s1163
          %s1165 = sand.u32 %s96, 1
          %s1166 = smul.addr %s1165, 2
          %s1167 = scalar_lea.vmem [#allocation7], %s1166
          %1168 = dma.done %s1164, 32
        $region56: #{dcgan_discriminator.8} parent=51 // pred_fallthru
          _
        // Predicated region
        $region57: #{dcgan_discriminator.8} parent=51 // pred_check
          %p1169 = pneg %p139
        $region58: #{dcgan_discriminator.8} parent=51 // pred_check_branch
          %1171 = sbr.rel (%p1169) target = $region60
        $region59: #{dcgan_discriminator.8} parent=51 // pred_region
          %s1172 = sand.u32 %s27, 1
          %s1173 = scalar_lea.sflag [#allocation9], %s1172
          %s1174 = sand.u32 %s124, 1
          %s1175 = scalar_lea.vmem [#allocation8], %s1174
          %1176 = dma.done %s1173, 16
        $region60: #{dcgan_discriminator.8} parent=51 // pred_fallthru
          _
        // Predicated region
        $region61: #{dcgan_discriminator.8} parent=51 // pred_check
          %p1177 = pneg %p167
        $region62: #{dcgan_discriminator.8} parent=51 // pred_check_branch
          %1179 = sbr.rel (%p1177) target = $region64
        $region63: #{dcgan_discriminator.8} parent=51 // pred_region
          %s1180 = sand.u32 %s27, 1
          %s1181 = scalar_lea.sflag [#allocation9], %s1180
          %s1182 = sand.u32 %s152, 1
          %s1183 = scalar_lea.vmem [#allocation10], %s1182
          %1184 = dma.done %s1181, 16
        $region64: #{dcgan_discriminator.8} parent=51 // pred_fallthru
          _
      $region52: #{dcgan_discriminator.8} parent=5 // pred_fallthru
        _
    $region6: #{dcgan_discriminator.8} parent=1 // loop_footer
      %s25 = sadd.s32 1, %s21
    $region7: #{dcgan_discriminator.8} parent=1 // loop_footer_branch
      %20 = sbr.rel target = $region3
    $region8: #{dcgan_discriminator.8} parent=1 // loop_exit
      _
    %1185 = vsyncpa [#allocation3], 1
    %s1186 = scalar_lea.sflag [#allocation3], 1
    %1187 = vsyncpa %s1186, 1
    %1188 = vsyncpa [#allocation6], 1
    %1189 = vsyncpa [#allocation4], 1
    %s1190 = scalar_lea.sflag [#allocation4], 1
    %1191 = vsyncpa %s1190, 1
    %1192 = vsyncpa [#allocation9], 1
    %s1193 = scalar_lea.sflag [#allocation9], 1
    %1194 = vsyncpa %s1193, 1

// kernel: dcgan_discriminator.9
$region0: #{dcgan_discriminator.9}
  #allocation0 [shape = 'u32[]', space=smem, size = 0x4, offset = 0x4, fixed_abs, tag = 'smem constant byte address 0x4 - core index']
  #allocation1 [shape = 'u32[144,128]{1,0:T(1,128)}', space=vmem, size = 0x12000, scoped, tag = 'internal scratch']
  %s0 = inlined_call_operand.hbm [shape: bf16[2,2,1,512], index: 0, kind: input, shape index: {}]
  %s1 = inlined_call_operand.hbm [shape: bf16[2,512,128], index: 1, kind: input, shape index: {}]
  %s2 = inlined_call_operand.hbm [shape: f32[2,1,1,128], index: 2, kind: output, shape index: {}]
  %s3 = sld [smem:[#allocation0]]
  $region49: #{dcgan_discriminator.9} parent=0
    _
  %s5 = ssub.s32 1, %s3
  %s6 = scalar_select 0, %s5, %s3
  $region1: #{dcgan_discriminator.9} parent=0
    #allocation2 [shape = 'u8[8192]{0}', space=vmem, size = 0x2000, scoped, tag = 'input window, operand 0']
    #allocation3 [shape = 's32[2]{0}', space=sflag, size = 0x8, scoped, tag = 'scoped memory for dcgan_discriminator.9']
    #allocation4 [shape = 's32[2]{0}', space=sflag, size = 0x8, scoped, tag = 'scoped memory for dcgan_discriminator.9']
    #allocation5 [shape = 'u8[262144]{0}', space=vmem, size = 0x40000, scoped, tag = 'input window, operand 1, single buffered']
    #allocation6 [shape = 's32[1]{0}', space=sflag, size = 0x4, scoped, tag = 'scoped memory for dcgan_discriminator.9']
    #allocation7 [shape = 'u8[1024]{0}', space=vmem, size = 0x400, scoped, tag = 'output window, operand 0']
    %7 = vsyncpa [#allocation3], 0
    %s8 = scalar_lea.sflag [#allocation3], 1
    %9 = vsyncpa %s8, 0
    %10 = vsyncpa [#allocation6], 0
    %11 = vsyncpa [#allocation4], 0
    %s12 = scalar_lea.sflag [#allocation4], 1
    %13 = vsyncpa %s12, 0
    loop: start=0, step=1, limit=4
    $region2: #{dcgan_discriminator.9} parent=1 // loop_pre_header
      _
    $region3: #{dcgan_discriminator.9} parent=1 // loop_header
      %s15 = sphi 0, %s19
      %p16 = scmp.ge.s32.totalorder %s15, 4
      %s22 = sphi 0, %s34
      %s23 = sphi 0, %s30
      %s24 = sphi 0, %s22
      %s25 = sphi 0, %s23
      %s26 = sphi 0, %s24
      %s27 = sphi 0, %s25
      %s37 = sphi 0, %s39
      %s40 = sphi 0, %s37
      %s41 = sphi 0, %s40
      %s57 = sphi 0, %s41
      %s61 = sphi 0, %s61
      %s63 = sphi 0, %s61
      %s64 = sphi 0, %s63
      %s78 = sphi 0, %s64
      %s86 = sphi 0, %s88
      %s89 = sphi 0, %s86
      %s90 = sphi 0, %s89
      %s106 = sphi 0, %s90
    $region4: #{dcgan_discriminator.9} parent=1 // loop_header_branch
      %18 = sbr.rel (%p16) target = $region8
    $region5: #{dcgan_discriminator.9} parent=1 // loop_body
      %s20 = ssub.s32 %s15, 1
      %s21 = ssub.s32 %s15, 2
      %s28 = sadd.s32 1, %s23
      %p29 = scmp.ge.s32.totalorder %s28, 1
      %s30 = scalar_select %p29, 0, %s28
      %s31 = sadd.s32 1, %s22
      %s32 = scalar_select %p29, %s31, %s22
      %p33 = scmp.ge.s32.totalorder %s32, 2
      %s34 = scalar_select %p33, 0, %s32
      %s35 = ssub.s32 %s22, %s34
      %p36 = scmp.eq.s32.totalorder %s35, 0
      %s38 = sadd.s32 %s37, 1
      %s39 = scalar_select %p36, %s37, %s38
      %p42 = pneg %p36
      %p43 = scmp.eq.s32.totalorder %s15, 1
      %p44 = por %p42, %p43
      %p45 = scmp.ne.s32.totalorder %s37, %s40
      %p46 = scmp.eq.s32.totalorder %s15, 0
      %p47 = por %p45, %p46
      %p48 = scmp.ne.s32.totalorder %s37, %s40
      %p49 = scmp.eq.s32.totalorder %s20, 1
      %p50 = por %p48, %p49
      %p51 = scmp.ne.s32.totalorder %s40, %s41
      %p52 = scmp.eq.s32.totalorder %s20, 0
      %p53 = por %p51, %p52
      %p54 = scmp.ne.s32.totalorder %s40, %s41
      %p55 = scmp.eq.s32.totalorder %s21, 1
      %p56 = por %p54, %p55
      %p58 = scmp.ne.s32.totalorder %s41, %s57
      %p59 = scmp.eq.s32.totalorder %s21, 0
      %p60 = por %p58, %p59
      %s62 = sadd.s32 %s61, 1
      %p65 = scmp.eq.s32.totalorder %s15, 1
      %p66 = scmp.ne.s32.totalorder %s61, %s63
      %p67 = scmp.eq.s32.totalorder %s15, 0
      %p68 = por %p66, %p67
      %p69 = scmp.ne.s32.totalorder %s61, %s63
      %p70 = scmp.eq.s32.totalorder %s20, 1
      %p71 = por %p69, %p70
      %p72 = scmp.ne.s32.totalorder %s63, %s64
      %p73 = scmp.eq.s32.totalorder %s20, 0
      %p74 = por %p72, %p73
      %p75 = scmp.ne.s32.totalorder %s63, %s64
      %p76 = scmp.eq.s32.totalorder %s21, 1
      %p77 = por %p75, %p76
      %p79 = scmp.ne.s32.totalorder %s64, %s78
      %p80 = scmp.eq.s32.totalorder %s21, 0
      %p81 = por %p79, %p80
      %s82 = ssub.s32 %s22, %s34
      %s83 = ssub.s32 %s23, %s30
      %s84 = sor.u32 %s82, %s83
      %p85 = scmp.eq.s32.totalorder %s84, 0
      %s87 = sadd.s32 %s86, 1
      %s88 = scalar_select %p85, %s86, %s87
      %p91 = pneg %p85
      %p92 = scmp.eq.s32.totalorder %s15, 1
      %p93 = por %p91, %p92
      %p94 = scmp.ne.s32.totalorder %s86, %s89
      %p95 = scmp.eq.s32.totalorder %s15, 0
      %p96 = por %p94, %p95
      %p97 = scmp.ne.s32.totalorder %s86, %s89
      %p98 = scmp.eq.s32.totalorder %s20, 1
      %p99 = por %p97, %p98
      %p100 = scmp.ne.s32.totalorder %s89, %s90
      %p101 = scmp.eq.s32.totalorder %s20, 0
      %p102 = por %p100, %p101
      %p103 = scmp.ne.s32.totalorder %s89, %s90
      %p104 = scmp.eq.s32.totalorder %s21, 1
      %p105 = por %p103, %p104
      %p107 = scmp.ne.s32.totalorder %s90, %s106
      %p108 = scmp.eq.s32.totalorder %s21, 0
      %p109 = por %p107, %p108
      %p110 = scmp.le.s32.totalorder 1, %s15
      %p111 = scmp.lt.s32.totalorder %s15, 3
      %p112 = pnand %p110, %p111
      %p113 = pneg %p112
      // Predicated region
      $region9: #{dcgan_discriminator.9} parent=5 // pred_check
        _
      $region10: #{dcgan_discriminator.9} parent=5 // pred_check_branch
        %115 = sbr.rel (%p112) target = $region12
      $region11: #{dcgan_discriminator.9} parent=5 // pred_region
        %s116 = ssub.s32 %s15, 1
        // Predicated region
        $region13: #{dcgan_discriminator.9} parent=11 // pred_check
          %p117 = pneg %p74
        $region14: #{dcgan_discriminator.9} parent=11 // pred_check_branch
          %119 = sbr.rel (%p117) target = $region16
        $region15: #{dcgan_discriminator.9} parent=11 // pred_region
          %s121 = ssub.s32 8192, 8192
          %122 = vsyncadd [#allocation6], %s121
          %s123 = sshll.u32 [#allocation5], 4
          %s124 = int_to_ptr.vmem [resolvable:$true] %s123
          %129 = dma.hbm_to_vmem [thread:$0]  %s1, 8192, %s124, [#allocation6], 64, 64, 4
        $region16: #{dcgan_discriminator.9} parent=11 // pred_fallthru
          _
      $region12: #{dcgan_discriminator.9} parent=5 // pred_fallthru
        _
      %p130 = scmp.lt.s32.totalorder %s15, 2
      // Predicated region
      $region17: #{dcgan_discriminator.9} parent=5 // pred_check
        %p131 = pneg %p130
      $region18: #{dcgan_discriminator.9} parent=5 // pred_check_branch
        %133 = sbr.rel (%p131) target = $region20
      $region19: #{dcgan_discriminator.9} parent=5 // pred_region
        // Predicated region
        $region21: #{dcgan_discriminator.9} parent=19 // pred_check
          %p134 = pneg %p47
        $region22: #{dcgan_discriminator.9} parent=19 // pred_check_branch
          %136 = sbr.rel (%p134) target = $region24
        $region23: #{dcgan_discriminator.9} parent=19 // pred_region
          %s137 = sand.u32 %s37, 1
          %s138 = scalar_lea.sflag [#allocation3], %s137
          %s139 = sand.u32 %s37, 1
          %s140 = smul.addr %s139, 8
          %s141 = scalar_lea.vmem [#allocation2], %s140
          %s143 = ssub.s32 128, 128
          %144 = vsyncadd %s138, %s143
          %s145 = smul.addr %s22, 8
          %s146 = smul.addr %s145, 16
          %s147 = scalar_lea.hbm %s0, %s146
          %s148 = sshll.u32 %s141, 4
          %s149 = int_to_ptr.vmem [resolvable:$true] %s148
          %154 = dma.hbm_to_vmem [thread:$0]  %s147, 128, %s149, %s138, 64, 64, 4
        $region24: #{dcgan_discriminator.9} parent=19 // pred_fallthru
          _
      $region20: #{dcgan_discriminator.9} parent=5 // pred_fallthru
        _
      %p155 = scmp.le.s32.totalorder 1, %s15
      %p156 = scmp.lt.s32.totalorder %s15, 3
      %p157 = pnand %p155, %p156
      %p158 = pneg %p157
      // Predicated region
      $region25: #{dcgan_discriminator.9} parent=5 // pred_check
        _
      $region26: #{dcgan_discriminator.9} parent=5 // pred_check_branch
        %160 = sbr.rel (%p157) target = $region28
      $region27: #{dcgan_discriminator.9} parent=5 // pred_region
        %s161 = ssub.s32 %s15, 1
        %s162 = sand.u32 %s40, 1
        %s163 = scalar_lea.sflag [#allocation3], %s162
        %s164 = sand.u32 %s40, 1
        %s165 = smul.addr %s164, 8
        %s166 = scalar_lea.vmem [#allocation2], %s165
        // Predicated region
        $region29: #{dcgan_discriminator.9} parent=27 // pred_check
          %p167 = pneg %p53
        $region30: #{dcgan_discriminator.9} parent=27 // pred_check_branch
          %169 = sbr.rel (%p167) target = $region32
        $region31: #{dcgan_discriminator.9} parent=27 // pred_region
          %170 = dma.done %s163, 128
        $region32: #{dcgan_discriminator.9} parent=27 // pred_fallthru
          _
        // Predicated region
        $region33: #{dcgan_discriminator.9} parent=27 // pred_check
          %p171 = pneg %p74
        $region34: #{dcgan_discriminator.9} parent=27 // pred_check_branch
          %173 = sbr.rel (%p171) target = $region36
        $region35: #{dcgan_discriminator.9} parent=27 // pred_region
          %174 = dma.done [#allocation6], 8192
        $region36: #{dcgan_discriminator.9} parent=27 // pred_fallthru
          _
        %s175 = sand.u32 %s40, 1
        %s176 = scalar_lea.sflag [#allocation3], %s175
        %s177 = sand.u32 %s40, 1
        %s178 = smul.addr %s177, 8
        %s179 = scalar_lea.vmem [#allocation2], %s178
        %p180 = pneg %p53
        %p181 = pneg %p50
        %p182 = pneg %p74
        %p183 = pneg %p71
        %p184 = pneg %p102
        %p185 = pneg %p99
        %s186 = sand.u32 %s89, 1
        %s187 = scalar_lea.sflag [#allocation4], %s186
        %s188 = sand.u32 %s89, 1
        %s189 = scalar_lea.vmem [#allocation7], %s188
        %s191 = smul.u32 %s25, 4
        %s192 = scalar_lea.vmem %s166, %s191 [#allocation2]
        %v193 = vld [vmem:[%s192] sm:$0xf]
        %v194 = vld [vmem:[#allocation5] sm:$0xf]
        %v195 = vld [vmem:[#allocation5 + $0x4] sm:$0xf]
        %v196 = vld [vmem:[#allocation5 + $0x8] sm:$0xf]
        %v197 = vld [vmem:[#allocation5 + $0xc] sm:$0xf]
        %v198 = vld [vmem:[#allocation5 + $0x10] sm:$0xf]
        %v199 = vld [vmem:[#allocation5 + $0x14] sm:$0xf]
        %v200 = vld [vmem:[#allocation5 + $0x18] sm:$0xf]
        %v201 = vld [vmem:[#allocation5 + $0x1c] sm:$0xf]
        %v202 = vld [vmem:[#allocation5 + $0x20] sm:$0xf]
        %v203 = vld [vmem:[#allocation5 + $0x24] sm:$0xf]
        %v204 = vld [vmem:[#allocation5 + $0x28] sm:$0xf]
        %v205 = vld [vmem:[#allocation5 + $0x2c] sm:$0xf]
        %v206 = vld [vmem:[#allocation5 + $0x30] sm:$0xf]
        %v207 = vld [vmem:[#allocation5 + $0x34] sm:$0xf]
        %v208 = vld [vmem:[#allocation5 + $0x38] sm:$0xf]
        %v209 = vld [vmem:[#allocation5 + $0x3c] sm:$0xf]
        %v210 = vld [vmem:[#allocation5 + $0x40] sm:$0xf]
        %v211 = vld [vmem:[#allocation5 + $0x44] sm:$0xf]
        %v212 = vld [vmem:[#allocation5 + $0x48] sm:$0xf]
        %v213 = vld [vmem:[#allocation5 + $0x4c] sm:$0xf]
        %v214 = vld [vmem:[#allocation5 + $0x50] sm:$0xf]
        %v215 = vld [vmem:[#allocation5 + $0x54] sm:$0xf]
        %v216 = vld [vmem:[#allocation5 + $0x58] sm:$0xf]
        %v217 = vld [vmem:[#allocation5 + $0x5c] sm:$0xf]
        %v218 = vld [vmem:[#allocation5 + $0x60] sm:$0xf]
        %v219 = vld [vmem:[#allocation5 + $0x64] sm:$0xf]
        %v220 = vld [vmem:[#allocation5 + $0x68] sm:$0xf]
        %v221 = vld [vmem:[#allocation5 + $0x6c] sm:$0xf]
        %v222 = vld [vmem:[#allocation5 + $0x70] sm:$0xf]
        %v223 = vld [vmem:[#allocation5 + $0x74] sm:$0xf]
        %v224 = vld [vmem:[#allocation5 + $0x78] sm:$0xf]
        %v225 = vld [vmem:[#allocation5 + $0x7c] sm:$0xf]
        %v226 = vld [vmem:[#allocation5 + $0x80] sm:$0xf]
        %v227 = vld [vmem:[#allocation5 + $0x84] sm:$0xf]
        %v228 = vld [vmem:[#allocation5 + $0x88] sm:$0xf]
        %v229 = vld [vmem:[#allocation5 + $0x8c] sm:$0xf]
        %v230 = vld [vmem:[#allocation5 + $0x90] sm:$0xf]
        %v231 = vld [vmem:[#allocation5 + $0x94] sm:$0xf]
        %v232 = vld [vmem:[#allocation5 + $0x98] sm:$0xf]
        %v233 = vld [vmem:[#allocation5 + $0x9c] sm:$0xf]
        %v234 = vld [vmem:[#allocation5 + $0xa0] sm:$0xf]
        %v235 = vld [vmem:[#allocation5 + $0xa4] sm:$0xf]
        %v236 = vld [vmem:[#allocation5 + $0xa8] sm:$0xf]
        %v237 = vld [vmem:[#allocation5 + $0xac] sm:$0xf]
        %v238 = vld [vmem:[#allocation5 + $0xb0] sm:$0xf]
        %v239 = vld [vmem:[#allocation5 + $0xb4] sm:$0xf]
        %v240 = vld [vmem:[#allocation5 + $0xb8] sm:$0xf]
        %v241 = vld [vmem:[#allocation5 + $0xbc] sm:$0xf]
        %v242 = vld [vmem:[#allocation5 + $0xc0] sm:$0xf]
        %v243 = vld [vmem:[#allocation5 + $0xc4] sm:$0xf]
        %v244 = vld [vmem:[#allocation5 + $0xc8] sm:$0xf]
        %v245 = vld [vmem:[#allocation5 + $0xcc] sm:$0xf]
        %v246 = vld [vmem:[#allocation5 + $0xd0] sm:$0xf]
        %v247 = vld [vmem:[#allocation5 + $0xd4] sm:$0xf]
        %v248 = vld [vmem:[#allocation5 + $0xd8] sm:$0xf]
        %v249 = vld [vmem:[#allocation5 + $0xdc] sm:$0xf]
        %v250 = vld [vmem:[#allocation5 + $0xe0] sm:$0xf]
        %v251 = vld [vmem:[#allocation5 + $0xe4] sm:$0xf]
        %v252 = vld [vmem:[#allocation5 + $0xe8] sm:$0xf]
        %v253 = vld [vmem:[#allocation5 + $0xec] sm:$0xf]
        %v254 = vld [vmem:[#allocation5 + $0xf0] sm:$0xf]
        %v255 = vld [vmem:[#allocation5 + $0xf4] sm:$0xf]
        %v256 = vld [vmem:[#allocation5 + $0xf8] sm:$0xf]
        %v257 = vld [vmem:[#allocation5 + $0xfc] sm:$0xf]
        %s258 = sadd.s32 %s25, 1
        %s259 = smul.u32 %s258, 4
        %s260 = scalar_lea.vmem %s166, %s259 [#allocation2]
        %v261 = vld [vmem:[%s260] sm:$0xf]
        %s262 = scalar_lea.vmem [#allocation5], 256
        %v263 = vld [vmem:[%s262] sm:$0xf]
        %v264 = vld [vmem:[%s262 + $0x4] sm:$0xf]
        %v265 = vld [vmem:[%s262 + $0x8] sm:$0xf]
        %v266 = vld [vmem:[%s262 + $0xc] sm:$0xf]
        %v267 = vld [vmem:[%s262 + $0x10] sm:$0xf]
        %v268 = vld [vmem:[%s262 + $0x14] sm:$0xf]
        %v269 = vld [vmem:[%s262 + $0x18] sm:$0xf]
        %v270 = vld [vmem:[%s262 + $0x1c] sm:$0xf]
        %v271 = vld [vmem:[%s262 + $0x20] sm:$0xf]
        %v272 = vld [vmem:[%s262 + $0x24] sm:$0xf]
        %v273 = vld [vmem:[%s262 + $0x28] sm:$0xf]
        %v274 = vld [vmem:[%s262 + $0x2c] sm:$0xf]
        %v275 = vld [vmem:[%s262 + $0x30] sm:$0xf]
        %v276 = vld [vmem:[%s262 + $0x34] sm:$0xf]
        %v277 = vld [vmem:[%s262 + $0x38] sm:$0xf]
        %v278 = vld [vmem:[%s262 + $0x3c] sm:$0xf]
        %v279 = vld [vmem:[%s262 + $0x40] sm:$0xf]
        %v280 = vld [vmem:[%s262 + $0x44] sm:$0xf]
        %v281 = vld [vmem:[%s262 + $0x48] sm:$0xf]
        %v282 = vld [vmem:[%s262 + $0x4c] sm:$0xf]
        %v283 = vld [vmem:[%s262 + $0x50] sm:$0xf]
        %v284 = vld [vmem:[%s262 + $0x54] sm:$0xf]
        %v285 = vld [vmem:[%s262 + $0x58] sm:$0xf]
        %v286 = vld [vmem:[%s262 + $0x5c] sm:$0xf]
        %v287 = vld [vmem:[%s262 + $0x60] sm:$0xf]
        %v288 = vld [vmem:[%s262 + $0x64] sm:$0xf]
        %v289 = vld [vmem:[%s262 + $0x68] sm:$0xf]
        %v290 = vld [vmem:[%s262 + $0x6c] sm:$0xf]
        %v291 = vld [vmem:[%s262 + $0x70] sm:$0xf]
        %v292 = vld [vmem:[%s262 + $0x74] sm:$0xf]
        %v293 = vld [vmem:[%s262 + $0x78] sm:$0xf]
        %v294 = vld [vmem:[%s262 + $0x7c] sm:$0xf]
        %v295 = vld [vmem:[%s262 + $0x80] sm:$0xf]
        %v296 = vld [vmem:[%s262 + $0x84] sm:$0xf]
        %v297 = vld [vmem:[%s262 + $0x88] sm:$0xf]
        %v298 = vld [vmem:[%s262 + $0x8c] sm:$0xf]
        %v299 = vld [vmem:[%s262 + $0x90] sm:$0xf]
        %v300 = vld [vmem:[%s262 + $0x94] sm:$0xf]
        %v301 = vld [vmem:[%s262 + $0x98] sm:$0xf]
        %v302 = vld [vmem:[%s262 + $0x9c] sm:$0xf]
        %v303 = vld [vmem:[%s262 + $0xa0] sm:$0xf]
        %v304 = vld [vmem:[%s262 + $0xa4] sm:$0xf]
        %v305 = vld [vmem:[%s262 + $0xa8] sm:$0xf]
        %v306 = vld [vmem:[%s262 + $0xac] sm:$0xf]
        %v307 = vld [vmem:[%s262 + $0xb0] sm:$0xf]
        %v308 = vld [vmem:[%s262 + $0xb4] sm:$0xf]
        %v309 = vld [vmem:[%s262 + $0xb8] sm:$0xf]
        %v310 = vld [vmem:[%s262 + $0xbc] sm:$0xf]
        %v311 = vld [vmem:[%s262 + $0xc0] sm:$0xf]
        %v312 = vld [vmem:[%s262 + $0xc4] sm:$0xf]
        %v313 = vld [vmem:[%s262 + $0xc8] sm:$0xf]
        %v314 = vld [vmem:[%s262 + $0xcc] sm:$0xf]
        %v315 = vld [vmem:[%s262 + $0xd0] sm:$0xf]
        %v316 = vld [vmem:[%s262 + $0xd4] sm:$0xf]
        %v317 = vld [vmem:[%s262 + $0xd8] sm:$0xf]
        %v318 = vld [vmem:[%s262 + $0xdc] sm:$0xf]
        %v319 = vld [vmem:[%s262 + $0xe0] sm:$0xf]
        %v320 = vld [vmem:[%s262 + $0xe4] sm:$0xf]
        %v321 = vld [vmem:[%s262 + $0xe8] sm:$0xf]
        %v322 = vld [vmem:[%s262 + $0xec] sm:$0xf]
        %v323 = vld [vmem:[%s262 + $0xf0] sm:$0xf]
        %v324 = vld [vmem:[%s262 + $0xf4] sm:$0xf]
        %v325 = vld [vmem:[%s262 + $0xf8] sm:$0xf]
        %v326 = vld [vmem:[%s262 + $0xfc] sm:$0xf]
        %v329 = vunpack.c.l.s4 1966171168
        %v330 = vunpack.c.0.s8 %v329
        %v331 = vlaneseq
        %v332 = vshrl.u32 %v331, 7
        %v333 = vsub.s32 %v330, %v332
        %v334 = vrot.slane %v261, %v333
        %v335 = vcombine.high %v334, %v334
        %v337 = vunpack.c.l.s4 1966171168
        %v338 = vunpack.c.0.s8 %v337
        %v339 = vlaneseq
        %v340 = vshrl.u32 %v339, 7
        %v341 = vsub.s32 %v338, %v340
        %v342 = vrot.slane %v334, %v341
        %v344 = vunpack.c.l.s4 1966171168
        %v345 = vunpack.c.0.s8 %v344
        %v346 = vlaneseq
        %v347 = vshrl.u32 %v346, 7
        %v348 = vsub.s32 %v345, %v347
        %v349 = vrot.slane %v335, %v348
        %v350 = vcombine.high %v342, %v342
        %v351 = vcombine.high %v349, %v349
        %v420 = vunpack.c.l.b16 %v263
        %v421 = vunpack.c.l.b16 %v264
        %v422 = vunpack.c.l.b16 %v265
        %v423 = vunpack.c.l.b16 %v266
        %v424 = vunpack.c.l.b16 %v267
        %v425 = vunpack.c.l.b16 %v268
        %v426 = vunpack.c.l.b16 %v269
        %v427 = vunpack.c.l.b16 %v270
        %v428 = vunpack.c.l.b16 %v271
        %v429 = vunpack.c.l.b16 %v272
        %v430 = vunpack.c.l.b16 %v273
        %v431 = vunpack.c.l.b16 %v274
        %v432 = vunpack.c.l.b16 %v275
        %v433 = vunpack.c.l.b16 %v276
        %v434 = vunpack.c.l.b16 %v277
        %v435 = vunpack.c.l.b16 %v278
        %v436 = vunpack.c.l.b16 %v279
        %v437 = vunpack.c.l.b16 %v280
        %v438 = vunpack.c.l.b16 %v281
        %v439 = vunpack.c.l.b16 %v282
        %v440 = vunpack.c.l.b16 %v283
        %v441 = vunpack.c.l.b16 %v284
        %v442 = vunpack.c.l.b16 %v285
        %v443 = vunpack.c.l.b16 %v286
        %v444 = vunpack.c.l.b16 %v287
        %v445 = vunpack.c.l.b16 %v288
        %v446 = vunpack.c.l.b16 %v289
        %v447 = vunpack.c.l.b16 %v290
        %v448 = vunpack.c.l.b16 %v291
        %v449 = vunpack.c.l.b16 %v292
        %v450 = vunpack.c.l.b16 %v293
        %v451 = vunpack.c.l.b16 %v294
        %v452 = vunpack.c.l.b16 %v295
        %v453 = vunpack.c.l.b16 %v296
        %v454 = vunpack.c.l.b16 %v297
        %v455 = vunpack.c.l.b16 %v298
        %v456 = vunpack.c.l.b16 %v299
        %v457 = vunpack.c.l.b16 %v300
        %v458 = vunpack.c.l.b16 %v301
        %v459 = vunpack.c.l.b16 %v302
        %v460 = vunpack.c.l.b16 %v303
        %v461 = vunpack.c.l.b16 %v304
        %v462 = vunpack.c.l.b16 %v305
        %v463 = vunpack.c.l.b16 %v306
        %v464 = vunpack.c.l.b16 %v307
        %v465 = vunpack.c.l.b16 %v308
        %v466 = vunpack.c.l.b16 %v309
        %v467 = vunpack.c.l.b16 %v310
        %v468 = vunpack.c.l.b16 %v311
        %v469 = vunpack.c.l.b16 %v312
        %v470 = vunpack.c.l.b16 %v313
        %v471 = vunpack.c.l.b16 %v314
        %v472 = vunpack.c.l.b16 %v315
        %v473 = vunpack.c.l.b16 %v316
        %v474 = vunpack.c.l.b16 %v317
        %v475 = vunpack.c.l.b16 %v318
        %v476 = vunpack.c.l.b16 %v319
        %v477 = vunpack.c.l.b16 %v320
        %v478 = vunpack.c.l.b16 %v321
        %v479 = vunpack.c.l.b16 %v322
        %v480 = vunpack.c.l.b16 %v323
        %v481 = vunpack.c.l.b16 %v324
        %v482 = vunpack.c.l.b16 %v325
        %v483 = vunpack.c.l.b16 %v326
        %v484 = vpack.c.b16 %v421, %v420
        %v485 = vpack.c.b16 %v423, %v422
        %v486 = vpack.c.b16 %v425, %v424
        %v487 = vpack.c.b16 %v427, %v426
        %v488 = vpack.c.b16 %v429, %v428
        %v489 = vpack.c.b16 %v431, %v430
        %v490 = vpack.c.b16 %v433, %v432
        %v491 = vpack.c.b16 %v435, %v434
        %v492 = vpack.c.b16 %v437, %v436
        %v493 = vpack.c.b16 %v439, %v438
        %v494 = vpack.c.b16 %v441, %v440
        %v495 = vpack.c.b16 %v443, %v442
        %v496 = vpack.c.b16 %v445, %v444
        %v497 = vpack.c.b16 %v447, %v446
        %v498 = vpack.c.b16 %v449, %v448
        %v499 = vpack.c.b16 %v451, %v450
        %v500 = vpack.c.b16 %v453, %v452
        %v501 = vpack.c.b16 %v455, %v454
        %v502 = vpack.c.b16 %v457, %v456
        %v503 = vpack.c.b16 %v459, %v458
        %v504 = vpack.c.b16 %v461, %v460
        %v505 = vpack.c.b16 %v463, %v462
        %v506 = vpack.c.b16 %v465, %v464
        %v507 = vpack.c.b16 %v467, %v466
        %v508 = vpack.c.b16 %v469, %v468
        %v509 = vpack.c.b16 %v471, %v470
        %v510 = vpack.c.b16 %v473, %v472
        %v511 = vpack.c.b16 %v475, %v474
        %v512 = vpack.c.b16 %v477, %v476
        %v513 = vpack.c.b16 %v479, %v478
        %v514 = vpack.c.b16 %v481, %v480
        %v515 = vpack.c.b16 %v483, %v482
        %548 = vmatprep.subr.bf16.mxu0 0
        %549 = vmatpush1.bf16.msra.mxu0 %v484
        %550 = vmatprep.subr.bf16.mxu0 0
        %551 = vmatpush1.bf16.msra.mxu0 %v485
        %552 = vmatprep.subr.bf16.mxu0 0
        %553 = vmatpush1.bf16.msra.mxu0 %v486
        %554 = vmatprep.subr.bf16.mxu0 0
        %555 = vmatpush1.bf16.msra.mxu0 %v487
        %556 = vmatprep.subr.bf16.mxu0 0
        %557 = vmatpush1.bf16.msra.mxu0 %v488
        %558 = vmatprep.subr.bf16.mxu0 0
        %559 = vmatpush1.bf16.msra.mxu0 %v489
        %560 = vmatprep.subr.bf16.mxu0 0
        %561 = vmatpush1.bf16.msra.mxu0 %v490
        %562 = vmatprep.subr.bf16.mxu0 0
        %563 = vmatpush1.bf16.msra.mxu0 %v491
        %564 = vmatprep.subr.bf16.mxu0 0
        %565 = vmatpush1.bf16.msra.mxu0 %v492
        %566 = vmatprep.subr.bf16.mxu0 0
        %567 = vmatpush1.bf16.msra.mxu0 %v493
        %568 = vmatprep.subr.bf16.mxu0 0
        %569 = vmatpush1.bf16.msra.mxu0 %v494
        %570 = vmatprep.subr.bf16.mxu0 0
        %571 = vmatpush1.bf16.msra.mxu0 %v495
        %572 = vmatprep.subr.bf16.mxu0 0
        %573 = vmatpush1.bf16.msra.mxu0 %v496
        %574 = vmatprep.subr.bf16.mxu0 0
        %575 = vmatpush1.bf16.msra.mxu0 %v497
        %576 = vmatprep.subr.bf16.mxu0 0
        %577 = vmatpush1.bf16.msra.mxu0 %v498
        %578 = vmatprep.subr.bf16.mxu0 0
        %579 = vmatpush1.bf16.msra.mxu0 %v499
        %580 = vmatprep.mubr.bf16.mxu0 %v349
        %581 = vmatmul.mubr.bf16.gmra.mrb[0].mxu0 %v342
        %v582 = vpop.f32.mrb[0].mxu0
        %v583 = vadd.f32 0.0, %v582
        %v584 = vpop.f32.mrb[0].mxu0
        %v585 = vpop.f32.mrb[0].mxu0
        %v586 = vpop.f32.mrb[0].mxu0
        %587 = vdwg.mxu0
        %588 = vmatprep.subr.bf16.mxu0 0
        %589 = vmatpush1.bf16.msra.mxu0 %v500
        %590 = vmatprep.subr.bf16.mxu0 0
        %591 = vmatpush1.bf16.msra.mxu0 %v501
        %592 = vmatprep.subr.bf16.mxu0 0
        %593 = vmatpush1.bf16.msra.mxu0 %v502
        %594 = vmatprep.subr.bf16.mxu0 0
        %595 = vmatpush1.bf16.msra.mxu0 %v503
        %596 = vmatprep.subr.bf16.mxu0 0
        %597 = vmatpush1.bf16.msra.mxu0 %v504
        %598 = vmatprep.subr.bf16.mxu0 0
        %599 = vmatpush1.bf16.msra.mxu0 %v505
        %600 = vmatprep.subr.bf16.mxu0 0
        %601 = vmatpush1.bf16.msra.mxu0 %v506
        %602 = vmatprep.subr.bf16.mxu0 0
        %603 = vmatpush1.bf16.msra.mxu0 %v507
        %604 = vmatprep.subr.bf16.mxu0 0
        %605 = vmatpush1.bf16.msra.mxu0 %v508
        %606 = vmatprep.subr.bf16.mxu0 0
        %607 = vmatpush1.bf16.msra.mxu0 %v509
        %608 = vmatprep.subr.bf16.mxu0 0
        %609 = vmatpush1.bf16.msra.mxu0 %v510
        %610 = vmatprep.subr.bf16.mxu0 0
        %611 = vmatpush1.bf16.msra.mxu0 %v511
        %612 = vmatprep.subr.bf16.mxu0 0
        %613 = vmatpush1.bf16.msra.mxu0 %v512
        %614 = vmatprep.subr.bf16.mxu0 0
        %615 = vmatpush1.bf16.msra.mxu0 %v513
        %616 = vmatprep.subr.bf16.mxu0 0
        %617 = vmatpush1.bf16.msra.mxu0 %v514
        %618 = vmatprep.subr.bf16.mxu0 0
        %619 = vmatpush1.bf16.msra.mxu0 %v515
        %620 = vmatprep.mubr.bf16.mxu0 %v351
        %621 = vmatmul.mubr.bf16.gmra.mrb[0].mxu0 %v350
        %v622 = vpop.f32.mrb[0].mxu0
        %v623 = vadd.f32 %v583, %v622
        %v624 = vpop.f32.mrb[0].mxu0
        %v625 = vpop.f32.mrb[0].mxu0
        %v626 = vpop.f32.mrb[0].mxu0
        %627 = vdwg.mxu0
        %v630 = vunpack.c.l.s4 1966171168
        %v631 = vunpack.c.0.s8 %v630
        %v632 = vlaneseq
        %v633 = vshrl.u32 %v632, 7
        %v634 = vsub.s32 %v631, %v633
        %v635 = vrot.slane %v193, %v634
        %v636 = vcombine.high %v635, %v635
        %v638 = vunpack.c.l.s4 1966171168
        %v639 = vunpack.c.0.s8 %v638
        %v640 = vlaneseq
        %v641 = vshrl.u32 %v640, 7
        %v642 = vsub.s32 %v639, %v641
        %v643 = vrot.slane %v635, %v642
        %v645 = vunpack.c.l.s4 1966171168
        %v646 = vunpack.c.0.s8 %v645
        %v647 = vlaneseq
        %v648 = vshrl.u32 %v647, 7
        %v649 = vsub.s32 %v646, %v648
        %v650 = vrot.slane %v636, %v649
        %v651 = vcombine.high %v643, %v643
        %v652 = vcombine.high %v650, %v650
        %v721 = vunpack.c.l.b16 %v194
        %v722 = vunpack.c.l.b16 %v195
        %v723 = vunpack.c.l.b16 %v196
        %v724 = vunpack.c.l.b16 %v197
        %v725 = vunpack.c.l.b16 %v198
        %v726 = vunpack.c.l.b16 %v199
        %v727 = vunpack.c.l.b16 %v200
        %v728 = vunpack.c.l.b16 %v201
        %v729 = vunpack.c.l.b16 %v202
        %v730 = vunpack.c.l.b16 %v203
        %v731 = vunpack.c.l.b16 %v204
        %v732 = vunpack.c.l.b16 %v205
        %v733 = vunpack.c.l.b16 %v206
        %v734 = vunpack.c.l.b16 %v207
        %v735 = vunpack.c.l.b16 %v208
        %v736 = vunpack.c.l.b16 %v209
        %v737 = vunpack.c.l.b16 %v210
        %v738 = vunpack.c.l.b16 %v211
        %v739 = vunpack.c.l.b16 %v212
        %v740 = vunpack.c.l.b16 %v213
        %v741 = vunpack.c.l.b16 %v214
        %v742 = vunpack.c.l.b16 %v215
        %v743 = vunpack.c.l.b16 %v216
        %v744 = vunpack.c.l.b16 %v217
        %v745 = vunpack.c.l.b16 %v218
        %v746 = vunpack.c.l.b16 %v219
        %v747 = vunpack.c.l.b16 %v220
        %v748 = vunpack.c.l.b16 %v221
        %v749 = vunpack.c.l.b16 %v222
        %v750 = vunpack.c.l.b16 %v223
        %v751 = vunpack.c.l.b16 %v224
        %v752 = vunpack.c.l.b16 %v225
        %v753 = vunpack.c.l.b16 %v226
        %v754 = vunpack.c.l.b16 %v227
        %v755 = vunpack.c.l.b16 %v228
        %v756 = vunpack.c.l.b16 %v229
        %v757 = vunpack.c.l.b16 %v230
        %v758 = vunpack.c.l.b16 %v231
        %v759 = vunpack.c.l.b16 %v232
        %v760 = vunpack.c.l.b16 %v233
        %v761 = vunpack.c.l.b16 %v234
        %v762 = vunpack.c.l.b16 %v235
        %v763 = vunpack.c.l.b16 %v236
        %v764 = vunpack.c.l.b16 %v237
        %v765 = vunpack.c.l.b16 %v238
        %v766 = vunpack.c.l.b16 %v239
        %v767 = vunpack.c.l.b16 %v240
        %v768 = vunpack.c.l.b16 %v241
        %v769 = vunpack.c.l.b16 %v242
        %v770 = vunpack.c.l.b16 %v243
        %v771 = vunpack.c.l.b16 %v244
        %v772 = vunpack.c.l.b16 %v245
        %v773 = vunpack.c.l.b16 %v246
        %v774 = vunpack.c.l.b16 %v247
        %v775 = vunpack.c.l.b16 %v248
        %v776 = vunpack.c.l.b16 %v249
        %v777 = vunpack.c.l.b16 %v250
        %v778 = vunpack.c.l.b16 %v251
        %v779 = vunpack.c.l.b16 %v252
        %v780 = vunpack.c.l.b16 %v253
        %v781 = vunpack.c.l.b16 %v254
        %v782 = vunpack.c.l.b16 %v255
        %v783 = vunpack.c.l.b16 %v256
        %v784 = vunpack.c.l.b16 %v257
        %v785 = vpack.c.b16 %v722, %v721
        %v786 = vpack.c.b16 %v724, %v723
        %v787 = vpack.c.b16 %v726, %v725
        %v788 = vpack.c.b16 %v728, %v727
        %v789 = vpack.c.b16 %v730, %v729
        %v790 = vpack.c.b16 %v732, %v731
        %v791 = vpack.c.b16 %v734, %v733
        %v792 = vpack.c.b16 %v736, %v735
        %v793 = vpack.c.b16 %v738, %v737
        %v794 = vpack.c.b16 %v740, %v739
        %v795 = vpack.c.b16 %v742, %v741
        %v796 = vpack.c.b16 %v744, %v743
        %v797 = vpack.c.b16 %v746, %v745
        %v798 = vpack.c.b16 %v748, %v747
        %v799 = vpack.c.b16 %v750, %v749
        %v800 = vpack.c.b16 %v752, %v751
        %v801 = vpack.c.b16 %v754, %v753
        %v802 = vpack.c.b16 %v756, %v755
        %v803 = vpack.c.b16 %v758, %v757
        %v804 = vpack.c.b16 %v760, %v759
        %v805 = vpack.c.b16 %v762, %v761
        %v806 = vpack.c.b16 %v764, %v763
        %v807 = vpack.c.b16 %v766, %v765
        %v808 = vpack.c.b16 %v768, %v767
        %v809 = vpack.c.b16 %v770, %v769
        %v810 = vpack.c.b16 %v772, %v771
        %v811 = vpack.c.b16 %v774, %v773
        %v812 = vpack.c.b16 %v776, %v775
        %v813 = vpack.c.b16 %v778, %v777
        %v814 = vpack.c.b16 %v780, %v779
        %v815 = vpack.c.b16 %v782, %v781
        %v816 = vpack.c.b16 %v784, %v783
        %849 = vmatprep.subr.bf16.mxu0 0
        %850 = vmatpush1.bf16.msra.mxu0 %v785
        %851 = vmatprep.subr.bf16.mxu0 0
        %852 = vmatpush1.bf16.msra.mxu0 %v786
        %853 = vmatprep.subr.bf16.mxu0 0
        %854 = vmatpush1.bf16.msra.mxu0 %v787
        %855 = vmatprep.subr.bf16.mxu0 0
        %856 = vmatpush1.bf16.msra.mxu0 %v788
        %857 = vmatprep.subr.bf16.mxu0 0
        %858 = vmatpush1.bf16.msra.mxu0 %v789
        %859 = vmatprep.subr.bf16.mxu0 0
        %860 = vmatpush1.bf16.msra.mxu0 %v790
        %861 = vmatprep.subr.bf16.mxu0 0
        %862 = vmatpush1.bf16.msra.mxu0 %v791
        %863 = vmatprep.subr.bf16.mxu0 0
        %864 = vmatpush1.bf16.msra.mxu0 %v792
        %865 = vmatprep.subr.bf16.mxu0 0
        %866 = vmatpush1.bf16.msra.mxu0 %v793
        %867 = vmatprep.subr.bf16.mxu0 0
        %868 = vmatpush1.bf16.msra.mxu0 %v794
        %869 = vmatprep.subr.bf16.mxu0 0
        %870 = vmatpush1.bf16.msra.mxu0 %v795
        %871 = vmatprep.subr.bf16.mxu0 0
        %872 = vmatpush1.bf16.msra.mxu0 %v796
        %873 = vmatprep.subr.bf16.mxu0 0
        %874 = vmatpush1.bf16.msra.mxu0 %v797
        %875 = vmatprep.subr.bf16.mxu0 0
        %876 = vmatpush1.bf16.msra.mxu0 %v798
        %877 = vmatprep.subr.bf16.mxu0 0
        %878 = vmatpush1.bf16.msra.mxu0 %v799
        %879 = vmatprep.subr.bf16.mxu0 0
        %880 = vmatpush1.bf16.msra.mxu0 %v800
        %881 = vmatprep.mubr.bf16.mxu0 %v650
        %882 = vmatmul.mubr.bf16.gmra.mrb[0].mxu0 %v643
        %v883 = vpop.f32.mrb[0].mxu0
        %v884 = vadd.f32 %v623, %v883
        %v885 = vpop.f32.mrb[0].mxu0
        %v886 = vpop.f32.mrb[0].mxu0
        %v887 = vpop.f32.mrb[0].mxu0
        %888 = vdwg.mxu0
        %889 = vmatprep.subr.bf16.mxu0 0
        %890 = vmatpush1.bf16.msra.mxu0 %v801
        %891 = vmatprep.subr.bf16.mxu0 0
        %892 = vmatpush1.bf16.msra.mxu0 %v802
        %893 = vmatprep.subr.bf16.mxu0 0
        %894 = vmatpush1.bf16.msra.mxu0 %v803
        %895 = vmatprep.subr.bf16.mxu0 0
        %896 = vmatpush1.bf16.msra.mxu0 %v804
        %897 = vmatprep.subr.bf16.mxu0 0
        %898 = vmatpush1.bf16.msra.mxu0 %v805
        %899 = vmatprep.subr.bf16.mxu0 0
        %900 = vmatpush1.bf16.msra.mxu0 %v806
        %901 = vmatprep.subr.bf16.mxu0 0
        %902 = vmatpush1.bf16.msra.mxu0 %v807
        %903 = vmatprep.subr.bf16.mxu0 0
        %904 = vmatpush1.bf16.msra.mxu0 %v808
        %905 = vmatprep.subr.bf16.mxu0 0
        %906 = vmatpush1.bf16.msra.mxu0 %v809
        %907 = vmatprep.subr.bf16.mxu0 0
        %908 = vmatpush1.bf16.msra.mxu0 %v810
        %909 = vmatprep.subr.bf16.mxu0 0
        %910 = vmatpush1.bf16.msra.mxu0 %v811
        %911 = vmatprep.subr.bf16.mxu0 0
        %912 = vmatpush1.bf16.msra.mxu0 %v812
        %913 = vmatprep.subr.bf16.mxu0 0
        %914 = vmatpush1.bf16.msra.mxu0 %v813
        %915 = vmatprep.subr.bf16.mxu0 0
        %916 = vmatpush1.bf16.msra.mxu0 %v814
        %917 = vmatprep.subr.bf16.mxu0 0
        %918 = vmatpush1.bf16.msra.mxu0 %v815
        %919 = vmatprep.subr.bf16.mxu0 0
        %920 = vmatpush1.bf16.msra.mxu0 %v816
        %921 = vmatprep.mubr.bf16.mxu0 %v652
        %922 = vmatmul.mubr.bf16.gmra.mrb[0].mxu0 %v651
        %v923 = vpop.f32.mrb[0].mxu0
        %v924 = vadd.f32 %v884, %v923
        %v925 = vpop.f32.mrb[0].mxu0
        %v926 = vpop.f32.mrb[0].mxu0
        %v927 = vpop.f32.mrb[0].mxu0
        %928 = vdwg.mxu0
        %v929 = vsub.f32 0.0, %v924
        %v930 = vmul.f32 %v929, 1.442695
        %v931 = vpow.pop %v930
        %v932 = vadd.f32 %v931, 1.0
        %v933 = vrcp.pop %v932
        %v934 = vmul.f32 1.0, %v933
        %935 = vst [vmem:[%s189] sm:$0x1] %v934
        %s936 = sand.u32 %s89, 1
        %s937 = scalar_lea.sflag [#allocation4], %s936
        %s938 = sand.u32 %s89, 1
        %s939 = scalar_lea.vmem [#allocation7], %s938
        // Predicated region
        $region37: #{dcgan_discriminator.9} parent=27 // pred_check
          %p940 = pneg %p99
        $region38: #{dcgan_discriminator.9} parent=27 // pred_check_branch
          %942 = sbr.rel (%p940) target = $region40
        $region39: #{dcgan_discriminator.9} parent=27 // pred_region
          %s944 = ssub.s32 16, 16
          %945 = vsyncadd %s937, %s944
          %s946 = sadd.s32 %s25, %s24
          %s947 = smul.addr %s946, 16
          %s948 = scalar_lea.hbm %s2, %s947
          %s950 = sshll.u32 %s939, 4
          %s951 = int_to_ptr.vmem [resolvable:$true] %s950
          %953 = dma.vmem_to_hbm [thread:$0]  %s951, 16, %s948, %s937
        $region40: #{dcgan_discriminator.9} parent=27 // pred_fallthru
          _
      $region28: #{dcgan_discriminator.9} parent=5 // pred_fallthru
        _
      %p954 = scmp.le.s32.totalorder 2, %s15
      // Predicated region
      $region41: #{dcgan_discriminator.9} parent=5 // pred_check
        %p955 = pneg %p954
      $region42: #{dcgan_discriminator.9} parent=5 // pred_check_branch
        %957 = sbr.rel (%p955) target = $region44
      $region43: #{dcgan_discriminator.9} parent=5 // pred_region
        %s958 = ssub.s32 %s15, 2
        // Predicated region
        $region45: #{dcgan_discriminator.9} parent=43 // pred_check
          %p959 = pneg %p105
        $region46: #{dcgan_discriminator.9} parent=43 // pred_check_branch
          %961 = sbr.rel (%p959) target = $region48
        $region47: #{dcgan_discriminator.9} parent=43 // pred_region
          %s962 = sand.u32 %s90, 1
          %s963 = scalar_lea.sflag [#allocation4], %s962
          %s964 = sand.u32 %s90, 1
          %s965 = scalar_lea.vmem [#allocation7], %s964
          %966 = dma.done %s963, 16
        $region48: #{dcgan_discriminator.9} parent=43 // pred_fallthru
          _
      $region44: #{dcgan_discriminator.9} parent=5 // pred_fallthru
        _
    $region6: #{dcgan_discriminator.9} parent=1 // loop_footer
      %s19 = sadd.s32 1, %s15
    $region7: #{dcgan_discriminator.9} parent=1 // loop_footer_branch
      %14 = sbr.rel target = $region3
    $region8: #{dcgan_discriminator.9} parent=1 // loop_exit
      _
    %967 = vsyncpa [#allocation3], 1
    %s968 = scalar_lea.sflag [#allocation3], 1
    %969 = vsyncpa %s968, 1
    %970 = vsyncpa [#allocation6], 1
    %971 = vsyncpa [#allocation4], 1
    %s972 = scalar_lea.sflag [#allocation4], 1
    %973 = vsyncpa %s972, 1

</llo_original>
